<compile_context>
chip_gen: v5e
topology: v5e:2x2
jax: 0.10.0
libtpu: 0.0.40
codegen_flags: <defaults>
</compile_context>

<pallas_src>
import jax
import jax.numpy as jnp
from jax.experimental import pallas as pl
from jax.experimental.pallas import tpu as pltpu

# ----- module config (PyTorch defaults of FlexibleNeRFModel) -----
NUM_LAYERS = 4
HIDDEN = 128
SKIP_EVERY = 4
NUM_ENC_XYZ = 6
NUM_ENC_DIR = 4
USE_VIEWDIRS = True          # only the default use_viewdirs=True path is implemented

DIM_XYZ = 3 + 2 * 3 * NUM_ENC_XYZ          # 39
DIM_DIR = 3 + 2 * 3 * NUM_ENC_DIR          # 27
D_IN = DIM_XYZ + DIM_DIR                   # 66
D_OUT = 4


# ------------------------- parameter init -------------------------
def init_params(key):
    """Deterministic init with the exact shapes of FlexibleNeRFModel.__init__.

    Returns a flat list [w0, b0, w1, b1, ...] in the order:
      layer1, layers_xyz[0..NUM_LAYERS-2], layers_dir[0], fc_alpha, fc_rgb, fc_feat
    Weights are (in_features, out_features); biases are (1, out_features).
    NOTE: mirrors PyTorch exactly, including the __init__ skip condition
    `i != num_layers - 1` (vs. the forward's `i != len(layers_xyz) - 1`);
    both are dead at the default config.
    """
    def linear(k, fan_in, fan_out):
        kw, kb = jax.random.split(k)
        bound = 1.0 / (fan_in ** 0.5)
        w = jax.random.uniform(kw, (fan_in, fan_out), jnp.float32, -bound, bound)
        b = jax.random.uniform(kb, (1, fan_out), jnp.float32, -bound, bound)
        return w, b

    keys = iter(jax.random.split(key, 32))
    layers = [linear(next(keys), DIM_XYZ, HIDDEN)]                      # layer1
    for i in range(NUM_LAYERS - 1):                                     # layers_xyz
        if i % SKIP_EVERY == 0 and i > 0 and i != NUM_LAYERS - 1:
            layers.append(linear(next(keys), DIM_XYZ + HIDDEN, HIDDEN))
        else:
            layers.append(linear(next(keys), HIDDEN, HIDDEN))
    layers.append(linear(next(keys), DIM_DIR + HIDDEN, HIDDEN // 2))    # layers_dir[0]
    layers.append(linear(next(keys), HIDDEN, 1))                        # fc_alpha
    layers.append(linear(next(keys), HIDDEN // 2, 3))                   # fc_rgb
    layers.append(linear(next(keys), HIDDEN, HIDDEN))                   # fc_feat

    flat = []
    for w, b in layers:
        flat.extend([w, b])
    return flat


# -------------------- kernel-side parameter packing --------------------
def pack_params(params):
    """Cast weights to bf16, zero-pad input-consuming weights to 66 rows,
    fuse/pad the heads.

    Kernel param order (all 2-D):
      w1_pad (D_IN, H), b1 (1, H),
      [w_xyz_i ((H, H) or (H+D_IN, H)), b_xyz_i] * (NUM_LAYERS-1),
      w_fa (H, H+4), b_fa,                     # fc_feat | 0 0 0 | fc_alpha
      w_dir (H+D_IN, H/2), b_dir,              # rows H..H+38 = 0 (xyz part unused)
      w_rgb4 (H/2, 4), b_rgb4                  # fc_rgb padded; lane 3 zero
    Biases stay f32 (added on the f32 accumulator).
    """
    n_xyz = NUM_LAYERS - 1
    j = 0

    def nxt():
        nonlocal j
        w, b = params[j], params[j + 1]
        j += 2
        return w, b

    w1, b1 = nxt()
    xyz_layers = [nxt() for _ in range(n_xyz)]
    w_dir, b_dir = nxt()
    w_alpha, b_alpha = nxt()
    w_rgb, b_rgb = nxt()
    w_feat, b_feat = nxt()

    bf = jnp.bfloat16

    # layer1 padded to the full 66-wide input (view columns multiply zeros)
    w1_pad = jnp.zeros((D_IN, HIDDEN), jnp.float32).at[:DIM_XYZ].set(w1)
    kp = [w1_pad.astype(bf), b1]

    for w, b in xyz_layers:
        if w.shape[0] == HIDDEN + DIM_XYZ:
            # skip layer: input is (h || x); place xyz rows at 128..166, rest 0
            w_pad = jnp.zeros((HIDDEN + D_IN, HIDDEN), jnp.float32)
            w_pad = w_pad.at[:HIDDEN].set(w[:HIDDEN])
            w_pad = w_pad.at[HIDDEN:HIDDEN + DIM_XYZ].set(w[HIDDEN:])
            kp += [w_pad.astype(bf), b]
        else:
            kp += [w.astype(bf), b]

    # fused fc_feat + fc_alpha head: cols [0:128]=feat, [128:131]=0, [131]=alpha
    w_fa = jnp.zeros((HIDDEN, HIDDEN + D_OUT), jnp.float32)
    w_fa = w_fa.at[:, :HIDDEN].set(w_feat)
    w_fa = w_fa.at[:, HIDDEN + D_OUT - 1].set(w_alpha[:, 0])
    b_fa = jnp.zeros((1, HIDDEN + D_OUT), jnp.float32)
    b_fa = b_fa.at[:, :HIDDEN].set(b_feat)
    b_fa = b_fa.at[:, HIDDEN + D_OUT - 1].set(b_alpha[:, 0])
    kp += [w_fa.astype(bf), b_fa]

    # layers_dir[0]: one weight for the lane-aligned (feat || x) concat
    #   rows 0..127   -> feat
    #   rows 128..166 -> 0   (xyz part of x, unused by the dir layer)
    #   rows 167..193 -> view part of x
    w_d = jnp.zeros((HIDDEN + D_IN, HIDDEN // 2), jnp.float32)
    w_d = w_d.at[:HIDDEN].set(w_dir[:HIDDEN])
    w_d = w_d.at[HIDDEN + DIM_XYZ:].set(w_dir[HIDDEN:])
    kp += [w_d.astype(bf), b_dir]

    # fc_rgb padded to 4 output lanes (lane 3 = 0; alpha lands there at the end)
    w_r4 = jnp.zeros((HIDDEN // 2, D_OUT), jnp.float32).at[:, :3].set(w_rgb)
    b_r4 = jnp.zeros((1, D_OUT), jnp.float32).at[:, :3].set(b_rgb)
    kp += [w_r4.astype(bf), b_r4]
    return kp


# --------------------------- the kernel ---------------------------
def nerf_kernel(x_ref, *refs):
    out_ref = refs[-1]
    p = refs[:-1]

    x_bf = x_ref[...].astype(jnp.bfloat16)        # (tm, 66)

    # layer1 (NOTE: no ReLU after layer1, exactly as in the PyTorch forward)
    h = jnp.dot(x_bf, p[0][...], preferred_element_type=jnp.float32) + p[1][...]

    idx = 2
    for _ in range(NUM_LAYERS - 1):
        w_ref = p[idx]
        b = p[idx + 1][...]
        idx += 2
        h_bf = h.astype(jnp.bfloat16)
        if w_ref.shape[0] == HIDDEN + D_IN:
            # skip layer: concat splits at lane 128 (vreg boundary) -> free
            lhs = jnp.concatenate([h_bf, x_bf], axis=-1)
        else:
            lhs = h_bf
        acc = jnp.dot(lhs, w_ref[...], preferred_element_type=jnp.float32)
        h = jnp.maximum(acc + b, 0.0)

    h_bf = h.astype(jnp.bfloat16)

    # fused fc_feat / fc_alpha head (one MXU pass for both)
    y = jnp.dot(h_bf, p[idx][...], preferred_element_type=jnp.float32) + p[idx + 1][...]
    idx += 2
    feat = jnp.maximum(y[:, :HIDDEN], 0.0).astype(jnp.bfloat16)
    alpha4 = y[:, HIDDEN:HIDDEN + D_OUT]           # [0, 0, 0, alpha]

    # layers_dir[0]: single dot over the lane-aligned (feat || x) concat, K=194
    hd_in = jnp.concatenate([feat, x_bf], axis=-1)
    hd = jnp.dot(hd_in, p[idx][...], preferred_element_type=jnp.float32) + p[idx + 1][...]
    idx += 2
    hd_bf = jnp.maximum(hd, 0.0).astype(jnp.bfloat16)

    # fc_rgb (padded to 4 lanes) + alpha already in lane 3 -> one full-block store
    out = jnp.dot(hd_bf, p[idx][...], preferred_element_type=jnp.float32) + p[idx + 1][...] + alpha4
    out_ref[...] = out.astype(out_ref.dtype)


# --------------------------- wrapper ---------------------------
def flexible_nerf_forward(x, params, tm=4096):
    """x: (N, 66) float32.  No wrapper-side slicing / casting / padding:
    the last grid tile is ragged (OOB rows only affect outputs past N)."""
    N = x.shape[0]
    # shrink the tile for small inputs, keep it a multiple of 128
    tm = max(128, min(tm, ((N + 127) // 128) * 128))
    n_tiles = pl.cdiv(N, tm)

    kp = pack_params(params)

    in_specs = [pl.BlockSpec((tm, D_IN), lambda i: (i, 0))]
    # every weight / bias is fully resident (block == full array shape)
    for p in kp:
        in_specs.append(pl.BlockSpec(p.shape, lambda i: (0, 0)))
    out_spec = pl.BlockSpec((tm, D_OUT), lambda i: (i, 0))

    out = pl.pallas_call(
        nerf_kernel,
        out_shape=jax.ShapeDtypeStruct((N, D_OUT), jnp.float32),
        grid_spec=pltpu.PrefetchScalarGridSpec(
            num_scalar_prefetch=0,
            grid=(n_tiles,),
            in_specs=in_specs,
            out_specs=out_spec,
        ),
        compiler_params=pltpu.CompilerParams(
            dimension_semantics=("parallel",),
            vmem_limit_bytes=48 * 1024 * 1024),
    )(x, *kp)
    return out


# ------------------- pure-JAX reference (for checking) -------------------
def reference_forward(x, params, operand_dtype=jnp.float32):
    """Mirrors FlexibleNeRFModel.forward. operand_dtype=bfloat16 mimics the
    kernel's bf16-operand / f32-accumulate matmuls for a tight comparison."""
    def c(a):
        return a.astype(operand_dtype).astype(jnp.float32)

    def wb(j):
        return params[2 * j], params[2 * j + 1]

    xyz = c(x[..., :DIM_XYZ])
    view = c(x[..., DIM_XYZ:])

    idx = 0
    w, b = wb(idx); idx += 1
    h = xyz @ c(w) + b
    n_xyz = NUM_LAYERS - 1
    for i in range(n_xyz):
        if i % SKIP_EVERY == 0 and i > 0 and i != n_xyz - 1:
            h = jnp.concatenate([h, xyz], axis=-1)
        w, b = wb(idx); idx += 1
        h = jax.nn.relu(c(h) @ c(w) + b)
    w_dir, b_dir = wb(idx); idx += 1
    w_alpha, b_alpha = wb(idx); idx += 1
    w_rgb, b_rgb = wb(idx); idx += 1
    w_feat, b_feat = wb(idx); idx += 1
    feat = jax.nn.relu(c(h) @ c(w_feat) + b_feat)
    alpha = c(h) @ c(w_alpha) + b_alpha
    hd = jnp.concatenate([c(feat), view], axis=-1)
    hd = jax.nn.relu(hd @ c(w_dir) + b_dir)
    rgb = c(hd) @ c(w_rgb) + b_rgb
    return jnp.concatenate([rgb, alpha], axis=-1)


if __name__ == "__main__":
    key = jax.random.PRNGKey(0)
    k_param, k_x = jax.random.split(key)

    params = init_params(k_param)
    N = 1000  # deliberately not a multiple of the tile: exercises the ragged last block
    x = jax.random.normal(k_x, (N, D_IN), dtype=jnp.float32)

    # default (large) tile path: N=1000 -> single ragged 1024-row tile
    out = jax.block_until_ready(flexible_nerf_forward(x, params))
    assert out.shape == (N, D_OUT)

    # small tile: multiple tiles + ragged tail
    out_small = jax.block_until_ready(flexible_nerf_forward(x, params, tm=256))
    assert out_small.shape == (N, D_OUT)

    # tight check vs a reference using the same bf16-rounded operands
    ref_bf16 = reference_forward(x, params, operand_dtype=jnp.bfloat16)
    assert jnp.allclose(out, ref_bf16, atol=5e-3, rtol=5e-3), "mismatch vs bf16 reference"
    assert jnp.allclose(out_small, ref_bf16, atol=5e-3, rtol=5e-3), "mismatch (small tile)"

    # loose check vs the full-f32 module forward (bf16 operand rounding only)
    ref_f32 = reference_forward(x, params)
    assert jnp.allclose(out, ref_f32, atol=5e-2, rtol=5e-2), "mismatch vs f32 reference"

    print("KERNEL_OK")
</pallas_src>

<mosaic_0001>
module attributes {stable_mosaic.version = 11 : i64} {
  func.func @nerf_kernel(%arg0: i32, %arg1: memref<1024x66xf32, #tpu.memory_space<vmem>>, %arg2: memref<66x128xbf16, #tpu.memory_space<vmem>>, %arg3: memref<1x128xf32, #tpu.memory_space<vmem>>, %arg4: memref<128x128xbf16, #tpu.memory_space<vmem>>, %arg5: memref<1x128xf32, #tpu.memory_space<vmem>>, %arg6: memref<128x128xbf16, #tpu.memory_space<vmem>>, %arg7: memref<1x128xf32, #tpu.memory_space<vmem>>, %arg8: memref<128x128xbf16, #tpu.memory_space<vmem>>, %arg9: memref<1x128xf32, #tpu.memory_space<vmem>>, %arg10: memref<128x132xbf16, #tpu.memory_space<vmem>>, %arg11: memref<1x132xf32, #tpu.memory_space<vmem>>, %arg12: memref<194x64xbf16, #tpu.memory_space<vmem>>, %arg13: memref<1x64xf32, #tpu.memory_space<vmem>>, %arg14: memref<64x4xbf16, #tpu.memory_space<vmem>>, %arg15: memref<1x4xf32, #tpu.memory_space<vmem>>, %arg16: memref<1024x4xf32, #tpu.memory_space<vmem>>) attributes {dimension_semantics = [#tpu.dimension_semantics<parallel>], iteration_bounds = array<i64: 1>, scalar_prefetch = 0 : i64, scratch_operands = 0 : i64, tpu.core_type = #tpu.core_type<tc>, window_params = [{transform_indices = @transform_0, window_bounds = array<i64: 1024, 66>}, {pipeline_mode = #tpu.pipeline_mode<synchronous>, transform_indices = @transform_1, window_bounds = array<i64: 66, 128>}, {pipeline_mode = #tpu.pipeline_mode<synchronous>, transform_indices = @transform_2, window_bounds = array<i64: 1, 128>}, {pipeline_mode = #tpu.pipeline_mode<synchronous>, transform_indices = @transform_3, window_bounds = array<i64: 128, 128>}, {pipeline_mode = #tpu.pipeline_mode<synchronous>, transform_indices = @transform_4, window_bounds = array<i64: 1, 128>}, {pipeline_mode = #tpu.pipeline_mode<synchronous>, transform_indices = @transform_5, window_bounds = array<i64: 128, 128>}, {pipeline_mode = #tpu.pipeline_mode<synchronous>, transform_indices = @transform_6, window_bounds = array<i64: 1, 128>}, {pipeline_mode = #tpu.pipeline_mode<synchronous>, transform_indices = @transform_7, window_bounds = array<i64: 128, 128>}, {pipeline_mode = #tpu.pipeline_mode<synchronous>, transform_indices = @transform_8, window_bounds = array<i64: 1, 128>}, {pipeline_mode = #tpu.pipeline_mode<synchronous>, transform_indices = @transform_9, window_bounds = array<i64: 128, 132>}, {pipeline_mode = #tpu.pipeline_mode<synchronous>, transform_indices = @transform_10, window_bounds = array<i64: 1, 132>}, {pipeline_mode = #tpu.pipeline_mode<synchronous>, transform_indices = @transform_11, window_bounds = array<i64: 194, 64>}, {pipeline_mode = #tpu.pipeline_mode<synchronous>, transform_indices = @transform_12, window_bounds = array<i64: 1, 64>}, {pipeline_mode = #tpu.pipeline_mode<synchronous>, transform_indices = @transform_13, window_bounds = array<i64: 64, 4>}, {pipeline_mode = #tpu.pipeline_mode<synchronous>, transform_indices = @transform_14, window_bounds = array<i64: 1, 4>}, {transform_indices = @transform_15, window_bounds = array<i64: 1024, 4>}]} {
    %c0 = arith.constant 0 : index
    %c0_0 = arith.constant 0 : index
    %0 = vector.load %arg1[%c0, %c0_0] : memref<1024x66xf32, #tpu.memory_space<vmem>>, vector<1024x66xf32>
    %1 = arith.truncf %0 : vector<1024x66xf32> to vector<1024x66xbf16>
    %c0_1 = arith.constant 0 : index
    %c0_2 = arith.constant 0 : index
    %2 = vector.load %arg2[%c0_1, %c0_2] : memref<66x128xbf16, #tpu.memory_space<vmem>>, vector<66x128xbf16>
    %cst = arith.constant dense<0.000000e+00> : vector<1024x128xf32>
    %3 = tpu.matmul %1, %2, %cst {dimension_numbers = #tpu.dot_dimension_numbers<[1], [0], [0], [1], [0, 0, 1, 1], [], []>} : vector<1024x66xbf16>, vector<66x128xbf16>, vector<1024x128xf32> -> vector<1024x128xf32>
    %c0_3 = arith.constant 0 : index
    %c0_4 = arith.constant 0 : index
    %4 = vector.load %arg3[%c0_3, %c0_4] : memref<1x128xf32, #tpu.memory_space<vmem>>, vector<1x128xf32>
    %5 = vector.broadcast %4 : vector<1x128xf32> to vector<1024x128xf32>
    %6 = arith.addf %3, %5 : vector<1024x128xf32>
    %c0_5 = arith.constant 0 : index
    %c0_6 = arith.constant 0 : index
    %7 = vector.load %arg5[%c0_5, %c0_6] : memref<1x128xf32, #tpu.memory_space<vmem>>, vector<1x128xf32>
    %8 = arith.truncf %6 : vector<1024x128xf32> to vector<1024x128xbf16>
    %c0_7 = arith.constant 0 : index
    %c0_8 = arith.constant 0 : index
    %9 = vector.load %arg4[%c0_7, %c0_8] : memref<128x128xbf16, #tpu.memory_space<vmem>>, vector<128x128xbf16>
    %cst_9 = arith.constant dense<0.000000e+00> : vector<1024x128xf32>
    %10 = tpu.matmul %8, %9, %cst_9 {dimension_numbers = #tpu.dot_dimension_numbers<[1], [0], [0], [1], [0, 0, 1, 1], [], []>} : vector<1024x128xbf16>, vector<128x128xbf16>, vector<1024x128xf32> -> vector<1024x128xf32>
    %11 = vector.broadcast %7 : vector<1x128xf32> to vector<1024x128xf32>
    %12 = arith.addf %10, %11 : vector<1024x128xf32>
    %cst_10 = arith.constant 0.000000e+00 : f32
    %13 = vector.broadcast %cst_10 : f32 to vector<1024x128xf32>
    %14 = arith.maximumf %12, %13 : vector<1024x128xf32>
    %c0_11 = arith.constant 0 : index
    %c0_12 = arith.constant 0 : index
    %15 = vector.load %arg7[%c0_11, %c0_12] : memref<1x128xf32, #tpu.memory_space<vmem>>, vector<1x128xf32>
    %16 = arith.truncf %14 : vector<1024x128xf32> to vector<1024x128xbf16>
    %c0_13 = arith.constant 0 : index
    %c0_14 = arith.constant 0 : index
    %17 = vector.load %arg6[%c0_13, %c0_14] : memref<128x128xbf16, #tpu.memory_space<vmem>>, vector<128x128xbf16>
    %cst_15 = arith.constant dense<0.000000e+00> : vector<1024x128xf32>
    %18 = tpu.matmul %16, %17, %cst_15 {dimension_numbers = #tpu.dot_dimension_numbers<[1], [0], [0], [1], [0, 0, 1, 1], [], []>} : vector<1024x128xbf16>, vector<128x128xbf16>, vector<1024x128xf32> -> vector<1024x128xf32>
    %19 = vector.broadcast %15 : vector<1x128xf32> to vector<1024x128xf32>
    %20 = arith.addf %18, %19 : vector<1024x128xf32>
    %cst_16 = arith.constant 0.000000e+00 : f32
    %21 = vector.broadcast %cst_16 : f32 to vector<1024x128xf32>
    %22 = arith.maximumf %20, %21 : vector<1024x128xf32>
    %c0_17 = arith.constant 0 : index
    %c0_18 = arith.constant 0 : index
    %23 = vector.load %arg9[%c0_17, %c0_18] : memref<1x128xf32, #tpu.memory_space<vmem>>, vector<1x128xf32>
    %24 = arith.truncf %22 : vector<1024x128xf32> to vector<1024x128xbf16>
    %c0_19 = arith.constant 0 : index
    %c0_20 = arith.constant 0 : index
    %25 = vector.load %arg8[%c0_19, %c0_20] : memref<128x128xbf16, #tpu.memory_space<vmem>>, vector<128x128xbf16>
    %cst_21 = arith.constant dense<0.000000e+00> : vector<1024x128xf32>
    %26 = tpu.matmul %24, %25, %cst_21 {dimension_numbers = #tpu.dot_dimension_numbers<[1], [0], [0], [1], [0, 0, 1, 1], [], []>} : vector<1024x128xbf16>, vector<128x128xbf16>, vector<1024x128xf32> -> vector<1024x128xf32>
    %27 = vector.broadcast %23 : vector<1x128xf32> to vector<1024x128xf32>
    %28 = arith.addf %26, %27 : vector<1024x128xf32>
    %cst_22 = arith.constant 0.000000e+00 : f32
    %29 = vector.broadcast %cst_22 : f32 to vector<1024x128xf32>
    %30 = arith.maximumf %28, %29 : vector<1024x128xf32>
    %31 = arith.truncf %30 : vector<1024x128xf32> to vector<1024x128xbf16>
    %c0_23 = arith.constant 0 : index
    %c0_24 = arith.constant 0 : index
    %32 = vector.load %arg10[%c0_23, %c0_24] : memref<128x132xbf16, #tpu.memory_space<vmem>>, vector<128x132xbf16>
    %cst_25 = arith.constant dense<0.000000e+00> : vector<1024x132xf32>
    %33 = tpu.matmul %31, %32, %cst_25 {dimension_numbers = #tpu.dot_dimension_numbers<[1], [0], [0], [1], [0, 0, 1, 1], [], []>} : vector<1024x128xbf16>, vector<128x132xbf16>, vector<1024x132xf32> -> vector<1024x132xf32>
    %c0_26 = arith.constant 0 : index
    %c0_27 = arith.constant 0 : index
    %34 = vector.load %arg11[%c0_26, %c0_27] : memref<1x132xf32, #tpu.memory_space<vmem>>, vector<1x132xf32>
    %35 = vector.broadcast %34 : vector<1x132xf32> to vector<1024x132xf32>
    %36 = arith.addf %33, %35 : vector<1024x132xf32>
    %37 = vector.extract_strided_slice %36 {offsets = [0, 0], sizes = [1024, 128], strides = [1, 1]} : vector<1024x132xf32> to vector<1024x128xf32>
    %cst_28 = arith.constant 0.000000e+00 : f32
    %38 = vector.broadcast %cst_28 : f32 to vector<1024x128xf32>
    %39 = arith.maximumf %37, %38 : vector<1024x128xf32>
    %40 = arith.truncf %39 : vector<1024x128xf32> to vector<1024x128xbf16>
    %41 = vector.extract_strided_slice %36 {offsets = [0, 128], sizes = [1024, 4], strides = [1, 1]} : vector<1024x132xf32> to vector<1024x4xf32>
    %42 = tpu.concatenate %40, %1 in 1 : vector<1024x128xbf16>, vector<1024x66xbf16> -> vector<1024x194xbf16>
    %c0_29 = arith.constant 0 : index
    %c0_30 = arith.constant 0 : index
    %43 = vector.load %arg12[%c0_29, %c0_30] : memref<194x64xbf16, #tpu.memory_space<vmem>>, vector<194x64xbf16>
    %cst_31 = arith.constant dense<0.000000e+00> : vector<1024x64xf32>
    %44 = tpu.matmul %42, %43, %cst_31 {dimension_numbers = #tpu.dot_dimension_numbers<[1], [0], [0], [1], [0, 0, 1, 1], [], []>} : vector<1024x194xbf16>, vector<194x64xbf16>, vector<1024x64xf32> -> vector<1024x64xf32>
    %c0_32 = arith.constant 0 : index
    %c0_33 = arith.constant 0 : index
    %45 = vector.load %arg13[%c0_32, %c0_33] : memref<1x64xf32, #tpu.memory_space<vmem>>, vector<1x64xf32>
    %46 = vector.broadcast %45 : vector<1x64xf32> to vector<1024x64xf32>
    %47 = arith.addf %44, %46 : vector<1024x64xf32>
    %cst_34 = arith.constant 0.000000e+00 : f32
    %48 = vector.broadcast %cst_34 : f32 to vector<1024x64xf32>
    %49 = arith.maximumf %47, %48 : vector<1024x64xf32>
    %50 = arith.truncf %49 : vector<1024x64xf32> to vector<1024x64xbf16>
    %c0_35 = arith.constant 0 : index
    %c0_36 = arith.constant 0 : index
    %51 = vector.load %arg14[%c0_35, %c0_36] : memref<64x4xbf16, #tpu.memory_space<vmem>>, vector<64x4xbf16>
    %cst_37 = arith.constant dense<0.000000e+00> : vector<1024x4xf32>
    %52 = tpu.matmul %50, %51, %cst_37 {dimension_numbers = #tpu.dot_dimension_numbers<[1], [0], [0], [1], [0, 0, 1, 1], [], []>} : vector<1024x64xbf16>, vector<64x4xbf16>, vector<1024x4xf32> -> vector<1024x4xf32>
    %c0_38 = arith.constant 0 : index
    %c0_39 = arith.constant 0 : index
    %53 = vector.load %arg15[%c0_38, %c0_39] : memref<1x4xf32, #tpu.memory_space<vmem>>, vector<1x4xf32>
    %54 = vector.broadcast %53 : vector<1x4xf32> to vector<1024x4xf32>
    %55 = arith.addf %52, %54 : vector<1024x4xf32>
    %56 = arith.addf %55, %41 : vector<1024x4xf32>
    %c0_40 = arith.constant 0 : index
    %c0_41 = arith.constant 0 : index
    %57 = vector.load %arg16[%c0_40, %c0_41] : memref<1024x4xf32, #tpu.memory_space<vmem>>, vector<1024x4xf32>
    tpu.vector_store %arg16[%c0_40, %c0_41], %56 {strides = array<i32>} : memref<1024x4xf32, #tpu.memory_space<vmem>>, vector<1024x4xf32>,
    return
  }
  func.func @transform_0(%arg0: i32) -> (i32, i32) {
    %c0_i32 = arith.constant 0 : i32
    %c0_i32_0 = arith.constant 0 : i32
    return %arg0, %c0_i32 : i32, i32
  }
  func.func @transform_1(%arg0: i32) -> (i32, i32) {
    %c0_i32 = arith.constant 0 : i32
    %c0_i32_0 = arith.constant 0 : i32
    %c0_i32_1 = arith.constant 0 : i32
    return %c0_i32, %c0_i32_0 : i32, i32
  }
  func.func @transform_2(%arg0: i32) -> (i32, i32) {
    %c0_i32 = arith.constant 0 : i32
    %c0_i32_0 = arith.constant 0 : i32
    %c0_i32_1 = arith.constant 0 : i32
    return %c0_i32, %c0_i32_0 : i32, i32
  }
  func.func @transform_3(%arg0: i32) -> (i32, i32) {
    %c0_i32 = arith.constant 0 : i32
    %c0_i32_0 = arith.constant 0 : i32
    %c0_i32_1 = arith.constant 0 : i32
    return %c0_i32, %c0_i32_0 : i32, i32
  }
  func.func @transform_4(%arg0: i32) -> (i32, i32) {
    %c0_i32 = arith.constant 0 : i32
    %c0_i32_0 = arith.constant 0 : i32
    %c0_i32_1 = arith.constant 0 : i32
    return %c0_i32, %c0_i32_0 : i32, i32
  }
  func.func @transform_5(%arg0: i32) -> (i32, i32) {
    %c0_i32 = arith.constant 0 : i32
    %c0_i32_0 = arith.constant 0 : i32
    %c0_i32_1 = arith.constant 0 : i32
    return %c0_i32, %c0_i32_0 : i32, i32
  }
  func.func @transform_6(%arg0: i32) -> (i32, i32) {
    %c0_i32 = arith.constant 0 : i32
    %c0_i32_0 = arith.constant 0 : i32
    %c0_i32_1 = arith.constant 0 : i32
    return %c0_i32, %c0_i32_0 : i32, i32
  }
  func.func @transform_7(%arg0: i32) -> (i32, i32) {
    %c0_i32 = arith.constant 0 : i32
    %c0_i32_0 = arith.constant 0 : i32
    %c0_i32_1 = arith.constant 0 : i32
    return %c0_i32, %c0_i32_0 : i32, i32
  }
  func.func @transform_8(%arg0: i32) -> (i32, i32) {
    %c0_i32 = arith.constant 0 : i32
    %c0_i32_0 = arith.constant 0 : i32
    %c0_i32_1 = arith.constant 0 : i32
    return %c0_i32, %c0_i32_0 : i32, i32
  }
  func.func @transform_9(%arg0: i32) -> (i32, i32) {
    %c0_i32 = arith.constant 0 : i32
    %c0_i32_0 = arith.constant 0 : i32
    %c0_i32_1 = arith.constant 0 : i32
    return %c0_i32, %c0_i32_0 : i32, i32
  }
  func.func @transform_10(%arg0: i32) -> (i32, i32) {
    %c0_i32 = arith.constant 0 : i32
    %c0_i32_0 = arith.constant 0 : i32
    %c0_i32_1 = arith.constant 0 : i32
    return %c0_i32, %c0_i32_0 : i32, i32
  }
  func.func @transform_11(%arg0: i32) -> (i32, i32) {
    %c0_i32 = arith.constant 0 : i32
    %c0_i32_0 = arith.constant 0 : i32
    %c0_i32_1 = arith.constant 0 : i32
    return %c0_i32, %c0_i32_0 : i32, i32
  }
  func.func @transform_12(%arg0: i32) -> (i32, i32) {
    %c0_i32 = arith.constant 0 : i32
    %c0_i32_0 = arith.constant 0 : i32
    %c0_i32_1 = arith.constant 0 : i32
    return %c0_i32, %c0_i32_0 : i32, i32
  }
  func.func @transform_13(%arg0: i32) -> (i32, i32) {
    %c0_i32 = arith.constant 0 : i32
    %c0_i32_0 = arith.constant 0 : i32
    %c0_i32_1 = arith.constant 0 : i32
    return %c0_i32, %c0_i32_0 : i32, i32
  }
  func.func @transform_14(%arg0: i32) -> (i32, i32) {
    %c0_i32 = arith.constant 0 : i32
    %c0_i32_0 = arith.constant 0 : i32
    %c0_i32_1 = arith.constant 0 : i32
    return %c0_i32, %c0_i32_0 : i32, i32
  }
  func.func @transform_15(%arg0: i32) -> (i32, i32) {
    %c0_i32 = arith.constant 0 : i32
    %c0_i32_0 = arith.constant 0 : i32
    return %arg0, %c0_i32 : i32, i32
  }
}

</mosaic_0001>

<llo_original>
// kernel: tpu_custom_call.1
$region0: #{tpu_custom_call.1}
  #allocation0 [shape = 'u32[]', space=smem, size = 0x4, offset = 0x4, fixed_abs, tag = 'smem constant byte address 0x4 - core index']
  #allocation1 [shape = 'u32[72,128]{1,0:T(1,128)}', space=vmem, size = 0x9000, scoped, tag = 'internal scratch']
  %s0 = inlined_call_operand.vmem [shape: f32[1000,66], index: 0, kind: input, shape index: {}]
  %s1 = inlined_call_operand.vmem [shape: bf16[66,128], index: 1, kind: input, shape index: {}]
  %s2 = inlined_call_operand.vmem [shape: f32[1,128], index: 2, kind: input, shape index: {}]
  %s3 = inlined_call_operand.vmem [shape: bf16[128,128], index: 3, kind: input, shape index: {}]
  %s4 = inlined_call_operand.vmem [shape: f32[1,128], index: 4, kind: input, shape index: {}]
  %s5 = inlined_call_operand.vmem [shape: bf16[128,128], index: 5, kind: input, shape index: {}]
  %s6 = inlined_call_operand.vmem [shape: f32[1,128], index: 6, kind: input, shape index: {}]
  %s7 = inlined_call_operand.vmem [shape: bf16[128,128], index: 7, kind: input, shape index: {}]
  %s8 = inlined_call_operand.vmem [shape: f32[1,128], index: 8, kind: input, shape index: {}]
  %s9 = inlined_call_operand.vmem [shape: bf16[128,132], index: 9, kind: input, shape index: {}]
  %s10 = inlined_call_operand.vmem [shape: f32[1,132], index: 10, kind: input, shape index: {}]
  %s11 = inlined_call_operand.vmem [shape: bf16[194,64], index: 11, kind: input, shape index: {}]
  %s12 = inlined_call_operand.vmem [shape: f32[1,64], index: 12, kind: input, shape index: {}]
  %s13 = inlined_call_operand.vmem [shape: bf16[64,4], index: 13, kind: input, shape index: {}]
  %s14 = inlined_call_operand.vmem [shape: f32[1,4], index: 14, kind: input, shape index: {}]
  %s15 = inlined_call_operand.vmem [shape: f32[1000,4], index: 15, kind: output, shape index: {}]
  %s16 = sld [smem:[#allocation0]]
  $region104: #{tpu_custom_call.1} parent=0
    _
  %s18 = ssub.s32 1, %s16
  %s19 = scalar_select 0, %s18, %s16
  $region1: #{tpu_custom_call.1} parent=0
    #allocation2 [shape = 'u8[524288]{0}', space=vmem, size = 0x80000, scoped, tag = 'output window, operand 0, single buffered']
    // Predicated region
    $region2: #{tpu_custom_call.1} parent=1 // pred_check
      _
    $region3: #{tpu_custom_call.1} parent=1 // pred_check_branch
      %21 = sbr.rel (0) target = $region5
    $region4: #{tpu_custom_call.1} parent=1 // pred_region
      _
    $region5: #{tpu_custom_call.1} parent=1 // pred_fallthru
      _
    // Predicated region
    $region6: #{tpu_custom_call.1} parent=1 // pred_check
      _
    $region7: #{tpu_custom_call.1} parent=1 // pred_check_branch
      %23 = sbr.rel (0) target = $region9
    $region8: #{tpu_custom_call.1} parent=1 // pred_region
      _
    $region9: #{tpu_custom_call.1} parent=1 // pred_fallthru
      _
    // Predicated region
    $region10: #{tpu_custom_call.1} parent=1 // pred_check
      _
    $region11: #{tpu_custom_call.1} parent=1 // pred_check_branch
      %25 = sbr.rel (0) target = $region13
    $region12: #{tpu_custom_call.1} parent=1 // pred_region
      _
    $region13: #{tpu_custom_call.1} parent=1 // pred_fallthru
      _
    // Predicated region
    $region14: #{tpu_custom_call.1} parent=1 // pred_check
      _
    $region15: #{tpu_custom_call.1} parent=1 // pred_check_branch
      %27 = sbr.rel (0) target = $region17
    $region16: #{tpu_custom_call.1} parent=1 // pred_region
      _
    $region17: #{tpu_custom_call.1} parent=1 // pred_fallthru
      _
    // Predicated region
    $region18: #{tpu_custom_call.1} parent=1 // pred_check
      _
    $region19: #{tpu_custom_call.1} parent=1 // pred_check_branch
      %29 = sbr.rel (0) target = $region21
    $region20: #{tpu_custom_call.1} parent=1 // pred_region
      _
    $region21: #{tpu_custom_call.1} parent=1 // pred_fallthru
      _
    // Predicated region
    $region22: #{tpu_custom_call.1} parent=1 // pred_check
      _
    $region23: #{tpu_custom_call.1} parent=1 // pred_check_branch
      %31 = sbr.rel (0) target = $region25
    $region24: #{tpu_custom_call.1} parent=1 // pred_region
      _
    $region25: #{tpu_custom_call.1} parent=1 // pred_fallthru
      _
    // Predicated region
    $region26: #{tpu_custom_call.1} parent=1 // pred_check
      _
    $region27: #{tpu_custom_call.1} parent=1 // pred_check_branch
      %33 = sbr.rel (0) target = $region29
    $region28: #{tpu_custom_call.1} parent=1 // pred_region
      _
    $region29: #{tpu_custom_call.1} parent=1 // pred_fallthru
      _
    // Predicated region
    $region30: #{tpu_custom_call.1} parent=1 // pred_check
      _
    $region31: #{tpu_custom_call.1} parent=1 // pred_check_branch
      %35 = sbr.rel (0) target = $region33
    $region32: #{tpu_custom_call.1} parent=1 // pred_region
      _
    $region33: #{tpu_custom_call.1} parent=1 // pred_fallthru
      _
    // Predicated region
    $region34: #{tpu_custom_call.1} parent=1 // pred_check
      _
    $region35: #{tpu_custom_call.1} parent=1 // pred_check_branch
      %37 = sbr.rel (0) target = $region37
    $region36: #{tpu_custom_call.1} parent=1 // pred_region
      _
    $region37: #{tpu_custom_call.1} parent=1 // pred_fallthru
      _
    // Predicated region
    $region38: #{tpu_custom_call.1} parent=1 // pred_check
      _
    $region39: #{tpu_custom_call.1} parent=1 // pred_check_branch
      %39 = sbr.rel (0) target = $region41
    $region40: #{tpu_custom_call.1} parent=1 // pred_region
      _
    $region41: #{tpu_custom_call.1} parent=1 // pred_fallthru
      _
    // Predicated region
    $region42: #{tpu_custom_call.1} parent=1 // pred_check
      _
    $region43: #{tpu_custom_call.1} parent=1 // pred_check_branch
      %41 = sbr.rel (0) target = $region45
    $region44: #{tpu_custom_call.1} parent=1 // pred_region
      _
    $region45: #{tpu_custom_call.1} parent=1 // pred_fallthru
      _
    // Predicated region
    $region46: #{tpu_custom_call.1} parent=1 // pred_check
      _
    $region47: #{tpu_custom_call.1} parent=1 // pred_check_branch
      %43 = sbr.rel (0) target = $region49
    $region48: #{tpu_custom_call.1} parent=1 // pred_region
      _
    $region49: #{tpu_custom_call.1} parent=1 // pred_fallthru
      _
    // Predicated region
    $region50: #{tpu_custom_call.1} parent=1 // pred_check
      _
    $region51: #{tpu_custom_call.1} parent=1 // pred_check_branch
      %45 = sbr.rel (0) target = $region53
    $region52: #{tpu_custom_call.1} parent=1 // pred_region
      _
    $region53: #{tpu_custom_call.1} parent=1 // pred_fallthru
      _
    // Predicated region
    $region54: #{tpu_custom_call.1} parent=1 // pred_check
      _
    $region55: #{tpu_custom_call.1} parent=1 // pred_check_branch
      %47 = sbr.rel (0) target = $region57
    $region56: #{tpu_custom_call.1} parent=1 // pred_region
      _
    $region57: #{tpu_custom_call.1} parent=1 // pred_fallthru
      _
    // Predicated region
    $region58: #{tpu_custom_call.1} parent=1 // pred_check
      _
    $region59: #{tpu_custom_call.1} parent=1 // pred_check_branch
      %49 = sbr.rel (0) target = $region61
    $region60: #{tpu_custom_call.1} parent=1 // pred_region
      _
    $region61: #{tpu_custom_call.1} parent=1 // pred_fallthru
      _
    %v51 = vld [vmem:[%s0] sm:$0xff]
    %v52 = vld [vmem:[%s0 + $0x8] sm:$0xff]
    %v53 = vld [vmem:[%s0 + $0x10] sm:$0xff]
    %v54 = vld [vmem:[%s0 + $0x18] sm:$0xff]
    %v55 = vld [vmem:[%s0 + $0x20] sm:$0xff]
    %v56 = vld [vmem:[%s0 + $0x28] sm:$0xff]
    %v57 = vld [vmem:[%s0 + $0x30] sm:$0xff]
    %v58 = vld [vmem:[%s0 + $0x38] sm:$0xff]
    %v59 = vld [vmem:[%s0 + $0x40] sm:$0xff]
    %v60 = vld [vmem:[%s0 + $0x48] sm:$0xff]
    %v61 = vld [vmem:[%s0 + $0x50] sm:$0xff]
    %v62 = vld [vmem:[%s0 + $0x58] sm:$0xff]
    %v63 = vld [vmem:[%s0 + $0x60] sm:$0xff]
    %v64 = vld [vmem:[%s0 + $0x68] sm:$0xff]
    %v65 = vld [vmem:[%s0 + $0x70] sm:$0xff]
    %v66 = vld [vmem:[%s0 + $0x78] sm:$0xff]
    %v67 = vld [vmem:[%s0 + $0x80] sm:$0xff]
    %v68 = vld [vmem:[%s0 + $0x88] sm:$0xff]
    %v69 = vld [vmem:[%s0 + $0x90] sm:$0xff]
    %v70 = vld [vmem:[%s0 + $0x98] sm:$0xff]
    %v71 = vld [vmem:[%s0 + $0xa0] sm:$0xff]
    %v72 = vld [vmem:[%s0 + $0xa8] sm:$0xff]
    %v73 = vld [vmem:[%s0 + $0xb0] sm:$0xff]
    %v74 = vld [vmem:[%s0 + $0xb8] sm:$0xff]
    %v75 = vld [vmem:[%s0 + $0xc0] sm:$0xff]
    %v76 = vld [vmem:[%s0 + $0xc8] sm:$0xff]
    %v77 = vld [vmem:[%s0 + $0xd0] sm:$0xff]
    %v78 = vld [vmem:[%s0 + $0xd8] sm:$0xff]
    %v79 = vld [vmem:[%s0 + $0xe0] sm:$0xff]
    %v80 = vld [vmem:[%s0 + $0xe8] sm:$0xff]
    %v81 = vld [vmem:[%s0 + $0xf0] sm:$0xff]
    %v82 = vld [vmem:[%s0 + $0xf8] sm:$0xff]
    %v83 = vld [vmem:[%s0 + $0x100] sm:$0xff]
    %v84 = vld [vmem:[%s0 + $0x108] sm:$0xff]
    %v85 = vld [vmem:[%s0 + $0x110] sm:$0xff]
    %v86 = vld [vmem:[%s0 + $0x118] sm:$0xff]
    %v87 = vld [vmem:[%s0 + $0x120] sm:$0xff]
    %v88 = vld [vmem:[%s0 + $0x128] sm:$0xff]
    %v89 = vld [vmem:[%s0 + $0x130] sm:$0xff]
    %v90 = vld [vmem:[%s0 + $0x138] sm:$0xff]
    %v91 = vld [vmem:[%s0 + $0x140] sm:$0xff]
    %v92 = vld [vmem:[%s0 + $0x148] sm:$0xff]
    %v93 = vld [vmem:[%s0 + $0x150] sm:$0xff]
    %v94 = vld [vmem:[%s0 + $0x158] sm:$0xff]
    %v95 = vld [vmem:[%s0 + $0x160] sm:$0xff]
    %v96 = vld [vmem:[%s0 + $0x168] sm:$0xff]
    %v97 = vld [vmem:[%s0 + $0x170] sm:$0xff]
    %v98 = vld [vmem:[%s0 + $0x178] sm:$0xff]
    %v99 = vld [vmem:[%s0 + $0x180] sm:$0xff]
    %v100 = vld [vmem:[%s0 + $0x188] sm:$0xff]
    %v101 = vld [vmem:[%s0 + $0x190] sm:$0xff]
    %v102 = vld [vmem:[%s0 + $0x198] sm:$0xff]
    %v103 = vld [vmem:[%s0 + $0x1a0] sm:$0xff]
    %v104 = vld [vmem:[%s0 + $0x1a8] sm:$0xff]
    %v105 = vld [vmem:[%s0 + $0x1b0] sm:$0xff]
    %v106 = vld [vmem:[%s0 + $0x1b8] sm:$0xff]
    %v107 = vld [vmem:[%s0 + $0x1c0] sm:$0xff]
    %v108 = vld [vmem:[%s0 + $0x1c8] sm:$0xff]
    %v109 = vld [vmem:[%s0 + $0x1d0] sm:$0xff]
    %v110 = vld [vmem:[%s0 + $0x1d8] sm:$0xff]
    %v111 = vld [vmem:[%s0 + $0x1e0] sm:$0xff]
    %v112 = vld [vmem:[%s0 + $0x1e8] sm:$0xff]
    %v113 = vld [vmem:[%s0 + $0x1f0] sm:$0xff]
    %v114 = vld [vmem:[%s0 + $0x1f8] sm:$0xff]
    %v115 = vld [vmem:[%s0 + $0x200] sm:$0xff]
    %v116 = vld [vmem:[%s0 + $0x208] sm:$0xff]
    %v117 = vld [vmem:[%s0 + $0x210] sm:$0xff]
    %v118 = vld [vmem:[%s0 + $0x218] sm:$0xff]
    %v119 = vld [vmem:[%s0 + $0x220] sm:$0xff]
    %v120 = vld [vmem:[%s0 + $0x228] sm:$0xff]
    %v121 = vld [vmem:[%s0 + $0x230] sm:$0xff]
    %v122 = vld [vmem:[%s0 + $0x238] sm:$0xff]
    %v123 = vld [vmem:[%s0 + $0x240] sm:$0xff]
    %v124 = vld [vmem:[%s0 + $0x248] sm:$0xff]
    %v125 = vld [vmem:[%s0 + $0x250] sm:$0xff]
    %v126 = vld [vmem:[%s0 + $0x258] sm:$0xff]
    %v127 = vld [vmem:[%s0 + $0x260] sm:$0xff]
    %v128 = vld [vmem:[%s0 + $0x268] sm:$0xff]
    %v129 = vld [vmem:[%s0 + $0x270] sm:$0xff]
    %v130 = vld [vmem:[%s0 + $0x278] sm:$0xff]
    %v131 = vld [vmem:[%s0 + $0x280] sm:$0xff]
    %v132 = vld [vmem:[%s0 + $0x288] sm:$0xff]
    %v133 = vld [vmem:[%s0 + $0x290] sm:$0xff]
    %v134 = vld [vmem:[%s0 + $0x298] sm:$0xff]
    %v135 = vld [vmem:[%s0 + $0x2a0] sm:$0xff]
    %v136 = vld [vmem:[%s0 + $0x2a8] sm:$0xff]
    %v137 = vld [vmem:[%s0 + $0x2b0] sm:$0xff]
    %v138 = vld [vmem:[%s0 + $0x2b8] sm:$0xff]
    %v139 = vld [vmem:[%s0 + $0x2c0] sm:$0xff]
    %v140 = vld [vmem:[%s0 + $0x2c8] sm:$0xff]
    %v141 = vld [vmem:[%s0 + $0x2d0] sm:$0xff]
    %v142 = vld [vmem:[%s0 + $0x2d8] sm:$0xff]
    %v143 = vld [vmem:[%s0 + $0x2e0] sm:$0xff]
    %v144 = vld [vmem:[%s0 + $0x2e8] sm:$0xff]
    %v145 = vld [vmem:[%s0 + $0x2f0] sm:$0xff]
    %v146 = vld [vmem:[%s0 + $0x2f8] sm:$0xff]
    %v147 = vld [vmem:[%s0 + $0x300] sm:$0xff]
    %v148 = vld [vmem:[%s0 + $0x308] sm:$0xff]
    %v149 = vld [vmem:[%s0 + $0x310] sm:$0xff]
    %v150 = vld [vmem:[%s0 + $0x318] sm:$0xff]
    %v151 = vld [vmem:[%s0 + $0x320] sm:$0xff]
    %v152 = vld [vmem:[%s0 + $0x328] sm:$0xff]
    %v153 = vld [vmem:[%s0 + $0x330] sm:$0xff]
    %v154 = vld [vmem:[%s0 + $0x338] sm:$0xff]
    %v155 = vld [vmem:[%s0 + $0x340] sm:$0xff]
    %v156 = vld [vmem:[%s0 + $0x348] sm:$0xff]
    %v157 = vld [vmem:[%s0 + $0x350] sm:$0xff]
    %v158 = vld [vmem:[%s0 + $0x358] sm:$0xff]
    %v159 = vld [vmem:[%s0 + $0x360] sm:$0xff]
    %v160 = vld [vmem:[%s0 + $0x368] sm:$0xff]
    %v161 = vld [vmem:[%s0 + $0x370] sm:$0xff]
    %v162 = vld [vmem:[%s0 + $0x378] sm:$0xff]
    %v163 = vld [vmem:[%s0 + $0x380] sm:$0xff]
    %v164 = vld [vmem:[%s0 + $0x388] sm:$0xff]
    %v165 = vld [vmem:[%s0 + $0x390] sm:$0xff]
    %v166 = vld [vmem:[%s0 + $0x398] sm:$0xff]
    %v167 = vld [vmem:[%s0 + $0x3a0] sm:$0xff]
    %v168 = vld [vmem:[%s0 + $0x3a8] sm:$0xff]
    %v169 = vld [vmem:[%s0 + $0x3b0] sm:$0xff]
    %v170 = vld [vmem:[%s0 + $0x3b8] sm:$0xff]
    %v171 = vld [vmem:[%s0 + $0x3c0] sm:$0xff]
    %v172 = vld [vmem:[%s0 + $0x3c8] sm:$0xff]
    %v173 = vld [vmem:[%s0 + $0x3d0] sm:$0xff]
    %v174 = vld [vmem:[%s0 + $0x3d8] sm:$0xff]
    %v175 = vld [vmem:[%s0 + $0x3e0] sm:$0xff]
    %v176 = vld [vmem:[%s0 + $0x3e8] sm:$0xff]
    %v177 = vld [vmem:[%s0 + $0x3f0] sm:$0xff]
    %v178 = vld [vmem:[%s0 + $0x3f8] sm:$0xff]
    %v179 = vpack.c.bf16 %v51, %v51
    %v180 = vpack.c.bf16 %v52, %v52
    %v181 = vpack.c.bf16 %v53, %v53
    %v182 = vpack.c.bf16 %v54, %v54
    %v183 = vpack.c.bf16 %v55, %v55
    %v184 = vpack.c.bf16 %v56, %v56
    %v185 = vpack.c.bf16 %v57, %v57
    %v186 = vpack.c.bf16 %v58, %v58
    %v187 = vpack.c.bf16 %v59, %v59
    %v188 = vpack.c.bf16 %v60, %v60
    %v189 = vpack.c.bf16 %v61, %v61
    %v190 = vpack.c.bf16 %v62, %v62
    %v191 = vpack.c.bf16 %v63, %v63
    %v192 = vpack.c.bf16 %v64, %v64
    %v193 = vpack.c.bf16 %v65, %v65
    %v194 = vpack.c.bf16 %v66, %v66
    %v195 = vpack.c.bf16 %v67, %v67
    %v196 = vpack.c.bf16 %v68, %v68
    %v197 = vpack.c.bf16 %v69, %v69
    %v198 = vpack.c.bf16 %v70, %v70
    %v199 = vpack.c.bf16 %v71, %v71
    %v200 = vpack.c.bf16 %v72, %v72
    %v201 = vpack.c.bf16 %v73, %v73
    %v202 = vpack.c.bf16 %v74, %v74
    %v203 = vpack.c.bf16 %v75, %v75
    %v204 = vpack.c.bf16 %v76, %v76
    %v205 = vpack.c.bf16 %v77, %v77
    %v206 = vpack.c.bf16 %v78, %v78
    %v207 = vpack.c.bf16 %v79, %v79
    %v208 = vpack.c.bf16 %v80, %v80
    %v209 = vpack.c.bf16 %v81, %v81
    %v210 = vpack.c.bf16 %v82, %v82
    %v211 = vpack.c.bf16 %v83, %v83
    %v212 = vpack.c.bf16 %v84, %v84
    %v213 = vpack.c.bf16 %v85, %v85
    %v214 = vpack.c.bf16 %v86, %v86
    %v215 = vpack.c.bf16 %v87, %v87
    %v216 = vpack.c.bf16 %v88, %v88
    %v217 = vpack.c.bf16 %v89, %v89
    %v218 = vpack.c.bf16 %v90, %v90
    %v219 = vpack.c.bf16 %v91, %v91
    %v220 = vpack.c.bf16 %v92, %v92
    %v221 = vpack.c.bf16 %v93, %v93
    %v222 = vpack.c.bf16 %v94, %v94
    %v223 = vpack.c.bf16 %v95, %v95
    %v224 = vpack.c.bf16 %v96, %v96
    %v225 = vpack.c.bf16 %v97, %v97
    %v226 = vpack.c.bf16 %v98, %v98
    %v227 = vpack.c.bf16 %v99, %v99
    %v228 = vpack.c.bf16 %v100, %v100
    %v229 = vpack.c.bf16 %v101, %v101
    %v230 = vpack.c.bf16 %v102, %v102
    %v231 = vpack.c.bf16 %v103, %v103
    %v232 = vpack.c.bf16 %v104, %v104
    %v233 = vpack.c.bf16 %v105, %v105
    %v234 = vpack.c.bf16 %v106, %v106
    %v235 = vpack.c.bf16 %v107, %v107
    %v236 = vpack.c.bf16 %v108, %v108
    %v237 = vpack.c.bf16 %v109, %v109
    %v238 = vpack.c.bf16 %v110, %v110
    %v239 = vpack.c.bf16 %v111, %v111
    %v240 = vpack.c.bf16 %v112, %v112
    %v241 = vpack.c.bf16 %v113, %v113
    %v242 = vpack.c.bf16 %v114, %v114
    %v243 = vpack.c.bf16 %v115, %v115
    %v244 = vpack.c.bf16 %v116, %v116
    %v245 = vpack.c.bf16 %v117, %v117
    %v246 = vpack.c.bf16 %v118, %v118
    %v247 = vpack.c.bf16 %v119, %v119
    %v248 = vpack.c.bf16 %v120, %v120
    %v249 = vpack.c.bf16 %v121, %v121
    %v250 = vpack.c.bf16 %v122, %v122
    %v251 = vpack.c.bf16 %v123, %v123
    %v252 = vpack.c.bf16 %v124, %v124
    %v253 = vpack.c.bf16 %v125, %v125
    %v254 = vpack.c.bf16 %v126, %v126
    %v255 = vpack.c.bf16 %v127, %v127
    %v256 = vpack.c.bf16 %v128, %v128
    %v257 = vpack.c.bf16 %v129, %v129
    %v258 = vpack.c.bf16 %v130, %v130
    %v259 = vpack.c.bf16 %v131, %v131
    %v260 = vpack.c.bf16 %v132, %v132
    %v261 = vpack.c.bf16 %v133, %v133
    %v262 = vpack.c.bf16 %v134, %v134
    %v263 = vpack.c.bf16 %v135, %v135
    %v264 = vpack.c.bf16 %v136, %v136
    %v265 = vpack.c.bf16 %v137, %v137
    %v266 = vpack.c.bf16 %v138, %v138
    %v267 = vpack.c.bf16 %v139, %v139
    %v268 = vpack.c.bf16 %v140, %v140
    %v269 = vpack.c.bf16 %v141, %v141
    %v270 = vpack.c.bf16 %v142, %v142
    %v271 = vpack.c.bf16 %v143, %v143
    %v272 = vpack.c.bf16 %v144, %v144
    %v273 = vpack.c.bf16 %v145, %v145
    %v274 = vpack.c.bf16 %v146, %v146
    %v275 = vpack.c.bf16 %v147, %v147
    %v276 = vpack.c.bf16 %v148, %v148
    %v277 = vpack.c.bf16 %v149, %v149
    %v278 = vpack.c.bf16 %v150, %v150
    %v279 = vpack.c.bf16 %v151, %v151
    %v280 = vpack.c.bf16 %v152, %v152
    %v281 = vpack.c.bf16 %v153, %v153
    %v282 = vpack.c.bf16 %v154, %v154
    %v283 = vpack.c.bf16 %v155, %v155
    %v284 = vpack.c.bf16 %v156, %v156
    %v285 = vpack.c.bf16 %v157, %v157
    %v286 = vpack.c.bf16 %v158, %v158
    %v287 = vpack.c.bf16 %v159, %v159
    %v288 = vpack.c.bf16 %v160, %v160
    %v289 = vpack.c.bf16 %v161, %v161
    %v290 = vpack.c.bf16 %v162, %v162
    %v291 = vpack.c.bf16 %v163, %v163
    %v292 = vpack.c.bf16 %v164, %v164
    %v293 = vpack.c.bf16 %v165, %v165
    %v294 = vpack.c.bf16 %v166, %v166
    %v295 = vpack.c.bf16 %v167, %v167
    %v296 = vpack.c.bf16 %v168, %v168
    %v297 = vpack.c.bf16 %v169, %v169
    %v298 = vpack.c.bf16 %v170, %v170
    %v299 = vpack.c.bf16 %v171, %v171
    %v300 = vpack.c.bf16 %v172, %v172
    %v301 = vpack.c.bf16 %v173, %v173
    %v302 = vpack.c.bf16 %v174, %v174
    %v303 = vpack.c.bf16 %v175, %v175
    %v304 = vpack.c.bf16 %v176, %v176
    %v305 = vpack.c.bf16 %v177, %v177
    %v306 = vpack.c.bf16 %v178, %v178
    %v307 = vld [vmem:[%s1] sm:$0xf]
    %v308 = vld [vmem:[%s1 + $0x4] sm:$0xf]
    %v309 = vld [vmem:[%s1 + $0x8] sm:$0xf]
    %v310 = vld [vmem:[%s1 + $0xc] sm:$0xf]
    %v311 = vld [vmem:[%s1 + $0x10] sm:$0xf]
    %v312 = vld [vmem:[%s1 + $0x14] sm:$0xf]
    %v313 = vld [vmem:[%s1 + $0x18] sm:$0xf]
    %v314 = vld [vmem:[%s1 + $0x1c] sm:$0xf]
    %v315 = vld [vmem:[%s1 + $0x20] sm:$0x1]
    %v316 = vld [vmem:[%s2] sm:$0x1]
    %v318 = vperm.slane %v316, 0
    %v448 = vunpack.c.l.b16 %v179
    %v449 = vunpack.c.l.b16 %v180
    %v450 = vunpack.c.l.b16 %v181
    %v451 = vunpack.c.l.b16 %v182
    %v452 = vunpack.c.l.b16 %v183
    %v453 = vunpack.c.l.b16 %v184
    %v454 = vunpack.c.l.b16 %v185
    %v455 = vunpack.c.l.b16 %v186
    %v456 = vunpack.c.l.b16 %v187
    %v457 = vunpack.c.l.b16 %v188
    %v458 = vunpack.c.l.b16 %v189
    %v459 = vunpack.c.l.b16 %v190
    %v460 = vunpack.c.l.b16 %v191
    %v461 = vunpack.c.l.b16 %v192
    %v462 = vunpack.c.l.b16 %v193
    %v463 = vunpack.c.l.b16 %v194
    %v464 = vunpack.c.l.b16 %v195
    %v465 = vunpack.c.l.b16 %v196
    %v466 = vunpack.c.l.b16 %v197
    %v467 = vunpack.c.l.b16 %v198
    %v468 = vunpack.c.l.b16 %v199
    %v469 = vunpack.c.l.b16 %v200
    %v470 = vunpack.c.l.b16 %v201
    %v471 = vunpack.c.l.b16 %v202
    %v472 = vunpack.c.l.b16 %v203
    %v473 = vunpack.c.l.b16 %v204
    %v474 = vunpack.c.l.b16 %v205
    %v475 = vunpack.c.l.b16 %v206
    %v476 = vunpack.c.l.b16 %v207
    %v477 = vunpack.c.l.b16 %v208
    %v478 = vunpack.c.l.b16 %v209
    %v479 = vunpack.c.l.b16 %v210
    %v480 = vunpack.c.l.b16 %v211
    %v481 = vunpack.c.l.b16 %v212
    %v482 = vunpack.c.l.b16 %v213
    %v483 = vunpack.c.l.b16 %v214
    %v484 = vunpack.c.l.b16 %v215
    %v485 = vunpack.c.l.b16 %v216
    %v486 = vunpack.c.l.b16 %v217
    %v487 = vunpack.c.l.b16 %v218
    %v488 = vunpack.c.l.b16 %v219
    %v489 = vunpack.c.l.b16 %v220
    %v490 = vunpack.c.l.b16 %v221
    %v491 = vunpack.c.l.b16 %v222
    %v492 = vunpack.c.l.b16 %v223
    %v493 = vunpack.c.l.b16 %v224
    %v494 = vunpack.c.l.b16 %v225
    %v495 = vunpack.c.l.b16 %v226
    %v496 = vunpack.c.l.b16 %v227
    %v497 = vunpack.c.l.b16 %v228
    %v498 = vunpack.c.l.b16 %v229
    %v499 = vunpack.c.l.b16 %v230
    %v500 = vunpack.c.l.b16 %v231
    %v501 = vunpack.c.l.b16 %v232
    %v502 = vunpack.c.l.b16 %v233
    %v503 = vunpack.c.l.b16 %v234
    %v504 = vunpack.c.l.b16 %v235
    %v505 = vunpack.c.l.b16 %v236
    %v506 = vunpack.c.l.b16 %v237
    %v507 = vunpack.c.l.b16 %v238
    %v508 = vunpack.c.l.b16 %v239
    %v509 = vunpack.c.l.b16 %v240
    %v510 = vunpack.c.l.b16 %v241
    %v511 = vunpack.c.l.b16 %v242
    %v512 = vunpack.c.l.b16 %v243
    %v513 = vunpack.c.l.b16 %v244
    %v514 = vunpack.c.l.b16 %v245
    %v515 = vunpack.c.l.b16 %v246
    %v516 = vunpack.c.l.b16 %v247
    %v517 = vunpack.c.l.b16 %v248
    %v518 = vunpack.c.l.b16 %v249
    %v519 = vunpack.c.l.b16 %v250
    %v520 = vunpack.c.l.b16 %v251
    %v521 = vunpack.c.l.b16 %v252
    %v522 = vunpack.c.l.b16 %v253
    %v523 = vunpack.c.l.b16 %v254
    %v524 = vunpack.c.l.b16 %v255
    %v525 = vunpack.c.l.b16 %v256
    %v526 = vunpack.c.l.b16 %v257
    %v527 = vunpack.c.l.b16 %v258
    %v528 = vunpack.c.l.b16 %v259
    %v529 = vunpack.c.l.b16 %v260
    %v530 = vunpack.c.l.b16 %v261
    %v531 = vunpack.c.l.b16 %v262
    %v532 = vunpack.c.l.b16 %v263
    %v533 = vunpack.c.l.b16 %v264
    %v534 = vunpack.c.l.b16 %v265
    %v535 = vunpack.c.l.b16 %v266
    %v536 = vunpack.c.l.b16 %v267
    %v537 = vunpack.c.l.b16 %v268
    %v538 = vunpack.c.l.b16 %v269
    %v539 = vunpack.c.l.b16 %v270
    %v540 = vunpack.c.l.b16 %v271
    %v541 = vunpack.c.l.b16 %v272
    %v542 = vunpack.c.l.b16 %v273
    %v543 = vunpack.c.l.b16 %v274
    %v544 = vunpack.c.l.b16 %v275
    %v545 = vunpack.c.l.b16 %v276
    %v546 = vunpack.c.l.b16 %v277
    %v547 = vunpack.c.l.b16 %v278
    %v548 = vunpack.c.l.b16 %v279
    %v549 = vunpack.c.l.b16 %v280
    %v550 = vunpack.c.l.b16 %v281
    %v551 = vunpack.c.l.b16 %v282
    %v552 = vunpack.c.l.b16 %v283
    %v553 = vunpack.c.l.b16 %v284
    %v554 = vunpack.c.l.b16 %v285
    %v555 = vunpack.c.l.b16 %v286
    %v556 = vunpack.c.l.b16 %v287
    %v557 = vunpack.c.l.b16 %v288
    %v558 = vunpack.c.l.b16 %v289
    %v559 = vunpack.c.l.b16 %v290
    %v560 = vunpack.c.l.b16 %v291
    %v561 = vunpack.c.l.b16 %v292
    %v562 = vunpack.c.l.b16 %v293
    %v563 = vunpack.c.l.b16 %v294
    %v564 = vunpack.c.l.b16 %v295
    %v565 = vunpack.c.l.b16 %v296
    %v566 = vunpack.c.l.b16 %v297
    %v567 = vunpack.c.l.b16 %v298
    %v568 = vunpack.c.l.b16 %v299
    %v569 = vunpack.c.l.b16 %v300
    %v570 = vunpack.c.l.b16 %v301
    %v571 = vunpack.c.l.b16 %v302
    %v572 = vunpack.c.l.b16 %v303
    %v573 = vunpack.c.l.b16 %v304
    %v574 = vunpack.c.l.b16 %v305
    %v575 = vunpack.c.l.b16 %v306
    %v576 = vpack.c.b16 %v449, %v448
    %v577 = vpack.c.b16 %v451, %v450
    %v578 = vpack.c.b16 %v453, %v452
    %v579 = vpack.c.b16 %v455, %v454
    %v580 = vpack.c.b16 %v457, %v456
    %v581 = vpack.c.b16 %v459, %v458
    %v582 = vpack.c.b16 %v461, %v460
    %v583 = vpack.c.b16 %v463, %v462
    %v584 = vpack.c.b16 %v465, %v464
    %v585 = vpack.c.b16 %v467, %v466
    %v586 = vpack.c.b16 %v469, %v468
    %v587 = vpack.c.b16 %v471, %v470
    %v588 = vpack.c.b16 %v473, %v472
    %v589 = vpack.c.b16 %v475, %v474
    %v590 = vpack.c.b16 %v477, %v476
    %v591 = vpack.c.b16 %v479, %v478
    %v592 = vpack.c.b16 %v481, %v480
    %v593 = vpack.c.b16 %v483, %v482
    %v594 = vpack.c.b16 %v485, %v484
    %v595 = vpack.c.b16 %v487, %v486
    %v596 = vpack.c.b16 %v489, %v488
    %v597 = vpack.c.b16 %v491, %v490
    %v598 = vpack.c.b16 %v493, %v492
    %v599 = vpack.c.b16 %v495, %v494
    %v600 = vpack.c.b16 %v497, %v496
    %v601 = vpack.c.b16 %v499, %v498
    %v602 = vpack.c.b16 %v501, %v500
    %v603 = vpack.c.b16 %v503, %v502
    %v604 = vpack.c.b16 %v505, %v504
    %v605 = vpack.c.b16 %v507, %v506
    %v606 = vpack.c.b16 %v509, %v508
    %v607 = vpack.c.b16 %v511, %v510
    %v608 = vpack.c.b16 %v513, %v512
    %v609 = vpack.c.b16 %v515, %v514
    %v610 = vpack.c.b16 %v517, %v516
    %v611 = vpack.c.b16 %v519, %v518
    %v612 = vpack.c.b16 %v521, %v520
    %v613 = vpack.c.b16 %v523, %v522
    %v614 = vpack.c.b16 %v525, %v524
    %v615 = vpack.c.b16 %v527, %v526
    %v616 = vpack.c.b16 %v529, %v528
    %v617 = vpack.c.b16 %v531, %v530
    %v618 = vpack.c.b16 %v533, %v532
    %v619 = vpack.c.b16 %v535, %v534
    %v620 = vpack.c.b16 %v537, %v536
    %v621 = vpack.c.b16 %v539, %v538
    %v622 = vpack.c.b16 %v541, %v540
    %v623 = vpack.c.b16 %v543, %v542
    %v624 = vpack.c.b16 %v545, %v544
    %v625 = vpack.c.b16 %v547, %v546
    %v626 = vpack.c.b16 %v549, %v548
    %v627 = vpack.c.b16 %v551, %v550
    %v628 = vpack.c.b16 %v553, %v552
    %v629 = vpack.c.b16 %v555, %v554
    %v630 = vpack.c.b16 %v557, %v556
    %v631 = vpack.c.b16 %v559, %v558
    %v632 = vpack.c.b16 %v561, %v560
    %v633 = vpack.c.b16 %v563, %v562
    %v634 = vpack.c.b16 %v565, %v564
    %v635 = vpack.c.b16 %v567, %v566
    %v636 = vpack.c.b16 %v569, %v568
    %v637 = vpack.c.b16 %v571, %v570
    %v638 = vpack.c.b16 %v573, %v572
    %v639 = vpack.c.b16 %v575, %v574
    %v649 = vunpack.c.l.b16 %v307
    %v650 = vunpack.c.l.b16 %v308
    %v651 = vunpack.c.l.b16 %v309
    %v652 = vunpack.c.l.b16 %v310
    %v653 = vunpack.c.l.b16 %v311
    %v654 = vunpack.c.l.b16 %v312
    %v655 = vunpack.c.l.b16 %v313
    %v656 = vunpack.c.l.b16 %v314
    %v657 = vunpack.c.l.b16 %v315
    %v658 = vpack.c.b16 %v650, %v649
    %v659 = vpack.c.b16 %v652, %v651
    %v660 = vpack.c.b16 %v654, %v653
    %v661 = vpack.c.b16 %v656, %v655
    %v662 = vpack.c.b16 %v657, %v657
    %vm667 = vcmask 539648
    %v669 = vsel %vm667, %v576, 0
    %v672 = vsel %vm667, %v577, 0
    %v675 = vsel %vm667, %v578, 0
    %v678 = vsel %vm667, %v579, 0
    %v681 = vsel %vm667, %v580, 0
    %v684 = vsel %vm667, %v581, 0
    %v687 = vsel %vm667, %v582, 0
    %v690 = vsel %vm667, %v583, 0
    %v693 = vsel %vm667, %v584, 0
    %v696 = vsel %vm667, %v585, 0
    %v699 = vsel %vm667, %v586, 0
    %v702 = vsel %vm667, %v587, 0
    %v705 = vsel %vm667, %v588, 0
    %v708 = vsel %vm667, %v589, 0
    %v711 = vsel %vm667, %v590, 0
    %v714 = vsel %vm667, %v591, 0
    %v717 = vsel %vm667, %v592, 0
    %v720 = vsel %vm667, %v593, 0
    %v723 = vsel %vm667, %v594, 0
    %v726 = vsel %vm667, %v595, 0
    %v729 = vsel %vm667, %v596, 0
    %v732 = vsel %vm667, %v597, 0
    %v735 = vsel %vm667, %v598, 0
    %v738 = vsel %vm667, %v599, 0
    %v741 = vsel %vm667, %v600, 0
    %v744 = vsel %vm667, %v601, 0
    %v747 = vsel %vm667, %v602, 0
    %v750 = vsel %vm667, %v603, 0
    %v753 = vsel %vm667, %v604, 0
    %v756 = vsel %vm667, %v605, 0
    %v759 = vsel %vm667, %v606, 0
    %v762 = vsel %vm667, %v607, 0
    %v765 = vsel %vm667, %v608, 0
    %v768 = vsel %vm667, %v609, 0
    %v771 = vsel %vm667, %v610, 0
    %v774 = vsel %vm667, %v611, 0
    %v777 = vsel %vm667, %v612, 0
    %v780 = vsel %vm667, %v613, 0
    %v783 = vsel %vm667, %v614, 0
    %v786 = vsel %vm667, %v615, 0
    %v789 = vsel %vm667, %v616, 0
    %v792 = vsel %vm667, %v617, 0
    %v795 = vsel %vm667, %v618, 0
    %v798 = vsel %vm667, %v619, 0
    %v801 = vsel %vm667, %v620, 0
    %v804 = vsel %vm667, %v621, 0
    %v807 = vsel %vm667, %v622, 0
    %v810 = vsel %vm667, %v623, 0
    %v813 = vsel %vm667, %v624, 0
    %v816 = vsel %vm667, %v625, 0
    %v819 = vsel %vm667, %v626, 0
    %v822 = vsel %vm667, %v627, 0
    %v825 = vsel %vm667, %v628, 0
    %v828 = vsel %vm667, %v629, 0
    %v831 = vsel %vm667, %v630, 0
    %v834 = vsel %vm667, %v631, 0
    %v837 = vsel %vm667, %v632, 0
    %v840 = vsel %vm667, %v633, 0
    %v843 = vsel %vm667, %v634, 0
    %v846 = vsel %vm667, %v635, 0
    %v849 = vsel %vm667, %v636, 0
    %v852 = vsel %vm667, %v637, 0
    %v855 = vsel %vm667, %v638, 0
    %v858 = vsel %vm667, %v639, 0
    %vm860 = vcmask 1040384
    %v862 = vsel %vm860, %v662, 0
    %864 = vmatpush.bf16.msra.mxu0 0
    %865 = vmatpush.bf16.msra.mxu0 0
    %866 = vmatpush.bf16.msra.mxu0 0
    %867 = vmatpush.bf16.msra.mxu0 %v862
    %868 = vmatpush.bf16.msra.mxu0 %v661
    %869 = vmatpush.bf16.msra.mxu0 %v660
    %870 = vmatpush.bf16.msra.mxu0 %v659
    %871 = vmatpush.bf16.msra.mxu0 %v658
    %872 = vmatmul.bf16.gmra.mxu0 %v669
    %v873 = vpop.f32.mrf.mxu0
    %v874 = vadd.f32 %v318, %v873
    %v875 = vpop.f32.mrf.mxu0
    %v876 = vadd.f32 %v318, %v875
    %877 = vmatmul.bf16.gmra.mxu0 %v672
    %v878 = vpop.f32.mrf.mxu0
    %v879 = vadd.f32 %v318, %v878
    %v880 = vpop.f32.mrf.mxu0
    %v881 = vadd.f32 %v318, %v880
    %882 = vmatmul.bf16.gmra.mxu0 %v675
    %v883 = vpop.f32.mrf.mxu0
    %v884 = vadd.f32 %v318, %v883
    %v885 = vpop.f32.mrf.mxu0
    %v886 = vadd.f32 %v318, %v885
    %887 = vmatmul.bf16.gmra.mxu0 %v678
    %v888 = vpop.f32.mrf.mxu0
    %v889 = vadd.f32 %v318, %v888
    %v890 = vpop.f32.mrf.mxu0
    %v891 = vadd.f32 %v318, %v890
    %892 = vmatmul.bf16.gmra.mxu0 %v681
    %v893 = vpop.f32.mrf.mxu0
    %v894 = vadd.f32 %v318, %v893
    %v895 = vpop.f32.mrf.mxu0
    %v896 = vadd.f32 %v318, %v895
    %897 = vmatmul.bf16.gmra.mxu0 %v684
    %v898 = vpop.f32.mrf.mxu0
    %v899 = vadd.f32 %v318, %v898
    %v900 = vpop.f32.mrf.mxu0
    %v901 = vadd.f32 %v318, %v900
    %902 = vmatmul.bf16.gmra.mxu0 %v687
    %v903 = vpop.f32.mrf.mxu0
    %v904 = vadd.f32 %v318, %v903
    %v905 = vpop.f32.mrf.mxu0
    %v906 = vadd.f32 %v318, %v905
    %907 = vmatmul.bf16.gmra.mxu0 %v690
    %v908 = vpop.f32.mrf.mxu0
    %v909 = vadd.f32 %v318, %v908
    %v910 = vpop.f32.mrf.mxu0
    %v911 = vadd.f32 %v318, %v910
    %912 = vmatmul.bf16.gmra.mxu0 %v693
    %v913 = vpop.f32.mrf.mxu0
    %v914 = vadd.f32 %v318, %v913
    %v915 = vpop.f32.mrf.mxu0
    %v916 = vadd.f32 %v318, %v915
    %917 = vmatmul.bf16.gmra.mxu0 %v696
    %v918 = vpop.f32.mrf.mxu0
    %v919 = vadd.f32 %v318, %v918
    %v920 = vpop.f32.mrf.mxu0
    %v921 = vadd.f32 %v318, %v920
    %922 = vmatmul.bf16.gmra.mxu0 %v699
    %v923 = vpop.f32.mrf.mxu0
    %v924 = vadd.f32 %v318, %v923
    %v925 = vpop.f32.mrf.mxu0
    %v926 = vadd.f32 %v318, %v925
    %927 = vmatmul.bf16.gmra.mxu0 %v702
    %v928 = vpop.f32.mrf.mxu0
    %v929 = vadd.f32 %v318, %v928
    %v930 = vpop.f32.mrf.mxu0
    %v931 = vadd.f32 %v318, %v930
    %932 = vmatmul.bf16.gmra.mxu0 %v705
    %v933 = vpop.f32.mrf.mxu0
    %v934 = vadd.f32 %v318, %v933
    %v935 = vpop.f32.mrf.mxu0
    %v936 = vadd.f32 %v318, %v935
    %937 = vmatmul.bf16.gmra.mxu0 %v708
    %v938 = vpop.f32.mrf.mxu0
    %v939 = vadd.f32 %v318, %v938
    %v940 = vpop.f32.mrf.mxu0
    %v941 = vadd.f32 %v318, %v940
    %942 = vmatmul.bf16.gmra.mxu0 %v711
    %v943 = vpop.f32.mrf.mxu0
    %v944 = vadd.f32 %v318, %v943
    %v945 = vpop.f32.mrf.mxu0
    %v946 = vadd.f32 %v318, %v945
    %947 = vmatmul.bf16.gmra.mxu0 %v714
    %v948 = vpop.f32.mrf.mxu0
    %v949 = vadd.f32 %v318, %v948
    %v950 = vpop.f32.mrf.mxu0
    %v951 = vadd.f32 %v318, %v950
    %952 = vmatmul.bf16.gmra.mxu0 %v717
    %v953 = vpop.f32.mrf.mxu0
    %v954 = vadd.f32 %v318, %v953
    %v955 = vpop.f32.mrf.mxu0
    %v956 = vadd.f32 %v318, %v955
    %957 = vmatmul.bf16.gmra.mxu0 %v720
    %v958 = vpop.f32.mrf.mxu0
    %v959 = vadd.f32 %v318, %v958
    %v960 = vpop.f32.mrf.mxu0
    %v961 = vadd.f32 %v318, %v960
    %962 = vmatmul.bf16.gmra.mxu0 %v723
    %v963 = vpop.f32.mrf.mxu0
    %v964 = vadd.f32 %v318, %v963
    %v965 = vpop.f32.mrf.mxu0
    %v966 = vadd.f32 %v318, %v965
    %967 = vmatmul.bf16.gmra.mxu0 %v726
    %v968 = vpop.f32.mrf.mxu0
    %v969 = vadd.f32 %v318, %v968
    %v970 = vpop.f32.mrf.mxu0
    %v971 = vadd.f32 %v318, %v970
    %972 = vmatmul.bf16.gmra.mxu0 %v729
    %v973 = vpop.f32.mrf.mxu0
    %v974 = vadd.f32 %v318, %v973
    %v975 = vpop.f32.mrf.mxu0
    %v976 = vadd.f32 %v318, %v975
    %977 = vmatmul.bf16.gmra.mxu0 %v732
    %v978 = vpop.f32.mrf.mxu0
    %v979 = vadd.f32 %v318, %v978
    %v980 = vpop.f32.mrf.mxu0
    %v981 = vadd.f32 %v318, %v980
    %982 = vmatmul.bf16.gmra.mxu0 %v735
    %v983 = vpop.f32.mrf.mxu0
    %v984 = vadd.f32 %v318, %v983
    %v985 = vpop.f32.mrf.mxu0
    %v986 = vadd.f32 %v318, %v985
    %987 = vmatmul.bf16.gmra.mxu0 %v738
    %v988 = vpop.f32.mrf.mxu0
    %v989 = vadd.f32 %v318, %v988
    %v990 = vpop.f32.mrf.mxu0
    %v991 = vadd.f32 %v318, %v990
    %992 = vmatmul.bf16.gmra.mxu0 %v741
    %v993 = vpop.f32.mrf.mxu0
    %v994 = vadd.f32 %v318, %v993
    %v995 = vpop.f32.mrf.mxu0
    %v996 = vadd.f32 %v318, %v995
    %997 = vmatmul.bf16.gmra.mxu0 %v744
    %v998 = vpop.f32.mrf.mxu0
    %v999 = vadd.f32 %v318, %v998
    %v1000 = vpop.f32.mrf.mxu0
    %v1001 = vadd.f32 %v318, %v1000
    %1002 = vmatmul.bf16.gmra.mxu0 %v747
    %v1003 = vpop.f32.mrf.mxu0
    %v1004 = vadd.f32 %v318, %v1003
    %v1005 = vpop.f32.mrf.mxu0
    %v1006 = vadd.f32 %v318, %v1005
    %1007 = vmatmul.bf16.gmra.mxu0 %v750
    %v1008 = vpop.f32.mrf.mxu0
    %v1009 = vadd.f32 %v318, %v1008
    %v1010 = vpop.f32.mrf.mxu0
    %v1011 = vadd.f32 %v318, %v1010
    %1012 = vmatmul.bf16.gmra.mxu0 %v753
    %v1013 = vpop.f32.mrf.mxu0
    %v1014 = vadd.f32 %v318, %v1013
    %v1015 = vpop.f32.mrf.mxu0
    %v1016 = vadd.f32 %v318, %v1015
    %1017 = vmatmul.bf16.gmra.mxu0 %v756
    %v1018 = vpop.f32.mrf.mxu0
    %v1019 = vadd.f32 %v318, %v1018
    %v1020 = vpop.f32.mrf.mxu0
    %v1021 = vadd.f32 %v318, %v1020
    %1022 = vmatmul.bf16.gmra.mxu0 %v759
    %v1023 = vpop.f32.mrf.mxu0
    %v1024 = vadd.f32 %v318, %v1023
    %v1025 = vpop.f32.mrf.mxu0
    %v1026 = vadd.f32 %v318, %v1025
    %1027 = vmatmul.bf16.gmra.mxu0 %v762
    %v1028 = vpop.f32.mrf.mxu0
    %v1029 = vadd.f32 %v318, %v1028
    %v1030 = vpop.f32.mrf.mxu0
    %v1031 = vadd.f32 %v318, %v1030
    %1032 = vmatmul.bf16.gmra.mxu0 %v765
    %v1033 = vpop.f32.mrf.mxu0
    %v1034 = vadd.f32 %v318, %v1033
    %v1035 = vpop.f32.mrf.mxu0
    %v1036 = vadd.f32 %v318, %v1035
    %1037 = vmatmul.bf16.gmra.mxu0 %v768
    %v1038 = vpop.f32.mrf.mxu0
    %v1039 = vadd.f32 %v318, %v1038
    %v1040 = vpop.f32.mrf.mxu0
    %v1041 = vadd.f32 %v318, %v1040
    %1042 = vmatmul.bf16.gmra.mxu0 %v771
    %v1043 = vpop.f32.mrf.mxu0
    %v1044 = vadd.f32 %v318, %v1043
    %v1045 = vpop.f32.mrf.mxu0
    %v1046 = vadd.f32 %v318, %v1045
    %1047 = vmatmul.bf16.gmra.mxu0 %v774
    %v1048 = vpop.f32.mrf.mxu0
    %v1049 = vadd.f32 %v318, %v1048
    %v1050 = vpop.f32.mrf.mxu0
    %v1051 = vadd.f32 %v318, %v1050
    %1052 = vmatmul.bf16.gmra.mxu0 %v777
    %v1053 = vpop.f32.mrf.mxu0
    %v1054 = vadd.f32 %v318, %v1053
    %v1055 = vpop.f32.mrf.mxu0
    %v1056 = vadd.f32 %v318, %v1055
    %1057 = vmatmul.bf16.gmra.mxu0 %v780
    %v1058 = vpop.f32.mrf.mxu0
    %v1059 = vadd.f32 %v318, %v1058
    %v1060 = vpop.f32.mrf.mxu0
    %v1061 = vadd.f32 %v318, %v1060
    %1062 = vmatmul.bf16.gmra.mxu0 %v783
    %v1063 = vpop.f32.mrf.mxu0
    %v1064 = vadd.f32 %v318, %v1063
    %v1065 = vpop.f32.mrf.mxu0
    %v1066 = vadd.f32 %v318, %v1065
    %1067 = vmatmul.bf16.gmra.mxu0 %v786
    %v1068 = vpop.f32.mrf.mxu0
    %v1069 = vadd.f32 %v318, %v1068
    %v1070 = vpop.f32.mrf.mxu0
    %v1071 = vadd.f32 %v318, %v1070
    %1072 = vmatmul.bf16.gmra.mxu0 %v789
    %v1073 = vpop.f32.mrf.mxu0
    %v1074 = vadd.f32 %v318, %v1073
    %v1075 = vpop.f32.mrf.mxu0
    %v1076 = vadd.f32 %v318, %v1075
    %1077 = vmatmul.bf16.gmra.mxu0 %v792
    %v1078 = vpop.f32.mrf.mxu0
    %v1079 = vadd.f32 %v318, %v1078
    %v1080 = vpop.f32.mrf.mxu0
    %v1081 = vadd.f32 %v318, %v1080
    %1082 = vmatmul.bf16.gmra.mxu0 %v795
    %v1083 = vpop.f32.mrf.mxu0
    %v1084 = vadd.f32 %v318, %v1083
    %v1085 = vpop.f32.mrf.mxu0
    %v1086 = vadd.f32 %v318, %v1085
    %1087 = vmatmul.bf16.gmra.mxu0 %v798
    %v1088 = vpop.f32.mrf.mxu0
    %v1089 = vadd.f32 %v318, %v1088
    %v1090 = vpop.f32.mrf.mxu0
    %v1091 = vadd.f32 %v318, %v1090
    %1092 = vmatmul.bf16.gmra.mxu0 %v801
    %v1093 = vpop.f32.mrf.mxu0
    %v1094 = vadd.f32 %v318, %v1093
    %v1095 = vpop.f32.mrf.mxu0
    %v1096 = vadd.f32 %v318, %v1095
    %1097 = vmatmul.bf16.gmra.mxu0 %v804
    %v1098 = vpop.f32.mrf.mxu0
    %v1099 = vadd.f32 %v318, %v1098
    %v1100 = vpop.f32.mrf.mxu0
    %v1101 = vadd.f32 %v318, %v1100
    %1102 = vmatmul.bf16.gmra.mxu0 %v807
    %v1103 = vpop.f32.mrf.mxu0
    %v1104 = vadd.f32 %v318, %v1103
    %v1105 = vpop.f32.mrf.mxu0
    %v1106 = vadd.f32 %v318, %v1105
    %1107 = vmatmul.bf16.gmra.mxu0 %v810
    %v1108 = vpop.f32.mrf.mxu0
    %v1109 = vadd.f32 %v318, %v1108
    %v1110 = vpop.f32.mrf.mxu0
    %v1111 = vadd.f32 %v318, %v1110
    %1112 = vmatmul.bf16.gmra.mxu0 %v813
    %v1113 = vpop.f32.mrf.mxu0
    %v1114 = vadd.f32 %v318, %v1113
    %v1115 = vpop.f32.mrf.mxu0
    %v1116 = vadd.f32 %v318, %v1115
    %1117 = vmatmul.bf16.gmra.mxu0 %v816
    %v1118 = vpop.f32.mrf.mxu0
    %v1119 = vadd.f32 %v318, %v1118
    %v1120 = vpop.f32.mrf.mxu0
    %v1121 = vadd.f32 %v318, %v1120
    %1122 = vmatmul.bf16.gmra.mxu0 %v819
    %v1123 = vpop.f32.mrf.mxu0
    %v1124 = vadd.f32 %v318, %v1123
    %v1125 = vpop.f32.mrf.mxu0
    %v1126 = vadd.f32 %v318, %v1125
    %1127 = vmatmul.bf16.gmra.mxu0 %v822
    %v1128 = vpop.f32.mrf.mxu0
    %v1129 = vadd.f32 %v318, %v1128
    %v1130 = vpop.f32.mrf.mxu0
    %v1131 = vadd.f32 %v318, %v1130
    %1132 = vmatmul.bf16.gmra.mxu0 %v825
    %v1133 = vpop.f32.mrf.mxu0
    %v1134 = vadd.f32 %v318, %v1133
    %v1135 = vpop.f32.mrf.mxu0
    %v1136 = vadd.f32 %v318, %v1135
    %1137 = vmatmul.bf16.gmra.mxu0 %v828
    %v1138 = vpop.f32.mrf.mxu0
    %v1139 = vadd.f32 %v318, %v1138
    %v1140 = vpop.f32.mrf.mxu0
    %v1141 = vadd.f32 %v318, %v1140
    %1142 = vmatmul.bf16.gmra.mxu0 %v831
    %v1143 = vpop.f32.mrf.mxu0
    %v1144 = vadd.f32 %v318, %v1143
    %v1145 = vpop.f32.mrf.mxu0
    %v1146 = vadd.f32 %v318, %v1145
    %1147 = vmatmul.bf16.gmra.mxu0 %v834
    %v1148 = vpop.f32.mrf.mxu0
    %v1149 = vadd.f32 %v318, %v1148
    %v1150 = vpop.f32.mrf.mxu0
    %v1151 = vadd.f32 %v318, %v1150
    %1152 = vmatmul.bf16.gmra.mxu0 %v837
    %v1153 = vpop.f32.mrf.mxu0
    %v1154 = vadd.f32 %v318, %v1153
    %v1155 = vpop.f32.mrf.mxu0
    %v1156 = vadd.f32 %v318, %v1155
    %1157 = vmatmul.bf16.gmra.mxu0 %v840
    %v1158 = vpop.f32.mrf.mxu0
    %v1159 = vadd.f32 %v318, %v1158
    %v1160 = vpop.f32.mrf.mxu0
    %v1161 = vadd.f32 %v318, %v1160
    %1162 = vmatmul.bf16.gmra.mxu0 %v843
    %v1163 = vpop.f32.mrf.mxu0
    %v1164 = vadd.f32 %v318, %v1163
    %v1165 = vpop.f32.mrf.mxu0
    %v1166 = vadd.f32 %v318, %v1165
    %1167 = vmatmul.bf16.gmra.mxu0 %v846
    %v1168 = vpop.f32.mrf.mxu0
    %v1169 = vadd.f32 %v318, %v1168
    %v1170 = vpop.f32.mrf.mxu0
    %v1171 = vadd.f32 %v318, %v1170
    %1172 = vmatmul.bf16.gmra.mxu0 %v849
    %v1173 = vpop.f32.mrf.mxu0
    %v1174 = vadd.f32 %v318, %v1173
    %v1175 = vpop.f32.mrf.mxu0
    %v1176 = vadd.f32 %v318, %v1175
    %1177 = vmatmul.bf16.gmra.mxu0 %v852
    %v1178 = vpop.f32.mrf.mxu0
    %v1179 = vadd.f32 %v318, %v1178
    %v1180 = vpop.f32.mrf.mxu0
    %v1181 = vadd.f32 %v318, %v1180
    %1182 = vmatmul.bf16.gmra.mxu0 %v855
    %v1183 = vpop.f32.mrf.mxu0
    %v1184 = vadd.f32 %v318, %v1183
    %v1185 = vpop.f32.mrf.mxu0
    %v1186 = vadd.f32 %v318, %v1185
    %1187 = vmatmul.bf16.gmra.mxu0 %v858
    %v1188 = vpop.f32.mrf.mxu0
    %v1189 = vadd.f32 %v318, %v1188
    %v1190 = vpop.f32.mrf.mxu0
    %v1191 = vadd.f32 %v318, %v1190
    %1192 = vdwg.mxu0
    %v1193 = vld [vmem:[%s4] sm:$0x1]
    %v1194 = vpack.c.bf16 %v876, %v874
    %v1195 = vpack.c.bf16 %v881, %v879
    %v1196 = vpack.c.bf16 %v886, %v884
    %v1197 = vpack.c.bf16 %v891, %v889
    %v1198 = vpack.c.bf16 %v896, %v894
    %v1199 = vpack.c.bf16 %v901, %v899
    %v1200 = vpack.c.bf16 %v906, %v904
    %v1201 = vpack.c.bf16 %v911, %v909
    %v1202 = vpack.c.bf16 %v916, %v914
    %v1203 = vpack.c.bf16 %v921, %v919
    %v1204 = vpack.c.bf16 %v926, %v924
    %v1205 = vpack.c.bf16 %v931, %v929
    %v1206 = vpack.c.bf16 %v936, %v934
    %v1207 = vpack.c.bf16 %v941, %v939
    %v1208 = vpack.c.bf16 %v946, %v944
    %v1209 = vpack.c.bf16 %v951, %v949
    %v1210 = vpack.c.bf16 %v956, %v954
    %v1211 = vpack.c.bf16 %v961, %v959
    %v1212 = vpack.c.bf16 %v966, %v964
    %v1213 = vpack.c.bf16 %v971, %v969
    %v1214 = vpack.c.bf16 %v976, %v974
    %v1215 = vpack.c.bf16 %v981, %v979
    %v1216 = vpack.c.bf16 %v986, %v984
    %v1217 = vpack.c.bf16 %v991, %v989
    %v1218 = vpack.c.bf16 %v996, %v994
    %v1219 = vpack.c.bf16 %v1001, %v999
    %v1220 = vpack.c.bf16 %v1006, %v1004
    %v1221 = vpack.c.bf16 %v1011, %v1009
    %v1222 = vpack.c.bf16 %v1016, %v1014
    %v1223 = vpack.c.bf16 %v1021, %v1019
    %v1224 = vpack.c.bf16 %v1026, %v1024
    %v1225 = vpack.c.bf16 %v1031, %v1029
    %v1226 = vpack.c.bf16 %v1036, %v1034
    %v1227 = vpack.c.bf16 %v1041, %v1039
    %v1228 = vpack.c.bf16 %v1046, %v1044
    %v1229 = vpack.c.bf16 %v1051, %v1049
    %v1230 = vpack.c.bf16 %v1056, %v1054
    %v1231 = vpack.c.bf16 %v1061, %v1059
    %v1232 = vpack.c.bf16 %v1066, %v1064
    %v1233 = vpack.c.bf16 %v1071, %v1069
    %v1234 = vpack.c.bf16 %v1076, %v1074
    %v1235 = vpack.c.bf16 %v1081, %v1079
    %v1236 = vpack.c.bf16 %v1086, %v1084
    %v1237 = vpack.c.bf16 %v1091, %v1089
    %v1238 = vpack.c.bf16 %v1096, %v1094
    %v1239 = vpack.c.bf16 %v1101, %v1099
    %v1240 = vpack.c.bf16 %v1106, %v1104
    %v1241 = vpack.c.bf16 %v1111, %v1109
    %v1242 = vpack.c.bf16 %v1116, %v1114
    %v1243 = vpack.c.bf16 %v1121, %v1119
    %v1244 = vpack.c.bf16 %v1126, %v1124
    %v1245 = vpack.c.bf16 %v1131, %v1129
    %v1246 = vpack.c.bf16 %v1136, %v1134
    %v1247 = vpack.c.bf16 %v1141, %v1139
    %v1248 = vpack.c.bf16 %v1146, %v1144
    %v1249 = vpack.c.bf16 %v1151, %v1149
    %v1250 = vpack.c.bf16 %v1156, %v1154
    %v1251 = vpack.c.bf16 %v1161, %v1159
    %v1252 = vpack.c.bf16 %v1166, %v1164
    %v1253 = vpack.c.bf16 %v1171, %v1169
    %v1254 = vpack.c.bf16 %v1176, %v1174
    %v1255 = vpack.c.bf16 %v1181, %v1179
    %v1256 = vpack.c.bf16 %v1186, %v1184
    %v1257 = vpack.c.bf16 %v1191, %v1189
    %v1258 = vld [vmem:[%s3] sm:$0xf]
    %v1259 = vld [vmem:[%s3 + $0x4] sm:$0xf]
    %v1260 = vld [vmem:[%s3 + $0x8] sm:$0xf]
    %v1261 = vld [vmem:[%s3 + $0xc] sm:$0xf]
    %v1262 = vld [vmem:[%s3 + $0x10] sm:$0xf]
    %v1263 = vld [vmem:[%s3 + $0x14] sm:$0xf]
    %v1264 = vld [vmem:[%s3 + $0x18] sm:$0xf]
    %v1265 = vld [vmem:[%s3 + $0x1c] sm:$0xf]
    %v1266 = vld [vmem:[%s3 + $0x20] sm:$0xf]
    %v1267 = vld [vmem:[%s3 + $0x24] sm:$0xf]
    %v1268 = vld [vmem:[%s3 + $0x28] sm:$0xf]
    %v1269 = vld [vmem:[%s3 + $0x2c] sm:$0xf]
    %v1270 = vld [vmem:[%s3 + $0x30] sm:$0xf]
    %v1271 = vld [vmem:[%s3 + $0x34] sm:$0xf]
    %v1272 = vld [vmem:[%s3 + $0x38] sm:$0xf]
    %v1273 = vld [vmem:[%s3 + $0x3c] sm:$0xf]
    %v1275 = vperm.slane %v1193, 0
    %v1293 = vunpack.c.l.b16 %v1258
    %v1294 = vunpack.c.l.b16 %v1259
    %v1295 = vunpack.c.l.b16 %v1260
    %v1296 = vunpack.c.l.b16 %v1261
    %v1297 = vunpack.c.l.b16 %v1262
    %v1298 = vunpack.c.l.b16 %v1263
    %v1299 = vunpack.c.l.b16 %v1264
    %v1300 = vunpack.c.l.b16 %v1265
    %v1301 = vunpack.c.l.b16 %v1266
    %v1302 = vunpack.c.l.b16 %v1267
    %v1303 = vunpack.c.l.b16 %v1268
    %v1304 = vunpack.c.l.b16 %v1269
    %v1305 = vunpack.c.l.b16 %v1270
    %v1306 = vunpack.c.l.b16 %v1271
    %v1307 = vunpack.c.l.b16 %v1272
    %v1308 = vunpack.c.l.b16 %v1273
    %v1309 = vpack.c.b16 %v1294, %v1293
    %v1310 = vpack.c.b16 %v1296, %v1295
    %v1311 = vpack.c.b16 %v1298, %v1297
    %v1312 = vpack.c.b16 %v1300, %v1299
    %v1313 = vpack.c.b16 %v1302, %v1301
    %v1314 = vpack.c.b16 %v1304, %v1303
    %v1315 = vpack.c.b16 %v1306, %v1305
    %v1316 = vpack.c.b16 %v1308, %v1307
    %1325 = vmatpush.bf16.msra.mxu0 %v1316
    %1326 = vmatpush.bf16.msra.mxu0 %v1315
    %1327 = vmatpush.bf16.msra.mxu0 %v1314
    %1328 = vmatpush.bf16.msra.mxu0 %v1313
    %1329 = vmatpush.bf16.msra.mxu0 %v1312
    %1330 = vmatpush.bf16.msra.mxu0 %v1311
    %1331 = vmatpush.bf16.msra.mxu0 %v1310
    %1332 = vmatpush.bf16.msra.mxu0 %v1309
    %1333 = vmatmul.bf16.gmra.mxu0 %v1194
    %v1334 = vpop.f32.mrf.mxu0
    %v1335 = vadd.f32 %v1275, %v1334
    %v1336 = vpop.f32.mrf.mxu0
    %v1337 = vadd.f32 %v1275, %v1336
    %1338 = vmatmul.bf16.gmra.mxu0 %v1195
    %v1339 = vpop.f32.mrf.mxu0
    %v1340 = vadd.f32 %v1275, %v1339
    %v1341 = vpop.f32.mrf.mxu0
    %v1342 = vadd.f32 %v1275, %v1341
    %1343 = vmatmul.bf16.gmra.mxu0 %v1196
    %v1344 = vpop.f32.mrf.mxu0
    %v1345 = vadd.f32 %v1275, %v1344
    %v1346 = vpop.f32.mrf.mxu0
    %v1347 = vadd.f32 %v1275, %v1346
    %1348 = vmatmul.bf16.gmra.mxu0 %v1197
    %v1349 = vpop.f32.mrf.mxu0
    %v1350 = vadd.f32 %v1275, %v1349
    %v1351 = vpop.f32.mrf.mxu0
    %v1352 = vadd.f32 %v1275, %v1351
    %1353 = vmatmul.bf16.gmra.mxu0 %v1198
    %v1354 = vpop.f32.mrf.mxu0
    %v1355 = vadd.f32 %v1275, %v1354
    %v1356 = vpop.f32.mrf.mxu0
    %v1357 = vadd.f32 %v1275, %v1356
    %1358 = vmatmul.bf16.gmra.mxu0 %v1199
    %v1359 = vpop.f32.mrf.mxu0
    %v1360 = vadd.f32 %v1275, %v1359
    %v1361 = vpop.f32.mrf.mxu0
    %v1362 = vadd.f32 %v1275, %v1361
    %1363 = vmatmul.bf16.gmra.mxu0 %v1200
    %v1364 = vpop.f32.mrf.mxu0
    %v1365 = vadd.f32 %v1275, %v1364
    %v1366 = vpop.f32.mrf.mxu0
    %v1367 = vadd.f32 %v1275, %v1366
    %1368 = vmatmul.bf16.gmra.mxu0 %v1201
    %v1369 = vpop.f32.mrf.mxu0
    %v1370 = vadd.f32 %v1275, %v1369
    %v1371 = vpop.f32.mrf.mxu0
    %v1372 = vadd.f32 %v1275, %v1371
    %1373 = vmatmul.bf16.gmra.mxu0 %v1202
    %v1374 = vpop.f32.mrf.mxu0
    %v1375 = vadd.f32 %v1275, %v1374
    %v1376 = vpop.f32.mrf.mxu0
    %v1377 = vadd.f32 %v1275, %v1376
    %1378 = vmatmul.bf16.gmra.mxu0 %v1203
    %v1379 = vpop.f32.mrf.mxu0
    %v1380 = vadd.f32 %v1275, %v1379
    %v1381 = vpop.f32.mrf.mxu0
    %v1382 = vadd.f32 %v1275, %v1381
    %1383 = vmatmul.bf16.gmra.mxu0 %v1204
    %v1384 = vpop.f32.mrf.mxu0
    %v1385 = vadd.f32 %v1275, %v1384
    %v1386 = vpop.f32.mrf.mxu0
    %v1387 = vadd.f32 %v1275, %v1386
    %1388 = vmatmul.bf16.gmra.mxu0 %v1205
    %v1389 = vpop.f32.mrf.mxu0
    %v1390 = vadd.f32 %v1275, %v1389
    %v1391 = vpop.f32.mrf.mxu0
    %v1392 = vadd.f32 %v1275, %v1391
    %1393 = vmatmul.bf16.gmra.mxu0 %v1206
    %v1394 = vpop.f32.mrf.mxu0
    %v1395 = vadd.f32 %v1275, %v1394
    %v1396 = vpop.f32.mrf.mxu0
    %v1397 = vadd.f32 %v1275, %v1396
    %1398 = vmatmul.bf16.gmra.mxu0 %v1207
    %v1399 = vpop.f32.mrf.mxu0
    %v1400 = vadd.f32 %v1275, %v1399
    %v1401 = vpop.f32.mrf.mxu0
    %v1402 = vadd.f32 %v1275, %v1401
    %1403 = vmatmul.bf16.gmra.mxu0 %v1208
    %v1404 = vpop.f32.mrf.mxu0
    %v1405 = vadd.f32 %v1275, %v1404
    %v1406 = vpop.f32.mrf.mxu0
    %v1407 = vadd.f32 %v1275, %v1406
    %1408 = vmatmul.bf16.gmra.mxu0 %v1209
    %v1409 = vpop.f32.mrf.mxu0
    %v1410 = vadd.f32 %v1275, %v1409
    %v1411 = vpop.f32.mrf.mxu0
    %v1412 = vadd.f32 %v1275, %v1411
    %1413 = vmatmul.bf16.gmra.mxu0 %v1210
    %v1414 = vpop.f32.mrf.mxu0
    %v1415 = vadd.f32 %v1275, %v1414
    %v1416 = vpop.f32.mrf.mxu0
    %v1417 = vadd.f32 %v1275, %v1416
    %1418 = vmatmul.bf16.gmra.mxu0 %v1211
    %v1419 = vpop.f32.mrf.mxu0
    %v1420 = vadd.f32 %v1275, %v1419
    %v1421 = vpop.f32.mrf.mxu0
    %v1422 = vadd.f32 %v1275, %v1421
    %1423 = vmatmul.bf16.gmra.mxu0 %v1212
    %v1424 = vpop.f32.mrf.mxu0
    %v1425 = vadd.f32 %v1275, %v1424
    %v1426 = vpop.f32.mrf.mxu0
    %v1427 = vadd.f32 %v1275, %v1426
    %1428 = vmatmul.bf16.gmra.mxu0 %v1213
    %v1429 = vpop.f32.mrf.mxu0
    %v1430 = vadd.f32 %v1275, %v1429
    %v1431 = vpop.f32.mrf.mxu0
    %v1432 = vadd.f32 %v1275, %v1431
    %1433 = vmatmul.bf16.gmra.mxu0 %v1214
    %v1434 = vpop.f32.mrf.mxu0
    %v1435 = vadd.f32 %v1275, %v1434
    %v1436 = vpop.f32.mrf.mxu0
    %v1437 = vadd.f32 %v1275, %v1436
    %1438 = vmatmul.bf16.gmra.mxu0 %v1215
    %v1439 = vpop.f32.mrf.mxu0
    %v1440 = vadd.f32 %v1275, %v1439
    %v1441 = vpop.f32.mrf.mxu0
    %v1442 = vadd.f32 %v1275, %v1441
    %1443 = vmatmul.bf16.gmra.mxu0 %v1216
    %v1444 = vpop.f32.mrf.mxu0
    %v1445 = vadd.f32 %v1275, %v1444
    %v1446 = vpop.f32.mrf.mxu0
    %v1447 = vadd.f32 %v1275, %v1446
    %1448 = vmatmul.bf16.gmra.mxu0 %v1217
    %v1449 = vpop.f32.mrf.mxu0
    %v1450 = vadd.f32 %v1275, %v1449
    %v1451 = vpop.f32.mrf.mxu0
    %v1452 = vadd.f32 %v1275, %v1451
    %1453 = vmatmul.bf16.gmra.mxu0 %v1218
    %v1454 = vpop.f32.mrf.mxu0
    %v1455 = vadd.f32 %v1275, %v1454
    %v1456 = vpop.f32.mrf.mxu0
    %v1457 = vadd.f32 %v1275, %v1456
    %1458 = vmatmul.bf16.gmra.mxu0 %v1219
    %v1459 = vpop.f32.mrf.mxu0
    %v1460 = vadd.f32 %v1275, %v1459
    %v1461 = vpop.f32.mrf.mxu0
    %v1462 = vadd.f32 %v1275, %v1461
    %1463 = vmatmul.bf16.gmra.mxu0 %v1220
    %v1464 = vpop.f32.mrf.mxu0
    %v1465 = vadd.f32 %v1275, %v1464
    %v1466 = vpop.f32.mrf.mxu0
    %v1467 = vadd.f32 %v1275, %v1466
    %1468 = vmatmul.bf16.gmra.mxu0 %v1221
    %v1469 = vpop.f32.mrf.mxu0
    %v1470 = vadd.f32 %v1275, %v1469
    %v1471 = vpop.f32.mrf.mxu0
    %v1472 = vadd.f32 %v1275, %v1471
    %1473 = vmatmul.bf16.gmra.mxu0 %v1222
    %v1474 = vpop.f32.mrf.mxu0
    %v1475 = vadd.f32 %v1275, %v1474
    %v1476 = vpop.f32.mrf.mxu0
    %v1477 = vadd.f32 %v1275, %v1476
    %1478 = vmatmul.bf16.gmra.mxu0 %v1223
    %v1479 = vpop.f32.mrf.mxu0
    %v1480 = vadd.f32 %v1275, %v1479
    %v1481 = vpop.f32.mrf.mxu0
    %v1482 = vadd.f32 %v1275, %v1481
    %1483 = vmatmul.bf16.gmra.mxu0 %v1224
    %v1484 = vpop.f32.mrf.mxu0
    %v1485 = vadd.f32 %v1275, %v1484
    %v1486 = vpop.f32.mrf.mxu0
    %v1487 = vadd.f32 %v1275, %v1486
    %1488 = vmatmul.bf16.gmra.mxu0 %v1225
    %v1489 = vpop.f32.mrf.mxu0
    %v1490 = vadd.f32 %v1275, %v1489
    %v1491 = vpop.f32.mrf.mxu0
    %v1492 = vadd.f32 %v1275, %v1491
    %1493 = vmatmul.bf16.gmra.mxu0 %v1226
    %v1494 = vpop.f32.mrf.mxu0
    %v1495 = vadd.f32 %v1275, %v1494
    %v1496 = vpop.f32.mrf.mxu0
    %v1497 = vadd.f32 %v1275, %v1496
    %1498 = vmatmul.bf16.gmra.mxu0 %v1227
    %v1499 = vpop.f32.mrf.mxu0
    %v1500 = vadd.f32 %v1275, %v1499
    %v1501 = vpop.f32.mrf.mxu0
    %v1502 = vadd.f32 %v1275, %v1501
    %1503 = vmatmul.bf16.gmra.mxu0 %v1228
    %v1504 = vpop.f32.mrf.mxu0
    %v1505 = vadd.f32 %v1275, %v1504
    %v1506 = vpop.f32.mrf.mxu0
    %v1507 = vadd.f32 %v1275, %v1506
    %1508 = vmatmul.bf16.gmra.mxu0 %v1229
    %v1509 = vpop.f32.mrf.mxu0
    %v1510 = vadd.f32 %v1275, %v1509
    %v1511 = vpop.f32.mrf.mxu0
    %v1512 = vadd.f32 %v1275, %v1511
    %1513 = vmatmul.bf16.gmra.mxu0 %v1230
    %v1514 = vpop.f32.mrf.mxu0
    %v1515 = vadd.f32 %v1275, %v1514
    %v1516 = vpop.f32.mrf.mxu0
    %v1517 = vadd.f32 %v1275, %v1516
    %1518 = vmatmul.bf16.gmra.mxu0 %v1231
    %v1519 = vpop.f32.mrf.mxu0
    %v1520 = vadd.f32 %v1275, %v1519
    %v1521 = vpop.f32.mrf.mxu0
    %v1522 = vadd.f32 %v1275, %v1521
    %1523 = vmatmul.bf16.gmra.mxu0 %v1232
    %v1524 = vpop.f32.mrf.mxu0
    %v1525 = vadd.f32 %v1275, %v1524
    %v1526 = vpop.f32.mrf.mxu0
    %v1527 = vadd.f32 %v1275, %v1526
    %1528 = vmatmul.bf16.gmra.mxu0 %v1233
    %v1529 = vpop.f32.mrf.mxu0
    %v1530 = vadd.f32 %v1275, %v1529
    %v1531 = vpop.f32.mrf.mxu0
    %v1532 = vadd.f32 %v1275, %v1531
    %1533 = vmatmul.bf16.gmra.mxu0 %v1234
    %v1534 = vpop.f32.mrf.mxu0
    %v1535 = vadd.f32 %v1275, %v1534
    %v1536 = vpop.f32.mrf.mxu0
    %v1537 = vadd.f32 %v1275, %v1536
    %1538 = vmatmul.bf16.gmra.mxu0 %v1235
    %v1539 = vpop.f32.mrf.mxu0
    %v1540 = vadd.f32 %v1275, %v1539
    %v1541 = vpop.f32.mrf.mxu0
    %v1542 = vadd.f32 %v1275, %v1541
    %1543 = vmatmul.bf16.gmra.mxu0 %v1236
    %v1544 = vpop.f32.mrf.mxu0
    %v1545 = vadd.f32 %v1275, %v1544
    %v1546 = vpop.f32.mrf.mxu0
    %v1547 = vadd.f32 %v1275, %v1546
    %1548 = vmatmul.bf16.gmra.mxu0 %v1237
    %v1549 = vpop.f32.mrf.mxu0
    %v1550 = vadd.f32 %v1275, %v1549
    %v1551 = vpop.f32.mrf.mxu0
    %v1552 = vadd.f32 %v1275, %v1551
    %1553 = vmatmul.bf16.gmra.mxu0 %v1238
    %v1554 = vpop.f32.mrf.mxu0
    %v1555 = vadd.f32 %v1275, %v1554
    %v1556 = vpop.f32.mrf.mxu0
    %v1557 = vadd.f32 %v1275, %v1556
    %1558 = vmatmul.bf16.gmra.mxu0 %v1239
    %v1559 = vpop.f32.mrf.mxu0
    %v1560 = vadd.f32 %v1275, %v1559
    %v1561 = vpop.f32.mrf.mxu0
    %v1562 = vadd.f32 %v1275, %v1561
    %1563 = vmatmul.bf16.gmra.mxu0 %v1240
    %v1564 = vpop.f32.mrf.mxu0
    %v1565 = vadd.f32 %v1275, %v1564
    %v1566 = vpop.f32.mrf.mxu0
    %v1567 = vadd.f32 %v1275, %v1566
    %1568 = vmatmul.bf16.gmra.mxu0 %v1241
    %v1569 = vpop.f32.mrf.mxu0
    %v1570 = vadd.f32 %v1275, %v1569
    %v1571 = vpop.f32.mrf.mxu0
    %v1572 = vadd.f32 %v1275, %v1571
    %1573 = vmatmul.bf16.gmra.mxu0 %v1242
    %v1574 = vpop.f32.mrf.mxu0
    %v1575 = vadd.f32 %v1275, %v1574
    %v1576 = vpop.f32.mrf.mxu0
    %v1577 = vadd.f32 %v1275, %v1576
    %1578 = vmatmul.bf16.gmra.mxu0 %v1243
    %v1579 = vpop.f32.mrf.mxu0
    %v1580 = vadd.f32 %v1275, %v1579
    %v1581 = vpop.f32.mrf.mxu0
    %v1582 = vadd.f32 %v1275, %v1581
    %1583 = vmatmul.bf16.gmra.mxu0 %v1244
    %v1584 = vpop.f32.mrf.mxu0
    %v1585 = vadd.f32 %v1275, %v1584
    %v1586 = vpop.f32.mrf.mxu0
    %v1587 = vadd.f32 %v1275, %v1586
    %1588 = vmatmul.bf16.gmra.mxu0 %v1245
    %v1589 = vpop.f32.mrf.mxu0
    %v1590 = vadd.f32 %v1275, %v1589
    %v1591 = vpop.f32.mrf.mxu0
    %v1592 = vadd.f32 %v1275, %v1591
    %1593 = vmatmul.bf16.gmra.mxu0 %v1246
    %v1594 = vpop.f32.mrf.mxu0
    %v1595 = vadd.f32 %v1275, %v1594
    %v1596 = vpop.f32.mrf.mxu0
    %v1597 = vadd.f32 %v1275, %v1596
    %1598 = vmatmul.bf16.gmra.mxu0 %v1247
    %v1599 = vpop.f32.mrf.mxu0
    %v1600 = vadd.f32 %v1275, %v1599
    %v1601 = vpop.f32.mrf.mxu0
    %v1602 = vadd.f32 %v1275, %v1601
    %1603 = vmatmul.bf16.gmra.mxu0 %v1248
    %v1604 = vpop.f32.mrf.mxu0
    %v1605 = vadd.f32 %v1275, %v1604
    %v1606 = vpop.f32.mrf.mxu0
    %v1607 = vadd.f32 %v1275, %v1606
    %1608 = vmatmul.bf16.gmra.mxu0 %v1249
    %v1609 = vpop.f32.mrf.mxu0
    %v1610 = vadd.f32 %v1275, %v1609
    %v1611 = vpop.f32.mrf.mxu0
    %v1612 = vadd.f32 %v1275, %v1611
    %1613 = vmatmul.bf16.gmra.mxu0 %v1250
    %v1614 = vpop.f32.mrf.mxu0
    %v1615 = vadd.f32 %v1275, %v1614
    %v1616 = vpop.f32.mrf.mxu0
    %v1617 = vadd.f32 %v1275, %v1616
    %1618 = vmatmul.bf16.gmra.mxu0 %v1251
    %v1619 = vpop.f32.mrf.mxu0
    %v1620 = vadd.f32 %v1275, %v1619
    %v1621 = vpop.f32.mrf.mxu0
    %v1622 = vadd.f32 %v1275, %v1621
    %1623 = vmatmul.bf16.gmra.mxu0 %v1252
    %v1624 = vpop.f32.mrf.mxu0
    %v1625 = vadd.f32 %v1275, %v1624
    %v1626 = vpop.f32.mrf.mxu0
    %v1627 = vadd.f32 %v1275, %v1626
    %1628 = vmatmul.bf16.gmra.mxu0 %v1253
    %v1629 = vpop.f32.mrf.mxu0
    %v1630 = vadd.f32 %v1275, %v1629
    %v1631 = vpop.f32.mrf.mxu0
    %v1632 = vadd.f32 %v1275, %v1631
    %1633 = vmatmul.bf16.gmra.mxu0 %v1254
    %v1634 = vpop.f32.mrf.mxu0
    %v1635 = vadd.f32 %v1275, %v1634
    %v1636 = vpop.f32.mrf.mxu0
    %v1637 = vadd.f32 %v1275, %v1636
    %1638 = vmatmul.bf16.gmra.mxu0 %v1255
    %v1639 = vpop.f32.mrf.mxu0
    %v1640 = vadd.f32 %v1275, %v1639
    %v1641 = vpop.f32.mrf.mxu0
    %v1642 = vadd.f32 %v1275, %v1641
    %1643 = vmatmul.bf16.gmra.mxu0 %v1256
    %v1644 = vpop.f32.mrf.mxu0
    %v1645 = vadd.f32 %v1275, %v1644
    %v1646 = vpop.f32.mrf.mxu0
    %v1647 = vadd.f32 %v1275, %v1646
    %1648 = vmatmul.bf16.gmra.mxu0 %v1257
    %v1649 = vpop.f32.mrf.mxu0
    %v1650 = vadd.f32 %v1275, %v1649
    %v1651 = vpop.f32.mrf.mxu0
    %v1652 = vadd.f32 %v1275, %v1651
    %1653 = vdwg.mxu0
    %v1654 = vmax.f32 %v1335, 0.0
    %v1655 = vmax.f32 %v1337, 0.0
    %v1656 = vmax.f32 %v1340, 0.0
    %v1657 = vmax.f32 %v1342, 0.0
    %v1658 = vmax.f32 %v1345, 0.0
    %v1659 = vmax.f32 %v1347, 0.0
    %v1660 = vmax.f32 %v1350, 0.0
    %v1661 = vmax.f32 %v1352, 0.0
    %v1662 = vmax.f32 %v1355, 0.0
    %v1663 = vmax.f32 %v1357, 0.0
    %v1664 = vmax.f32 %v1360, 0.0
    %v1665 = vmax.f32 %v1362, 0.0
    %v1666 = vmax.f32 %v1365, 0.0
    %v1667 = vmax.f32 %v1367, 0.0
    %v1668 = vmax.f32 %v1370, 0.0
    %v1669 = vmax.f32 %v1372, 0.0
    %v1670 = vmax.f32 %v1375, 0.0
    %v1671 = vmax.f32 %v1377, 0.0
    %v1672 = vmax.f32 %v1380, 0.0
    %v1673 = vmax.f32 %v1382, 0.0
    %v1674 = vmax.f32 %v1385, 0.0
    %v1675 = vmax.f32 %v1387, 0.0
    %v1676 = vmax.f32 %v1390, 0.0
    %v1677 = vmax.f32 %v1392, 0.0
    %v1678 = vmax.f32 %v1395, 0.0
    %v1679 = vmax.f32 %v1397, 0.0
    %v1680 = vmax.f32 %v1400, 0.0
    %v1681 = vmax.f32 %v1402, 0.0
    %v1682 = vmax.f32 %v1405, 0.0
    %v1683 = vmax.f32 %v1407, 0.0
    %v1684 = vmax.f32 %v1410, 0.0
    %v1685 = vmax.f32 %v1412, 0.0
    %v1686 = vmax.f32 %v1415, 0.0
    %v1687 = vmax.f32 %v1417, 0.0
    %v1688 = vmax.f32 %v1420, 0.0
    %v1689 = vmax.f32 %v1422, 0.0
    %v1690 = vmax.f32 %v1425, 0.0
    %v1691 = vmax.f32 %v1427, 0.0
    %v1692 = vmax.f32 %v1430, 0.0
    %v1693 = vmax.f32 %v1432, 0.0
    %v1694 = vmax.f32 %v1435, 0.0
    %v1695 = vmax.f32 %v1437, 0.0
    %v1696 = vmax.f32 %v1440, 0.0
    %v1697 = vmax.f32 %v1442, 0.0
    %v1698 = vmax.f32 %v1445, 0.0
    %v1699 = vmax.f32 %v1447, 0.0
    %v1700 = vmax.f32 %v1450, 0.0
    %v1701 = vmax.f32 %v1452, 0.0
    %v1702 = vmax.f32 %v1455, 0.0
    %v1703 = vmax.f32 %v1457, 0.0
    %v1704 = vmax.f32 %v1460, 0.0
    %v1705 = vmax.f32 %v1462, 0.0
    %v1706 = vmax.f32 %v1465, 0.0
    %v1707 = vmax.f32 %v1467, 0.0
    %v1708 = vmax.f32 %v1470, 0.0
    %v1709 = vmax.f32 %v1472, 0.0
    %v1710 = vmax.f32 %v1475, 0.0
    %v1711 = vmax.f32 %v1477, 0.0
    %v1712 = vmax.f32 %v1480, 0.0
    %v1713 = vmax.f32 %v1482, 0.0
    %v1714 = vmax.f32 %v1485, 0.0
    %v1715 = vmax.f32 %v1487, 0.0
    %v1716 = vmax.f32 %v1490, 0.0
    %v1717 = vmax.f32 %v1492, 0.0
    %v1718 = vmax.f32 %v1495, 0.0
    %v1719 = vmax.f32 %v1497, 0.0
    %v1720 = vmax.f32 %v1500, 0.0
    %v1721 = vmax.f32 %v1502, 0.0
    %v1722 = vmax.f32 %v1505, 0.0
    %v1723 = vmax.f32 %v1507, 0.0
    %v1724 = vmax.f32 %v1510, 0.0
    %v1725 = vmax.f32 %v1512, 0.0
    %v1726 = vmax.f32 %v1515, 0.0
    %v1727 = vmax.f32 %v1517, 0.0
    %v1728 = vmax.f32 %v1520, 0.0
    %v1729 = vmax.f32 %v1522, 0.0
    %v1730 = vmax.f32 %v1525, 0.0
    %v1731 = vmax.f32 %v1527, 0.0
    %v1732 = vmax.f32 %v1530, 0.0
    %v1733 = vmax.f32 %v1532, 0.0
    %v1734 = vmax.f32 %v1535, 0.0
    %v1735 = vmax.f32 %v1537, 0.0
    %v1736 = vmax.f32 %v1540, 0.0
    %v1737 = vmax.f32 %v1542, 0.0
    %v1738 = vmax.f32 %v1545, 0.0
    %v1739 = vmax.f32 %v1547, 0.0
    %v1740 = vmax.f32 %v1550, 0.0
    %v1741 = vmax.f32 %v1552, 0.0
    %v1742 = vmax.f32 %v1555, 0.0
    %v1743 = vmax.f32 %v1557, 0.0
    %v1744 = vmax.f32 %v1560, 0.0
    %v1745 = vmax.f32 %v1562, 0.0
    %v1746 = vmax.f32 %v1565, 0.0
    %v1747 = vmax.f32 %v1567, 0.0
    %v1748 = vmax.f32 %v1570, 0.0
    %v1749 = vmax.f32 %v1572, 0.0
    %v1750 = vmax.f32 %v1575, 0.0
    %v1751 = vmax.f32 %v1577, 0.0
    %v1752 = vmax.f32 %v1580, 0.0
    %v1753 = vmax.f32 %v1582, 0.0
    %v1754 = vmax.f32 %v1585, 0.0
    %v1755 = vmax.f32 %v1587, 0.0
    %v1756 = vmax.f32 %v1590, 0.0
    %v1757 = vmax.f32 %v1592, 0.0
    %v1758 = vmax.f32 %v1595, 0.0
    %v1759 = vmax.f32 %v1597, 0.0
    %v1760 = vmax.f32 %v1600, 0.0
    %v1761 = vmax.f32 %v1602, 0.0
    %v1762 = vmax.f32 %v1605, 0.0
    %v1763 = vmax.f32 %v1607, 0.0
    %v1764 = vmax.f32 %v1610, 0.0
    %v1765 = vmax.f32 %v1612, 0.0
    %v1766 = vmax.f32 %v1615, 0.0
    %v1767 = vmax.f32 %v1617, 0.0
    %v1768 = vmax.f32 %v1620, 0.0
    %v1769 = vmax.f32 %v1622, 0.0
    %v1770 = vmax.f32 %v1625, 0.0
    %v1771 = vmax.f32 %v1627, 0.0
    %v1772 = vmax.f32 %v1630, 0.0
    %v1773 = vmax.f32 %v1632, 0.0
    %v1774 = vmax.f32 %v1635, 0.0
    %v1775 = vmax.f32 %v1637, 0.0
    %v1776 = vmax.f32 %v1640, 0.0
    %v1777 = vmax.f32 %v1642, 0.0
    %v1778 = vmax.f32 %v1645, 0.0
    %v1779 = vmax.f32 %v1647, 0.0
    %v1780 = vmax.f32 %v1650, 0.0
    %v1781 = vmax.f32 %v1652, 0.0
    %v1782 = vld [vmem:[%s6] sm:$0x1]
    %v1783 = vpack.c.bf16 %v1655, %v1654
    %v1784 = vpack.c.bf16 %v1657, %v1656
    %v1785 = vpack.c.bf16 %v1659, %v1658
    %v1786 = vpack.c.bf16 %v1661, %v1660
    %v1787 = vpack.c.bf16 %v1663, %v1662
    %v1788 = vpack.c.bf16 %v1665, %v1664
    %v1789 = vpack.c.bf16 %v1667, %v1666
    %v1790 = vpack.c.bf16 %v1669, %v1668
    %v1791 = vpack.c.bf16 %v1671, %v1670
    %v1792 = vpack.c.bf16 %v1673, %v1672
    %v1793 = vpack.c.bf16 %v1675, %v1674
    %v1794 = vpack.c.bf16 %v1677, %v1676
    %v1795 = vpack.c.bf16 %v1679, %v1678
    %v1796 = vpack.c.bf16 %v1681, %v1680
    %v1797 = vpack.c.bf16 %v1683, %v1682
    %v1798 = vpack.c.bf16 %v1685, %v1684
    %v1799 = vpack.c.bf16 %v1687, %v1686
    %v1800 = vpack.c.bf16 %v1689, %v1688
    %v1801 = vpack.c.bf16 %v1691, %v1690
    %v1802 = vpack.c.bf16 %v1693, %v1692
    %v1803 = vpack.c.bf16 %v1695, %v1694
    %v1804 = vpack.c.bf16 %v1697, %v1696
    %v1805 = vpack.c.bf16 %v1699, %v1698
    %v1806 = vpack.c.bf16 %v1701, %v1700
    %v1807 = vpack.c.bf16 %v1703, %v1702
    %v1808 = vpack.c.bf16 %v1705, %v1704
    %v1809 = vpack.c.bf16 %v1707, %v1706
    %v1810 = vpack.c.bf16 %v1709, %v1708
    %v1811 = vpack.c.bf16 %v1711, %v1710
    %v1812 = vpack.c.bf16 %v1713, %v1712
    %v1813 = vpack.c.bf16 %v1715, %v1714
    %v1814 = vpack.c.bf16 %v1717, %v1716
    %v1815 = vpack.c.bf16 %v1719, %v1718
    %v1816 = vpack.c.bf16 %v1721, %v1720
    %v1817 = vpack.c.bf16 %v1723, %v1722
    %v1818 = vpack.c.bf16 %v1725, %v1724
    %v1819 = vpack.c.bf16 %v1727, %v1726
    %v1820 = vpack.c.bf16 %v1729, %v1728
    %v1821 = vpack.c.bf16 %v1731, %v1730
    %v1822 = vpack.c.bf16 %v1733, %v1732
    %v1823 = vpack.c.bf16 %v1735, %v1734
    %v1824 = vpack.c.bf16 %v1737, %v1736
    %v1825 = vpack.c.bf16 %v1739, %v1738
    %v1826 = vpack.c.bf16 %v1741, %v1740
    %v1827 = vpack.c.bf16 %v1743, %v1742
    %v1828 = vpack.c.bf16 %v1745, %v1744
    %v1829 = vpack.c.bf16 %v1747, %v1746
    %v1830 = vpack.c.bf16 %v1749, %v1748
    %v1831 = vpack.c.bf16 %v1751, %v1750
    %v1832 = vpack.c.bf16 %v1753, %v1752
    %v1833 = vpack.c.bf16 %v1755, %v1754
    %v1834 = vpack.c.bf16 %v1757, %v1756
    %v1835 = vpack.c.bf16 %v1759, %v1758
    %v1836 = vpack.c.bf16 %v1761, %v1760
    %v1837 = vpack.c.bf16 %v1763, %v1762
    %v1838 = vpack.c.bf16 %v1765, %v1764
    %v1839 = vpack.c.bf16 %v1767, %v1766
    %v1840 = vpack.c.bf16 %v1769, %v1768
    %v1841 = vpack.c.bf16 %v1771, %v1770
    %v1842 = vpack.c.bf16 %v1773, %v1772
    %v1843 = vpack.c.bf16 %v1775, %v1774
    %v1844 = vpack.c.bf16 %v1777, %v1776
    %v1845 = vpack.c.bf16 %v1779, %v1778
    %v1846 = vpack.c.bf16 %v1781, %v1780
    %v1847 = vld [vmem:[%s5] sm:$0xf]
    %v1848 = vld [vmem:[%s5 + $0x4] sm:$0xf]
    %v1849 = vld [vmem:[%s5 + $0x8] sm:$0xf]
    %v1850 = vld [vmem:[%s5 + $0xc] sm:$0xf]
    %v1851 = vld [vmem:[%s5 + $0x10] sm:$0xf]
    %v1852 = vld [vmem:[%s5 + $0x14] sm:$0xf]
    %v1853 = vld [vmem:[%s5 + $0x18] sm:$0xf]
    %v1854 = vld [vmem:[%s5 + $0x1c] sm:$0xf]
    %v1855 = vld [vmem:[%s5 + $0x20] sm:$0xf]
    %v1856 = vld [vmem:[%s5 + $0x24] sm:$0xf]
    %v1857 = vld [vmem:[%s5 + $0x28] sm:$0xf]
    %v1858 = vld [vmem:[%s5 + $0x2c] sm:$0xf]
    %v1859 = vld [vmem:[%s5 + $0x30] sm:$0xf]
    %v1860 = vld [vmem:[%s5 + $0x34] sm:$0xf]
    %v1861 = vld [vmem:[%s5 + $0x38] sm:$0xf]
    %v1862 = vld [vmem:[%s5 + $0x3c] sm:$0xf]
    %v1864 = vperm.slane %v1782, 0
    %v1882 = vunpack.c.l.b16 %v1847
    %v1883 = vunpack.c.l.b16 %v1848
    %v1884 = vunpack.c.l.b16 %v1849
    %v1885 = vunpack.c.l.b16 %v1850
    %v1886 = vunpack.c.l.b16 %v1851
    %v1887 = vunpack.c.l.b16 %v1852
    %v1888 = vunpack.c.l.b16 %v1853
    %v1889 = vunpack.c.l.b16 %v1854
    %v1890 = vunpack.c.l.b16 %v1855
    %v1891 = vunpack.c.l.b16 %v1856
    %v1892 = vunpack.c.l.b16 %v1857
    %v1893 = vunpack.c.l.b16 %v1858
    %v1894 = vunpack.c.l.b16 %v1859
    %v1895 = vunpack.c.l.b16 %v1860
    %v1896 = vunpack.c.l.b16 %v1861
    %v1897 = vunpack.c.l.b16 %v1862
    %v1898 = vpack.c.b16 %v1883, %v1882
    %v1899 = vpack.c.b16 %v1885, %v1884
    %v1900 = vpack.c.b16 %v1887, %v1886
    %v1901 = vpack.c.b16 %v1889, %v1888
    %v1902 = vpack.c.b16 %v1891, %v1890
    %v1903 = vpack.c.b16 %v1893, %v1892
    %v1904 = vpack.c.b16 %v1895, %v1894
    %v1905 = vpack.c.b16 %v1897, %v1896
    %1914 = vmatpush.bf16.msra.mxu0 %v1905
    %1915 = vmatpush.bf16.msra.mxu0 %v1904
    %1916 = vmatpush.bf16.msra.mxu0 %v1903
    %1917 = vmatpush.bf16.msra.mxu0 %v1902
    %1918 = vmatpush.bf16.msra.mxu0 %v1901
    %1919 = vmatpush.bf16.msra.mxu0 %v1900
    %1920 = vmatpush.bf16.msra.mxu0 %v1899
    %1921 = vmatpush.bf16.msra.mxu0 %v1898
    %1922 = vmatmul.bf16.gmra.mxu0 %v1783
    %v1923 = vpop.f32.mrf.mxu0
    %v1924 = vadd.f32 %v1864, %v1923
    %v1925 = vpop.f32.mrf.mxu0
    %v1926 = vadd.f32 %v1864, %v1925
    %1927 = vmatmul.bf16.gmra.mxu0 %v1784
    %v1928 = vpop.f32.mrf.mxu0
    %v1929 = vadd.f32 %v1864, %v1928
    %v1930 = vpop.f32.mrf.mxu0
    %v1931 = vadd.f32 %v1864, %v1930
    %1932 = vmatmul.bf16.gmra.mxu0 %v1785
    %v1933 = vpop.f32.mrf.mxu0
    %v1934 = vadd.f32 %v1864, %v1933
    %v1935 = vpop.f32.mrf.mxu0
    %v1936 = vadd.f32 %v1864, %v1935
    %1937 = vmatmul.bf16.gmra.mxu0 %v1786
    %v1938 = vpop.f32.mrf.mxu0
    %v1939 = vadd.f32 %v1864, %v1938
    %v1940 = vpop.f32.mrf.mxu0
    %v1941 = vadd.f32 %v1864, %v1940
    %1942 = vmatmul.bf16.gmra.mxu0 %v1787
    %v1943 = vpop.f32.mrf.mxu0
    %v1944 = vadd.f32 %v1864, %v1943
    %v1945 = vpop.f32.mrf.mxu0
    %v1946 = vadd.f32 %v1864, %v1945
    %1947 = vmatmul.bf16.gmra.mxu0 %v1788
    %v1948 = vpop.f32.mrf.mxu0
    %v1949 = vadd.f32 %v1864, %v1948
    %v1950 = vpop.f32.mrf.mxu0
    %v1951 = vadd.f32 %v1864, %v1950
    %1952 = vmatmul.bf16.gmra.mxu0 %v1789
    %v1953 = vpop.f32.mrf.mxu0
    %v1954 = vadd.f32 %v1864, %v1953
    %v1955 = vpop.f32.mrf.mxu0
    %v1956 = vadd.f32 %v1864, %v1955
    %1957 = vmatmul.bf16.gmra.mxu0 %v1790
    %v1958 = vpop.f32.mrf.mxu0
    %v1959 = vadd.f32 %v1864, %v1958
    %v1960 = vpop.f32.mrf.mxu0
    %v1961 = vadd.f32 %v1864, %v1960
    %1962 = vmatmul.bf16.gmra.mxu0 %v1791
    %v1963 = vpop.f32.mrf.mxu0
    %v1964 = vadd.f32 %v1864, %v1963
    %v1965 = vpop.f32.mrf.mxu0
    %v1966 = vadd.f32 %v1864, %v1965
    %1967 = vmatmul.bf16.gmra.mxu0 %v1792
    %v1968 = vpop.f32.mrf.mxu0
    %v1969 = vadd.f32 %v1864, %v1968
    %v1970 = vpop.f32.mrf.mxu0
    %v1971 = vadd.f32 %v1864, %v1970
    %1972 = vmatmul.bf16.gmra.mxu0 %v1793
    %v1973 = vpop.f32.mrf.mxu0
    %v1974 = vadd.f32 %v1864, %v1973
    %v1975 = vpop.f32.mrf.mxu0
    %v1976 = vadd.f32 %v1864, %v1975
    %1977 = vmatmul.bf16.gmra.mxu0 %v1794
    %v1978 = vpop.f32.mrf.mxu0
    %v1979 = vadd.f32 %v1864, %v1978
    %v1980 = vpop.f32.mrf.mxu0
    %v1981 = vadd.f32 %v1864, %v1980
    %1982 = vmatmul.bf16.gmra.mxu0 %v1795
    %v1983 = vpop.f32.mrf.mxu0
    %v1984 = vadd.f32 %v1864, %v1983
    %v1985 = vpop.f32.mrf.mxu0
    %v1986 = vadd.f32 %v1864, %v1985
    %1987 = vmatmul.bf16.gmra.mxu0 %v1796
    %v1988 = vpop.f32.mrf.mxu0
    %v1989 = vadd.f32 %v1864, %v1988
    %v1990 = vpop.f32.mrf.mxu0
    %v1991 = vadd.f32 %v1864, %v1990
    %1992 = vmatmul.bf16.gmra.mxu0 %v1797
    %v1993 = vpop.f32.mrf.mxu0
    %v1994 = vadd.f32 %v1864, %v1993
    %v1995 = vpop.f32.mrf.mxu0
    %v1996 = vadd.f32 %v1864, %v1995
    %1997 = vmatmul.bf16.gmra.mxu0 %v1798
    %v1998 = vpop.f32.mrf.mxu0
    %v1999 = vadd.f32 %v1864, %v1998
    %v2000 = vpop.f32.mrf.mxu0
    %v2001 = vadd.f32 %v1864, %v2000
    %2002 = vmatmul.bf16.gmra.mxu0 %v1799
    %v2003 = vpop.f32.mrf.mxu0
    %v2004 = vadd.f32 %v1864, %v2003
    %v2005 = vpop.f32.mrf.mxu0
    %v2006 = vadd.f32 %v1864, %v2005
    %2007 = vmatmul.bf16.gmra.mxu0 %v1800
    %v2008 = vpop.f32.mrf.mxu0
    %v2009 = vadd.f32 %v1864, %v2008
    %v2010 = vpop.f32.mrf.mxu0
    %v2011 = vadd.f32 %v1864, %v2010
    %2012 = vmatmul.bf16.gmra.mxu0 %v1801
    %v2013 = vpop.f32.mrf.mxu0
    %v2014 = vadd.f32 %v1864, %v2013
    %v2015 = vpop.f32.mrf.mxu0
    %v2016 = vadd.f32 %v1864, %v2015
    %2017 = vmatmul.bf16.gmra.mxu0 %v1802
    %v2018 = vpop.f32.mrf.mxu0
    %v2019 = vadd.f32 %v1864, %v2018
    %v2020 = vpop.f32.mrf.mxu0
    %v2021 = vadd.f32 %v1864, %v2020
    %2022 = vmatmul.bf16.gmra.mxu0 %v1803
    %v2023 = vpop.f32.mrf.mxu0
    %v2024 = vadd.f32 %v1864, %v2023
    %v2025 = vpop.f32.mrf.mxu0
    %v2026 = vadd.f32 %v1864, %v2025
    %2027 = vmatmul.bf16.gmra.mxu0 %v1804
    %v2028 = vpop.f32.mrf.mxu0
    %v2029 = vadd.f32 %v1864, %v2028
    %v2030 = vpop.f32.mrf.mxu0
    %v2031 = vadd.f32 %v1864, %v2030
    %2032 = vmatmul.bf16.gmra.mxu0 %v1805
    %v2033 = vpop.f32.mrf.mxu0
    %v2034 = vadd.f32 %v1864, %v2033
    %v2035 = vpop.f32.mrf.mxu0
    %v2036 = vadd.f32 %v1864, %v2035
    %2037 = vmatmul.bf16.gmra.mxu0 %v1806
    %v2038 = vpop.f32.mrf.mxu0
    %v2039 = vadd.f32 %v1864, %v2038
    %v2040 = vpop.f32.mrf.mxu0
    %v2041 = vadd.f32 %v1864, %v2040
    %2042 = vmatmul.bf16.gmra.mxu0 %v1807
    %v2043 = vpop.f32.mrf.mxu0
    %v2044 = vadd.f32 %v1864, %v2043
    %v2045 = vpop.f32.mrf.mxu0
    %v2046 = vadd.f32 %v1864, %v2045
    %2047 = vmatmul.bf16.gmra.mxu0 %v1808
    %v2048 = vpop.f32.mrf.mxu0
    %v2049 = vadd.f32 %v1864, %v2048
    %v2050 = vpop.f32.mrf.mxu0
    %v2051 = vadd.f32 %v1864, %v2050
    %2052 = vmatmul.bf16.gmra.mxu0 %v1809
    %v2053 = vpop.f32.mrf.mxu0
    %v2054 = vadd.f32 %v1864, %v2053
    %v2055 = vpop.f32.mrf.mxu0
    %v2056 = vadd.f32 %v1864, %v2055
    %2057 = vmatmul.bf16.gmra.mxu0 %v1810
    %v2058 = vpop.f32.mrf.mxu0
    %v2059 = vadd.f32 %v1864, %v2058
    %v2060 = vpop.f32.mrf.mxu0
    %v2061 = vadd.f32 %v1864, %v2060
    %2062 = vmatmul.bf16.gmra.mxu0 %v1811
    %v2063 = vpop.f32.mrf.mxu0
    %v2064 = vadd.f32 %v1864, %v2063
    %v2065 = vpop.f32.mrf.mxu0
    %v2066 = vadd.f32 %v1864, %v2065
    %2067 = vmatmul.bf16.gmra.mxu0 %v1812
    %v2068 = vpop.f32.mrf.mxu0
    %v2069 = vadd.f32 %v1864, %v2068
    %v2070 = vpop.f32.mrf.mxu0
    %v2071 = vadd.f32 %v1864, %v2070
    %2072 = vmatmul.bf16.gmra.mxu0 %v1813
    %v2073 = vpop.f32.mrf.mxu0
    %v2074 = vadd.f32 %v1864, %v2073
    %v2075 = vpop.f32.mrf.mxu0
    %v2076 = vadd.f32 %v1864, %v2075
    %2077 = vmatmul.bf16.gmra.mxu0 %v1814
    %v2078 = vpop.f32.mrf.mxu0
    %v2079 = vadd.f32 %v1864, %v2078
    %v2080 = vpop.f32.mrf.mxu0
    %v2081 = vadd.f32 %v1864, %v2080
    %2082 = vmatmul.bf16.gmra.mxu0 %v1815
    %v2083 = vpop.f32.mrf.mxu0
    %v2084 = vadd.f32 %v1864, %v2083
    %v2085 = vpop.f32.mrf.mxu0
    %v2086 = vadd.f32 %v1864, %v2085
    %2087 = vmatmul.bf16.gmra.mxu0 %v1816
    %v2088 = vpop.f32.mrf.mxu0
    %v2089 = vadd.f32 %v1864, %v2088
    %v2090 = vpop.f32.mrf.mxu0
    %v2091 = vadd.f32 %v1864, %v2090
    %2092 = vmatmul.bf16.gmra.mxu0 %v1817
    %v2093 = vpop.f32.mrf.mxu0
    %v2094 = vadd.f32 %v1864, %v2093
    %v2095 = vpop.f32.mrf.mxu0
    %v2096 = vadd.f32 %v1864, %v2095
    %2097 = vmatmul.bf16.gmra.mxu0 %v1818
    %v2098 = vpop.f32.mrf.mxu0
    %v2099 = vadd.f32 %v1864, %v2098
    %v2100 = vpop.f32.mrf.mxu0
    %v2101 = vadd.f32 %v1864, %v2100
    %2102 = vmatmul.bf16.gmra.mxu0 %v1819
    %v2103 = vpop.f32.mrf.mxu0
    %v2104 = vadd.f32 %v1864, %v2103
    %v2105 = vpop.f32.mrf.mxu0
    %v2106 = vadd.f32 %v1864, %v2105
    %2107 = vmatmul.bf16.gmra.mxu0 %v1820
    %v2108 = vpop.f32.mrf.mxu0
    %v2109 = vadd.f32 %v1864, %v2108
    %v2110 = vpop.f32.mrf.mxu0
    %v2111 = vadd.f32 %v1864, %v2110
    %2112 = vmatmul.bf16.gmra.mxu0 %v1821
    %v2113 = vpop.f32.mrf.mxu0
    %v2114 = vadd.f32 %v1864, %v2113
    %v2115 = vpop.f32.mrf.mxu0
    %v2116 = vadd.f32 %v1864, %v2115
    %2117 = vmatmul.bf16.gmra.mxu0 %v1822
    %v2118 = vpop.f32.mrf.mxu0
    %v2119 = vadd.f32 %v1864, %v2118
    %v2120 = vpop.f32.mrf.mxu0
    %v2121 = vadd.f32 %v1864, %v2120
    %2122 = vmatmul.bf16.gmra.mxu0 %v1823
    %v2123 = vpop.f32.mrf.mxu0
    %v2124 = vadd.f32 %v1864, %v2123
    %v2125 = vpop.f32.mrf.mxu0
    %v2126 = vadd.f32 %v1864, %v2125
    %2127 = vmatmul.bf16.gmra.mxu0 %v1824
    %v2128 = vpop.f32.mrf.mxu0
    %v2129 = vadd.f32 %v1864, %v2128
    %v2130 = vpop.f32.mrf.mxu0
    %v2131 = vadd.f32 %v1864, %v2130
    %2132 = vmatmul.bf16.gmra.mxu0 %v1825
    %v2133 = vpop.f32.mrf.mxu0
    %v2134 = vadd.f32 %v1864, %v2133
    %v2135 = vpop.f32.mrf.mxu0
    %v2136 = vadd.f32 %v1864, %v2135
    %2137 = vmatmul.bf16.gmra.mxu0 %v1826
    %v2138 = vpop.f32.mrf.mxu0
    %v2139 = vadd.f32 %v1864, %v2138
    %v2140 = vpop.f32.mrf.mxu0
    %v2141 = vadd.f32 %v1864, %v2140
    %2142 = vmatmul.bf16.gmra.mxu0 %v1827
    %v2143 = vpop.f32.mrf.mxu0
    %v2144 = vadd.f32 %v1864, %v2143
    %v2145 = vpop.f32.mrf.mxu0
    %v2146 = vadd.f32 %v1864, %v2145
    %2147 = vmatmul.bf16.gmra.mxu0 %v1828
    %v2148 = vpop.f32.mrf.mxu0
    %v2149 = vadd.f32 %v1864, %v2148
    %v2150 = vpop.f32.mrf.mxu0
    %v2151 = vadd.f32 %v1864, %v2150
    %2152 = vmatmul.bf16.gmra.mxu0 %v1829
    %v2153 = vpop.f32.mrf.mxu0
    %v2154 = vadd.f32 %v1864, %v2153
    %v2155 = vpop.f32.mrf.mxu0
    %v2156 = vadd.f32 %v1864, %v2155
    %2157 = vmatmul.bf16.gmra.mxu0 %v1830
    %v2158 = vpop.f32.mrf.mxu0
    %v2159 = vadd.f32 %v1864, %v2158
    %v2160 = vpop.f32.mrf.mxu0
    %v2161 = vadd.f32 %v1864, %v2160
    %2162 = vmatmul.bf16.gmra.mxu0 %v1831
    %v2163 = vpop.f32.mrf.mxu0
    %v2164 = vadd.f32 %v1864, %v2163
    %v2165 = vpop.f32.mrf.mxu0
    %v2166 = vadd.f32 %v1864, %v2165
    %2167 = vmatmul.bf16.gmra.mxu0 %v1832
    %v2168 = vpop.f32.mrf.mxu0
    %v2169 = vadd.f32 %v1864, %v2168
    %v2170 = vpop.f32.mrf.mxu0
    %v2171 = vadd.f32 %v1864, %v2170
    %2172 = vmatmul.bf16.gmra.mxu0 %v1833
    %v2173 = vpop.f32.mrf.mxu0
    %v2174 = vadd.f32 %v1864, %v2173
    %v2175 = vpop.f32.mrf.mxu0
    %v2176 = vadd.f32 %v1864, %v2175
    %2177 = vmatmul.bf16.gmra.mxu0 %v1834
    %v2178 = vpop.f32.mrf.mxu0
    %v2179 = vadd.f32 %v1864, %v2178
    %v2180 = vpop.f32.mrf.mxu0
    %v2181 = vadd.f32 %v1864, %v2180
    %2182 = vmatmul.bf16.gmra.mxu0 %v1835
    %v2183 = vpop.f32.mrf.mxu0
    %v2184 = vadd.f32 %v1864, %v2183
    %v2185 = vpop.f32.mrf.mxu0
    %v2186 = vadd.f32 %v1864, %v2185
    %2187 = vmatmul.bf16.gmra.mxu0 %v1836
    %v2188 = vpop.f32.mrf.mxu0
    %v2189 = vadd.f32 %v1864, %v2188
    %v2190 = vpop.f32.mrf.mxu0
    %v2191 = vadd.f32 %v1864, %v2190
    %2192 = vmatmul.bf16.gmra.mxu0 %v1837
    %v2193 = vpop.f32.mrf.mxu0
    %v2194 = vadd.f32 %v1864, %v2193
    %v2195 = vpop.f32.mrf.mxu0
    %v2196 = vadd.f32 %v1864, %v2195
    %2197 = vmatmul.bf16.gmra.mxu0 %v1838
    %v2198 = vpop.f32.mrf.mxu0
    %v2199 = vadd.f32 %v1864, %v2198
    %v2200 = vpop.f32.mrf.mxu0
    %v2201 = vadd.f32 %v1864, %v2200
    %2202 = vmatmul.bf16.gmra.mxu0 %v1839
    %v2203 = vpop.f32.mrf.mxu0
    %v2204 = vadd.f32 %v1864, %v2203
    %v2205 = vpop.f32.mrf.mxu0
    %v2206 = vadd.f32 %v1864, %v2205
    %2207 = vmatmul.bf16.gmra.mxu0 %v1840
    %v2208 = vpop.f32.mrf.mxu0
    %v2209 = vadd.f32 %v1864, %v2208
    %v2210 = vpop.f32.mrf.mxu0
    %v2211 = vadd.f32 %v1864, %v2210
    %2212 = vmatmul.bf16.gmra.mxu0 %v1841
    %v2213 = vpop.f32.mrf.mxu0
    %v2214 = vadd.f32 %v1864, %v2213
    %v2215 = vpop.f32.mrf.mxu0
    %v2216 = vadd.f32 %v1864, %v2215
    %2217 = vmatmul.bf16.gmra.mxu0 %v1842
    %v2218 = vpop.f32.mrf.mxu0
    %v2219 = vadd.f32 %v1864, %v2218
    %v2220 = vpop.f32.mrf.mxu0
    %v2221 = vadd.f32 %v1864, %v2220
    %2222 = vmatmul.bf16.gmra.mxu0 %v1843
    %v2223 = vpop.f32.mrf.mxu0
    %v2224 = vadd.f32 %v1864, %v2223
    %v2225 = vpop.f32.mrf.mxu0
    %v2226 = vadd.f32 %v1864, %v2225
    %2227 = vmatmul.bf16.gmra.mxu0 %v1844
    %v2228 = vpop.f32.mrf.mxu0
    %v2229 = vadd.f32 %v1864, %v2228
    %v2230 = vpop.f32.mrf.mxu0
    %v2231 = vadd.f32 %v1864, %v2230
    %2232 = vmatmul.bf16.gmra.mxu0 %v1845
    %v2233 = vpop.f32.mrf.mxu0
    %v2234 = vadd.f32 %v1864, %v2233
    %v2235 = vpop.f32.mrf.mxu0
    %v2236 = vadd.f32 %v1864, %v2235
    %2237 = vmatmul.bf16.gmra.mxu0 %v1846
    %v2238 = vpop.f32.mrf.mxu0
    %v2239 = vadd.f32 %v1864, %v2238
    %v2240 = vpop.f32.mrf.mxu0
    %v2241 = vadd.f32 %v1864, %v2240
    %2242 = vdwg.mxu0
    %v2243 = vmax.f32 %v1924, 0.0
    %v2244 = vmax.f32 %v1926, 0.0
    %v2245 = vmax.f32 %v1929, 0.0
    %v2246 = vmax.f32 %v1931, 0.0
    %v2247 = vmax.f32 %v1934, 0.0
    %v2248 = vmax.f32 %v1936, 0.0
    %v2249 = vmax.f32 %v1939, 0.0
    %v2250 = vmax.f32 %v1941, 0.0
    %v2251 = vmax.f32 %v1944, 0.0
    %v2252 = vmax.f32 %v1946, 0.0
    %v2253 = vmax.f32 %v1949, 0.0
    %v2254 = vmax.f32 %v1951, 0.0
    %v2255 = vmax.f32 %v1954, 0.0
    %v2256 = vmax.f32 %v1956, 0.0
    %v2257 = vmax.f32 %v1959, 0.0
    %v2258 = vmax.f32 %v1961, 0.0
    %v2259 = vmax.f32 %v1964, 0.0
    %v2260 = vmax.f32 %v1966, 0.0
    %v2261 = vmax.f32 %v1969, 0.0
    %v2262 = vmax.f32 %v1971, 0.0
    %v2263 = vmax.f32 %v1974, 0.0
    %v2264 = vmax.f32 %v1976, 0.0
    %v2265 = vmax.f32 %v1979, 0.0
    %v2266 = vmax.f32 %v1981, 0.0
    %v2267 = vmax.f32 %v1984, 0.0
    %v2268 = vmax.f32 %v1986, 0.0
    %v2269 = vmax.f32 %v1989, 0.0
    %v2270 = vmax.f32 %v1991, 0.0
    %v2271 = vmax.f32 %v1994, 0.0
    %v2272 = vmax.f32 %v1996, 0.0
    %v2273 = vmax.f32 %v1999, 0.0
    %v2274 = vmax.f32 %v2001, 0.0
    %v2275 = vmax.f32 %v2004, 0.0
    %v2276 = vmax.f32 %v2006, 0.0
    %v2277 = vmax.f32 %v2009, 0.0
    %v2278 = vmax.f32 %v2011, 0.0
    %v2279 = vmax.f32 %v2014, 0.0
    %v2280 = vmax.f32 %v2016, 0.0
    %v2281 = vmax.f32 %v2019, 0.0
    %v2282 = vmax.f32 %v2021, 0.0
    %v2283 = vmax.f32 %v2024, 0.0
    %v2284 = vmax.f32 %v2026, 0.0
    %v2285 = vmax.f32 %v2029, 0.0
    %v2286 = vmax.f32 %v2031, 0.0
    %v2287 = vmax.f32 %v2034, 0.0
    %v2288 = vmax.f32 %v2036, 0.0
    %v2289 = vmax.f32 %v2039, 0.0
    %v2290 = vmax.f32 %v2041, 0.0
    %v2291 = vmax.f32 %v2044, 0.0
    %v2292 = vmax.f32 %v2046, 0.0
    %v2293 = vmax.f32 %v2049, 0.0
    %v2294 = vmax.f32 %v2051, 0.0
    %v2295 = vmax.f32 %v2054, 0.0
    %v2296 = vmax.f32 %v2056, 0.0
    %v2297 = vmax.f32 %v2059, 0.0
    %v2298 = vmax.f32 %v2061, 0.0
    %v2299 = vmax.f32 %v2064, 0.0
    %v2300 = vmax.f32 %v2066, 0.0
    %v2301 = vmax.f32 %v2069, 0.0
    %v2302 = vmax.f32 %v2071, 0.0
    %v2303 = vmax.f32 %v2074, 0.0
    %v2304 = vmax.f32 %v2076, 0.0
    %v2305 = vmax.f32 %v2079, 0.0
    %v2306 = vmax.f32 %v2081, 0.0
    %v2307 = vmax.f32 %v2084, 0.0
    %v2308 = vmax.f32 %v2086, 0.0
    %v2309 = vmax.f32 %v2089, 0.0
    %v2310 = vmax.f32 %v2091, 0.0
    %v2311 = vmax.f32 %v2094, 0.0
    %v2312 = vmax.f32 %v2096, 0.0
    %v2313 = vmax.f32 %v2099, 0.0
    %v2314 = vmax.f32 %v2101, 0.0
    %v2315 = vmax.f32 %v2104, 0.0
    %v2316 = vmax.f32 %v2106, 0.0
    %v2317 = vmax.f32 %v2109, 0.0
    %v2318 = vmax.f32 %v2111, 0.0
    %v2319 = vmax.f32 %v2114, 0.0
    %v2320 = vmax.f32 %v2116, 0.0
    %v2321 = vmax.f32 %v2119, 0.0
    %v2322 = vmax.f32 %v2121, 0.0
    %v2323 = vmax.f32 %v2124, 0.0
    %v2324 = vmax.f32 %v2126, 0.0
    %v2325 = vmax.f32 %v2129, 0.0
    %v2326 = vmax.f32 %v2131, 0.0
    %v2327 = vmax.f32 %v2134, 0.0
    %v2328 = vmax.f32 %v2136, 0.0
    %v2329 = vmax.f32 %v2139, 0.0
    %v2330 = vmax.f32 %v2141, 0.0
    %v2331 = vmax.f32 %v2144, 0.0
    %v2332 = vmax.f32 %v2146, 0.0
    %v2333 = vmax.f32 %v2149, 0.0
    %v2334 = vmax.f32 %v2151, 0.0
    %v2335 = vmax.f32 %v2154, 0.0
    %v2336 = vmax.f32 %v2156, 0.0
    %v2337 = vmax.f32 %v2159, 0.0
    %v2338 = vmax.f32 %v2161, 0.0
    %v2339 = vmax.f32 %v2164, 0.0
    %v2340 = vmax.f32 %v2166, 0.0
    %v2341 = vmax.f32 %v2169, 0.0
    %v2342 = vmax.f32 %v2171, 0.0
    %v2343 = vmax.f32 %v2174, 0.0
    %v2344 = vmax.f32 %v2176, 0.0
    %v2345 = vmax.f32 %v2179, 0.0
    %v2346 = vmax.f32 %v2181, 0.0
    %v2347 = vmax.f32 %v2184, 0.0
    %v2348 = vmax.f32 %v2186, 0.0
    %v2349 = vmax.f32 %v2189, 0.0
    %v2350 = vmax.f32 %v2191, 0.0
    %v2351 = vmax.f32 %v2194, 0.0
    %v2352 = vmax.f32 %v2196, 0.0
    %v2353 = vmax.f32 %v2199, 0.0
    %v2354 = vmax.f32 %v2201, 0.0
    %v2355 = vmax.f32 %v2204, 0.0
    %v2356 = vmax.f32 %v2206, 0.0
    %v2357 = vmax.f32 %v2209, 0.0
    %v2358 = vmax.f32 %v2211, 0.0
    %v2359 = vmax.f32 %v2214, 0.0
    %v2360 = vmax.f32 %v2216, 0.0
    %v2361 = vmax.f32 %v2219, 0.0
    %v2362 = vmax.f32 %v2221, 0.0
    %v2363 = vmax.f32 %v2224, 0.0
    %v2364 = vmax.f32 %v2226, 0.0
    %v2365 = vmax.f32 %v2229, 0.0
    %v2366 = vmax.f32 %v2231, 0.0
    %v2367 = vmax.f32 %v2234, 0.0
    %v2368 = vmax.f32 %v2236, 0.0
    %v2369 = vmax.f32 %v2239, 0.0
    %v2370 = vmax.f32 %v2241, 0.0
    %v2371 = vld [vmem:[%s8] sm:$0x1]
    %v2372 = vpack.c.bf16 %v2244, %v2243
    %v2373 = vpack.c.bf16 %v2246, %v2245
    %v2374 = vpack.c.bf16 %v2248, %v2247
    %v2375 = vpack.c.bf16 %v2250, %v2249
    %v2376 = vpack.c.bf16 %v2252, %v2251
    %v2377 = vpack.c.bf16 %v2254, %v2253
    %v2378 = vpack.c.bf16 %v2256, %v2255
    %v2379 = vpack.c.bf16 %v2258, %v2257
    %v2380 = vpack.c.bf16 %v2260, %v2259
    %v2381 = vpack.c.bf16 %v2262, %v2261
    %v2382 = vpack.c.bf16 %v2264, %v2263
    %v2383 = vpack.c.bf16 %v2266, %v2265
    %v2384 = vpack.c.bf16 %v2268, %v2267
    %v2385 = vpack.c.bf16 %v2270, %v2269
    %v2386 = vpack.c.bf16 %v2272, %v2271
    %v2387 = vpack.c.bf16 %v2274, %v2273
    %v2388 = vpack.c.bf16 %v2276, %v2275
    %v2389 = vpack.c.bf16 %v2278, %v2277
    %v2390 = vpack.c.bf16 %v2280, %v2279
    %v2391 = vpack.c.bf16 %v2282, %v2281
    %v2392 = vpack.c.bf16 %v2284, %v2283
    %v2393 = vpack.c.bf16 %v2286, %v2285
    %v2394 = vpack.c.bf16 %v2288, %v2287
    %v2395 = vpack.c.bf16 %v2290, %v2289
    %v2396 = vpack.c.bf16 %v2292, %v2291
    %v2397 = vpack.c.bf16 %v2294, %v2293
    %v2398 = vpack.c.bf16 %v2296, %v2295
    %v2399 = vpack.c.bf16 %v2298, %v2297
    %v2400 = vpack.c.bf16 %v2300, %v2299
    %v2401 = vpack.c.bf16 %v2302, %v2301
    %v2402 = vpack.c.bf16 %v2304, %v2303
    %v2403 = vpack.c.bf16 %v2306, %v2305
    %v2404 = vpack.c.bf16 %v2308, %v2307
    %v2405 = vpack.c.bf16 %v2310, %v2309
    %v2406 = vpack.c.bf16 %v2312, %v2311
    %v2407 = vpack.c.bf16 %v2314, %v2313
    %v2408 = vpack.c.bf16 %v2316, %v2315
    %v2409 = vpack.c.bf16 %v2318, %v2317
    %v2410 = vpack.c.bf16 %v2320, %v2319
    %v2411 = vpack.c.bf16 %v2322, %v2321
    %v2412 = vpack.c.bf16 %v2324, %v2323
    %v2413 = vpack.c.bf16 %v2326, %v2325
    %v2414 = vpack.c.bf16 %v2328, %v2327
    %v2415 = vpack.c.bf16 %v2330, %v2329
    %v2416 = vpack.c.bf16 %v2332, %v2331
    %v2417 = vpack.c.bf16 %v2334, %v2333
    %v2418 = vpack.c.bf16 %v2336, %v2335
    %v2419 = vpack.c.bf16 %v2338, %v2337
    %v2420 = vpack.c.bf16 %v2340, %v2339
    %v2421 = vpack.c.bf16 %v2342, %v2341
    %v2422 = vpack.c.bf16 %v2344, %v2343
    %v2423 = vpack.c.bf16 %v2346, %v2345
    %v2424 = vpack.c.bf16 %v2348, %v2347
    %v2425 = vpack.c.bf16 %v2350, %v2349
    %v2426 = vpack.c.bf16 %v2352, %v2351
    %v2427 = vpack.c.bf16 %v2354, %v2353
    %v2428 = vpack.c.bf16 %v2356, %v2355
    %v2429 = vpack.c.bf16 %v2358, %v2357
    %v2430 = vpack.c.bf16 %v2360, %v2359
    %v2431 = vpack.c.bf16 %v2362, %v2361
    %v2432 = vpack.c.bf16 %v2364, %v2363
    %v2433 = vpack.c.bf16 %v2366, %v2365
    %v2434 = vpack.c.bf16 %v2368, %v2367
    %v2435 = vpack.c.bf16 %v2370, %v2369
    %v2436 = vld [vmem:[%s7] sm:$0xf]
    %v2437 = vld [vmem:[%s7 + $0x4] sm:$0xf]
    %v2438 = vld [vmem:[%s7 + $0x8] sm:$0xf]
    %v2439 = vld [vmem:[%s7 + $0xc] sm:$0xf]
    %v2440 = vld [vmem:[%s7 + $0x10] sm:$0xf]
    %v2441 = vld [vmem:[%s7 + $0x14] sm:$0xf]
    %v2442 = vld [vmem:[%s7 + $0x18] sm:$0xf]
    %v2443 = vld [vmem:[%s7 + $0x1c] sm:$0xf]
    %v2444 = vld [vmem:[%s7 + $0x20] sm:$0xf]
    %v2445 = vld [vmem:[%s7 + $0x24] sm:$0xf]
    %v2446 = vld [vmem:[%s7 + $0x28] sm:$0xf]
    %v2447 = vld [vmem:[%s7 + $0x2c] sm:$0xf]
    %v2448 = vld [vmem:[%s7 + $0x30] sm:$0xf]
    %v2449 = vld [vmem:[%s7 + $0x34] sm:$0xf]
    %v2450 = vld [vmem:[%s7 + $0x38] sm:$0xf]
    %v2451 = vld [vmem:[%s7 + $0x3c] sm:$0xf]
    %v2453 = vperm.slane %v2371, 0
    %v2471 = vunpack.c.l.b16 %v2436
    %v2472 = vunpack.c.l.b16 %v2437
    %v2473 = vunpack.c.l.b16 %v2438
    %v2474 = vunpack.c.l.b16 %v2439
    %v2475 = vunpack.c.l.b16 %v2440
    %v2476 = vunpack.c.l.b16 %v2441
    %v2477 = vunpack.c.l.b16 %v2442
    %v2478 = vunpack.c.l.b16 %v2443
    %v2479 = vunpack.c.l.b16 %v2444
    %v2480 = vunpack.c.l.b16 %v2445
    %v2481 = vunpack.c.l.b16 %v2446
    %v2482 = vunpack.c.l.b16 %v2447
    %v2483 = vunpack.c.l.b16 %v2448
    %v2484 = vunpack.c.l.b16 %v2449
    %v2485 = vunpack.c.l.b16 %v2450
    %v2486 = vunpack.c.l.b16 %v2451
    %v2487 = vpack.c.b16 %v2472, %v2471
    %v2488 = vpack.c.b16 %v2474, %v2473
    %v2489 = vpack.c.b16 %v2476, %v2475
    %v2490 = vpack.c.b16 %v2478, %v2477
    %v2491 = vpack.c.b16 %v2480, %v2479
    %v2492 = vpack.c.b16 %v2482, %v2481
    %v2493 = vpack.c.b16 %v2484, %v2483
    %v2494 = vpack.c.b16 %v2486, %v2485
    %2503 = vmatpush.bf16.msra.mxu0 %v2494
    %2504 = vmatpush.bf16.msra.mxu0 %v2493
    %2505 = vmatpush.bf16.msra.mxu0 %v2492
    %2506 = vmatpush.bf16.msra.mxu0 %v2491
    %2507 = vmatpush.bf16.msra.mxu0 %v2490
    %2508 = vmatpush.bf16.msra.mxu0 %v2489
    %2509 = vmatpush.bf16.msra.mxu0 %v2488
    %2510 = vmatpush.bf16.msra.mxu0 %v2487
    %2511 = vmatmul.bf16.gmra.mxu0 %v2372
    %v2512 = vpop.f32.mrf.mxu0
    %v2513 = vadd.f32 %v2453, %v2512
    %v2514 = vpop.f32.mrf.mxu0
    %v2515 = vadd.f32 %v2453, %v2514
    %2516 = vmatmul.bf16.gmra.mxu0 %v2373
    %v2517 = vpop.f32.mrf.mxu0
    %v2518 = vadd.f32 %v2453, %v2517
    %v2519 = vpop.f32.mrf.mxu0
    %v2520 = vadd.f32 %v2453, %v2519
    %2521 = vmatmul.bf16.gmra.mxu0 %v2374
    %v2522 = vpop.f32.mrf.mxu0
    %v2523 = vadd.f32 %v2453, %v2522
    %v2524 = vpop.f32.mrf.mxu0
    %v2525 = vadd.f32 %v2453, %v2524
    %2526 = vmatmul.bf16.gmra.mxu0 %v2375
    %v2527 = vpop.f32.mrf.mxu0
    %v2528 = vadd.f32 %v2453, %v2527
    %v2529 = vpop.f32.mrf.mxu0
    %v2530 = vadd.f32 %v2453, %v2529
    %2531 = vmatmul.bf16.gmra.mxu0 %v2376
    %v2532 = vpop.f32.mrf.mxu0
    %v2533 = vadd.f32 %v2453, %v2532
    %v2534 = vpop.f32.mrf.mxu0
    %v2535 = vadd.f32 %v2453, %v2534
    %2536 = vmatmul.bf16.gmra.mxu0 %v2377
    %v2537 = vpop.f32.mrf.mxu0
    %v2538 = vadd.f32 %v2453, %v2537
    %v2539 = vpop.f32.mrf.mxu0
    %v2540 = vadd.f32 %v2453, %v2539
    %2541 = vmatmul.bf16.gmra.mxu0 %v2378
    %v2542 = vpop.f32.mrf.mxu0
    %v2543 = vadd.f32 %v2453, %v2542
    %v2544 = vpop.f32.mrf.mxu0
    %v2545 = vadd.f32 %v2453, %v2544
    %2546 = vmatmul.bf16.gmra.mxu0 %v2379
    %v2547 = vpop.f32.mrf.mxu0
    %v2548 = vadd.f32 %v2453, %v2547
    %v2549 = vpop.f32.mrf.mxu0
    %v2550 = vadd.f32 %v2453, %v2549
    %2551 = vmatmul.bf16.gmra.mxu0 %v2380
    %v2552 = vpop.f32.mrf.mxu0
    %v2553 = vadd.f32 %v2453, %v2552
    %v2554 = vpop.f32.mrf.mxu0
    %v2555 = vadd.f32 %v2453, %v2554
    %2556 = vmatmul.bf16.gmra.mxu0 %v2381
    %v2557 = vpop.f32.mrf.mxu0
    %v2558 = vadd.f32 %v2453, %v2557
    %v2559 = vpop.f32.mrf.mxu0
    %v2560 = vadd.f32 %v2453, %v2559
    %2561 = vmatmul.bf16.gmra.mxu0 %v2382
    %v2562 = vpop.f32.mrf.mxu0
    %v2563 = vadd.f32 %v2453, %v2562
    %v2564 = vpop.f32.mrf.mxu0
    %v2565 = vadd.f32 %v2453, %v2564
    %2566 = vmatmul.bf16.gmra.mxu0 %v2383
    %v2567 = vpop.f32.mrf.mxu0
    %v2568 = vadd.f32 %v2453, %v2567
    %v2569 = vpop.f32.mrf.mxu0
    %v2570 = vadd.f32 %v2453, %v2569
    %2571 = vmatmul.bf16.gmra.mxu0 %v2384
    %v2572 = vpop.f32.mrf.mxu0
    %v2573 = vadd.f32 %v2453, %v2572
    %v2574 = vpop.f32.mrf.mxu0
    %v2575 = vadd.f32 %v2453, %v2574
    %2576 = vmatmul.bf16.gmra.mxu0 %v2385
    %v2577 = vpop.f32.mrf.mxu0
    %v2578 = vadd.f32 %v2453, %v2577
    %v2579 = vpop.f32.mrf.mxu0
    %v2580 = vadd.f32 %v2453, %v2579
    %2581 = vmatmul.bf16.gmra.mxu0 %v2386
    %v2582 = vpop.f32.mrf.mxu0
    %v2583 = vadd.f32 %v2453, %v2582
    %v2584 = vpop.f32.mrf.mxu0
    %v2585 = vadd.f32 %v2453, %v2584
    %2586 = vmatmul.bf16.gmra.mxu0 %v2387
    %v2587 = vpop.f32.mrf.mxu0
    %v2588 = vadd.f32 %v2453, %v2587
    %v2589 = vpop.f32.mrf.mxu0
    %v2590 = vadd.f32 %v2453, %v2589
    %2591 = vmatmul.bf16.gmra.mxu0 %v2388
    %v2592 = vpop.f32.mrf.mxu0
    %v2593 = vadd.f32 %v2453, %v2592
    %v2594 = vpop.f32.mrf.mxu0
    %v2595 = vadd.f32 %v2453, %v2594
    %2596 = vmatmul.bf16.gmra.mxu0 %v2389
    %v2597 = vpop.f32.mrf.mxu0
    %v2598 = vadd.f32 %v2453, %v2597
    %v2599 = vpop.f32.mrf.mxu0
    %v2600 = vadd.f32 %v2453, %v2599
    %2601 = vmatmul.bf16.gmra.mxu0 %v2390
    %v2602 = vpop.f32.mrf.mxu0
    %v2603 = vadd.f32 %v2453, %v2602
    %v2604 = vpop.f32.mrf.mxu0
    %v2605 = vadd.f32 %v2453, %v2604
    %2606 = vmatmul.bf16.gmra.mxu0 %v2391
    %v2607 = vpop.f32.mrf.mxu0
    %v2608 = vadd.f32 %v2453, %v2607
    %v2609 = vpop.f32.mrf.mxu0
    %v2610 = vadd.f32 %v2453, %v2609
    %2611 = vmatmul.bf16.gmra.mxu0 %v2392
    %v2612 = vpop.f32.mrf.mxu0
    %v2613 = vadd.f32 %v2453, %v2612
    %v2614 = vpop.f32.mrf.mxu0
    %v2615 = vadd.f32 %v2453, %v2614
    %2616 = vmatmul.bf16.gmra.mxu0 %v2393
    %v2617 = vpop.f32.mrf.mxu0
    %v2618 = vadd.f32 %v2453, %v2617
    %v2619 = vpop.f32.mrf.mxu0
    %v2620 = vadd.f32 %v2453, %v2619
    %2621 = vmatmul.bf16.gmra.mxu0 %v2394
    %v2622 = vpop.f32.mrf.mxu0
    %v2623 = vadd.f32 %v2453, %v2622
    %v2624 = vpop.f32.mrf.mxu0
    %v2625 = vadd.f32 %v2453, %v2624
    %2626 = vmatmul.bf16.gmra.mxu0 %v2395
    %v2627 = vpop.f32.mrf.mxu0
    %v2628 = vadd.f32 %v2453, %v2627
    %v2629 = vpop.f32.mrf.mxu0
    %v2630 = vadd.f32 %v2453, %v2629
    %2631 = vmatmul.bf16.gmra.mxu0 %v2396
    %v2632 = vpop.f32.mrf.mxu0
    %v2633 = vadd.f32 %v2453, %v2632
    %v2634 = vpop.f32.mrf.mxu0
    %v2635 = vadd.f32 %v2453, %v2634
    %2636 = vmatmul.bf16.gmra.mxu0 %v2397
    %v2637 = vpop.f32.mrf.mxu0
    %v2638 = vadd.f32 %v2453, %v2637
    %v2639 = vpop.f32.mrf.mxu0
    %v2640 = vadd.f32 %v2453, %v2639
    %2641 = vmatmul.bf16.gmra.mxu0 %v2398
    %v2642 = vpop.f32.mrf.mxu0
    %v2643 = vadd.f32 %v2453, %v2642
    %v2644 = vpop.f32.mrf.mxu0
    %v2645 = vadd.f32 %v2453, %v2644
    %2646 = vmatmul.bf16.gmra.mxu0 %v2399
    %v2647 = vpop.f32.mrf.mxu0
    %v2648 = vadd.f32 %v2453, %v2647
    %v2649 = vpop.f32.mrf.mxu0
    %v2650 = vadd.f32 %v2453, %v2649
    %2651 = vmatmul.bf16.gmra.mxu0 %v2400
    %v2652 = vpop.f32.mrf.mxu0
    %v2653 = vadd.f32 %v2453, %v2652
    %v2654 = vpop.f32.mrf.mxu0
    %v2655 = vadd.f32 %v2453, %v2654
    %2656 = vmatmul.bf16.gmra.mxu0 %v2401
    %v2657 = vpop.f32.mrf.mxu0
    %v2658 = vadd.f32 %v2453, %v2657
    %v2659 = vpop.f32.mrf.mxu0
    %v2660 = vadd.f32 %v2453, %v2659
    %2661 = vmatmul.bf16.gmra.mxu0 %v2402
    %v2662 = vpop.f32.mrf.mxu0
    %v2663 = vadd.f32 %v2453, %v2662
    %v2664 = vpop.f32.mrf.mxu0
    %v2665 = vadd.f32 %v2453, %v2664
    %2666 = vmatmul.bf16.gmra.mxu0 %v2403
    %v2667 = vpop.f32.mrf.mxu0
    %v2668 = vadd.f32 %v2453, %v2667
    %v2669 = vpop.f32.mrf.mxu0
    %v2670 = vadd.f32 %v2453, %v2669
    %2671 = vmatmul.bf16.gmra.mxu0 %v2404
    %v2672 = vpop.f32.mrf.mxu0
    %v2673 = vadd.f32 %v2453, %v2672
    %v2674 = vpop.f32.mrf.mxu0
    %v2675 = vadd.f32 %v2453, %v2674
    %2676 = vmatmul.bf16.gmra.mxu0 %v2405
    %v2677 = vpop.f32.mrf.mxu0
    %v2678 = vadd.f32 %v2453, %v2677
    %v2679 = vpop.f32.mrf.mxu0
    %v2680 = vadd.f32 %v2453, %v2679
    %2681 = vmatmul.bf16.gmra.mxu0 %v2406
    %v2682 = vpop.f32.mrf.mxu0
    %v2683 = vadd.f32 %v2453, %v2682
    %v2684 = vpop.f32.mrf.mxu0
    %v2685 = vadd.f32 %v2453, %v2684
    %2686 = vmatmul.bf16.gmra.mxu0 %v2407
    %v2687 = vpop.f32.mrf.mxu0
    %v2688 = vadd.f32 %v2453, %v2687
    %v2689 = vpop.f32.mrf.mxu0
    %v2690 = vadd.f32 %v2453, %v2689
    %2691 = vmatmul.bf16.gmra.mxu0 %v2408
    %v2692 = vpop.f32.mrf.mxu0
    %v2693 = vadd.f32 %v2453, %v2692
    %v2694 = vpop.f32.mrf.mxu0
    %v2695 = vadd.f32 %v2453, %v2694
    %2696 = vmatmul.bf16.gmra.mxu0 %v2409
    %v2697 = vpop.f32.mrf.mxu0
    %v2698 = vadd.f32 %v2453, %v2697
    %v2699 = vpop.f32.mrf.mxu0
    %v2700 = vadd.f32 %v2453, %v2699
    %2701 = vmatmul.bf16.gmra.mxu0 %v2410
    %v2702 = vpop.f32.mrf.mxu0
    %v2703 = vadd.f32 %v2453, %v2702
    %v2704 = vpop.f32.mrf.mxu0
    %v2705 = vadd.f32 %v2453, %v2704
    %2706 = vmatmul.bf16.gmra.mxu0 %v2411
    %v2707 = vpop.f32.mrf.mxu0
    %v2708 = vadd.f32 %v2453, %v2707
    %v2709 = vpop.f32.mrf.mxu0
    %v2710 = vadd.f32 %v2453, %v2709
    %2711 = vmatmul.bf16.gmra.mxu0 %v2412
    %v2712 = vpop.f32.mrf.mxu0
    %v2713 = vadd.f32 %v2453, %v2712
    %v2714 = vpop.f32.mrf.mxu0
    %v2715 = vadd.f32 %v2453, %v2714
    %2716 = vmatmul.bf16.gmra.mxu0 %v2413
    %v2717 = vpop.f32.mrf.mxu0
    %v2718 = vadd.f32 %v2453, %v2717
    %v2719 = vpop.f32.mrf.mxu0
    %v2720 = vadd.f32 %v2453, %v2719
    %2721 = vmatmul.bf16.gmra.mxu0 %v2414
    %v2722 = vpop.f32.mrf.mxu0
    %v2723 = vadd.f32 %v2453, %v2722
    %v2724 = vpop.f32.mrf.mxu0
    %v2725 = vadd.f32 %v2453, %v2724
    %2726 = vmatmul.bf16.gmra.mxu0 %v2415
    %v2727 = vpop.f32.mrf.mxu0
    %v2728 = vadd.f32 %v2453, %v2727
    %v2729 = vpop.f32.mrf.mxu0
    %v2730 = vadd.f32 %v2453, %v2729
    %2731 = vmatmul.bf16.gmra.mxu0 %v2416
    %v2732 = vpop.f32.mrf.mxu0
    %v2733 = vadd.f32 %v2453, %v2732
    %v2734 = vpop.f32.mrf.mxu0
    %v2735 = vadd.f32 %v2453, %v2734
    %2736 = vmatmul.bf16.gmra.mxu0 %v2417
    %v2737 = vpop.f32.mrf.mxu0
    %v2738 = vadd.f32 %v2453, %v2737
    %v2739 = vpop.f32.mrf.mxu0
    %v2740 = vadd.f32 %v2453, %v2739
    %2741 = vmatmul.bf16.gmra.mxu0 %v2418
    %v2742 = vpop.f32.mrf.mxu0
    %v2743 = vadd.f32 %v2453, %v2742
    %v2744 = vpop.f32.mrf.mxu0
    %v2745 = vadd.f32 %v2453, %v2744
    %2746 = vmatmul.bf16.gmra.mxu0 %v2419
    %v2747 = vpop.f32.mrf.mxu0
    %v2748 = vadd.f32 %v2453, %v2747
    %v2749 = vpop.f32.mrf.mxu0
    %v2750 = vadd.f32 %v2453, %v2749
    %2751 = vmatmul.bf16.gmra.mxu0 %v2420
    %v2752 = vpop.f32.mrf.mxu0
    %v2753 = vadd.f32 %v2453, %v2752
    %v2754 = vpop.f32.mrf.mxu0
    %v2755 = vadd.f32 %v2453, %v2754
    %2756 = vmatmul.bf16.gmra.mxu0 %v2421
    %v2757 = vpop.f32.mrf.mxu0
    %v2758 = vadd.f32 %v2453, %v2757
    %v2759 = vpop.f32.mrf.mxu0
    %v2760 = vadd.f32 %v2453, %v2759
    %2761 = vmatmul.bf16.gmra.mxu0 %v2422
    %v2762 = vpop.f32.mrf.mxu0
    %v2763 = vadd.f32 %v2453, %v2762
    %v2764 = vpop.f32.mrf.mxu0
    %v2765 = vadd.f32 %v2453, %v2764
    %2766 = vmatmul.bf16.gmra.mxu0 %v2423
    %v2767 = vpop.f32.mrf.mxu0
    %v2768 = vadd.f32 %v2453, %v2767
    %v2769 = vpop.f32.mrf.mxu0
    %v2770 = vadd.f32 %v2453, %v2769
    %2771 = vmatmul.bf16.gmra.mxu0 %v2424
    %v2772 = vpop.f32.mrf.mxu0
    %v2773 = vadd.f32 %v2453, %v2772
    %v2774 = vpop.f32.mrf.mxu0
    %v2775 = vadd.f32 %v2453, %v2774
    %2776 = vmatmul.bf16.gmra.mxu0 %v2425
    %v2777 = vpop.f32.mrf.mxu0
    %v2778 = vadd.f32 %v2453, %v2777
    %v2779 = vpop.f32.mrf.mxu0
    %v2780 = vadd.f32 %v2453, %v2779
    %2781 = vmatmul.bf16.gmra.mxu0 %v2426
    %v2782 = vpop.f32.mrf.mxu0
    %v2783 = vadd.f32 %v2453, %v2782
    %v2784 = vpop.f32.mrf.mxu0
    %v2785 = vadd.f32 %v2453, %v2784
    %2786 = vmatmul.bf16.gmra.mxu0 %v2427
    %v2787 = vpop.f32.mrf.mxu0
    %v2788 = vadd.f32 %v2453, %v2787
    %v2789 = vpop.f32.mrf.mxu0
    %v2790 = vadd.f32 %v2453, %v2789
    %2791 = vmatmul.bf16.gmra.mxu0 %v2428
    %v2792 = vpop.f32.mrf.mxu0
    %v2793 = vadd.f32 %v2453, %v2792
    %v2794 = vpop.f32.mrf.mxu0
    %v2795 = vadd.f32 %v2453, %v2794
    %2796 = vmatmul.bf16.gmra.mxu0 %v2429
    %v2797 = vpop.f32.mrf.mxu0
    %v2798 = vadd.f32 %v2453, %v2797
    %v2799 = vpop.f32.mrf.mxu0
    %v2800 = vadd.f32 %v2453, %v2799
    %2801 = vmatmul.bf16.gmra.mxu0 %v2430
    %v2802 = vpop.f32.mrf.mxu0
    %v2803 = vadd.f32 %v2453, %v2802
    %v2804 = vpop.f32.mrf.mxu0
    %v2805 = vadd.f32 %v2453, %v2804
    %2806 = vmatmul.bf16.gmra.mxu0 %v2431
    %v2807 = vpop.f32.mrf.mxu0
    %v2808 = vadd.f32 %v2453, %v2807
    %v2809 = vpop.f32.mrf.mxu0
    %v2810 = vadd.f32 %v2453, %v2809
    %2811 = vmatmul.bf16.gmra.mxu0 %v2432
    %v2812 = vpop.f32.mrf.mxu0
    %v2813 = vadd.f32 %v2453, %v2812
    %v2814 = vpop.f32.mrf.mxu0
    %v2815 = vadd.f32 %v2453, %v2814
    %2816 = vmatmul.bf16.gmra.mxu0 %v2433
    %v2817 = vpop.f32.mrf.mxu0
    %v2818 = vadd.f32 %v2453, %v2817
    %v2819 = vpop.f32.mrf.mxu0
    %v2820 = vadd.f32 %v2453, %v2819
    %2821 = vmatmul.bf16.gmra.mxu0 %v2434
    %v2822 = vpop.f32.mrf.mxu0
    %v2823 = vadd.f32 %v2453, %v2822
    %v2824 = vpop.f32.mrf.mxu0
    %v2825 = vadd.f32 %v2453, %v2824
    %2826 = vmatmul.bf16.gmra.mxu0 %v2435
    %v2827 = vpop.f32.mrf.mxu0
    %v2828 = vadd.f32 %v2453, %v2827
    %v2829 = vpop.f32.mrf.mxu0
    %v2830 = vadd.f32 %v2453, %v2829
    %2831 = vdwg.mxu0
    %v2832 = vmax.f32 %v2513, 0.0
    %v2833 = vmax.f32 %v2515, 0.0
    %v2834 = vmax.f32 %v2518, 0.0
    %v2835 = vmax.f32 %v2520, 0.0
    %v2836 = vmax.f32 %v2523, 0.0
    %v2837 = vmax.f32 %v2525, 0.0
    %v2838 = vmax.f32 %v2528, 0.0
    %v2839 = vmax.f32 %v2530, 0.0
    %v2840 = vmax.f32 %v2533, 0.0
    %v2841 = vmax.f32 %v2535, 0.0
    %v2842 = vmax.f32 %v2538, 0.0
    %v2843 = vmax.f32 %v2540, 0.0
    %v2844 = vmax.f32 %v2543, 0.0
    %v2845 = vmax.f32 %v2545, 0.0
    %v2846 = vmax.f32 %v2548, 0.0
    %v2847 = vmax.f32 %v2550, 0.0
    %v2848 = vmax.f32 %v2553, 0.0
    %v2849 = vmax.f32 %v2555, 0.0
    %v2850 = vmax.f32 %v2558, 0.0
    %v2851 = vmax.f32 %v2560, 0.0
    %v2852 = vmax.f32 %v2563, 0.0
    %v2853 = vmax.f32 %v2565, 0.0
    %v2854 = vmax.f32 %v2568, 0.0
    %v2855 = vmax.f32 %v2570, 0.0
    %v2856 = vmax.f32 %v2573, 0.0
    %v2857 = vmax.f32 %v2575, 0.0
    %v2858 = vmax.f32 %v2578, 0.0
    %v2859 = vmax.f32 %v2580, 0.0
    %v2860 = vmax.f32 %v2583, 0.0
    %v2861 = vmax.f32 %v2585, 0.0
    %v2862 = vmax.f32 %v2588, 0.0
    %v2863 = vmax.f32 %v2590, 0.0
    %v2864 = vmax.f32 %v2593, 0.0
    %v2865 = vmax.f32 %v2595, 0.0
    %v2866 = vmax.f32 %v2598, 0.0
    %v2867 = vmax.f32 %v2600, 0.0
    %v2868 = vmax.f32 %v2603, 0.0
    %v2869 = vmax.f32 %v2605, 0.0
    %v2870 = vmax.f32 %v2608, 0.0
    %v2871 = vmax.f32 %v2610, 0.0
    %v2872 = vmax.f32 %v2613, 0.0
    %v2873 = vmax.f32 %v2615, 0.0
    %v2874 = vmax.f32 %v2618, 0.0
    %v2875 = vmax.f32 %v2620, 0.0
    %v2876 = vmax.f32 %v2623, 0.0
    %v2877 = vmax.f32 %v2625, 0.0
    %v2878 = vmax.f32 %v2628, 0.0
    %v2879 = vmax.f32 %v2630, 0.0
    %v2880 = vmax.f32 %v2633, 0.0
    %v2881 = vmax.f32 %v2635, 0.0
    %v2882 = vmax.f32 %v2638, 0.0
    %v2883 = vmax.f32 %v2640, 0.0
    %v2884 = vmax.f32 %v2643, 0.0
    %v2885 = vmax.f32 %v2645, 0.0
    %v2886 = vmax.f32 %v2648, 0.0
    %v2887 = vmax.f32 %v2650, 0.0
    %v2888 = vmax.f32 %v2653, 0.0
    %v2889 = vmax.f32 %v2655, 0.0
    %v2890 = vmax.f32 %v2658, 0.0
    %v2891 = vmax.f32 %v2660, 0.0
    %v2892 = vmax.f32 %v2663, 0.0
    %v2893 = vmax.f32 %v2665, 0.0
    %v2894 = vmax.f32 %v2668, 0.0
    %v2895 = vmax.f32 %v2670, 0.0
    %v2896 = vmax.f32 %v2673, 0.0
    %v2897 = vmax.f32 %v2675, 0.0
    %v2898 = vmax.f32 %v2678, 0.0
    %v2899 = vmax.f32 %v2680, 0.0
    %v2900 = vmax.f32 %v2683, 0.0
    %v2901 = vmax.f32 %v2685, 0.0
    %v2902 = vmax.f32 %v2688, 0.0
    %v2903 = vmax.f32 %v2690, 0.0
    %v2904 = vmax.f32 %v2693, 0.0
    %v2905 = vmax.f32 %v2695, 0.0
    %v2906 = vmax.f32 %v2698, 0.0
    %v2907 = vmax.f32 %v2700, 0.0
    %v2908 = vmax.f32 %v2703, 0.0
    %v2909 = vmax.f32 %v2705, 0.0
    %v2910 = vmax.f32 %v2708, 0.0
    %v2911 = vmax.f32 %v2710, 0.0
    %v2912 = vmax.f32 %v2713, 0.0
    %v2913 = vmax.f32 %v2715, 0.0
    %v2914 = vmax.f32 %v2718, 0.0
    %v2915 = vmax.f32 %v2720, 0.0
    %v2916 = vmax.f32 %v2723, 0.0
    %v2917 = vmax.f32 %v2725, 0.0
    %v2918 = vmax.f32 %v2728, 0.0
    %v2919 = vmax.f32 %v2730, 0.0
    %v2920 = vmax.f32 %v2733, 0.0
    %v2921 = vmax.f32 %v2735, 0.0
    %v2922 = vmax.f32 %v2738, 0.0
    %v2923 = vmax.f32 %v2740, 0.0
    %v2924 = vmax.f32 %v2743, 0.0
    %v2925 = vmax.f32 %v2745, 0.0
    %v2926 = vmax.f32 %v2748, 0.0
    %v2927 = vmax.f32 %v2750, 0.0
    %v2928 = vmax.f32 %v2753, 0.0
    %v2929 = vmax.f32 %v2755, 0.0
    %v2930 = vmax.f32 %v2758, 0.0
    %v2931 = vmax.f32 %v2760, 0.0
    %v2932 = vmax.f32 %v2763, 0.0
    %v2933 = vmax.f32 %v2765, 0.0
    %v2934 = vmax.f32 %v2768, 0.0
    %v2935 = vmax.f32 %v2770, 0.0
    %v2936 = vmax.f32 %v2773, 0.0
    %v2937 = vmax.f32 %v2775, 0.0
    %v2938 = vmax.f32 %v2778, 0.0
    %v2939 = vmax.f32 %v2780, 0.0
    %v2940 = vmax.f32 %v2783, 0.0
    %v2941 = vmax.f32 %v2785, 0.0
    %v2942 = vmax.f32 %v2788, 0.0
    %v2943 = vmax.f32 %v2790, 0.0
    %v2944 = vmax.f32 %v2793, 0.0
    %v2945 = vmax.f32 %v2795, 0.0
    %v2946 = vmax.f32 %v2798, 0.0
    %v2947 = vmax.f32 %v2800, 0.0
    %v2948 = vmax.f32 %v2803, 0.0
    %v2949 = vmax.f32 %v2805, 0.0
    %v2950 = vmax.f32 %v2808, 0.0
    %v2951 = vmax.f32 %v2810, 0.0
    %v2952 = vmax.f32 %v2813, 0.0
    %v2953 = vmax.f32 %v2815, 0.0
    %v2954 = vmax.f32 %v2818, 0.0
    %v2955 = vmax.f32 %v2820, 0.0
    %v2956 = vmax.f32 %v2823, 0.0
    %v2957 = vmax.f32 %v2825, 0.0
    %v2958 = vmax.f32 %v2828, 0.0
    %v2959 = vmax.f32 %v2830, 0.0
    %v2960 = vpack.c.bf16 %v2833, %v2832
    %v2961 = vpack.c.bf16 %v2835, %v2834
    %v2962 = vpack.c.bf16 %v2837, %v2836
    %v2963 = vpack.c.bf16 %v2839, %v2838
    %v2964 = vpack.c.bf16 %v2841, %v2840
    %v2965 = vpack.c.bf16 %v2843, %v2842
    %v2966 = vpack.c.bf16 %v2845, %v2844
    %v2967 = vpack.c.bf16 %v2847, %v2846
    %v2968 = vpack.c.bf16 %v2849, %v2848
    %v2969 = vpack.c.bf16 %v2851, %v2850
    %v2970 = vpack.c.bf16 %v2853, %v2852
    %v2971 = vpack.c.bf16 %v2855, %v2854
    %v2972 = vpack.c.bf16 %v2857, %v2856
    %v2973 = vpack.c.bf16 %v2859, %v2858
    %v2974 = vpack.c.bf16 %v2861, %v2860
    %v2975 = vpack.c.bf16 %v2863, %v2862
    %v2976 = vpack.c.bf16 %v2865, %v2864
    %v2977 = vpack.c.bf16 %v2867, %v2866
    %v2978 = vpack.c.bf16 %v2869, %v2868
    %v2979 = vpack.c.bf16 %v2871, %v2870
    %v2980 = vpack.c.bf16 %v2873, %v2872
    %v2981 = vpack.c.bf16 %v2875, %v2874
    %v2982 = vpack.c.bf16 %v2877, %v2876
    %v2983 = vpack.c.bf16 %v2879, %v2878
    %v2984 = vpack.c.bf16 %v2881, %v2880
    %v2985 = vpack.c.bf16 %v2883, %v2882
    %v2986 = vpack.c.bf16 %v2885, %v2884
    %v2987 = vpack.c.bf16 %v2887, %v2886
    %v2988 = vpack.c.bf16 %v2889, %v2888
    %v2989 = vpack.c.bf16 %v2891, %v2890
    %v2990 = vpack.c.bf16 %v2893, %v2892
    %v2991 = vpack.c.bf16 %v2895, %v2894
    %v2992 = vpack.c.bf16 %v2897, %v2896
    %v2993 = vpack.c.bf16 %v2899, %v2898
    %v2994 = vpack.c.bf16 %v2901, %v2900
    %v2995 = vpack.c.bf16 %v2903, %v2902
    %v2996 = vpack.c.bf16 %v2905, %v2904
    %v2997 = vpack.c.bf16 %v2907, %v2906
    %v2998 = vpack.c.bf16 %v2909, %v2908
    %v2999 = vpack.c.bf16 %v2911, %v2910
    %v3000 = vpack.c.bf16 %v2913, %v2912
    %v3001 = vpack.c.bf16 %v2915, %v2914
    %v3002 = vpack.c.bf16 %v2917, %v2916
    %v3003 = vpack.c.bf16 %v2919, %v2918
    %v3004 = vpack.c.bf16 %v2921, %v2920
    %v3005 = vpack.c.bf16 %v2923, %v2922
    %v3006 = vpack.c.bf16 %v2925, %v2924
    %v3007 = vpack.c.bf16 %v2927, %v2926
    %v3008 = vpack.c.bf16 %v2929, %v2928
    %v3009 = vpack.c.bf16 %v2931, %v2930
    %v3010 = vpack.c.bf16 %v2933, %v2932
    %v3011 = vpack.c.bf16 %v2935, %v2934
    %v3012 = vpack.c.bf16 %v2937, %v2936
    %v3013 = vpack.c.bf16 %v2939, %v2938
    %v3014 = vpack.c.bf16 %v2941, %v2940
    %v3015 = vpack.c.bf16 %v2943, %v2942
    %v3016 = vpack.c.bf16 %v2945, %v2944
    %v3017 = vpack.c.bf16 %v2947, %v2946
    %v3018 = vpack.c.bf16 %v2949, %v2948
    %v3019 = vpack.c.bf16 %v2951, %v2950
    %v3020 = vpack.c.bf16 %v2953, %v2952
    %v3021 = vpack.c.bf16 %v2955, %v2954
    %v3022 = vpack.c.bf16 %v2957, %v2956
    %v3023 = vpack.c.bf16 %v2959, %v2958
    %v3024 = vld [vmem:[%s9] sm:$0xff]
    %v3025 = vld [vmem:[%s9 + $0x8] sm:$0xff]
    %v3026 = vld [vmem:[%s9 + $0x10] sm:$0xff]
    %v3027 = vld [vmem:[%s9 + $0x18] sm:$0xff]
    %v3028 = vld [vmem:[%s9 + $0x20] sm:$0xff]
    %v3029 = vld [vmem:[%s9 + $0x28] sm:$0xff]
    %v3030 = vld [vmem:[%s9 + $0x30] sm:$0xff]
    %v3031 = vld [vmem:[%s9 + $0x38] sm:$0xff]
    %v3032 = vld [vmem:[%s9 + $0x40] sm:$0xff]
    %v3033 = vld [vmem:[%s9 + $0x48] sm:$0xff]
    %v3034 = vld [vmem:[%s9 + $0x50] sm:$0xff]
    %v3035 = vld [vmem:[%s9 + $0x58] sm:$0xff]
    %v3036 = vld [vmem:[%s9 + $0x60] sm:$0xff]
    %v3037 = vld [vmem:[%s9 + $0x68] sm:$0xff]
    %v3038 = vld [vmem:[%s9 + $0x70] sm:$0xff]
    %v3039 = vld [vmem:[%s9 + $0x78] sm:$0xff]
    %v3040 = vld [vmem:[%s10] sm:$0x3]
    %v3042 = vperm.slane %v3040, 0
    %v3043 = vperm.slane %v3040, 1
    %v3062 = vunpack.c.l.b16 %v3024
    %v3063 = vunpack.c.h.b16 %v3024
    %v3064 = vunpack.c.l.b16 %v3025
    %v3065 = vunpack.c.h.b16 %v3025
    %v3066 = vunpack.c.l.b16 %v3026
    %v3067 = vunpack.c.h.b16 %v3026
    %v3068 = vunpack.c.l.b16 %v3027
    %v3069 = vunpack.c.h.b16 %v3027
    %v3070 = vunpack.c.l.b16 %v3028
    %v3071 = vunpack.c.h.b16 %v3028
    %v3072 = vunpack.c.l.b16 %v3029
    %v3073 = vunpack.c.h.b16 %v3029
    %v3074 = vunpack.c.l.b16 %v3030
    %v3075 = vunpack.c.h.b16 %v3030
    %v3076 = vunpack.c.l.b16 %v3031
    %v3077 = vunpack.c.h.b16 %v3031
    %v3078 = vunpack.c.l.b16 %v3032
    %v3079 = vunpack.c.h.b16 %v3032
    %v3080 = vunpack.c.l.b16 %v3033
    %v3081 = vunpack.c.h.b16 %v3033
    %v3082 = vunpack.c.l.b16 %v3034
    %v3083 = vunpack.c.h.b16 %v3034
    %v3084 = vunpack.c.l.b16 %v3035
    %v3085 = vunpack.c.h.b16 %v3035
    %v3086 = vunpack.c.l.b16 %v3036
    %v3087 = vunpack.c.h.b16 %v3036
    %v3088 = vunpack.c.l.b16 %v3037
    %v3089 = vunpack.c.h.b16 %v3037
    %v3090 = vunpack.c.l.b16 %v3038
    %v3091 = vunpack.c.h.b16 %v3038
    %v3092 = vunpack.c.l.b16 %v3039
    %v3093 = vunpack.c.h.b16 %v3039
    %v3094 = vpack.c.b16 %v3064, %v3062
    %v3095 = vpack.c.b16 %v3065, %v3063
    %v3096 = vpack.c.b16 %v3068, %v3066
    %v3097 = vpack.c.b16 %v3069, %v3067
    %v3098 = vpack.c.b16 %v3072, %v3070
    %v3099 = vpack.c.b16 %v3073, %v3071
    %v3100 = vpack.c.b16 %v3076, %v3074
    %v3101 = vpack.c.b16 %v3077, %v3075
    %v3102 = vpack.c.b16 %v3080, %v3078
    %v3103 = vpack.c.b16 %v3081, %v3079
    %v3104 = vpack.c.b16 %v3084, %v3082
    %v3105 = vpack.c.b16 %v3085, %v3083
    %v3106 = vpack.c.b16 %v3088, %v3086
    %v3107 = vpack.c.b16 %v3089, %v3087
    %v3108 = vpack.c.b16 %v3092, %v3090
    %v3109 = vpack.c.b16 %v3093, %v3091
    %3126 = vmatpush.bf16.msra.mxu0 %v3108
    %3127 = vmatpush.bf16.msra.mxu0 %v3106
    %3128 = vmatpush.bf16.msra.mxu0 %v3104
    %3129 = vmatpush.bf16.msra.mxu0 %v3102
    %3130 = vmatpush.bf16.msra.mxu0 %v3100
    %3131 = vmatpush.bf16.msra.mxu0 %v3098
    %3132 = vmatpush.bf16.msra.mxu0 %v3096
    %3133 = vmatpush.bf16.msra.mxu0 %v3094
    %3134 = vmatmul.bf16.gmra.mxu0 %v2960
    %v3135 = vpop.f32.mrf.mxu0
    %v3136 = vadd.f32 %v3042, %v3135
    %v3137 = vpop.f32.mrf.mxu0
    %v3138 = vadd.f32 %v3042, %v3137
    %3139 = vmatmul.bf16.gmra.mxu0 %v2961
    %v3140 = vpop.f32.mrf.mxu0
    %v3141 = vadd.f32 %v3042, %v3140
    %v3142 = vpop.f32.mrf.mxu0
    %v3143 = vadd.f32 %v3042, %v3142
    %3144 = vmatmul.bf16.gmra.mxu0 %v2962
    %v3145 = vpop.f32.mrf.mxu0
    %v3146 = vadd.f32 %v3042, %v3145
    %v3147 = vpop.f32.mrf.mxu0
    %v3148 = vadd.f32 %v3042, %v3147
    %3149 = vmatmul.bf16.gmra.mxu0 %v2963
    %v3150 = vpop.f32.mrf.mxu0
    %v3151 = vadd.f32 %v3042, %v3150
    %v3152 = vpop.f32.mrf.mxu0
    %v3153 = vadd.f32 %v3042, %v3152
    %3154 = vmatmul.bf16.gmra.mxu0 %v2964
    %v3155 = vpop.f32.mrf.mxu0
    %v3156 = vadd.f32 %v3042, %v3155
    %v3157 = vpop.f32.mrf.mxu0
    %v3158 = vadd.f32 %v3042, %v3157
    %3159 = vmatmul.bf16.gmra.mxu0 %v2965
    %v3160 = vpop.f32.mrf.mxu0
    %v3161 = vadd.f32 %v3042, %v3160
    %v3162 = vpop.f32.mrf.mxu0
    %v3163 = vadd.f32 %v3042, %v3162
    %3164 = vmatmul.bf16.gmra.mxu0 %v2966
    %v3165 = vpop.f32.mrf.mxu0
    %v3166 = vadd.f32 %v3042, %v3165
    %v3167 = vpop.f32.mrf.mxu0
    %v3168 = vadd.f32 %v3042, %v3167
    %3169 = vmatmul.bf16.gmra.mxu0 %v2967
    %v3170 = vpop.f32.mrf.mxu0
    %v3171 = vadd.f32 %v3042, %v3170
    %v3172 = vpop.f32.mrf.mxu0
    %v3173 = vadd.f32 %v3042, %v3172
    %3174 = vmatmul.bf16.gmra.mxu0 %v2968
    %v3175 = vpop.f32.mrf.mxu0
    %v3176 = vadd.f32 %v3042, %v3175
    %v3177 = vpop.f32.mrf.mxu0
    %v3178 = vadd.f32 %v3042, %v3177
    %3179 = vmatmul.bf16.gmra.mxu0 %v2969
    %v3180 = vpop.f32.mrf.mxu0
    %v3181 = vadd.f32 %v3042, %v3180
    %v3182 = vpop.f32.mrf.mxu0
    %v3183 = vadd.f32 %v3042, %v3182
    %3184 = vmatmul.bf16.gmra.mxu0 %v2970
    %v3185 = vpop.f32.mrf.mxu0
    %v3186 = vadd.f32 %v3042, %v3185
    %v3187 = vpop.f32.mrf.mxu0
    %v3188 = vadd.f32 %v3042, %v3187
    %3189 = vmatmul.bf16.gmra.mxu0 %v2971
    %v3190 = vpop.f32.mrf.mxu0
    %v3191 = vadd.f32 %v3042, %v3190
    %v3192 = vpop.f32.mrf.mxu0
    %v3193 = vadd.f32 %v3042, %v3192
    %3194 = vmatmul.bf16.gmra.mxu0 %v2972
    %v3195 = vpop.f32.mrf.mxu0
    %v3196 = vadd.f32 %v3042, %v3195
    %v3197 = vpop.f32.mrf.mxu0
    %v3198 = vadd.f32 %v3042, %v3197
    %3199 = vmatmul.bf16.gmra.mxu0 %v2973
    %v3200 = vpop.f32.mrf.mxu0
    %v3201 = vadd.f32 %v3042, %v3200
    %v3202 = vpop.f32.mrf.mxu0
    %v3203 = vadd.f32 %v3042, %v3202
    %3204 = vmatmul.bf16.gmra.mxu0 %v2974
    %v3205 = vpop.f32.mrf.mxu0
    %v3206 = vadd.f32 %v3042, %v3205
    %v3207 = vpop.f32.mrf.mxu0
    %v3208 = vadd.f32 %v3042, %v3207
    %3209 = vmatmul.bf16.gmra.mxu0 %v2975
    %v3210 = vpop.f32.mrf.mxu0
    %v3211 = vadd.f32 %v3042, %v3210
    %v3212 = vpop.f32.mrf.mxu0
    %v3213 = vadd.f32 %v3042, %v3212
    %3214 = vmatmul.bf16.gmra.mxu0 %v2976
    %v3215 = vpop.f32.mrf.mxu0
    %v3216 = vadd.f32 %v3042, %v3215
    %v3217 = vpop.f32.mrf.mxu0
    %v3218 = vadd.f32 %v3042, %v3217
    %3219 = vmatmul.bf16.gmra.mxu0 %v2977
    %v3220 = vpop.f32.mrf.mxu0
    %v3221 = vadd.f32 %v3042, %v3220
    %v3222 = vpop.f32.mrf.mxu0
    %v3223 = vadd.f32 %v3042, %v3222
    %3224 = vmatmul.bf16.gmra.mxu0 %v2978
    %v3225 = vpop.f32.mrf.mxu0
    %v3226 = vadd.f32 %v3042, %v3225
    %v3227 = vpop.f32.mrf.mxu0
    %v3228 = vadd.f32 %v3042, %v3227
    %3229 = vmatmul.bf16.gmra.mxu0 %v2979
    %v3230 = vpop.f32.mrf.mxu0
    %v3231 = vadd.f32 %v3042, %v3230
    %v3232 = vpop.f32.mrf.mxu0
    %v3233 = vadd.f32 %v3042, %v3232
    %3234 = vmatmul.bf16.gmra.mxu0 %v2980
    %v3235 = vpop.f32.mrf.mxu0
    %v3236 = vadd.f32 %v3042, %v3235
    %v3237 = vpop.f32.mrf.mxu0
    %v3238 = vadd.f32 %v3042, %v3237
    %3239 = vmatmul.bf16.gmra.mxu0 %v2981
    %v3240 = vpop.f32.mrf.mxu0
    %v3241 = vadd.f32 %v3042, %v3240
    %v3242 = vpop.f32.mrf.mxu0
    %v3243 = vadd.f32 %v3042, %v3242
    %3244 = vmatmul.bf16.gmra.mxu0 %v2982
    %v3245 = vpop.f32.mrf.mxu0
    %v3246 = vadd.f32 %v3042, %v3245
    %v3247 = vpop.f32.mrf.mxu0
    %v3248 = vadd.f32 %v3042, %v3247
    %3249 = vmatmul.bf16.gmra.mxu0 %v2983
    %v3250 = vpop.f32.mrf.mxu0
    %v3251 = vadd.f32 %v3042, %v3250
    %v3252 = vpop.f32.mrf.mxu0
    %v3253 = vadd.f32 %v3042, %v3252
    %3254 = vmatmul.bf16.gmra.mxu0 %v2984
    %v3255 = vpop.f32.mrf.mxu0
    %v3256 = vadd.f32 %v3042, %v3255
    %v3257 = vpop.f32.mrf.mxu0
    %v3258 = vadd.f32 %v3042, %v3257
    %3259 = vmatmul.bf16.gmra.mxu0 %v2985
    %v3260 = vpop.f32.mrf.mxu0
    %v3261 = vadd.f32 %v3042, %v3260
    %v3262 = vpop.f32.mrf.mxu0
    %v3263 = vadd.f32 %v3042, %v3262
    %3264 = vmatmul.bf16.gmra.mxu0 %v2986
    %v3265 = vpop.f32.mrf.mxu0
    %v3266 = vadd.f32 %v3042, %v3265
    %v3267 = vpop.f32.mrf.mxu0
    %v3268 = vadd.f32 %v3042, %v3267
    %3269 = vmatmul.bf16.gmra.mxu0 %v2987
    %v3270 = vpop.f32.mrf.mxu0
    %v3271 = vadd.f32 %v3042, %v3270
    %v3272 = vpop.f32.mrf.mxu0
    %v3273 = vadd.f32 %v3042, %v3272
    %3274 = vmatmul.bf16.gmra.mxu0 %v2988
    %v3275 = vpop.f32.mrf.mxu0
    %v3276 = vadd.f32 %v3042, %v3275
    %v3277 = vpop.f32.mrf.mxu0
    %v3278 = vadd.f32 %v3042, %v3277
    %3279 = vmatmul.bf16.gmra.mxu0 %v2989
    %v3280 = vpop.f32.mrf.mxu0
    %v3281 = vadd.f32 %v3042, %v3280
    %v3282 = vpop.f32.mrf.mxu0
    %v3283 = vadd.f32 %v3042, %v3282
    %3284 = vmatmul.bf16.gmra.mxu0 %v2990
    %v3285 = vpop.f32.mrf.mxu0
    %v3286 = vadd.f32 %v3042, %v3285
    %v3287 = vpop.f32.mrf.mxu0
    %v3288 = vadd.f32 %v3042, %v3287
    %3289 = vmatmul.bf16.gmra.mxu0 %v2991
    %v3290 = vpop.f32.mrf.mxu0
    %v3291 = vadd.f32 %v3042, %v3290
    %v3292 = vpop.f32.mrf.mxu0
    %v3293 = vadd.f32 %v3042, %v3292
    %3294 = vmatmul.bf16.gmra.mxu0 %v2992
    %v3295 = vpop.f32.mrf.mxu0
    %v3296 = vadd.f32 %v3042, %v3295
    %v3297 = vpop.f32.mrf.mxu0
    %v3298 = vadd.f32 %v3042, %v3297
    %3299 = vmatmul.bf16.gmra.mxu0 %v2993
    %v3300 = vpop.f32.mrf.mxu0
    %v3301 = vadd.f32 %v3042, %v3300
    %v3302 = vpop.f32.mrf.mxu0
    %v3303 = vadd.f32 %v3042, %v3302
    %3304 = vmatmul.bf16.gmra.mxu0 %v2994
    %v3305 = vpop.f32.mrf.mxu0
    %v3306 = vadd.f32 %v3042, %v3305
    %v3307 = vpop.f32.mrf.mxu0
    %v3308 = vadd.f32 %v3042, %v3307
    %3309 = vmatmul.bf16.gmra.mxu0 %v2995
    %v3310 = vpop.f32.mrf.mxu0
    %v3311 = vadd.f32 %v3042, %v3310
    %v3312 = vpop.f32.mrf.mxu0
    %v3313 = vadd.f32 %v3042, %v3312
    %3314 = vmatmul.bf16.gmra.mxu0 %v2996
    %v3315 = vpop.f32.mrf.mxu0
    %v3316 = vadd.f32 %v3042, %v3315
    %v3317 = vpop.f32.mrf.mxu0
    %v3318 = vadd.f32 %v3042, %v3317
    %3319 = vmatmul.bf16.gmra.mxu0 %v2997
    %v3320 = vpop.f32.mrf.mxu0
    %v3321 = vadd.f32 %v3042, %v3320
    %v3322 = vpop.f32.mrf.mxu0
    %v3323 = vadd.f32 %v3042, %v3322
    %3324 = vmatmul.bf16.gmra.mxu0 %v2998
    %v3325 = vpop.f32.mrf.mxu0
    %v3326 = vadd.f32 %v3042, %v3325
    %v3327 = vpop.f32.mrf.mxu0
    %v3328 = vadd.f32 %v3042, %v3327
    %3329 = vmatmul.bf16.gmra.mxu0 %v2999
    %v3330 = vpop.f32.mrf.mxu0
    %v3331 = vadd.f32 %v3042, %v3330
    %v3332 = vpop.f32.mrf.mxu0
    %v3333 = vadd.f32 %v3042, %v3332
    %3334 = vmatmul.bf16.gmra.mxu0 %v3000
    %v3335 = vpop.f32.mrf.mxu0
    %v3336 = vadd.f32 %v3042, %v3335
    %v3337 = vpop.f32.mrf.mxu0
    %v3338 = vadd.f32 %v3042, %v3337
    %3339 = vmatmul.bf16.gmra.mxu0 %v3001
    %v3340 = vpop.f32.mrf.mxu0
    %v3341 = vadd.f32 %v3042, %v3340
    %v3342 = vpop.f32.mrf.mxu0
    %v3343 = vadd.f32 %v3042, %v3342
    %3344 = vmatmul.bf16.gmra.mxu0 %v3002
    %v3345 = vpop.f32.mrf.mxu0
    %v3346 = vadd.f32 %v3042, %v3345
    %v3347 = vpop.f32.mrf.mxu0
    %v3348 = vadd.f32 %v3042, %v3347
    %3349 = vmatmul.bf16.gmra.mxu0 %v3003
    %v3350 = vpop.f32.mrf.mxu0
    %v3351 = vadd.f32 %v3042, %v3350
    %v3352 = vpop.f32.mrf.mxu0
    %v3353 = vadd.f32 %v3042, %v3352
    %3354 = vmatmul.bf16.gmra.mxu0 %v3004
    %v3355 = vpop.f32.mrf.mxu0
    %v3356 = vadd.f32 %v3042, %v3355
    %v3357 = vpop.f32.mrf.mxu0
    %v3358 = vadd.f32 %v3042, %v3357
    %3359 = vmatmul.bf16.gmra.mxu0 %v3005
    %v3360 = vpop.f32.mrf.mxu0
    %v3361 = vadd.f32 %v3042, %v3360
    %v3362 = vpop.f32.mrf.mxu0
    %v3363 = vadd.f32 %v3042, %v3362
    %3364 = vmatmul.bf16.gmra.mxu0 %v3006
    %v3365 = vpop.f32.mrf.mxu0
    %v3366 = vadd.f32 %v3042, %v3365
    %v3367 = vpop.f32.mrf.mxu0
    %v3368 = vadd.f32 %v3042, %v3367
    %3369 = vmatmul.bf16.gmra.mxu0 %v3007
    %v3370 = vpop.f32.mrf.mxu0
    %v3371 = vadd.f32 %v3042, %v3370
    %v3372 = vpop.f32.mrf.mxu0
    %v3373 = vadd.f32 %v3042, %v3372
    %3374 = vmatmul.bf16.gmra.mxu0 %v3008
    %v3375 = vpop.f32.mrf.mxu0
    %v3376 = vadd.f32 %v3042, %v3375
    %v3377 = vpop.f32.mrf.mxu0
    %v3378 = vadd.f32 %v3042, %v3377
    %3379 = vmatmul.bf16.gmra.mxu0 %v3009
    %v3380 = vpop.f32.mrf.mxu0
    %v3381 = vadd.f32 %v3042, %v3380
    %v3382 = vpop.f32.mrf.mxu0
    %v3383 = vadd.f32 %v3042, %v3382
    %3384 = vmatmul.bf16.gmra.mxu0 %v3010
    %v3385 = vpop.f32.mrf.mxu0
    %v3386 = vadd.f32 %v3042, %v3385
    %v3387 = vpop.f32.mrf.mxu0
    %v3388 = vadd.f32 %v3042, %v3387
    %3389 = vmatmul.bf16.gmra.mxu0 %v3011
    %v3390 = vpop.f32.mrf.mxu0
    %v3391 = vadd.f32 %v3042, %v3390
    %v3392 = vpop.f32.mrf.mxu0
    %v3393 = vadd.f32 %v3042, %v3392
    %3394 = vmatmul.bf16.gmra.mxu0 %v3012
    %v3395 = vpop.f32.mrf.mxu0
    %v3396 = vadd.f32 %v3042, %v3395
    %v3397 = vpop.f32.mrf.mxu0
    %v3398 = vadd.f32 %v3042, %v3397
    %3399 = vmatmul.bf16.gmra.mxu0 %v3013
    %v3400 = vpop.f32.mrf.mxu0
    %v3401 = vadd.f32 %v3042, %v3400
    %v3402 = vpop.f32.mrf.mxu0
    %v3403 = vadd.f32 %v3042, %v3402
    %3404 = vmatmul.bf16.gmra.mxu0 %v3014
    %v3405 = vpop.f32.mrf.mxu0
    %v3406 = vadd.f32 %v3042, %v3405
    %v3407 = vpop.f32.mrf.mxu0
    %v3408 = vadd.f32 %v3042, %v3407
    %3409 = vmatmul.bf16.gmra.mxu0 %v3015
    %v3410 = vpop.f32.mrf.mxu0
    %v3411 = vadd.f32 %v3042, %v3410
    %v3412 = vpop.f32.mrf.mxu0
    %v3413 = vadd.f32 %v3042, %v3412
    %3414 = vmatmul.bf16.gmra.mxu0 %v3016
    %v3415 = vpop.f32.mrf.mxu0
    %v3416 = vadd.f32 %v3042, %v3415
    %v3417 = vpop.f32.mrf.mxu0
    %v3418 = vadd.f32 %v3042, %v3417
    %3419 = vmatmul.bf16.gmra.mxu0 %v3017
    %v3420 = vpop.f32.mrf.mxu0
    %v3421 = vadd.f32 %v3042, %v3420
    %v3422 = vpop.f32.mrf.mxu0
    %v3423 = vadd.f32 %v3042, %v3422
    %3424 = vmatmul.bf16.gmra.mxu0 %v3018
    %v3425 = vpop.f32.mrf.mxu0
    %v3426 = vadd.f32 %v3042, %v3425
    %v3427 = vpop.f32.mrf.mxu0
    %v3428 = vadd.f32 %v3042, %v3427
    %3429 = vmatmul.bf16.gmra.mxu0 %v3019
    %v3430 = vpop.f32.mrf.mxu0
    %v3431 = vadd.f32 %v3042, %v3430
    %v3432 = vpop.f32.mrf.mxu0
    %v3433 = vadd.f32 %v3042, %v3432
    %3434 = vmatmul.bf16.gmra.mxu0 %v3020
    %v3435 = vpop.f32.mrf.mxu0
    %v3436 = vadd.f32 %v3042, %v3435
    %v3437 = vpop.f32.mrf.mxu0
    %v3438 = vadd.f32 %v3042, %v3437
    %3439 = vmatmul.bf16.gmra.mxu0 %v3021
    %v3440 = vpop.f32.mrf.mxu0
    %v3441 = vadd.f32 %v3042, %v3440
    %v3442 = vpop.f32.mrf.mxu0
    %v3443 = vadd.f32 %v3042, %v3442
    %3444 = vmatmul.bf16.gmra.mxu0 %v3022
    %v3445 = vpop.f32.mrf.mxu0
    %v3446 = vadd.f32 %v3042, %v3445
    %v3447 = vpop.f32.mrf.mxu0
    %v3448 = vadd.f32 %v3042, %v3447
    %3449 = vmatmul.bf16.gmra.mxu0 %v3023
    %v3450 = vpop.f32.mrf.mxu0
    %v3451 = vadd.f32 %v3042, %v3450
    %v3452 = vpop.f32.mrf.mxu0
    %v3453 = vadd.f32 %v3042, %v3452
    %3454 = vdwg.mxu0
    %3455 = vmatpush.bf16.msra.mxu0 %v3109
    %3456 = vmatpush.bf16.msra.mxu0 %v3107
    %3457 = vmatpush.bf16.msra.mxu0 %v3105
    %3458 = vmatpush.bf16.msra.mxu0 %v3103
    %3459 = vmatpush.bf16.msra.mxu0 %v3101
    %3460 = vmatpush.bf16.msra.mxu0 %v3099
    %3461 = vmatpush.bf16.msra.mxu0 %v3097
    %3462 = vmatpush.bf16.msra.mxu0 %v3095
    %3463 = vmatmul.bf16.gmra.mxu0 %v2960
    %v3464 = vpop.f32.mrf.mxu0
    %v3465 = vadd.f32 %v3043, %v3464
    %v3466 = vpop.f32.mrf.mxu0
    %v3467 = vadd.f32 %v3043, %v3466
    %3468 = vmatmul.bf16.gmra.mxu0 %v2961
    %v3469 = vpop.f32.mrf.mxu0
    %v3470 = vadd.f32 %v3043, %v3469
    %v3471 = vpop.f32.mrf.mxu0
    %v3472 = vadd.f32 %v3043, %v3471
    %3473 = vmatmul.bf16.gmra.mxu0 %v2962
    %v3474 = vpop.f32.mrf.mxu0
    %v3475 = vadd.f32 %v3043, %v3474
    %v3476 = vpop.f32.mrf.mxu0
    %v3477 = vadd.f32 %v3043, %v3476
    %3478 = vmatmul.bf16.gmra.mxu0 %v2963
    %v3479 = vpop.f32.mrf.mxu0
    %v3480 = vadd.f32 %v3043, %v3479
    %v3481 = vpop.f32.mrf.mxu0
    %v3482 = vadd.f32 %v3043, %v3481
    %3483 = vmatmul.bf16.gmra.mxu0 %v2964
    %v3484 = vpop.f32.mrf.mxu0
    %v3485 = vadd.f32 %v3043, %v3484
    %v3486 = vpop.f32.mrf.mxu0
    %v3487 = vadd.f32 %v3043, %v3486
    %3488 = vmatmul.bf16.gmra.mxu0 %v2965
    %v3489 = vpop.f32.mrf.mxu0
    %v3490 = vadd.f32 %v3043, %v3489
    %v3491 = vpop.f32.mrf.mxu0
    %v3492 = vadd.f32 %v3043, %v3491
    %3493 = vmatmul.bf16.gmra.mxu0 %v2966
    %v3494 = vpop.f32.mrf.mxu0
    %v3495 = vadd.f32 %v3043, %v3494
    %v3496 = vpop.f32.mrf.mxu0
    %v3497 = vadd.f32 %v3043, %v3496
    %3498 = vmatmul.bf16.gmra.mxu0 %v2967
    %v3499 = vpop.f32.mrf.mxu0
    %v3500 = vadd.f32 %v3043, %v3499
    %v3501 = vpop.f32.mrf.mxu0
    %v3502 = vadd.f32 %v3043, %v3501
    %3503 = vmatmul.bf16.gmra.mxu0 %v2968
    %v3504 = vpop.f32.mrf.mxu0
    %v3505 = vadd.f32 %v3043, %v3504
    %v3506 = vpop.f32.mrf.mxu0
    %v3507 = vadd.f32 %v3043, %v3506
    %3508 = vmatmul.bf16.gmra.mxu0 %v2969
    %v3509 = vpop.f32.mrf.mxu0
    %v3510 = vadd.f32 %v3043, %v3509
    %v3511 = vpop.f32.mrf.mxu0
    %v3512 = vadd.f32 %v3043, %v3511
    %3513 = vmatmul.bf16.gmra.mxu0 %v2970
    %v3514 = vpop.f32.mrf.mxu0
    %v3515 = vadd.f32 %v3043, %v3514
    %v3516 = vpop.f32.mrf.mxu0
    %v3517 = vadd.f32 %v3043, %v3516
    %3518 = vmatmul.bf16.gmra.mxu0 %v2971
    %v3519 = vpop.f32.mrf.mxu0
    %v3520 = vadd.f32 %v3043, %v3519
    %v3521 = vpop.f32.mrf.mxu0
    %v3522 = vadd.f32 %v3043, %v3521
    %3523 = vmatmul.bf16.gmra.mxu0 %v2972
    %v3524 = vpop.f32.mrf.mxu0
    %v3525 = vadd.f32 %v3043, %v3524
    %v3526 = vpop.f32.mrf.mxu0
    %v3527 = vadd.f32 %v3043, %v3526
    %3528 = vmatmul.bf16.gmra.mxu0 %v2973
    %v3529 = vpop.f32.mrf.mxu0
    %v3530 = vadd.f32 %v3043, %v3529
    %v3531 = vpop.f32.mrf.mxu0
    %v3532 = vadd.f32 %v3043, %v3531
    %3533 = vmatmul.bf16.gmra.mxu0 %v2974
    %v3534 = vpop.f32.mrf.mxu0
    %v3535 = vadd.f32 %v3043, %v3534
    %v3536 = vpop.f32.mrf.mxu0
    %v3537 = vadd.f32 %v3043, %v3536
    %3538 = vmatmul.bf16.gmra.mxu0 %v2975
    %v3539 = vpop.f32.mrf.mxu0
    %v3540 = vadd.f32 %v3043, %v3539
    %v3541 = vpop.f32.mrf.mxu0
    %v3542 = vadd.f32 %v3043, %v3541
    %3543 = vmatmul.bf16.gmra.mxu0 %v2976
    %v3544 = vpop.f32.mrf.mxu0
    %v3545 = vadd.f32 %v3043, %v3544
    %v3546 = vpop.f32.mrf.mxu0
    %v3547 = vadd.f32 %v3043, %v3546
    %3548 = vmatmul.bf16.gmra.mxu0 %v2977
    %v3549 = vpop.f32.mrf.mxu0
    %v3550 = vadd.f32 %v3043, %v3549
    %v3551 = vpop.f32.mrf.mxu0
    %v3552 = vadd.f32 %v3043, %v3551
    %3553 = vmatmul.bf16.gmra.mxu0 %v2978
    %v3554 = vpop.f32.mrf.mxu0
    %v3555 = vadd.f32 %v3043, %v3554
    %v3556 = vpop.f32.mrf.mxu0
    %v3557 = vadd.f32 %v3043, %v3556
    %3558 = vmatmul.bf16.gmra.mxu0 %v2979
    %v3559 = vpop.f32.mrf.mxu0
    %v3560 = vadd.f32 %v3043, %v3559
    %v3561 = vpop.f32.mrf.mxu0
    %v3562 = vadd.f32 %v3043, %v3561
    %3563 = vmatmul.bf16.gmra.mxu0 %v2980
    %v3564 = vpop.f32.mrf.mxu0
    %v3565 = vadd.f32 %v3043, %v3564
    %v3566 = vpop.f32.mrf.mxu0
    %v3567 = vadd.f32 %v3043, %v3566
    %3568 = vmatmul.bf16.gmra.mxu0 %v2981
    %v3569 = vpop.f32.mrf.mxu0
    %v3570 = vadd.f32 %v3043, %v3569
    %v3571 = vpop.f32.mrf.mxu0
    %v3572 = vadd.f32 %v3043, %v3571
    %3573 = vmatmul.bf16.gmra.mxu0 %v2982
    %v3574 = vpop.f32.mrf.mxu0
    %v3575 = vadd.f32 %v3043, %v3574
    %v3576 = vpop.f32.mrf.mxu0
    %v3577 = vadd.f32 %v3043, %v3576
    %3578 = vmatmul.bf16.gmra.mxu0 %v2983
    %v3579 = vpop.f32.mrf.mxu0
    %v3580 = vadd.f32 %v3043, %v3579
    %v3581 = vpop.f32.mrf.mxu0
    %v3582 = vadd.f32 %v3043, %v3581
    %3583 = vmatmul.bf16.gmra.mxu0 %v2984
    %v3584 = vpop.f32.mrf.mxu0
    %v3585 = vadd.f32 %v3043, %v3584
    %v3586 = vpop.f32.mrf.mxu0
    %v3587 = vadd.f32 %v3043, %v3586
    %3588 = vmatmul.bf16.gmra.mxu0 %v2985
    %v3589 = vpop.f32.mrf.mxu0
    %v3590 = vadd.f32 %v3043, %v3589
    %v3591 = vpop.f32.mrf.mxu0
    %v3592 = vadd.f32 %v3043, %v3591
    %3593 = vmatmul.bf16.gmra.mxu0 %v2986
    %v3594 = vpop.f32.mrf.mxu0
    %v3595 = vadd.f32 %v3043, %v3594
    %v3596 = vpop.f32.mrf.mxu0
    %v3597 = vadd.f32 %v3043, %v3596
    %3598 = vmatmul.bf16.gmra.mxu0 %v2987
    %v3599 = vpop.f32.mrf.mxu0
    %v3600 = vadd.f32 %v3043, %v3599
    %v3601 = vpop.f32.mrf.mxu0
    %v3602 = vadd.f32 %v3043, %v3601
    %3603 = vmatmul.bf16.gmra.mxu0 %v2988
    %v3604 = vpop.f32.mrf.mxu0
    %v3605 = vadd.f32 %v3043, %v3604
    %v3606 = vpop.f32.mrf.mxu0
    %v3607 = vadd.f32 %v3043, %v3606
    %3608 = vmatmul.bf16.gmra.mxu0 %v2989
    %v3609 = vpop.f32.mrf.mxu0
    %v3610 = vadd.f32 %v3043, %v3609
    %v3611 = vpop.f32.mrf.mxu0
    %v3612 = vadd.f32 %v3043, %v3611
    %3613 = vmatmul.bf16.gmra.mxu0 %v2990
    %v3614 = vpop.f32.mrf.mxu0
    %v3615 = vadd.f32 %v3043, %v3614
    %v3616 = vpop.f32.mrf.mxu0
    %v3617 = vadd.f32 %v3043, %v3616
    %3618 = vmatmul.bf16.gmra.mxu0 %v2991
    %v3619 = vpop.f32.mrf.mxu0
    %v3620 = vadd.f32 %v3043, %v3619
    %v3621 = vpop.f32.mrf.mxu0
    %v3622 = vadd.f32 %v3043, %v3621
    %3623 = vmatmul.bf16.gmra.mxu0 %v2992
    %v3624 = vpop.f32.mrf.mxu0
    %v3625 = vadd.f32 %v3043, %v3624
    %v3626 = vpop.f32.mrf.mxu0
    %v3627 = vadd.f32 %v3043, %v3626
    %3628 = vmatmul.bf16.gmra.mxu0 %v2993
    %v3629 = vpop.f32.mrf.mxu0
    %v3630 = vadd.f32 %v3043, %v3629
    %v3631 = vpop.f32.mrf.mxu0
    %v3632 = vadd.f32 %v3043, %v3631
    %3633 = vmatmul.bf16.gmra.mxu0 %v2994
    %v3634 = vpop.f32.mrf.mxu0
    %v3635 = vadd.f32 %v3043, %v3634
    %v3636 = vpop.f32.mrf.mxu0
    %v3637 = vadd.f32 %v3043, %v3636
    %3638 = vmatmul.bf16.gmra.mxu0 %v2995
    %v3639 = vpop.f32.mrf.mxu0
    %v3640 = vadd.f32 %v3043, %v3639
    %v3641 = vpop.f32.mrf.mxu0
    %v3642 = vadd.f32 %v3043, %v3641
    %3643 = vmatmul.bf16.gmra.mxu0 %v2996
    %v3644 = vpop.f32.mrf.mxu0
    %v3645 = vadd.f32 %v3043, %v3644
    %v3646 = vpop.f32.mrf.mxu0
    %v3647 = vadd.f32 %v3043, %v3646
    %3648 = vmatmul.bf16.gmra.mxu0 %v2997
    %v3649 = vpop.f32.mrf.mxu0
    %v3650 = vadd.f32 %v3043, %v3649
    %v3651 = vpop.f32.mrf.mxu0
    %v3652 = vadd.f32 %v3043, %v3651
    %3653 = vmatmul.bf16.gmra.mxu0 %v2998
    %v3654 = vpop.f32.mrf.mxu0
    %v3655 = vadd.f32 %v3043, %v3654
    %v3656 = vpop.f32.mrf.mxu0
    %v3657 = vadd.f32 %v3043, %v3656
    %3658 = vmatmul.bf16.gmra.mxu0 %v2999
    %v3659 = vpop.f32.mrf.mxu0
    %v3660 = vadd.f32 %v3043, %v3659
    %v3661 = vpop.f32.mrf.mxu0
    %v3662 = vadd.f32 %v3043, %v3661
    %3663 = vmatmul.bf16.gmra.mxu0 %v3000
    %v3664 = vpop.f32.mrf.mxu0
    %v3665 = vadd.f32 %v3043, %v3664
    %v3666 = vpop.f32.mrf.mxu0
    %v3667 = vadd.f32 %v3043, %v3666
    %3668 = vmatmul.bf16.gmra.mxu0 %v3001
    %v3669 = vpop.f32.mrf.mxu0
    %v3670 = vadd.f32 %v3043, %v3669
    %v3671 = vpop.f32.mrf.mxu0
    %v3672 = vadd.f32 %v3043, %v3671
    %3673 = vmatmul.bf16.gmra.mxu0 %v3002
    %v3674 = vpop.f32.mrf.mxu0
    %v3675 = vadd.f32 %v3043, %v3674
    %v3676 = vpop.f32.mrf.mxu0
    %v3677 = vadd.f32 %v3043, %v3676
    %3678 = vmatmul.bf16.gmra.mxu0 %v3003
    %v3679 = vpop.f32.mrf.mxu0
    %v3680 = vadd.f32 %v3043, %v3679
    %v3681 = vpop.f32.mrf.mxu0
    %v3682 = vadd.f32 %v3043, %v3681
    %3683 = vmatmul.bf16.gmra.mxu0 %v3004
    %v3684 = vpop.f32.mrf.mxu0
    %v3685 = vadd.f32 %v3043, %v3684
    %v3686 = vpop.f32.mrf.mxu0
    %v3687 = vadd.f32 %v3043, %v3686
    %3688 = vmatmul.bf16.gmra.mxu0 %v3005
    %v3689 = vpop.f32.mrf.mxu0
    %v3690 = vadd.f32 %v3043, %v3689
    %v3691 = vpop.f32.mrf.mxu0
    %v3692 = vadd.f32 %v3043, %v3691
    %3693 = vmatmul.bf16.gmra.mxu0 %v3006
    %v3694 = vpop.f32.mrf.mxu0
    %v3695 = vadd.f32 %v3043, %v3694
    %v3696 = vpop.f32.mrf.mxu0
    %v3697 = vadd.f32 %v3043, %v3696
    %3698 = vmatmul.bf16.gmra.mxu0 %v3007
    %v3699 = vpop.f32.mrf.mxu0
    %v3700 = vadd.f32 %v3043, %v3699
    %v3701 = vpop.f32.mrf.mxu0
    %v3702 = vadd.f32 %v3043, %v3701
    %3703 = vmatmul.bf16.gmra.mxu0 %v3008
    %v3704 = vpop.f32.mrf.mxu0
    %v3705 = vadd.f32 %v3043, %v3704
    %v3706 = vpop.f32.mrf.mxu0
    %v3707 = vadd.f32 %v3043, %v3706
    %3708 = vmatmul.bf16.gmra.mxu0 %v3009
    %v3709 = vpop.f32.mrf.mxu0
    %v3710 = vadd.f32 %v3043, %v3709
    %v3711 = vpop.f32.mrf.mxu0
    %v3712 = vadd.f32 %v3043, %v3711
    %3713 = vmatmul.bf16.gmra.mxu0 %v3010
    %v3714 = vpop.f32.mrf.mxu0
    %v3715 = vadd.f32 %v3043, %v3714
    %v3716 = vpop.f32.mrf.mxu0
    %v3717 = vadd.f32 %v3043, %v3716
    %3718 = vmatmul.bf16.gmra.mxu0 %v3011
    %v3719 = vpop.f32.mrf.mxu0
    %v3720 = vadd.f32 %v3043, %v3719
    %v3721 = vpop.f32.mrf.mxu0
    %v3722 = vadd.f32 %v3043, %v3721
    %3723 = vmatmul.bf16.gmra.mxu0 %v3012
    %v3724 = vpop.f32.mrf.mxu0
    %v3725 = vadd.f32 %v3043, %v3724
    %v3726 = vpop.f32.mrf.mxu0
    %v3727 = vadd.f32 %v3043, %v3726
    %3728 = vmatmul.bf16.gmra.mxu0 %v3013
    %v3729 = vpop.f32.mrf.mxu0
    %v3730 = vadd.f32 %v3043, %v3729
    %v3731 = vpop.f32.mrf.mxu0
    %v3732 = vadd.f32 %v3043, %v3731
    %3733 = vmatmul.bf16.gmra.mxu0 %v3014
    %v3734 = vpop.f32.mrf.mxu0
    %v3735 = vadd.f32 %v3043, %v3734
    %v3736 = vpop.f32.mrf.mxu0
    %v3737 = vadd.f32 %v3043, %v3736
    %3738 = vmatmul.bf16.gmra.mxu0 %v3015
    %v3739 = vpop.f32.mrf.mxu0
    %v3740 = vadd.f32 %v3043, %v3739
    %v3741 = vpop.f32.mrf.mxu0
    %v3742 = vadd.f32 %v3043, %v3741
    %3743 = vmatmul.bf16.gmra.mxu0 %v3016
    %v3744 = vpop.f32.mrf.mxu0
    %v3745 = vadd.f32 %v3043, %v3744
    %v3746 = vpop.f32.mrf.mxu0
    %v3747 = vadd.f32 %v3043, %v3746
    %3748 = vmatmul.bf16.gmra.mxu0 %v3017
    %v3749 = vpop.f32.mrf.mxu0
    %v3750 = vadd.f32 %v3043, %v3749
    %v3751 = vpop.f32.mrf.mxu0
    %v3752 = vadd.f32 %v3043, %v3751
    %3753 = vmatmul.bf16.gmra.mxu0 %v3018
    %v3754 = vpop.f32.mrf.mxu0
    %v3755 = vadd.f32 %v3043, %v3754
    %v3756 = vpop.f32.mrf.mxu0
    %v3757 = vadd.f32 %v3043, %v3756
    %3758 = vmatmul.bf16.gmra.mxu0 %v3019
    %v3759 = vpop.f32.mrf.mxu0
    %v3760 = vadd.f32 %v3043, %v3759
    %v3761 = vpop.f32.mrf.mxu0
    %v3762 = vadd.f32 %v3043, %v3761
    %3763 = vmatmul.bf16.gmra.mxu0 %v3020
    %v3764 = vpop.f32.mrf.mxu0
    %v3765 = vadd.f32 %v3043, %v3764
    %v3766 = vpop.f32.mrf.mxu0
    %v3767 = vadd.f32 %v3043, %v3766
    %3768 = vmatmul.bf16.gmra.mxu0 %v3021
    %v3769 = vpop.f32.mrf.mxu0
    %v3770 = vadd.f32 %v3043, %v3769
    %v3771 = vpop.f32.mrf.mxu0
    %v3772 = vadd.f32 %v3043, %v3771
    %3773 = vmatmul.bf16.gmra.mxu0 %v3022
    %v3774 = vpop.f32.mrf.mxu0
    %v3775 = vadd.f32 %v3043, %v3774
    %v3776 = vpop.f32.mrf.mxu0
    %v3777 = vadd.f32 %v3043, %v3776
    %3778 = vmatmul.bf16.gmra.mxu0 %v3023
    %v3779 = vpop.f32.mrf.mxu0
    %v3780 = vadd.f32 %v3043, %v3779
    %v3781 = vpop.f32.mrf.mxu0
    %v3782 = vadd.f32 %v3043, %v3781
    %3783 = vdwg.mxu0
    %v3784 = vmax.f32 %v3136, 0.0
    %v3785 = vmax.f32 %v3138, 0.0
    %v3786 = vmax.f32 %v3141, 0.0
    %v3787 = vmax.f32 %v3143, 0.0
    %v3788 = vmax.f32 %v3146, 0.0
    %v3789 = vmax.f32 %v3148, 0.0
    %v3790 = vmax.f32 %v3151, 0.0
    %v3791 = vmax.f32 %v3153, 0.0
    %v3792 = vmax.f32 %v3156, 0.0
    %v3793 = vmax.f32 %v3158, 0.0
    %v3794 = vmax.f32 %v3161, 0.0
    %v3795 = vmax.f32 %v3163, 0.0
    %v3796 = vmax.f32 %v3166, 0.0
    %v3797 = vmax.f32 %v3168, 0.0
    %v3798 = vmax.f32 %v3171, 0.0
    %v3799 = vmax.f32 %v3173, 0.0
    %v3800 = vmax.f32 %v3176, 0.0
    %v3801 = vmax.f32 %v3178, 0.0
    %v3802 = vmax.f32 %v3181, 0.0
    %v3803 = vmax.f32 %v3183, 0.0
    %v3804 = vmax.f32 %v3186, 0.0
    %v3805 = vmax.f32 %v3188, 0.0
    %v3806 = vmax.f32 %v3191, 0.0
    %v3807 = vmax.f32 %v3193, 0.0
    %v3808 = vmax.f32 %v3196, 0.0
    %v3809 = vmax.f32 %v3198, 0.0
    %v3810 = vmax.f32 %v3201, 0.0
    %v3811 = vmax.f32 %v3203, 0.0
    %v3812 = vmax.f32 %v3206, 0.0
    %v3813 = vmax.f32 %v3208, 0.0
    %v3814 = vmax.f32 %v3211, 0.0
    %v3815 = vmax.f32 %v3213, 0.0
    %v3816 = vmax.f32 %v3216, 0.0
    %v3817 = vmax.f32 %v3218, 0.0
    %v3818 = vmax.f32 %v3221, 0.0
    %v3819 = vmax.f32 %v3223, 0.0
    %v3820 = vmax.f32 %v3226, 0.0
    %v3821 = vmax.f32 %v3228, 0.0
    %v3822 = vmax.f32 %v3231, 0.0
    %v3823 = vmax.f32 %v3233, 0.0
    %v3824 = vmax.f32 %v3236, 0.0
    %v3825 = vmax.f32 %v3238, 0.0
    %v3826 = vmax.f32 %v3241, 0.0
    %v3827 = vmax.f32 %v3243, 0.0
    %v3828 = vmax.f32 %v3246, 0.0
    %v3829 = vmax.f32 %v3248, 0.0
    %v3830 = vmax.f32 %v3251, 0.0
    %v3831 = vmax.f32 %v3253, 0.0
    %v3832 = vmax.f32 %v3256, 0.0
    %v3833 = vmax.f32 %v3258, 0.0
    %v3834 = vmax.f32 %v3261, 0.0
    %v3835 = vmax.f32 %v3263, 0.0
    %v3836 = vmax.f32 %v3266, 0.0
    %v3837 = vmax.f32 %v3268, 0.0
    %v3838 = vmax.f32 %v3271, 0.0
    %v3839 = vmax.f32 %v3273, 0.0
    %v3840 = vmax.f32 %v3276, 0.0
    %v3841 = vmax.f32 %v3278, 0.0
    %v3842 = vmax.f32 %v3281, 0.0
    %v3843 = vmax.f32 %v3283, 0.0
    %v3844 = vmax.f32 %v3286, 0.0
    %v3845 = vmax.f32 %v3288, 0.0
    %v3846 = vmax.f32 %v3291, 0.0
    %v3847 = vmax.f32 %v3293, 0.0
    %v3848 = vmax.f32 %v3296, 0.0
    %v3849 = vmax.f32 %v3298, 0.0
    %v3850 = vmax.f32 %v3301, 0.0
    %v3851 = vmax.f32 %v3303, 0.0
    %v3852 = vmax.f32 %v3306, 0.0
    %v3853 = vmax.f32 %v3308, 0.0
    %v3854 = vmax.f32 %v3311, 0.0
    %v3855 = vmax.f32 %v3313, 0.0
    %v3856 = vmax.f32 %v3316, 0.0
    %v3857 = vmax.f32 %v3318, 0.0
    %v3858 = vmax.f32 %v3321, 0.0
    %v3859 = vmax.f32 %v3323, 0.0
    %v3860 = vmax.f32 %v3326, 0.0
    %v3861 = vmax.f32 %v3328, 0.0
    %v3862 = vmax.f32 %v3331, 0.0
    %v3863 = vmax.f32 %v3333, 0.0
    %v3864 = vmax.f32 %v3336, 0.0
    %v3865 = vmax.f32 %v3338, 0.0
    %v3866 = vmax.f32 %v3341, 0.0
    %v3867 = vmax.f32 %v3343, 0.0
    %v3868 = vmax.f32 %v3346, 0.0
    %v3869 = vmax.f32 %v3348, 0.0
    %v3870 = vmax.f32 %v3351, 0.0
    %v3871 = vmax.f32 %v3353, 0.0
    %v3872 = vmax.f32 %v3356, 0.0
    %v3873 = vmax.f32 %v3358, 0.0
    %v3874 = vmax.f32 %v3361, 0.0
    %v3875 = vmax.f32 %v3363, 0.0
    %v3876 = vmax.f32 %v3366, 0.0
    %v3877 = vmax.f32 %v3368, 0.0
    %v3878 = vmax.f32 %v3371, 0.0
    %v3879 = vmax.f32 %v3373, 0.0
    %v3880 = vmax.f32 %v3376, 0.0
    %v3881 = vmax.f32 %v3378, 0.0
    %v3882 = vmax.f32 %v3381, 0.0
    %v3883 = vmax.f32 %v3383, 0.0
    %v3884 = vmax.f32 %v3386, 0.0
    %v3885 = vmax.f32 %v3388, 0.0
    %v3886 = vmax.f32 %v3391, 0.0
    %v3887 = vmax.f32 %v3393, 0.0
    %v3888 = vmax.f32 %v3396, 0.0
    %v3889 = vmax.f32 %v3398, 0.0
    %v3890 = vmax.f32 %v3401, 0.0
    %v3891 = vmax.f32 %v3403, 0.0
    %v3892 = vmax.f32 %v3406, 0.0
    %v3893 = vmax.f32 %v3408, 0.0
    %v3894 = vmax.f32 %v3411, 0.0
    %v3895 = vmax.f32 %v3413, 0.0
    %v3896 = vmax.f32 %v3416, 0.0
    %v3897 = vmax.f32 %v3418, 0.0
    %v3898 = vmax.f32 %v3421, 0.0
    %v3899 = vmax.f32 %v3423, 0.0
    %v3900 = vmax.f32 %v3426, 0.0
    %v3901 = vmax.f32 %v3428, 0.0
    %v3902 = vmax.f32 %v3431, 0.0
    %v3903 = vmax.f32 %v3433, 0.0
    %v3904 = vmax.f32 %v3436, 0.0
    %v3905 = vmax.f32 %v3438, 0.0
    %v3906 = vmax.f32 %v3441, 0.0
    %v3907 = vmax.f32 %v3443, 0.0
    %v3908 = vmax.f32 %v3446, 0.0
    %v3909 = vmax.f32 %v3448, 0.0
    %v3910 = vmax.f32 %v3451, 0.0
    %v3911 = vmax.f32 %v3453, 0.0
    %v3912 = vpack.c.bf16 %v3784, %v3784
    %v3913 = vpack.c.bf16 %v3785, %v3785
    %v3914 = vpack.c.bf16 %v3786, %v3786
    %v3915 = vpack.c.bf16 %v3787, %v3787
    %v3916 = vpack.c.bf16 %v3788, %v3788
    %v3917 = vpack.c.bf16 %v3789, %v3789
    %v3918 = vpack.c.bf16 %v3790, %v3790
    %v3919 = vpack.c.bf16 %v3791, %v3791
    %v3920 = vpack.c.bf16 %v3792, %v3792
    %v3921 = vpack.c.bf16 %v3793, %v3793
    %v3922 = vpack.c.bf16 %v3794, %v3794
    %v3923 = vpack.c.bf16 %v3795, %v3795
    %v3924 = vpack.c.bf16 %v3796, %v3796
    %v3925 = vpack.c.bf16 %v3797, %v3797
    %v3926 = vpack.c.bf16 %v3798, %v3798
    %v3927 = vpack.c.bf16 %v3799, %v3799
    %v3928 = vpack.c.bf16 %v3800, %v3800
    %v3929 = vpack.c.bf16 %v3801, %v3801
    %v3930 = vpack.c.bf16 %v3802, %v3802
    %v3931 = vpack.c.bf16 %v3803, %v3803
    %v3932 = vpack.c.bf16 %v3804, %v3804
    %v3933 = vpack.c.bf16 %v3805, %v3805
    %v3934 = vpack.c.bf16 %v3806, %v3806
    %v3935 = vpack.c.bf16 %v3807, %v3807
    %v3936 = vpack.c.bf16 %v3808, %v3808
    %v3937 = vpack.c.bf16 %v3809, %v3809
    %v3938 = vpack.c.bf16 %v3810, %v3810
    %v3939 = vpack.c.bf16 %v3811, %v3811
    %v3940 = vpack.c.bf16 %v3812, %v3812
    %v3941 = vpack.c.bf16 %v3813, %v3813
    %v3942 = vpack.c.bf16 %v3814, %v3814
    %v3943 = vpack.c.bf16 %v3815, %v3815
    %v3944 = vpack.c.bf16 %v3816, %v3816
    %v3945 = vpack.c.bf16 %v3817, %v3817
    %v3946 = vpack.c.bf16 %v3818, %v3818
    %v3947 = vpack.c.bf16 %v3819, %v3819
    %v3948 = vpack.c.bf16 %v3820, %v3820
    %v3949 = vpack.c.bf16 %v3821, %v3821
    %v3950 = vpack.c.bf16 %v3822, %v3822
    %v3951 = vpack.c.bf16 %v3823, %v3823
    %v3952 = vpack.c.bf16 %v3824, %v3824
    %v3953 = vpack.c.bf16 %v3825, %v3825
    %v3954 = vpack.c.bf16 %v3826, %v3826
    %v3955 = vpack.c.bf16 %v3827, %v3827
    %v3956 = vpack.c.bf16 %v3828, %v3828
    %v3957 = vpack.c.bf16 %v3829, %v3829
    %v3958 = vpack.c.bf16 %v3830, %v3830
    %v3959 = vpack.c.bf16 %v3831, %v3831
    %v3960 = vpack.c.bf16 %v3832, %v3832
    %v3961 = vpack.c.bf16 %v3833, %v3833
    %v3962 = vpack.c.bf16 %v3834, %v3834
    %v3963 = vpack.c.bf16 %v3835, %v3835
    %v3964 = vpack.c.bf16 %v3836, %v3836
    %v3965 = vpack.c.bf16 %v3837, %v3837
    %v3966 = vpack.c.bf16 %v3838, %v3838
    %v3967 = vpack.c.bf16 %v3839, %v3839
    %v3968 = vpack.c.bf16 %v3840, %v3840
    %v3969 = vpack.c.bf16 %v3841, %v3841
    %v3970 = vpack.c.bf16 %v3842, %v3842
    %v3971 = vpack.c.bf16 %v3843, %v3843
    %v3972 = vpack.c.bf16 %v3844, %v3844
    %v3973 = vpack.c.bf16 %v3845, %v3845
    %v3974 = vpack.c.bf16 %v3846, %v3846
    %v3975 = vpack.c.bf16 %v3847, %v3847
    %v3976 = vpack.c.bf16 %v3848, %v3848
    %v3977 = vpack.c.bf16 %v3849, %v3849
    %v3978 = vpack.c.bf16 %v3850, %v3850
    %v3979 = vpack.c.bf16 %v3851, %v3851
    %v3980 = vpack.c.bf16 %v3852, %v3852
    %v3981 = vpack.c.bf16 %v3853, %v3853
    %v3982 = vpack.c.bf16 %v3854, %v3854
    %v3983 = vpack.c.bf16 %v3855, %v3855
    %v3984 = vpack.c.bf16 %v3856, %v3856
    %v3985 = vpack.c.bf16 %v3857, %v3857
    %v3986 = vpack.c.bf16 %v3858, %v3858
    %v3987 = vpack.c.bf16 %v3859, %v3859
    %v3988 = vpack.c.bf16 %v3860, %v3860
    %v3989 = vpack.c.bf16 %v3861, %v3861
    %v3990 = vpack.c.bf16 %v3862, %v3862
    %v3991 = vpack.c.bf16 %v3863, %v3863
    %v3992 = vpack.c.bf16 %v3864, %v3864
    %v3993 = vpack.c.bf16 %v3865, %v3865
    %v3994 = vpack.c.bf16 %v3866, %v3866
    %v3995 = vpack.c.bf16 %v3867, %v3867
    %v3996 = vpack.c.bf16 %v3868, %v3868
    %v3997 = vpack.c.bf16 %v3869, %v3869
    %v3998 = vpack.c.bf16 %v3870, %v3870
    %v3999 = vpack.c.bf16 %v3871, %v3871
    %v4000 = vpack.c.bf16 %v3872, %v3872
    %v4001 = vpack.c.bf16 %v3873, %v3873
    %v4002 = vpack.c.bf16 %v3874, %v3874
    %v4003 = vpack.c.bf16 %v3875, %v3875
    %v4004 = vpack.c.bf16 %v3876, %v3876
    %v4005 = vpack.c.bf16 %v3877, %v3877
    %v4006 = vpack.c.bf16 %v3878, %v3878
    %v4007 = vpack.c.bf16 %v3879, %v3879
    %v4008 = vpack.c.bf16 %v3880, %v3880
    %v4009 = vpack.c.bf16 %v3881, %v3881
    %v4010 = vpack.c.bf16 %v3882, %v3882
    %v4011 = vpack.c.bf16 %v3883, %v3883
    %v4012 = vpack.c.bf16 %v3884, %v3884
    %v4013 = vpack.c.bf16 %v3885, %v3885
    %v4014 = vpack.c.bf16 %v3886, %v3886
    %v4015 = vpack.c.bf16 %v3887, %v3887
    %v4016 = vpack.c.bf16 %v3888, %v3888
    %v4017 = vpack.c.bf16 %v3889, %v3889
    %v4018 = vpack.c.bf16 %v3890, %v3890
    %v4019 = vpack.c.bf16 %v3891, %v3891
    %v4020 = vpack.c.bf16 %v3892, %v3892
    %v4021 = vpack.c.bf16 %v3893, %v3893
    %v4022 = vpack.c.bf16 %v3894, %v3894
    %v4023 = vpack.c.bf16 %v3895, %v3895
    %v4024 = vpack.c.bf16 %v3896, %v3896
    %v4025 = vpack.c.bf16 %v3897, %v3897
    %v4026 = vpack.c.bf16 %v3898, %v3898
    %v4027 = vpack.c.bf16 %v3899, %v3899
    %v4028 = vpack.c.bf16 %v3900, %v3900
    %v4029 = vpack.c.bf16 %v3901, %v3901
    %v4030 = vpack.c.bf16 %v3902, %v3902
    %v4031 = vpack.c.bf16 %v3903, %v3903
    %v4032 = vpack.c.bf16 %v3904, %v3904
    %v4033 = vpack.c.bf16 %v3905, %v3905
    %v4034 = vpack.c.bf16 %v3906, %v3906
    %v4035 = vpack.c.bf16 %v3907, %v3907
    %v4036 = vpack.c.bf16 %v3908, %v3908
    %v4037 = vpack.c.bf16 %v3909, %v3909
    %v4038 = vpack.c.bf16 %v3910, %v3910
    %v4039 = vpack.c.bf16 %v3911, %v3911
    %v4168 = vunpack.c.l.b16 %v3912
    %v4169 = vunpack.c.l.b16 %v3913
    %v4170 = vunpack.c.l.b16 %v3914
    %v4171 = vunpack.c.l.b16 %v3915
    %v4172 = vunpack.c.l.b16 %v3916
    %v4173 = vunpack.c.l.b16 %v3917
    %v4174 = vunpack.c.l.b16 %v3918
    %v4175 = vunpack.c.l.b16 %v3919
    %v4176 = vunpack.c.l.b16 %v3920
    %v4177 = vunpack.c.l.b16 %v3921
    %v4178 = vunpack.c.l.b16 %v3922
    %v4179 = vunpack.c.l.b16 %v3923
    %v4180 = vunpack.c.l.b16 %v3924
    %v4181 = vunpack.c.l.b16 %v3925
    %v4182 = vunpack.c.l.b16 %v3926
    %v4183 = vunpack.c.l.b16 %v3927
    %v4184 = vunpack.c.l.b16 %v3928
    %v4185 = vunpack.c.l.b16 %v3929
    %v4186 = vunpack.c.l.b16 %v3930
    %v4187 = vunpack.c.l.b16 %v3931
    %v4188 = vunpack.c.l.b16 %v3932
    %v4189 = vunpack.c.l.b16 %v3933
    %v4190 = vunpack.c.l.b16 %v3934
    %v4191 = vunpack.c.l.b16 %v3935
    %v4192 = vunpack.c.l.b16 %v3936
    %v4193 = vunpack.c.l.b16 %v3937
    %v4194 = vunpack.c.l.b16 %v3938
    %v4195 = vunpack.c.l.b16 %v3939
    %v4196 = vunpack.c.l.b16 %v3940
    %v4197 = vunpack.c.l.b16 %v3941
    %v4198 = vunpack.c.l.b16 %v3942
    %v4199 = vunpack.c.l.b16 %v3943
    %v4200 = vunpack.c.l.b16 %v3944
    %v4201 = vunpack.c.l.b16 %v3945
    %v4202 = vunpack.c.l.b16 %v3946
    %v4203 = vunpack.c.l.b16 %v3947
    %v4204 = vunpack.c.l.b16 %v3948
    %v4205 = vunpack.c.l.b16 %v3949
    %v4206 = vunpack.c.l.b16 %v3950
    %v4207 = vunpack.c.l.b16 %v3951
    %v4208 = vunpack.c.l.b16 %v3952
    %v4209 = vunpack.c.l.b16 %v3953
    %v4210 = vunpack.c.l.b16 %v3954
    %v4211 = vunpack.c.l.b16 %v3955
    %v4212 = vunpack.c.l.b16 %v3956
    %v4213 = vunpack.c.l.b16 %v3957
    %v4214 = vunpack.c.l.b16 %v3958
    %v4215 = vunpack.c.l.b16 %v3959
    %v4216 = vunpack.c.l.b16 %v3960
    %v4217 = vunpack.c.l.b16 %v3961
    %v4218 = vunpack.c.l.b16 %v3962
    %v4219 = vunpack.c.l.b16 %v3963
    %v4220 = vunpack.c.l.b16 %v3964
    %v4221 = vunpack.c.l.b16 %v3965
    %v4222 = vunpack.c.l.b16 %v3966
    %v4223 = vunpack.c.l.b16 %v3967
    %v4224 = vunpack.c.l.b16 %v3968
    %v4225 = vunpack.c.l.b16 %v3969
    %v4226 = vunpack.c.l.b16 %v3970
    %v4227 = vunpack.c.l.b16 %v3971
    %v4228 = vunpack.c.l.b16 %v3972
    %v4229 = vunpack.c.l.b16 %v3973
    %v4230 = vunpack.c.l.b16 %v3974
    %v4231 = vunpack.c.l.b16 %v3975
    %v4232 = vunpack.c.l.b16 %v3976
    %v4233 = vunpack.c.l.b16 %v3977
    %v4234 = vunpack.c.l.b16 %v3978
    %v4235 = vunpack.c.l.b16 %v3979
    %v4236 = vunpack.c.l.b16 %v3980
    %v4237 = vunpack.c.l.b16 %v3981
    %v4238 = vunpack.c.l.b16 %v3982
    %v4239 = vunpack.c.l.b16 %v3983
    %v4240 = vunpack.c.l.b16 %v3984
    %v4241 = vunpack.c.l.b16 %v3985
    %v4242 = vunpack.c.l.b16 %v3986
    %v4243 = vunpack.c.l.b16 %v3987
    %v4244 = vunpack.c.l.b16 %v3988
    %v4245 = vunpack.c.l.b16 %v3989
    %v4246 = vunpack.c.l.b16 %v3990
    %v4247 = vunpack.c.l.b16 %v3991
    %v4248 = vunpack.c.l.b16 %v3992
    %v4249 = vunpack.c.l.b16 %v3993
    %v4250 = vunpack.c.l.b16 %v3994
    %v4251 = vunpack.c.l.b16 %v3995
    %v4252 = vunpack.c.l.b16 %v3996
    %v4253 = vunpack.c.l.b16 %v3997
    %v4254 = vunpack.c.l.b16 %v3998
    %v4255 = vunpack.c.l.b16 %v3999
    %v4256 = vunpack.c.l.b16 %v4000
    %v4257 = vunpack.c.l.b16 %v4001
    %v4258 = vunpack.c.l.b16 %v4002
    %v4259 = vunpack.c.l.b16 %v4003
    %v4260 = vunpack.c.l.b16 %v4004
    %v4261 = vunpack.c.l.b16 %v4005
    %v4262 = vunpack.c.l.b16 %v4006
    %v4263 = vunpack.c.l.b16 %v4007
    %v4264 = vunpack.c.l.b16 %v4008
    %v4265 = vunpack.c.l.b16 %v4009
    %v4266 = vunpack.c.l.b16 %v4010
    %v4267 = vunpack.c.l.b16 %v4011
    %v4268 = vunpack.c.l.b16 %v4012
    %v4269 = vunpack.c.l.b16 %v4013
    %v4270 = vunpack.c.l.b16 %v4014
    %v4271 = vunpack.c.l.b16 %v4015
    %v4272 = vunpack.c.l.b16 %v4016
    %v4273 = vunpack.c.l.b16 %v4017
    %v4274 = vunpack.c.l.b16 %v4018
    %v4275 = vunpack.c.l.b16 %v4019
    %v4276 = vunpack.c.l.b16 %v4020
    %v4277 = vunpack.c.l.b16 %v4021
    %v4278 = vunpack.c.l.b16 %v4022
    %v4279 = vunpack.c.l.b16 %v4023
    %v4280 = vunpack.c.l.b16 %v4024
    %v4281 = vunpack.c.l.b16 %v4025
    %v4282 = vunpack.c.l.b16 %v4026
    %v4283 = vunpack.c.l.b16 %v4027
    %v4284 = vunpack.c.l.b16 %v4028
    %v4285 = vunpack.c.l.b16 %v4029
    %v4286 = vunpack.c.l.b16 %v4030
    %v4287 = vunpack.c.l.b16 %v4031
    %v4288 = vunpack.c.l.b16 %v4032
    %v4289 = vunpack.c.l.b16 %v4033
    %v4290 = vunpack.c.l.b16 %v4034
    %v4291 = vunpack.c.l.b16 %v4035
    %v4292 = vunpack.c.l.b16 %v4036
    %v4293 = vunpack.c.l.b16 %v4037
    %v4294 = vunpack.c.l.b16 %v4038
    %v4295 = vunpack.c.l.b16 %v4039
    %v4296 = vpack.c.b16 %v4169, %v4168
    %v4297 = vpack.c.b16 %v4171, %v4170
    %v4298 = vpack.c.b16 %v4173, %v4172
    %v4299 = vpack.c.b16 %v4175, %v4174
    %v4300 = vpack.c.b16 %v4177, %v4176
    %v4301 = vpack.c.b16 %v4179, %v4178
    %v4302 = vpack.c.b16 %v4181, %v4180
    %v4303 = vpack.c.b16 %v4183, %v4182
    %v4304 = vpack.c.b16 %v4185, %v4184
    %v4305 = vpack.c.b16 %v4187, %v4186
    %v4306 = vpack.c.b16 %v4189, %v4188
    %v4307 = vpack.c.b16 %v4191, %v4190
    %v4308 = vpack.c.b16 %v4193, %v4192
    %v4309 = vpack.c.b16 %v4195, %v4194
    %v4310 = vpack.c.b16 %v4197, %v4196
    %v4311 = vpack.c.b16 %v4199, %v4198
    %v4312 = vpack.c.b16 %v4201, %v4200
    %v4313 = vpack.c.b16 %v4203, %v4202
    %v4314 = vpack.c.b16 %v4205, %v4204
    %v4315 = vpack.c.b16 %v4207, %v4206
    %v4316 = vpack.c.b16 %v4209, %v4208
    %v4317 = vpack.c.b16 %v4211, %v4210
    %v4318 = vpack.c.b16 %v4213, %v4212
    %v4319 = vpack.c.b16 %v4215, %v4214
    %v4320 = vpack.c.b16 %v4217, %v4216
    %v4321 = vpack.c.b16 %v4219, %v4218
    %v4322 = vpack.c.b16 %v4221, %v4220
    %v4323 = vpack.c.b16 %v4223, %v4222
    %v4324 = vpack.c.b16 %v4225, %v4224
    %v4325 = vpack.c.b16 %v4227, %v4226
    %v4326 = vpack.c.b16 %v4229, %v4228
    %v4327 = vpack.c.b16 %v4231, %v4230
    %v4328 = vpack.c.b16 %v4233, %v4232
    %v4329 = vpack.c.b16 %v4235, %v4234
    %v4330 = vpack.c.b16 %v4237, %v4236
    %v4331 = vpack.c.b16 %v4239, %v4238
    %v4332 = vpack.c.b16 %v4241, %v4240
    %v4333 = vpack.c.b16 %v4243, %v4242
    %v4334 = vpack.c.b16 %v4245, %v4244
    %v4335 = vpack.c.b16 %v4247, %v4246
    %v4336 = vpack.c.b16 %v4249, %v4248
    %v4337 = vpack.c.b16 %v4251, %v4250
    %v4338 = vpack.c.b16 %v4253, %v4252
    %v4339 = vpack.c.b16 %v4255, %v4254
    %v4340 = vpack.c.b16 %v4257, %v4256
    %v4341 = vpack.c.b16 %v4259, %v4258
    %v4342 = vpack.c.b16 %v4261, %v4260
    %v4343 = vpack.c.b16 %v4263, %v4262
    %v4344 = vpack.c.b16 %v4265, %v4264
    %v4345 = vpack.c.b16 %v4267, %v4266
    %v4346 = vpack.c.b16 %v4269, %v4268
    %v4347 = vpack.c.b16 %v4271, %v4270
    %v4348 = vpack.c.b16 %v4273, %v4272
    %v4349 = vpack.c.b16 %v4275, %v4274
    %v4350 = vpack.c.b16 %v4277, %v4276
    %v4351 = vpack.c.b16 %v4279, %v4278
    %v4352 = vpack.c.b16 %v4281, %v4280
    %v4353 = vpack.c.b16 %v4283, %v4282
    %v4354 = vpack.c.b16 %v4285, %v4284
    %v4355 = vpack.c.b16 %v4287, %v4286
    %v4356 = vpack.c.b16 %v4289, %v4288
    %v4357 = vpack.c.b16 %v4291, %v4290
    %v4358 = vpack.c.b16 %v4293, %v4292
    %v4359 = vpack.c.b16 %v4295, %v4294
    %v4424 = vld [vmem:[%s11] sm:$0xf]
    %v4425 = vld [vmem:[%s11 + $0x4] sm:$0xf]
    %v4426 = vld [vmem:[%s11 + $0x8] sm:$0xf]
    %v4427 = vld [vmem:[%s11 + $0xc] sm:$0xf]
    %v4428 = vld [vmem:[%s11 + $0x10] sm:$0xf]
    %v4429 = vld [vmem:[%s11 + $0x14] sm:$0xf]
    %v4430 = vld [vmem:[%s11 + $0x18] sm:$0xf]
    %v4431 = vld [vmem:[%s11 + $0x1c] sm:$0xf]
    %v4432 = vld [vmem:[%s11 + $0x20] sm:$0xf]
    %v4433 = vld [vmem:[%s11 + $0x24] sm:$0xf]
    %v4434 = vld [vmem:[%s11 + $0x28] sm:$0xf]
    %v4435 = vld [vmem:[%s11 + $0x2c] sm:$0xf]
    %v4436 = vld [vmem:[%s11 + $0x30] sm:$0xf]
    %v4437 = vld [vmem:[%s11 + $0x34] sm:$0xf]
    %v4438 = vld [vmem:[%s11 + $0x38] sm:$0xf]
    %v4439 = vld [vmem:[%s11 + $0x3c] sm:$0xf]
    %v4440 = vld [vmem:[%s11 + $0x40] sm:$0xf]
    %v4441 = vld [vmem:[%s11 + $0x44] sm:$0xf]
    %v4442 = vld [vmem:[%s11 + $0x48] sm:$0xf]
    %v4443 = vld [vmem:[%s11 + $0x4c] sm:$0xf]
    %v4444 = vld [vmem:[%s11 + $0x50] sm:$0xf]
    %v4445 = vld [vmem:[%s11 + $0x54] sm:$0xf]
    %v4446 = vld [vmem:[%s11 + $0x58] sm:$0xf]
    %v4447 = vld [vmem:[%s11 + $0x5c] sm:$0xf]
    %v4448 = vld [vmem:[%s11 + $0x60] sm:$0x1]
    %v4449 = vld [vmem:[%s12] sm:$0x1]
    %v4451 = vperm.slane %v4449, 0
    %v4478 = vunpack.c.l.b16 %v4424
    %v4479 = vunpack.c.l.b16 %v4425
    %v4480 = vunpack.c.l.b16 %v4426
    %v4481 = vunpack.c.l.b16 %v4427
    %v4482 = vunpack.c.l.b16 %v4428
    %v4483 = vunpack.c.l.b16 %v4429
    %v4484 = vunpack.c.l.b16 %v4430
    %v4485 = vunpack.c.l.b16 %v4431
    %v4486 = vunpack.c.l.b16 %v4432
    %v4487 = vunpack.c.l.b16 %v4433
    %v4488 = vunpack.c.l.b16 %v4434
    %v4489 = vunpack.c.l.b16 %v4435
    %v4490 = vunpack.c.l.b16 %v4436
    %v4491 = vunpack.c.l.b16 %v4437
    %v4492 = vunpack.c.l.b16 %v4438
    %v4493 = vunpack.c.l.b16 %v4439
    %v4494 = vunpack.c.l.b16 %v4440
    %v4495 = vunpack.c.l.b16 %v4441
    %v4496 = vunpack.c.l.b16 %v4442
    %v4497 = vunpack.c.l.b16 %v4443
    %v4498 = vunpack.c.l.b16 %v4444
    %v4499 = vunpack.c.l.b16 %v4445
    %v4500 = vunpack.c.l.b16 %v4446
    %v4501 = vunpack.c.l.b16 %v4447
    %v4502 = vunpack.c.l.b16 %v4448
    %v4503 = vpack.c.b16 %v4479, %v4478
    %v4504 = vpack.c.b16 %v4481, %v4480
    %v4505 = vpack.c.b16 %v4483, %v4482
    %v4506 = vpack.c.b16 %v4485, %v4484
    %v4507 = vpack.c.b16 %v4487, %v4486
    %v4508 = vpack.c.b16 %v4489, %v4488
    %v4509 = vpack.c.b16 %v4491, %v4490
    %v4510 = vpack.c.b16 %v4493, %v4492
    %v4511 = vpack.c.b16 %v4495, %v4494
    %v4512 = vpack.c.b16 %v4497, %v4496
    %v4513 = vpack.c.b16 %v4499, %v4498
    %v4514 = vpack.c.b16 %v4501, %v4500
    %v4515 = vpack.c.b16 %v4502, %v4502
    %v4529 = vsel %vm860, %v4515, 0
    %4531 = vmatpush.bf16.msra.mxu0 %v4510
    %4532 = vmatpush.bf16.msra.mxu0 %v4509
    %4533 = vmatpush.bf16.msra.mxu0 %v4508
    %4534 = vmatpush.bf16.msra.mxu0 %v4507
    %4535 = vmatpush.bf16.msra.mxu0 %v4506
    %4536 = vmatpush.bf16.msra.mxu0 %v4505
    %4537 = vmatpush.bf16.msra.mxu0 %v4504
    %4538 = vmatpush.bf16.msra.mxu0 %v4503
    %4539 = vmatmul.bf16.gmra.mxu0 %v4296
    %v4540 = vpop.f32.mrf.mxu0
    %v4541 = vadd.f32 %v4451, %v4540
    %v4542 = vpop.f32.mrf.mxu0
    %v4543 = vadd.f32 %v4451, %v4542
    %4544 = vmatmul.bf16.gmra.mxu0 %v4297
    %v4545 = vpop.f32.mrf.mxu0
    %v4546 = vadd.f32 %v4451, %v4545
    %v4547 = vpop.f32.mrf.mxu0
    %v4548 = vadd.f32 %v4451, %v4547
    %4549 = vmatmul.bf16.gmra.mxu0 %v4298
    %v4550 = vpop.f32.mrf.mxu0
    %v4551 = vadd.f32 %v4451, %v4550
    %v4552 = vpop.f32.mrf.mxu0
    %v4553 = vadd.f32 %v4451, %v4552
    %4554 = vmatmul.bf16.gmra.mxu0 %v4299
    %v4555 = vpop.f32.mrf.mxu0
    %v4556 = vadd.f32 %v4451, %v4555
    %v4557 = vpop.f32.mrf.mxu0
    %v4558 = vadd.f32 %v4451, %v4557
    %4559 = vmatmul.bf16.gmra.mxu0 %v4300
    %v4560 = vpop.f32.mrf.mxu0
    %v4561 = vadd.f32 %v4451, %v4560
    %v4562 = vpop.f32.mrf.mxu0
    %v4563 = vadd.f32 %v4451, %v4562
    %4564 = vmatmul.bf16.gmra.mxu0 %v4301
    %v4565 = vpop.f32.mrf.mxu0
    %v4566 = vadd.f32 %v4451, %v4565
    %v4567 = vpop.f32.mrf.mxu0
    %v4568 = vadd.f32 %v4451, %v4567
    %4569 = vmatmul.bf16.gmra.mxu0 %v4302
    %v4570 = vpop.f32.mrf.mxu0
    %v4571 = vadd.f32 %v4451, %v4570
    %v4572 = vpop.f32.mrf.mxu0
    %v4573 = vadd.f32 %v4451, %v4572
    %4574 = vmatmul.bf16.gmra.mxu0 %v4303
    %v4575 = vpop.f32.mrf.mxu0
    %v4576 = vadd.f32 %v4451, %v4575
    %v4577 = vpop.f32.mrf.mxu0
    %v4578 = vadd.f32 %v4451, %v4577
    %4579 = vmatmul.bf16.gmra.mxu0 %v4304
    %v4580 = vpop.f32.mrf.mxu0
    %v4581 = vadd.f32 %v4451, %v4580
    %v4582 = vpop.f32.mrf.mxu0
    %v4583 = vadd.f32 %v4451, %v4582
    %4584 = vmatmul.bf16.gmra.mxu0 %v4305
    %v4585 = vpop.f32.mrf.mxu0
    %v4586 = vadd.f32 %v4451, %v4585
    %v4587 = vpop.f32.mrf.mxu0
    %v4588 = vadd.f32 %v4451, %v4587
    %4589 = vmatmul.bf16.gmra.mxu0 %v4306
    %v4590 = vpop.f32.mrf.mxu0
    %v4591 = vadd.f32 %v4451, %v4590
    %v4592 = vpop.f32.mrf.mxu0
    %v4593 = vadd.f32 %v4451, %v4592
    %4594 = vmatmul.bf16.gmra.mxu0 %v4307
    %v4595 = vpop.f32.mrf.mxu0
    %v4596 = vadd.f32 %v4451, %v4595
    %v4597 = vpop.f32.mrf.mxu0
    %v4598 = vadd.f32 %v4451, %v4597
    %4599 = vmatmul.bf16.gmra.mxu0 %v4308
    %v4600 = vpop.f32.mrf.mxu0
    %v4601 = vadd.f32 %v4451, %v4600
    %v4602 = vpop.f32.mrf.mxu0
    %v4603 = vadd.f32 %v4451, %v4602
    %4604 = vmatmul.bf16.gmra.mxu0 %v4309
    %v4605 = vpop.f32.mrf.mxu0
    %v4606 = vadd.f32 %v4451, %v4605
    %v4607 = vpop.f32.mrf.mxu0
    %v4608 = vadd.f32 %v4451, %v4607
    %4609 = vmatmul.bf16.gmra.mxu0 %v4310
    %v4610 = vpop.f32.mrf.mxu0
    %v4611 = vadd.f32 %v4451, %v4610
    %v4612 = vpop.f32.mrf.mxu0
    %v4613 = vadd.f32 %v4451, %v4612
    %4614 = vmatmul.bf16.gmra.mxu0 %v4311
    %v4615 = vpop.f32.mrf.mxu0
    %v4616 = vadd.f32 %v4451, %v4615
    %v4617 = vpop.f32.mrf.mxu0
    %v4618 = vadd.f32 %v4451, %v4617
    %4619 = vmatmul.bf16.gmra.mxu0 %v4312
    %v4620 = vpop.f32.mrf.mxu0
    %v4621 = vadd.f32 %v4451, %v4620
    %v4622 = vpop.f32.mrf.mxu0
    %v4623 = vadd.f32 %v4451, %v4622
    %4624 = vmatmul.bf16.gmra.mxu0 %v4313
    %v4625 = vpop.f32.mrf.mxu0
    %v4626 = vadd.f32 %v4451, %v4625
    %v4627 = vpop.f32.mrf.mxu0
    %v4628 = vadd.f32 %v4451, %v4627
    %4629 = vmatmul.bf16.gmra.mxu0 %v4314
    %v4630 = vpop.f32.mrf.mxu0
    %v4631 = vadd.f32 %v4451, %v4630
    %v4632 = vpop.f32.mrf.mxu0
    %v4633 = vadd.f32 %v4451, %v4632
    %4634 = vmatmul.bf16.gmra.mxu0 %v4315
    %v4635 = vpop.f32.mrf.mxu0
    %v4636 = vadd.f32 %v4451, %v4635
    %v4637 = vpop.f32.mrf.mxu0
    %v4638 = vadd.f32 %v4451, %v4637
    %4639 = vmatmul.bf16.gmra.mxu0 %v4316
    %v4640 = vpop.f32.mrf.mxu0
    %v4641 = vadd.f32 %v4451, %v4640
    %v4642 = vpop.f32.mrf.mxu0
    %v4643 = vadd.f32 %v4451, %v4642
    %4644 = vmatmul.bf16.gmra.mxu0 %v4317
    %v4645 = vpop.f32.mrf.mxu0
    %v4646 = vadd.f32 %v4451, %v4645
    %v4647 = vpop.f32.mrf.mxu0
    %v4648 = vadd.f32 %v4451, %v4647
    %4649 = vmatmul.bf16.gmra.mxu0 %v4318
    %v4650 = vpop.f32.mrf.mxu0
    %v4651 = vadd.f32 %v4451, %v4650
    %v4652 = vpop.f32.mrf.mxu0
    %v4653 = vadd.f32 %v4451, %v4652
    %4654 = vmatmul.bf16.gmra.mxu0 %v4319
    %v4655 = vpop.f32.mrf.mxu0
    %v4656 = vadd.f32 %v4451, %v4655
    %v4657 = vpop.f32.mrf.mxu0
    %v4658 = vadd.f32 %v4451, %v4657
    %4659 = vmatmul.bf16.gmra.mxu0 %v4320
    %v4660 = vpop.f32.mrf.mxu0
    %v4661 = vadd.f32 %v4451, %v4660
    %v4662 = vpop.f32.mrf.mxu0
    %v4663 = vadd.f32 %v4451, %v4662
    %4664 = vmatmul.bf16.gmra.mxu0 %v4321
    %v4665 = vpop.f32.mrf.mxu0
    %v4666 = vadd.f32 %v4451, %v4665
    %v4667 = vpop.f32.mrf.mxu0
    %v4668 = vadd.f32 %v4451, %v4667
    %4669 = vmatmul.bf16.gmra.mxu0 %v4322
    %v4670 = vpop.f32.mrf.mxu0
    %v4671 = vadd.f32 %v4451, %v4670
    %v4672 = vpop.f32.mrf.mxu0
    %v4673 = vadd.f32 %v4451, %v4672
    %4674 = vmatmul.bf16.gmra.mxu0 %v4323
    %v4675 = vpop.f32.mrf.mxu0
    %v4676 = vadd.f32 %v4451, %v4675
    %v4677 = vpop.f32.mrf.mxu0
    %v4678 = vadd.f32 %v4451, %v4677
    %4679 = vmatmul.bf16.gmra.mxu0 %v4324
    %v4680 = vpop.f32.mrf.mxu0
    %v4681 = vadd.f32 %v4451, %v4680
    %v4682 = vpop.f32.mrf.mxu0
    %v4683 = vadd.f32 %v4451, %v4682
    %4684 = vmatmul.bf16.gmra.mxu0 %v4325
    %v4685 = vpop.f32.mrf.mxu0
    %v4686 = vadd.f32 %v4451, %v4685
    %v4687 = vpop.f32.mrf.mxu0
    %v4688 = vadd.f32 %v4451, %v4687
    %4689 = vmatmul.bf16.gmra.mxu0 %v4326
    %v4690 = vpop.f32.mrf.mxu0
    %v4691 = vadd.f32 %v4451, %v4690
    %v4692 = vpop.f32.mrf.mxu0
    %v4693 = vadd.f32 %v4451, %v4692
    %4694 = vmatmul.bf16.gmra.mxu0 %v4327
    %v4695 = vpop.f32.mrf.mxu0
    %v4696 = vadd.f32 %v4451, %v4695
    %v4697 = vpop.f32.mrf.mxu0
    %v4698 = vadd.f32 %v4451, %v4697
    %4699 = vmatmul.bf16.gmra.mxu0 %v4328
    %v4700 = vpop.f32.mrf.mxu0
    %v4701 = vadd.f32 %v4451, %v4700
    %v4702 = vpop.f32.mrf.mxu0
    %v4703 = vadd.f32 %v4451, %v4702
    %4704 = vmatmul.bf16.gmra.mxu0 %v4329
    %v4705 = vpop.f32.mrf.mxu0
    %v4706 = vadd.f32 %v4451, %v4705
    %v4707 = vpop.f32.mrf.mxu0
    %v4708 = vadd.f32 %v4451, %v4707
    %4709 = vmatmul.bf16.gmra.mxu0 %v4330
    %v4710 = vpop.f32.mrf.mxu0
    %v4711 = vadd.f32 %v4451, %v4710
    %v4712 = vpop.f32.mrf.mxu0
    %v4713 = vadd.f32 %v4451, %v4712
    %4714 = vmatmul.bf16.gmra.mxu0 %v4331
    %v4715 = vpop.f32.mrf.mxu0
    %v4716 = vadd.f32 %v4451, %v4715
    %v4717 = vpop.f32.mrf.mxu0
    %v4718 = vadd.f32 %v4451, %v4717
    %4719 = vmatmul.bf16.gmra.mxu0 %v4332
    %v4720 = vpop.f32.mrf.mxu0
    %v4721 = vadd.f32 %v4451, %v4720
    %v4722 = vpop.f32.mrf.mxu0
    %v4723 = vadd.f32 %v4451, %v4722
    %4724 = vmatmul.bf16.gmra.mxu0 %v4333
    %v4725 = vpop.f32.mrf.mxu0
    %v4726 = vadd.f32 %v4451, %v4725
    %v4727 = vpop.f32.mrf.mxu0
    %v4728 = vadd.f32 %v4451, %v4727
    %4729 = vmatmul.bf16.gmra.mxu0 %v4334
    %v4730 = vpop.f32.mrf.mxu0
    %v4731 = vadd.f32 %v4451, %v4730
    %v4732 = vpop.f32.mrf.mxu0
    %v4733 = vadd.f32 %v4451, %v4732
    %4734 = vmatmul.bf16.gmra.mxu0 %v4335
    %v4735 = vpop.f32.mrf.mxu0
    %v4736 = vadd.f32 %v4451, %v4735
    %v4737 = vpop.f32.mrf.mxu0
    %v4738 = vadd.f32 %v4451, %v4737
    %4739 = vmatmul.bf16.gmra.mxu0 %v4336
    %v4740 = vpop.f32.mrf.mxu0
    %v4741 = vadd.f32 %v4451, %v4740
    %v4742 = vpop.f32.mrf.mxu0
    %v4743 = vadd.f32 %v4451, %v4742
    %4744 = vmatmul.bf16.gmra.mxu0 %v4337
    %v4745 = vpop.f32.mrf.mxu0
    %v4746 = vadd.f32 %v4451, %v4745
    %v4747 = vpop.f32.mrf.mxu0
    %v4748 = vadd.f32 %v4451, %v4747
    %4749 = vmatmul.bf16.gmra.mxu0 %v4338
    %v4750 = vpop.f32.mrf.mxu0
    %v4751 = vadd.f32 %v4451, %v4750
    %v4752 = vpop.f32.mrf.mxu0
    %v4753 = vadd.f32 %v4451, %v4752
    %4754 = vmatmul.bf16.gmra.mxu0 %v4339
    %v4755 = vpop.f32.mrf.mxu0
    %v4756 = vadd.f32 %v4451, %v4755
    %v4757 = vpop.f32.mrf.mxu0
    %v4758 = vadd.f32 %v4451, %v4757
    %4759 = vmatmul.bf16.gmra.mxu0 %v4340
    %v4760 = vpop.f32.mrf.mxu0
    %v4761 = vadd.f32 %v4451, %v4760
    %v4762 = vpop.f32.mrf.mxu0
    %v4763 = vadd.f32 %v4451, %v4762
    %4764 = vmatmul.bf16.gmra.mxu0 %v4341
    %v4765 = vpop.f32.mrf.mxu0
    %v4766 = vadd.f32 %v4451, %v4765
    %v4767 = vpop.f32.mrf.mxu0
    %v4768 = vadd.f32 %v4451, %v4767
    %4769 = vmatmul.bf16.gmra.mxu0 %v4342
    %v4770 = vpop.f32.mrf.mxu0
    %v4771 = vadd.f32 %v4451, %v4770
    %v4772 = vpop.f32.mrf.mxu0
    %v4773 = vadd.f32 %v4451, %v4772
    %4774 = vmatmul.bf16.gmra.mxu0 %v4343
    %v4775 = vpop.f32.mrf.mxu0
    %v4776 = vadd.f32 %v4451, %v4775
    %v4777 = vpop.f32.mrf.mxu0
    %v4778 = vadd.f32 %v4451, %v4777
    %4779 = vmatmul.bf16.gmra.mxu0 %v4344
    %v4780 = vpop.f32.mrf.mxu0
    %v4781 = vadd.f32 %v4451, %v4780
    %v4782 = vpop.f32.mrf.mxu0
    %v4783 = vadd.f32 %v4451, %v4782
    %4784 = vmatmul.bf16.gmra.mxu0 %v4345
    %v4785 = vpop.f32.mrf.mxu0
    %v4786 = vadd.f32 %v4451, %v4785
    %v4787 = vpop.f32.mrf.mxu0
    %v4788 = vadd.f32 %v4451, %v4787
    %4789 = vmatmul.bf16.gmra.mxu0 %v4346
    %v4790 = vpop.f32.mrf.mxu0
    %v4791 = vadd.f32 %v4451, %v4790
    %v4792 = vpop.f32.mrf.mxu0
    %v4793 = vadd.f32 %v4451, %v4792
    %4794 = vmatmul.bf16.gmra.mxu0 %v4347
    %v4795 = vpop.f32.mrf.mxu0
    %v4796 = vadd.f32 %v4451, %v4795
    %v4797 = vpop.f32.mrf.mxu0
    %v4798 = vadd.f32 %v4451, %v4797
    %4799 = vmatmul.bf16.gmra.mxu0 %v4348
    %v4800 = vpop.f32.mrf.mxu0
    %v4801 = vadd.f32 %v4451, %v4800
    %v4802 = vpop.f32.mrf.mxu0
    %v4803 = vadd.f32 %v4451, %v4802
    %4804 = vmatmul.bf16.gmra.mxu0 %v4349
    %v4805 = vpop.f32.mrf.mxu0
    %v4806 = vadd.f32 %v4451, %v4805
    %v4807 = vpop.f32.mrf.mxu0
    %v4808 = vadd.f32 %v4451, %v4807
    %4809 = vmatmul.bf16.gmra.mxu0 %v4350
    %v4810 = vpop.f32.mrf.mxu0
    %v4811 = vadd.f32 %v4451, %v4810
    %v4812 = vpop.f32.mrf.mxu0
    %v4813 = vadd.f32 %v4451, %v4812
    %4814 = vmatmul.bf16.gmra.mxu0 %v4351
    %v4815 = vpop.f32.mrf.mxu0
    %v4816 = vadd.f32 %v4451, %v4815
    %v4817 = vpop.f32.mrf.mxu0
    %v4818 = vadd.f32 %v4451, %v4817
    %4819 = vmatmul.bf16.gmra.mxu0 %v4352
    %v4820 = vpop.f32.mrf.mxu0
    %v4821 = vadd.f32 %v4451, %v4820
    %v4822 = vpop.f32.mrf.mxu0
    %v4823 = vadd.f32 %v4451, %v4822
    %4824 = vmatmul.bf16.gmra.mxu0 %v4353
    %v4825 = vpop.f32.mrf.mxu0
    %v4826 = vadd.f32 %v4451, %v4825
    %v4827 = vpop.f32.mrf.mxu0
    %v4828 = vadd.f32 %v4451, %v4827
    %4829 = vmatmul.bf16.gmra.mxu0 %v4354
    %v4830 = vpop.f32.mrf.mxu0
    %v4831 = vadd.f32 %v4451, %v4830
    %v4832 = vpop.f32.mrf.mxu0
    %v4833 = vadd.f32 %v4451, %v4832
    %4834 = vmatmul.bf16.gmra.mxu0 %v4355
    %v4835 = vpop.f32.mrf.mxu0
    %v4836 = vadd.f32 %v4451, %v4835
    %v4837 = vpop.f32.mrf.mxu0
    %v4838 = vadd.f32 %v4451, %v4837
    %4839 = vmatmul.bf16.gmra.mxu0 %v4356
    %v4840 = vpop.f32.mrf.mxu0
    %v4841 = vadd.f32 %v4451, %v4840
    %v4842 = vpop.f32.mrf.mxu0
    %v4843 = vadd.f32 %v4451, %v4842
    %4844 = vmatmul.bf16.gmra.mxu0 %v4357
    %v4845 = vpop.f32.mrf.mxu0
    %v4846 = vadd.f32 %v4451, %v4845
    %v4847 = vpop.f32.mrf.mxu0
    %v4848 = vadd.f32 %v4451, %v4847
    %4849 = vmatmul.bf16.gmra.mxu0 %v4358
    %v4850 = vpop.f32.mrf.mxu0
    %v4851 = vadd.f32 %v4451, %v4850
    %v4852 = vpop.f32.mrf.mxu0
    %v4853 = vadd.f32 %v4451, %v4852
    %4854 = vmatmul.bf16.gmra.mxu0 %v4359
    %v4855 = vpop.f32.mrf.mxu0
    %v4856 = vadd.f32 %v4451, %v4855
    %v4857 = vpop.f32.mrf.mxu0
    %v4858 = vadd.f32 %v4451, %v4857
    %4859 = vdwg.mxu0
    %4860 = vmatpush.bf16.msra.mxu0 0
    %4861 = vmatpush.bf16.msra.mxu0 0
    %4862 = vmatpush.bf16.msra.mxu0 0
    %4863 = vmatpush.bf16.msra.mxu0 %v4529
    %4864 = vmatpush.bf16.msra.mxu0 %v4514
    %4865 = vmatpush.bf16.msra.mxu0 %v4513
    %4866 = vmatpush.bf16.msra.mxu0 %v4512
    %4867 = vmatpush.bf16.msra.mxu0 %v4511
    %4868 = vmatmul.bf16.gmra.mxu0 %v669
    %v4869 = vpop.f32.mrf.mxu0
    %v4870 = vadd.f32 %v4541, %v4869
    %v4871 = vpop.f32.mrf.mxu0
    %v4872 = vadd.f32 %v4543, %v4871
    %4873 = vmatmul.bf16.gmra.mxu0 %v672
    %v4874 = vpop.f32.mrf.mxu0
    %v4875 = vadd.f32 %v4546, %v4874
    %v4876 = vpop.f32.mrf.mxu0
    %v4877 = vadd.f32 %v4548, %v4876
    %4878 = vmatmul.bf16.gmra.mxu0 %v675
    %v4879 = vpop.f32.mrf.mxu0
    %v4880 = vadd.f32 %v4551, %v4879
    %v4881 = vpop.f32.mrf.mxu0
    %v4882 = vadd.f32 %v4553, %v4881
    %4883 = vmatmul.bf16.gmra.mxu0 %v678
    %v4884 = vpop.f32.mrf.mxu0
    %v4885 = vadd.f32 %v4556, %v4884
    %v4886 = vpop.f32.mrf.mxu0
    %v4887 = vadd.f32 %v4558, %v4886
    %4888 = vmatmul.bf16.gmra.mxu0 %v681
    %v4889 = vpop.f32.mrf.mxu0
    %v4890 = vadd.f32 %v4561, %v4889
    %v4891 = vpop.f32.mrf.mxu0
    %v4892 = vadd.f32 %v4563, %v4891
    %4893 = vmatmul.bf16.gmra.mxu0 %v684
    %v4894 = vpop.f32.mrf.mxu0
    %v4895 = vadd.f32 %v4566, %v4894
    %v4896 = vpop.f32.mrf.mxu0
    %v4897 = vadd.f32 %v4568, %v4896
    %4898 = vmatmul.bf16.gmra.mxu0 %v687
    %v4899 = vpop.f32.mrf.mxu0
    %v4900 = vadd.f32 %v4571, %v4899
    %v4901 = vpop.f32.mrf.mxu0
    %v4902 = vadd.f32 %v4573, %v4901
    %4903 = vmatmul.bf16.gmra.mxu0 %v690
    %v4904 = vpop.f32.mrf.mxu0
    %v4905 = vadd.f32 %v4576, %v4904
    %v4906 = vpop.f32.mrf.mxu0
    %v4907 = vadd.f32 %v4578, %v4906
    %4908 = vmatmul.bf16.gmra.mxu0 %v693
    %v4909 = vpop.f32.mrf.mxu0
    %v4910 = vadd.f32 %v4581, %v4909
    %v4911 = vpop.f32.mrf.mxu0
    %v4912 = vadd.f32 %v4583, %v4911
    %4913 = vmatmul.bf16.gmra.mxu0 %v696
    %v4914 = vpop.f32.mrf.mxu0
    %v4915 = vadd.f32 %v4586, %v4914
    %v4916 = vpop.f32.mrf.mxu0
    %v4917 = vadd.f32 %v4588, %v4916
    %4918 = vmatmul.bf16.gmra.mxu0 %v699
    %v4919 = vpop.f32.mrf.mxu0
    %v4920 = vadd.f32 %v4591, %v4919
    %v4921 = vpop.f32.mrf.mxu0
    %v4922 = vadd.f32 %v4593, %v4921
    %4923 = vmatmul.bf16.gmra.mxu0 %v702
    %v4924 = vpop.f32.mrf.mxu0
    %v4925 = vadd.f32 %v4596, %v4924
    %v4926 = vpop.f32.mrf.mxu0
    %v4927 = vadd.f32 %v4598, %v4926
    %4928 = vmatmul.bf16.gmra.mxu0 %v705
    %v4929 = vpop.f32.mrf.mxu0
    %v4930 = vadd.f32 %v4601, %v4929
    %v4931 = vpop.f32.mrf.mxu0
    %v4932 = vadd.f32 %v4603, %v4931
    %4933 = vmatmul.bf16.gmra.mxu0 %v708
    %v4934 = vpop.f32.mrf.mxu0
    %v4935 = vadd.f32 %v4606, %v4934
    %v4936 = vpop.f32.mrf.mxu0
    %v4937 = vadd.f32 %v4608, %v4936
    %4938 = vmatmul.bf16.gmra.mxu0 %v711
    %v4939 = vpop.f32.mrf.mxu0
    %v4940 = vadd.f32 %v4611, %v4939
    %v4941 = vpop.f32.mrf.mxu0
    %v4942 = vadd.f32 %v4613, %v4941
    %4943 = vmatmul.bf16.gmra.mxu0 %v714
    %v4944 = vpop.f32.mrf.mxu0
    %v4945 = vadd.f32 %v4616, %v4944
    %v4946 = vpop.f32.mrf.mxu0
    %v4947 = vadd.f32 %v4618, %v4946
    %4948 = vmatmul.bf16.gmra.mxu0 %v717
    %v4949 = vpop.f32.mrf.mxu0
    %v4950 = vadd.f32 %v4621, %v4949
    %v4951 = vpop.f32.mrf.mxu0
    %v4952 = vadd.f32 %v4623, %v4951
    %4953 = vmatmul.bf16.gmra.mxu0 %v720
    %v4954 = vpop.f32.mrf.mxu0
    %v4955 = vadd.f32 %v4626, %v4954
    %v4956 = vpop.f32.mrf.mxu0
    %v4957 = vadd.f32 %v4628, %v4956
    %4958 = vmatmul.bf16.gmra.mxu0 %v723
    %v4959 = vpop.f32.mrf.mxu0
    %v4960 = vadd.f32 %v4631, %v4959
    %v4961 = vpop.f32.mrf.mxu0
    %v4962 = vadd.f32 %v4633, %v4961
    %4963 = vmatmul.bf16.gmra.mxu0 %v726
    %v4964 = vpop.f32.mrf.mxu0
    %v4965 = vadd.f32 %v4636, %v4964
    %v4966 = vpop.f32.mrf.mxu0
    %v4967 = vadd.f32 %v4638, %v4966
    %4968 = vmatmul.bf16.gmra.mxu0 %v729
    %v4969 = vpop.f32.mrf.mxu0
    %v4970 = vadd.f32 %v4641, %v4969
    %v4971 = vpop.f32.mrf.mxu0
    %v4972 = vadd.f32 %v4643, %v4971
    %4973 = vmatmul.bf16.gmra.mxu0 %v732
    %v4974 = vpop.f32.mrf.mxu0
    %v4975 = vadd.f32 %v4646, %v4974
    %v4976 = vpop.f32.mrf.mxu0
    %v4977 = vadd.f32 %v4648, %v4976
    %4978 = vmatmul.bf16.gmra.mxu0 %v735
    %v4979 = vpop.f32.mrf.mxu0
    %v4980 = vadd.f32 %v4651, %v4979
    %v4981 = vpop.f32.mrf.mxu0
    %v4982 = vadd.f32 %v4653, %v4981
    %4983 = vmatmul.bf16.gmra.mxu0 %v738
    %v4984 = vpop.f32.mrf.mxu0
    %v4985 = vadd.f32 %v4656, %v4984
    %v4986 = vpop.f32.mrf.mxu0
    %v4987 = vadd.f32 %v4658, %v4986
    %4988 = vmatmul.bf16.gmra.mxu0 %v741
    %v4989 = vpop.f32.mrf.mxu0
    %v4990 = vadd.f32 %v4661, %v4989
    %v4991 = vpop.f32.mrf.mxu0
    %v4992 = vadd.f32 %v4663, %v4991
    %4993 = vmatmul.bf16.gmra.mxu0 %v744
    %v4994 = vpop.f32.mrf.mxu0
    %v4995 = vadd.f32 %v4666, %v4994
    %v4996 = vpop.f32.mrf.mxu0
    %v4997 = vadd.f32 %v4668, %v4996
    %4998 = vmatmul.bf16.gmra.mxu0 %v747
    %v4999 = vpop.f32.mrf.mxu0
    %v5000 = vadd.f32 %v4671, %v4999
    %v5001 = vpop.f32.mrf.mxu0
    %v5002 = vadd.f32 %v4673, %v5001
    %5003 = vmatmul.bf16.gmra.mxu0 %v750
    %v5004 = vpop.f32.mrf.mxu0
    %v5005 = vadd.f32 %v4676, %v5004
    %v5006 = vpop.f32.mrf.mxu0
    %v5007 = vadd.f32 %v4678, %v5006
    %5008 = vmatmul.bf16.gmra.mxu0 %v753
    %v5009 = vpop.f32.mrf.mxu0
    %v5010 = vadd.f32 %v4681, %v5009
    %v5011 = vpop.f32.mrf.mxu0
    %v5012 = vadd.f32 %v4683, %v5011
    %5013 = vmatmul.bf16.gmra.mxu0 %v756
    %v5014 = vpop.f32.mrf.mxu0
    %v5015 = vadd.f32 %v4686, %v5014
    %v5016 = vpop.f32.mrf.mxu0
    %v5017 = vadd.f32 %v4688, %v5016
    %5018 = vmatmul.bf16.gmra.mxu0 %v759
    %v5019 = vpop.f32.mrf.mxu0
    %v5020 = vadd.f32 %v4691, %v5019
    %v5021 = vpop.f32.mrf.mxu0
    %v5022 = vadd.f32 %v4693, %v5021
    %5023 = vmatmul.bf16.gmra.mxu0 %v762
    %v5024 = vpop.f32.mrf.mxu0
    %v5025 = vadd.f32 %v4696, %v5024
    %v5026 = vpop.f32.mrf.mxu0
    %v5027 = vadd.f32 %v4698, %v5026
    %5028 = vmatmul.bf16.gmra.mxu0 %v765
    %v5029 = vpop.f32.mrf.mxu0
    %v5030 = vadd.f32 %v4701, %v5029
    %v5031 = vpop.f32.mrf.mxu0
    %v5032 = vadd.f32 %v4703, %v5031
    %5033 = vmatmul.bf16.gmra.mxu0 %v768
    %v5034 = vpop.f32.mrf.mxu0
    %v5035 = vadd.f32 %v4706, %v5034
    %v5036 = vpop.f32.mrf.mxu0
    %v5037 = vadd.f32 %v4708, %v5036
    %5038 = vmatmul.bf16.gmra.mxu0 %v771
    %v5039 = vpop.f32.mrf.mxu0
    %v5040 = vadd.f32 %v4711, %v5039
    %v5041 = vpop.f32.mrf.mxu0
    %v5042 = vadd.f32 %v4713, %v5041
    %5043 = vmatmul.bf16.gmra.mxu0 %v774
    %v5044 = vpop.f32.mrf.mxu0
    %v5045 = vadd.f32 %v4716, %v5044
    %v5046 = vpop.f32.mrf.mxu0
    %v5047 = vadd.f32 %v4718, %v5046
    %5048 = vmatmul.bf16.gmra.mxu0 %v777
    %v5049 = vpop.f32.mrf.mxu0
    %v5050 = vadd.f32 %v4721, %v5049
    %v5051 = vpop.f32.mrf.mxu0
    %v5052 = vadd.f32 %v4723, %v5051
    %5053 = vmatmul.bf16.gmra.mxu0 %v780
    %v5054 = vpop.f32.mrf.mxu0
    %v5055 = vadd.f32 %v4726, %v5054
    %v5056 = vpop.f32.mrf.mxu0
    %v5057 = vadd.f32 %v4728, %v5056
    %5058 = vmatmul.bf16.gmra.mxu0 %v783
    %v5059 = vpop.f32.mrf.mxu0
    %v5060 = vadd.f32 %v4731, %v5059
    %v5061 = vpop.f32.mrf.mxu0
    %v5062 = vadd.f32 %v4733, %v5061
    %5063 = vmatmul.bf16.gmra.mxu0 %v786
    %v5064 = vpop.f32.mrf.mxu0
    %v5065 = vadd.f32 %v4736, %v5064
    %v5066 = vpop.f32.mrf.mxu0
    %v5067 = vadd.f32 %v4738, %v5066
    %5068 = vmatmul.bf16.gmra.mxu0 %v789
    %v5069 = vpop.f32.mrf.mxu0
    %v5070 = vadd.f32 %v4741, %v5069
    %v5071 = vpop.f32.mrf.mxu0
    %v5072 = vadd.f32 %v4743, %v5071
    %5073 = vmatmul.bf16.gmra.mxu0 %v792
    %v5074 = vpop.f32.mrf.mxu0
    %v5075 = vadd.f32 %v4746, %v5074
    %v5076 = vpop.f32.mrf.mxu0
    %v5077 = vadd.f32 %v4748, %v5076
    %5078 = vmatmul.bf16.gmra.mxu0 %v795
    %v5079 = vpop.f32.mrf.mxu0
    %v5080 = vadd.f32 %v4751, %v5079
    %v5081 = vpop.f32.mrf.mxu0
    %v5082 = vadd.f32 %v4753, %v5081
    %5083 = vmatmul.bf16.gmra.mxu0 %v798
    %v5084 = vpop.f32.mrf.mxu0
    %v5085 = vadd.f32 %v4756, %v5084
    %v5086 = vpop.f32.mrf.mxu0
    %v5087 = vadd.f32 %v4758, %v5086
    %5088 = vmatmul.bf16.gmra.mxu0 %v801
    %v5089 = vpop.f32.mrf.mxu0
    %v5090 = vadd.f32 %v4761, %v5089
    %v5091 = vpop.f32.mrf.mxu0
    %v5092 = vadd.f32 %v4763, %v5091
    %5093 = vmatmul.bf16.gmra.mxu0 %v804
    %v5094 = vpop.f32.mrf.mxu0
    %v5095 = vadd.f32 %v4766, %v5094
    %v5096 = vpop.f32.mrf.mxu0
    %v5097 = vadd.f32 %v4768, %v5096
    %5098 = vmatmul.bf16.gmra.mxu0 %v807
    %v5099 = vpop.f32.mrf.mxu0
    %v5100 = vadd.f32 %v4771, %v5099
    %v5101 = vpop.f32.mrf.mxu0
    %v5102 = vadd.f32 %v4773, %v5101
    %5103 = vmatmul.bf16.gmra.mxu0 %v810
    %v5104 = vpop.f32.mrf.mxu0
    %v5105 = vadd.f32 %v4776, %v5104
    %v5106 = vpop.f32.mrf.mxu0
    %v5107 = vadd.f32 %v4778, %v5106
    %5108 = vmatmul.bf16.gmra.mxu0 %v813
    %v5109 = vpop.f32.mrf.mxu0
    %v5110 = vadd.f32 %v4781, %v5109
    %v5111 = vpop.f32.mrf.mxu0
    %v5112 = vadd.f32 %v4783, %v5111
    %5113 = vmatmul.bf16.gmra.mxu0 %v816
    %v5114 = vpop.f32.mrf.mxu0
    %v5115 = vadd.f32 %v4786, %v5114
    %v5116 = vpop.f32.mrf.mxu0
    %v5117 = vadd.f32 %v4788, %v5116
    %5118 = vmatmul.bf16.gmra.mxu0 %v819
    %v5119 = vpop.f32.mrf.mxu0
    %v5120 = vadd.f32 %v4791, %v5119
    %v5121 = vpop.f32.mrf.mxu0
    %v5122 = vadd.f32 %v4793, %v5121
    %5123 = vmatmul.bf16.gmra.mxu0 %v822
    %v5124 = vpop.f32.mrf.mxu0
    %v5125 = vadd.f32 %v4796, %v5124
    %v5126 = vpop.f32.mrf.mxu0
    %v5127 = vadd.f32 %v4798, %v5126
    %5128 = vmatmul.bf16.gmra.mxu0 %v825
    %v5129 = vpop.f32.mrf.mxu0
    %v5130 = vadd.f32 %v4801, %v5129
    %v5131 = vpop.f32.mrf.mxu0
    %v5132 = vadd.f32 %v4803, %v5131
    %5133 = vmatmul.bf16.gmra.mxu0 %v828
    %v5134 = vpop.f32.mrf.mxu0
    %v5135 = vadd.f32 %v4806, %v5134
    %v5136 = vpop.f32.mrf.mxu0
    %v5137 = vadd.f32 %v4808, %v5136
    %5138 = vmatmul.bf16.gmra.mxu0 %v831
    %v5139 = vpop.f32.mrf.mxu0
    %v5140 = vadd.f32 %v4811, %v5139
    %v5141 = vpop.f32.mrf.mxu0
    %v5142 = vadd.f32 %v4813, %v5141
    %5143 = vmatmul.bf16.gmra.mxu0 %v834
    %v5144 = vpop.f32.mrf.mxu0
    %v5145 = vadd.f32 %v4816, %v5144
    %v5146 = vpop.f32.mrf.mxu0
    %v5147 = vadd.f32 %v4818, %v5146
    %5148 = vmatmul.bf16.gmra.mxu0 %v837
    %v5149 = vpop.f32.mrf.mxu0
    %v5150 = vadd.f32 %v4821, %v5149
    %v5151 = vpop.f32.mrf.mxu0
    %v5152 = vadd.f32 %v4823, %v5151
    %5153 = vmatmul.bf16.gmra.mxu0 %v840
    %v5154 = vpop.f32.mrf.mxu0
    %v5155 = vadd.f32 %v4826, %v5154
    %v5156 = vpop.f32.mrf.mxu0
    %v5157 = vadd.f32 %v4828, %v5156
    %5158 = vmatmul.bf16.gmra.mxu0 %v843
    %v5159 = vpop.f32.mrf.mxu0
    %v5160 = vadd.f32 %v4831, %v5159
    %v5161 = vpop.f32.mrf.mxu0
    %v5162 = vadd.f32 %v4833, %v5161
    %5163 = vmatmul.bf16.gmra.mxu0 %v846
    %v5164 = vpop.f32.mrf.mxu0
    %v5165 = vadd.f32 %v4836, %v5164
    %v5166 = vpop.f32.mrf.mxu0
    %v5167 = vadd.f32 %v4838, %v5166
    %5168 = vmatmul.bf16.gmra.mxu0 %v849
    %v5169 = vpop.f32.mrf.mxu0
    %v5170 = vadd.f32 %v4841, %v5169
    %v5171 = vpop.f32.mrf.mxu0
    %v5172 = vadd.f32 %v4843, %v5171
    %5173 = vmatmul.bf16.gmra.mxu0 %v852
    %v5174 = vpop.f32.mrf.mxu0
    %v5175 = vadd.f32 %v4846, %v5174
    %v5176 = vpop.f32.mrf.mxu0
    %v5177 = vadd.f32 %v4848, %v5176
    %5178 = vmatmul.bf16.gmra.mxu0 %v855
    %v5179 = vpop.f32.mrf.mxu0
    %v5180 = vadd.f32 %v4851, %v5179
    %v5181 = vpop.f32.mrf.mxu0
    %v5182 = vadd.f32 %v4853, %v5181
    %5183 = vmatmul.bf16.gmra.mxu0 %v858
    %v5184 = vpop.f32.mrf.mxu0
    %v5185 = vadd.f32 %v4856, %v5184
    %v5186 = vpop.f32.mrf.mxu0
    %v5187 = vadd.f32 %v4858, %v5186
    %5188 = vdwg.mxu0
    %v5189 = vmax.f32 %v4870, 0.0
    %v5190 = vmax.f32 %v4872, 0.0
    %v5191 = vmax.f32 %v4875, 0.0
    %v5192 = vmax.f32 %v4877, 0.0
    %v5193 = vmax.f32 %v4880, 0.0
    %v5194 = vmax.f32 %v4882, 0.0
    %v5195 = vmax.f32 %v4885, 0.0
    %v5196 = vmax.f32 %v4887, 0.0
    %v5197 = vmax.f32 %v4890, 0.0
    %v5198 = vmax.f32 %v4892, 0.0
    %v5199 = vmax.f32 %v4895, 0.0
    %v5200 = vmax.f32 %v4897, 0.0
    %v5201 = vmax.f32 %v4900, 0.0
    %v5202 = vmax.f32 %v4902, 0.0
    %v5203 = vmax.f32 %v4905, 0.0
    %v5204 = vmax.f32 %v4907, 0.0
    %v5205 = vmax.f32 %v4910, 0.0
    %v5206 = vmax.f32 %v4912, 0.0
    %v5207 = vmax.f32 %v4915, 0.0
    %v5208 = vmax.f32 %v4917, 0.0
    %v5209 = vmax.f32 %v4920, 0.0
    %v5210 = vmax.f32 %v4922, 0.0
    %v5211 = vmax.f32 %v4925, 0.0
    %v5212 = vmax.f32 %v4927, 0.0
    %v5213 = vmax.f32 %v4930, 0.0
    %v5214 = vmax.f32 %v4932, 0.0
    %v5215 = vmax.f32 %v4935, 0.0
    %v5216 = vmax.f32 %v4937, 0.0
    %v5217 = vmax.f32 %v4940, 0.0
    %v5218 = vmax.f32 %v4942, 0.0
    %v5219 = vmax.f32 %v4945, 0.0
    %v5220 = vmax.f32 %v4947, 0.0
    %v5221 = vmax.f32 %v4950, 0.0
    %v5222 = vmax.f32 %v4952, 0.0
    %v5223 = vmax.f32 %v4955, 0.0
    %v5224 = vmax.f32 %v4957, 0.0
    %v5225 = vmax.f32 %v4960, 0.0
    %v5226 = vmax.f32 %v4962, 0.0
    %v5227 = vmax.f32 %v4965, 0.0
    %v5228 = vmax.f32 %v4967, 0.0
    %v5229 = vmax.f32 %v4970, 0.0
    %v5230 = vmax.f32 %v4972, 0.0
    %v5231 = vmax.f32 %v4975, 0.0
    %v5232 = vmax.f32 %v4977, 0.0
    %v5233 = vmax.f32 %v4980, 0.0
    %v5234 = vmax.f32 %v4982, 0.0
    %v5235 = vmax.f32 %v4985, 0.0
    %v5236 = vmax.f32 %v4987, 0.0
    %v5237 = vmax.f32 %v4990, 0.0
    %v5238 = vmax.f32 %v4992, 0.0
    %v5239 = vmax.f32 %v4995, 0.0
    %v5240 = vmax.f32 %v4997, 0.0
    %v5241 = vmax.f32 %v5000, 0.0
    %v5242 = vmax.f32 %v5002, 0.0
    %v5243 = vmax.f32 %v5005, 0.0
    %v5244 = vmax.f32 %v5007, 0.0
    %v5245 = vmax.f32 %v5010, 0.0
    %v5246 = vmax.f32 %v5012, 0.0
    %v5247 = vmax.f32 %v5015, 0.0
    %v5248 = vmax.f32 %v5017, 0.0
    %v5249 = vmax.f32 %v5020, 0.0
    %v5250 = vmax.f32 %v5022, 0.0
    %v5251 = vmax.f32 %v5025, 0.0
    %v5252 = vmax.f32 %v5027, 0.0
    %v5253 = vmax.f32 %v5030, 0.0
    %v5254 = vmax.f32 %v5032, 0.0
    %v5255 = vmax.f32 %v5035, 0.0
    %v5256 = vmax.f32 %v5037, 0.0
    %v5257 = vmax.f32 %v5040, 0.0
    %v5258 = vmax.f32 %v5042, 0.0
    %v5259 = vmax.f32 %v5045, 0.0
    %v5260 = vmax.f32 %v5047, 0.0
    %v5261 = vmax.f32 %v5050, 0.0
    %v5262 = vmax.f32 %v5052, 0.0
    %v5263 = vmax.f32 %v5055, 0.0
    %v5264 = vmax.f32 %v5057, 0.0
    %v5265 = vmax.f32 %v5060, 0.0
    %v5266 = vmax.f32 %v5062, 0.0
    %v5267 = vmax.f32 %v5065, 0.0
    %v5268 = vmax.f32 %v5067, 0.0
    %v5269 = vmax.f32 %v5070, 0.0
    %v5270 = vmax.f32 %v5072, 0.0
    %v5271 = vmax.f32 %v5075, 0.0
    %v5272 = vmax.f32 %v5077, 0.0
    %v5273 = vmax.f32 %v5080, 0.0
    %v5274 = vmax.f32 %v5082, 0.0
    %v5275 = vmax.f32 %v5085, 0.0
    %v5276 = vmax.f32 %v5087, 0.0
    %v5277 = vmax.f32 %v5090, 0.0
    %v5278 = vmax.f32 %v5092, 0.0
    %v5279 = vmax.f32 %v5095, 0.0
    %v5280 = vmax.f32 %v5097, 0.0
    %v5281 = vmax.f32 %v5100, 0.0
    %v5282 = vmax.f32 %v5102, 0.0
    %v5283 = vmax.f32 %v5105, 0.0
    %v5284 = vmax.f32 %v5107, 0.0
    %v5285 = vmax.f32 %v5110, 0.0
    %v5286 = vmax.f32 %v5112, 0.0
    %v5287 = vmax.f32 %v5115, 0.0
    %v5288 = vmax.f32 %v5117, 0.0
    %v5289 = vmax.f32 %v5120, 0.0
    %v5290 = vmax.f32 %v5122, 0.0
    %v5291 = vmax.f32 %v5125, 0.0
    %v5292 = vmax.f32 %v5127, 0.0
    %v5293 = vmax.f32 %v5130, 0.0
    %v5294 = vmax.f32 %v5132, 0.0
    %v5295 = vmax.f32 %v5135, 0.0
    %v5296 = vmax.f32 %v5137, 0.0
    %v5297 = vmax.f32 %v5140, 0.0
    %v5298 = vmax.f32 %v5142, 0.0
    %v5299 = vmax.f32 %v5145, 0.0
    %v5300 = vmax.f32 %v5147, 0.0
    %v5301 = vmax.f32 %v5150, 0.0
    %v5302 = vmax.f32 %v5152, 0.0
    %v5303 = vmax.f32 %v5155, 0.0
    %v5304 = vmax.f32 %v5157, 0.0
    %v5305 = vmax.f32 %v5160, 0.0
    %v5306 = vmax.f32 %v5162, 0.0
    %v5307 = vmax.f32 %v5165, 0.0
    %v5308 = vmax.f32 %v5167, 0.0
    %v5309 = vmax.f32 %v5170, 0.0
    %v5310 = vmax.f32 %v5172, 0.0
    %v5311 = vmax.f32 %v5175, 0.0
    %v5312 = vmax.f32 %v5177, 0.0
    %v5313 = vmax.f32 %v5180, 0.0
    %v5314 = vmax.f32 %v5182, 0.0
    %v5315 = vmax.f32 %v5185, 0.0
    %v5316 = vmax.f32 %v5187, 0.0
    %v5317 = vpack.c.bf16 %v5190, %v5189
    %v5318 = vpack.c.bf16 %v5192, %v5191
    %v5319 = vpack.c.bf16 %v5194, %v5193
    %v5320 = vpack.c.bf16 %v5196, %v5195
    %v5321 = vpack.c.bf16 %v5198, %v5197
    %v5322 = vpack.c.bf16 %v5200, %v5199
    %v5323 = vpack.c.bf16 %v5202, %v5201
    %v5324 = vpack.c.bf16 %v5204, %v5203
    %v5325 = vpack.c.bf16 %v5206, %v5205
    %v5326 = vpack.c.bf16 %v5208, %v5207
    %v5327 = vpack.c.bf16 %v5210, %v5209
    %v5328 = vpack.c.bf16 %v5212, %v5211
    %v5329 = vpack.c.bf16 %v5214, %v5213
    %v5330 = vpack.c.bf16 %v5216, %v5215
    %v5331 = vpack.c.bf16 %v5218, %v5217
    %v5332 = vpack.c.bf16 %v5220, %v5219
    %v5333 = vpack.c.bf16 %v5222, %v5221
    %v5334 = vpack.c.bf16 %v5224, %v5223
    %v5335 = vpack.c.bf16 %v5226, %v5225
    %v5336 = vpack.c.bf16 %v5228, %v5227
    %v5337 = vpack.c.bf16 %v5230, %v5229
    %v5338 = vpack.c.bf16 %v5232, %v5231
    %v5339 = vpack.c.bf16 %v5234, %v5233
    %v5340 = vpack.c.bf16 %v5236, %v5235
    %v5341 = vpack.c.bf16 %v5238, %v5237
    %v5342 = vpack.c.bf16 %v5240, %v5239
    %v5343 = vpack.c.bf16 %v5242, %v5241
    %v5344 = vpack.c.bf16 %v5244, %v5243
    %v5345 = vpack.c.bf16 %v5246, %v5245
    %v5346 = vpack.c.bf16 %v5248, %v5247
    %v5347 = vpack.c.bf16 %v5250, %v5249
    %v5348 = vpack.c.bf16 %v5252, %v5251
    %v5349 = vpack.c.bf16 %v5254, %v5253
    %v5350 = vpack.c.bf16 %v5256, %v5255
    %v5351 = vpack.c.bf16 %v5258, %v5257
    %v5352 = vpack.c.bf16 %v5260, %v5259
    %v5353 = vpack.c.bf16 %v5262, %v5261
    %v5354 = vpack.c.bf16 %v5264, %v5263
    %v5355 = vpack.c.bf16 %v5266, %v5265
    %v5356 = vpack.c.bf16 %v5268, %v5267
    %v5357 = vpack.c.bf16 %v5270, %v5269
    %v5358 = vpack.c.bf16 %v5272, %v5271
    %v5359 = vpack.c.bf16 %v5274, %v5273
    %v5360 = vpack.c.bf16 %v5276, %v5275
    %v5361 = vpack.c.bf16 %v5278, %v5277
    %v5362 = vpack.c.bf16 %v5280, %v5279
    %v5363 = vpack.c.bf16 %v5282, %v5281
    %v5364 = vpack.c.bf16 %v5284, %v5283
    %v5365 = vpack.c.bf16 %v5286, %v5285
    %v5366 = vpack.c.bf16 %v5288, %v5287
    %v5367 = vpack.c.bf16 %v5290, %v5289
    %v5368 = vpack.c.bf16 %v5292, %v5291
    %v5369 = vpack.c.bf16 %v5294, %v5293
    %v5370 = vpack.c.bf16 %v5296, %v5295
    %v5371 = vpack.c.bf16 %v5298, %v5297
    %v5372 = vpack.c.bf16 %v5300, %v5299
    %v5373 = vpack.c.bf16 %v5302, %v5301
    %v5374 = vpack.c.bf16 %v5304, %v5303
    %v5375 = vpack.c.bf16 %v5306, %v5305
    %v5376 = vpack.c.bf16 %v5308, %v5307
    %v5377 = vpack.c.bf16 %v5310, %v5309
    %v5378 = vpack.c.bf16 %v5312, %v5311
    %v5379 = vpack.c.bf16 %v5314, %v5313
    %v5380 = vpack.c.bf16 %v5316, %v5315
    %v5381 = vld [vmem:[%s13] sm:$0xf]
    %v5382 = vld [vmem:[%s13 + $0x4] sm:$0xf]
    %v5383 = vld [vmem:[%s13 + $0x8] sm:$0xf]
    %v5384 = vld [vmem:[%s13 + $0xc] sm:$0xf]
    %v5385 = vld [vmem:[%s13 + $0x10] sm:$0xf]
    %v5386 = vld [vmem:[%s13 + $0x14] sm:$0xf]
    %v5387 = vld [vmem:[%s13 + $0x18] sm:$0xf]
    %v5388 = vld [vmem:[%s13 + $0x1c] sm:$0xf]
    %v5389 = vld [vmem:[%s14] sm:$0x1]
    %v5391 = vperm.slane %v5389, 0
    %v5401 = vunpack.c.l.b16 %v5381
    %v5402 = vunpack.c.l.b16 %v5382
    %v5403 = vunpack.c.l.b16 %v5383
    %v5404 = vunpack.c.l.b16 %v5384
    %v5405 = vunpack.c.l.b16 %v5385
    %v5406 = vunpack.c.l.b16 %v5386
    %v5407 = vunpack.c.l.b16 %v5387
    %v5408 = vunpack.c.l.b16 %v5388
    %v5409 = vpack.c.b16 %v5402, %v5401
    %v5410 = vpack.c.b16 %v5404, %v5403
    %v5411 = vpack.c.b16 %v5406, %v5405
    %v5412 = vpack.c.b16 %v5408, %v5407
    %vm5417 = vcmask 523264
    %v5419 = vsel %vm5417, %v5317, 0
    %v5422 = vsel %vm5417, %v5318, 0
    %v5425 = vsel %vm5417, %v5319, 0
    %v5428 = vsel %vm5417, %v5320, 0
    %v5431 = vsel %vm5417, %v5321, 0
    %v5434 = vsel %vm5417, %v5322, 0
    %v5437 = vsel %vm5417, %v5323, 0
    %v5440 = vsel %vm5417, %v5324, 0
    %v5443 = vsel %vm5417, %v5325, 0
    %v5446 = vsel %vm5417, %v5326, 0
    %v5449 = vsel %vm5417, %v5327, 0
    %v5452 = vsel %vm5417, %v5328, 0
    %v5455 = vsel %vm5417, %v5329, 0
    %v5458 = vsel %vm5417, %v5330, 0
    %v5461 = vsel %vm5417, %v5331, 0
    %v5464 = vsel %vm5417, %v5332, 0
    %v5467 = vsel %vm5417, %v5333, 0
    %v5470 = vsel %vm5417, %v5334, 0
    %v5473 = vsel %vm5417, %v5335, 0
    %v5476 = vsel %vm5417, %v5336, 0
    %v5479 = vsel %vm5417, %v5337, 0
    %v5482 = vsel %vm5417, %v5338, 0
    %v5485 = vsel %vm5417, %v5339, 0
    %v5488 = vsel %vm5417, %v5340, 0
    %v5491 = vsel %vm5417, %v5341, 0
    %v5494 = vsel %vm5417, %v5342, 0
    %v5497 = vsel %vm5417, %v5343, 0
    %v5500 = vsel %vm5417, %v5344, 0
    %v5503 = vsel %vm5417, %v5345, 0
    %v5506 = vsel %vm5417, %v5346, 0
    %v5509 = vsel %vm5417, %v5347, 0
    %v5512 = vsel %vm5417, %v5348, 0
    %v5515 = vsel %vm5417, %v5349, 0
    %v5518 = vsel %vm5417, %v5350, 0
    %v5521 = vsel %vm5417, %v5351, 0
    %v5524 = vsel %vm5417, %v5352, 0
    %v5527 = vsel %vm5417, %v5353, 0
    %v5530 = vsel %vm5417, %v5354, 0
    %v5533 = vsel %vm5417, %v5355, 0
    %v5536 = vsel %vm5417, %v5356, 0
    %v5539 = vsel %vm5417, %v5357, 0
    %v5542 = vsel %vm5417, %v5358, 0
    %v5545 = vsel %vm5417, %v5359, 0
    %v5548 = vsel %vm5417, %v5360, 0
    %v5551 = vsel %vm5417, %v5361, 0
    %v5554 = vsel %vm5417, %v5362, 0
    %v5557 = vsel %vm5417, %v5363, 0
    %v5560 = vsel %vm5417, %v5364, 0
    %v5563 = vsel %vm5417, %v5365, 0
    %v5566 = vsel %vm5417, %v5366, 0
    %v5569 = vsel %vm5417, %v5367, 0
    %v5572 = vsel %vm5417, %v5368, 0
    %v5575 = vsel %vm5417, %v5369, 0
    %v5578 = vsel %vm5417, %v5370, 0
    %v5581 = vsel %vm5417, %v5371, 0
    %v5584 = vsel %vm5417, %v5372, 0
    %v5587 = vsel %vm5417, %v5373, 0
    %v5590 = vsel %vm5417, %v5374, 0
    %v5593 = vsel %vm5417, %v5375, 0
    %v5596 = vsel %vm5417, %v5376, 0
    %v5599 = vsel %vm5417, %v5377, 0
    %v5602 = vsel %vm5417, %v5378, 0
    %v5605 = vsel %vm5417, %v5379, 0
    %v5608 = vsel %vm5417, %v5380, 0
    %5610 = vmatpush.bf16.msra.mxu0 0
    %5611 = vmatpush.bf16.msra.mxu0 0
    %5612 = vmatpush.bf16.msra.mxu0 0
    %5613 = vmatpush.bf16.msra.mxu0 0
    %5614 = vmatpush.bf16.msra.mxu0 %v5412
    %5615 = vmatpush.bf16.msra.mxu0 %v5411
    %5616 = vmatpush.bf16.msra.mxu0 %v5410
    %5617 = vmatpush.bf16.msra.mxu0 %v5409
    %5618 = vmatmul.bf16.gmra.mxu0 %v5419
    %v5619 = vpop.f32.mrf.mxu0
    %v5620 = vadd.f32 %v5391, %v5619
    %v5621 = vpop.f32.mrf.mxu0
    %v5622 = vadd.f32 %v5391, %v5621
    %5623 = vmatmul.bf16.gmra.mxu0 %v5422
    %v5624 = vpop.f32.mrf.mxu0
    %v5625 = vadd.f32 %v5391, %v5624
    %v5626 = vpop.f32.mrf.mxu0
    %v5627 = vadd.f32 %v5391, %v5626
    %5628 = vmatmul.bf16.gmra.mxu0 %v5425
    %v5629 = vpop.f32.mrf.mxu0
    %v5630 = vadd.f32 %v5391, %v5629
    %v5631 = vpop.f32.mrf.mxu0
    %v5632 = vadd.f32 %v5391, %v5631
    %5633 = vmatmul.bf16.gmra.mxu0 %v5428
    %v5634 = vpop.f32.mrf.mxu0
    %v5635 = vadd.f32 %v5391, %v5634
    %v5636 = vpop.f32.mrf.mxu0
    %v5637 = vadd.f32 %v5391, %v5636
    %5638 = vmatmul.bf16.gmra.mxu0 %v5431
    %v5639 = vpop.f32.mrf.mxu0
    %v5640 = vadd.f32 %v5391, %v5639
    %v5641 = vpop.f32.mrf.mxu0
    %v5642 = vadd.f32 %v5391, %v5641
    %5643 = vmatmul.bf16.gmra.mxu0 %v5434
    %v5644 = vpop.f32.mrf.mxu0
    %v5645 = vadd.f32 %v5391, %v5644
    %v5646 = vpop.f32.mrf.mxu0
    %v5647 = vadd.f32 %v5391, %v5646
    %5648 = vmatmul.bf16.gmra.mxu0 %v5437
    %v5649 = vpop.f32.mrf.mxu0
    %v5650 = vadd.f32 %v5391, %v5649
    %v5651 = vpop.f32.mrf.mxu0
    %v5652 = vadd.f32 %v5391, %v5651
    %5653 = vmatmul.bf16.gmra.mxu0 %v5440
    %v5654 = vpop.f32.mrf.mxu0
    %v5655 = vadd.f32 %v5391, %v5654
    %v5656 = vpop.f32.mrf.mxu0
    %v5657 = vadd.f32 %v5391, %v5656
    %5658 = vmatmul.bf16.gmra.mxu0 %v5443
    %v5659 = vpop.f32.mrf.mxu0
    %v5660 = vadd.f32 %v5391, %v5659
    %v5661 = vpop.f32.mrf.mxu0
    %v5662 = vadd.f32 %v5391, %v5661
    %5663 = vmatmul.bf16.gmra.mxu0 %v5446
    %v5664 = vpop.f32.mrf.mxu0
    %v5665 = vadd.f32 %v5391, %v5664
    %v5666 = vpop.f32.mrf.mxu0
    %v5667 = vadd.f32 %v5391, %v5666
    %5668 = vmatmul.bf16.gmra.mxu0 %v5449
    %v5669 = vpop.f32.mrf.mxu0
    %v5670 = vadd.f32 %v5391, %v5669
    %v5671 = vpop.f32.mrf.mxu0
    %v5672 = vadd.f32 %v5391, %v5671
    %5673 = vmatmul.bf16.gmra.mxu0 %v5452
    %v5674 = vpop.f32.mrf.mxu0
    %v5675 = vadd.f32 %v5391, %v5674
    %v5676 = vpop.f32.mrf.mxu0
    %v5677 = vadd.f32 %v5391, %v5676
    %5678 = vmatmul.bf16.gmra.mxu0 %v5455
    %v5679 = vpop.f32.mrf.mxu0
    %v5680 = vadd.f32 %v5391, %v5679
    %v5681 = vpop.f32.mrf.mxu0
    %v5682 = vadd.f32 %v5391, %v5681
    %5683 = vmatmul.bf16.gmra.mxu0 %v5458
    %v5684 = vpop.f32.mrf.mxu0
    %v5685 = vadd.f32 %v5391, %v5684
    %v5686 = vpop.f32.mrf.mxu0
    %v5687 = vadd.f32 %v5391, %v5686
    %5688 = vmatmul.bf16.gmra.mxu0 %v5461
    %v5689 = vpop.f32.mrf.mxu0
    %v5690 = vadd.f32 %v5391, %v5689
    %v5691 = vpop.f32.mrf.mxu0
    %v5692 = vadd.f32 %v5391, %v5691
    %5693 = vmatmul.bf16.gmra.mxu0 %v5464
    %v5694 = vpop.f32.mrf.mxu0
    %v5695 = vadd.f32 %v5391, %v5694
    %v5696 = vpop.f32.mrf.mxu0
    %v5697 = vadd.f32 %v5391, %v5696
    %5698 = vmatmul.bf16.gmra.mxu0 %v5467
    %v5699 = vpop.f32.mrf.mxu0
    %v5700 = vadd.f32 %v5391, %v5699
    %v5701 = vpop.f32.mrf.mxu0
    %v5702 = vadd.f32 %v5391, %v5701
    %5703 = vmatmul.bf16.gmra.mxu0 %v5470
    %v5704 = vpop.f32.mrf.mxu0
    %v5705 = vadd.f32 %v5391, %v5704
    %v5706 = vpop.f32.mrf.mxu0
    %v5707 = vadd.f32 %v5391, %v5706
    %5708 = vmatmul.bf16.gmra.mxu0 %v5473
    %v5709 = vpop.f32.mrf.mxu0
    %v5710 = vadd.f32 %v5391, %v5709
    %v5711 = vpop.f32.mrf.mxu0
    %v5712 = vadd.f32 %v5391, %v5711
    %5713 = vmatmul.bf16.gmra.mxu0 %v5476
    %v5714 = vpop.f32.mrf.mxu0
    %v5715 = vadd.f32 %v5391, %v5714
    %v5716 = vpop.f32.mrf.mxu0
    %v5717 = vadd.f32 %v5391, %v5716
    %5718 = vmatmul.bf16.gmra.mxu0 %v5479
    %v5719 = vpop.f32.mrf.mxu0
    %v5720 = vadd.f32 %v5391, %v5719
    %v5721 = vpop.f32.mrf.mxu0
    %v5722 = vadd.f32 %v5391, %v5721
    %5723 = vmatmul.bf16.gmra.mxu0 %v5482
    %v5724 = vpop.f32.mrf.mxu0
    %v5725 = vadd.f32 %v5391, %v5724
    %v5726 = vpop.f32.mrf.mxu0
    %v5727 = vadd.f32 %v5391, %v5726
    %5728 = vmatmul.bf16.gmra.mxu0 %v5485
    %v5729 = vpop.f32.mrf.mxu0
    %v5730 = vadd.f32 %v5391, %v5729
    %v5731 = vpop.f32.mrf.mxu0
    %v5732 = vadd.f32 %v5391, %v5731
    %5733 = vmatmul.bf16.gmra.mxu0 %v5488
    %v5734 = vpop.f32.mrf.mxu0
    %v5735 = vadd.f32 %v5391, %v5734
    %v5736 = vpop.f32.mrf.mxu0
    %v5737 = vadd.f32 %v5391, %v5736
    %5738 = vmatmul.bf16.gmra.mxu0 %v5491
    %v5739 = vpop.f32.mrf.mxu0
    %v5740 = vadd.f32 %v5391, %v5739
    %v5741 = vpop.f32.mrf.mxu0
    %v5742 = vadd.f32 %v5391, %v5741
    %5743 = vmatmul.bf16.gmra.mxu0 %v5494
    %v5744 = vpop.f32.mrf.mxu0
    %v5745 = vadd.f32 %v5391, %v5744
    %v5746 = vpop.f32.mrf.mxu0
    %v5747 = vadd.f32 %v5391, %v5746
    %5748 = vmatmul.bf16.gmra.mxu0 %v5497
    %v5749 = vpop.f32.mrf.mxu0
    %v5750 = vadd.f32 %v5391, %v5749
    %v5751 = vpop.f32.mrf.mxu0
    %v5752 = vadd.f32 %v5391, %v5751
    %5753 = vmatmul.bf16.gmra.mxu0 %v5500
    %v5754 = vpop.f32.mrf.mxu0
    %v5755 = vadd.f32 %v5391, %v5754
    %v5756 = vpop.f32.mrf.mxu0
    %v5757 = vadd.f32 %v5391, %v5756
    %5758 = vmatmul.bf16.gmra.mxu0 %v5503
    %v5759 = vpop.f32.mrf.mxu0
    %v5760 = vadd.f32 %v5391, %v5759
    %v5761 = vpop.f32.mrf.mxu0
    %v5762 = vadd.f32 %v5391, %v5761
    %5763 = vmatmul.bf16.gmra.mxu0 %v5506
    %v5764 = vpop.f32.mrf.mxu0
    %v5765 = vadd.f32 %v5391, %v5764
    %v5766 = vpop.f32.mrf.mxu0
    %v5767 = vadd.f32 %v5391, %v5766
    %5768 = vmatmul.bf16.gmra.mxu0 %v5509
    %v5769 = vpop.f32.mrf.mxu0
    %v5770 = vadd.f32 %v5391, %v5769
    %v5771 = vpop.f32.mrf.mxu0
    %v5772 = vadd.f32 %v5391, %v5771
    %5773 = vmatmul.bf16.gmra.mxu0 %v5512
    %v5774 = vpop.f32.mrf.mxu0
    %v5775 = vadd.f32 %v5391, %v5774
    %v5776 = vpop.f32.mrf.mxu0
    %v5777 = vadd.f32 %v5391, %v5776
    %5778 = vmatmul.bf16.gmra.mxu0 %v5515
    %v5779 = vpop.f32.mrf.mxu0
    %v5780 = vadd.f32 %v5391, %v5779
    %v5781 = vpop.f32.mrf.mxu0
    %v5782 = vadd.f32 %v5391, %v5781
    %5783 = vmatmul.bf16.gmra.mxu0 %v5518
    %v5784 = vpop.f32.mrf.mxu0
    %v5785 = vadd.f32 %v5391, %v5784
    %v5786 = vpop.f32.mrf.mxu0
    %v5787 = vadd.f32 %v5391, %v5786
    %5788 = vmatmul.bf16.gmra.mxu0 %v5521
    %v5789 = vpop.f32.mrf.mxu0
    %v5790 = vadd.f32 %v5391, %v5789
    %v5791 = vpop.f32.mrf.mxu0
    %v5792 = vadd.f32 %v5391, %v5791
    %5793 = vmatmul.bf16.gmra.mxu0 %v5524
    %v5794 = vpop.f32.mrf.mxu0
    %v5795 = vadd.f32 %v5391, %v5794
    %v5796 = vpop.f32.mrf.mxu0
    %v5797 = vadd.f32 %v5391, %v5796
    %5798 = vmatmul.bf16.gmra.mxu0 %v5527
    %v5799 = vpop.f32.mrf.mxu0
    %v5800 = vadd.f32 %v5391, %v5799
    %v5801 = vpop.f32.mrf.mxu0
    %v5802 = vadd.f32 %v5391, %v5801
    %5803 = vmatmul.bf16.gmra.mxu0 %v5530
    %v5804 = vpop.f32.mrf.mxu0
    %v5805 = vadd.f32 %v5391, %v5804
    %v5806 = vpop.f32.mrf.mxu0
    %v5807 = vadd.f32 %v5391, %v5806
    %5808 = vmatmul.bf16.gmra.mxu0 %v5533
    %v5809 = vpop.f32.mrf.mxu0
    %v5810 = vadd.f32 %v5391, %v5809
    %v5811 = vpop.f32.mrf.mxu0
    %v5812 = vadd.f32 %v5391, %v5811
    %5813 = vmatmul.bf16.gmra.mxu0 %v5536
    %v5814 = vpop.f32.mrf.mxu0
    %v5815 = vadd.f32 %v5391, %v5814
    %v5816 = vpop.f32.mrf.mxu0
    %v5817 = vadd.f32 %v5391, %v5816
    %5818 = vmatmul.bf16.gmra.mxu0 %v5539
    %v5819 = vpop.f32.mrf.mxu0
    %v5820 = vadd.f32 %v5391, %v5819
    %v5821 = vpop.f32.mrf.mxu0
    %v5822 = vadd.f32 %v5391, %v5821
    %5823 = vmatmul.bf16.gmra.mxu0 %v5542
    %v5824 = vpop.f32.mrf.mxu0
    %v5825 = vadd.f32 %v5391, %v5824
    %v5826 = vpop.f32.mrf.mxu0
    %v5827 = vadd.f32 %v5391, %v5826
    %5828 = vmatmul.bf16.gmra.mxu0 %v5545
    %v5829 = vpop.f32.mrf.mxu0
    %v5830 = vadd.f32 %v5391, %v5829
    %v5831 = vpop.f32.mrf.mxu0
    %v5832 = vadd.f32 %v5391, %v5831
    %5833 = vmatmul.bf16.gmra.mxu0 %v5548
    %v5834 = vpop.f32.mrf.mxu0
    %v5835 = vadd.f32 %v5391, %v5834
    %v5836 = vpop.f32.mrf.mxu0
    %v5837 = vadd.f32 %v5391, %v5836
    %5838 = vmatmul.bf16.gmra.mxu0 %v5551
    %v5839 = vpop.f32.mrf.mxu0
    %v5840 = vadd.f32 %v5391, %v5839
    %v5841 = vpop.f32.mrf.mxu0
    %v5842 = vadd.f32 %v5391, %v5841
    %5843 = vmatmul.bf16.gmra.mxu0 %v5554
    %v5844 = vpop.f32.mrf.mxu0
    %v5845 = vadd.f32 %v5391, %v5844
    %v5846 = vpop.f32.mrf.mxu0
    %v5847 = vadd.f32 %v5391, %v5846
    %5848 = vmatmul.bf16.gmra.mxu0 %v5557
    %v5849 = vpop.f32.mrf.mxu0
    %v5850 = vadd.f32 %v5391, %v5849
    %v5851 = vpop.f32.mrf.mxu0
    %v5852 = vadd.f32 %v5391, %v5851
    %5853 = vmatmul.bf16.gmra.mxu0 %v5560
    %v5854 = vpop.f32.mrf.mxu0
    %v5855 = vadd.f32 %v5391, %v5854
    %v5856 = vpop.f32.mrf.mxu0
    %v5857 = vadd.f32 %v5391, %v5856
    %5858 = vmatmul.bf16.gmra.mxu0 %v5563
    %v5859 = vpop.f32.mrf.mxu0
    %v5860 = vadd.f32 %v5391, %v5859
    %v5861 = vpop.f32.mrf.mxu0
    %v5862 = vadd.f32 %v5391, %v5861
    %5863 = vmatmul.bf16.gmra.mxu0 %v5566
    %v5864 = vpop.f32.mrf.mxu0
    %v5865 = vadd.f32 %v5391, %v5864
    %v5866 = vpop.f32.mrf.mxu0
    %v5867 = vadd.f32 %v5391, %v5866
    %5868 = vmatmul.bf16.gmra.mxu0 %v5569
    %v5869 = vpop.f32.mrf.mxu0
    %v5870 = vadd.f32 %v5391, %v5869
    %v5871 = vpop.f32.mrf.mxu0
    %v5872 = vadd.f32 %v5391, %v5871
    %5873 = vmatmul.bf16.gmra.mxu0 %v5572
    %v5874 = vpop.f32.mrf.mxu0
    %v5875 = vadd.f32 %v5391, %v5874
    %v5876 = vpop.f32.mrf.mxu0
    %v5877 = vadd.f32 %v5391, %v5876
    %5878 = vmatmul.bf16.gmra.mxu0 %v5575
    %v5879 = vpop.f32.mrf.mxu0
    %v5880 = vadd.f32 %v5391, %v5879
    %v5881 = vpop.f32.mrf.mxu0
    %v5882 = vadd.f32 %v5391, %v5881
    %5883 = vmatmul.bf16.gmra.mxu0 %v5578
    %v5884 = vpop.f32.mrf.mxu0
    %v5885 = vadd.f32 %v5391, %v5884
    %v5886 = vpop.f32.mrf.mxu0
    %v5887 = vadd.f32 %v5391, %v5886
    %5888 = vmatmul.bf16.gmra.mxu0 %v5581
    %v5889 = vpop.f32.mrf.mxu0
    %v5890 = vadd.f32 %v5391, %v5889
    %v5891 = vpop.f32.mrf.mxu0
    %v5892 = vadd.f32 %v5391, %v5891
    %5893 = vmatmul.bf16.gmra.mxu0 %v5584
    %v5894 = vpop.f32.mrf.mxu0
    %v5895 = vadd.f32 %v5391, %v5894
    %v5896 = vpop.f32.mrf.mxu0
    %v5897 = vadd.f32 %v5391, %v5896
    %5898 = vmatmul.bf16.gmra.mxu0 %v5587
    %v5899 = vpop.f32.mrf.mxu0
    %v5900 = vadd.f32 %v5391, %v5899
    %v5901 = vpop.f32.mrf.mxu0
    %v5902 = vadd.f32 %v5391, %v5901
    %5903 = vmatmul.bf16.gmra.mxu0 %v5590
    %v5904 = vpop.f32.mrf.mxu0
    %v5905 = vadd.f32 %v5391, %v5904
    %v5906 = vpop.f32.mrf.mxu0
    %v5907 = vadd.f32 %v5391, %v5906
    %5908 = vmatmul.bf16.gmra.mxu0 %v5593
    %v5909 = vpop.f32.mrf.mxu0
    %v5910 = vadd.f32 %v5391, %v5909
    %v5911 = vpop.f32.mrf.mxu0
    %v5912 = vadd.f32 %v5391, %v5911
    %5913 = vmatmul.bf16.gmra.mxu0 %v5596
    %v5914 = vpop.f32.mrf.mxu0
    %v5915 = vadd.f32 %v5391, %v5914
    %v5916 = vpop.f32.mrf.mxu0
    %v5917 = vadd.f32 %v5391, %v5916
    %5918 = vmatmul.bf16.gmra.mxu0 %v5599
    %v5919 = vpop.f32.mrf.mxu0
    %v5920 = vadd.f32 %v5391, %v5919
    %v5921 = vpop.f32.mrf.mxu0
    %v5922 = vadd.f32 %v5391, %v5921
    %5923 = vmatmul.bf16.gmra.mxu0 %v5602
    %v5924 = vpop.f32.mrf.mxu0
    %v5925 = vadd.f32 %v5391, %v5924
    %v5926 = vpop.f32.mrf.mxu0
    %v5927 = vadd.f32 %v5391, %v5926
    %5928 = vmatmul.bf16.gmra.mxu0 %v5605
    %v5929 = vpop.f32.mrf.mxu0
    %v5930 = vadd.f32 %v5391, %v5929
    %v5931 = vpop.f32.mrf.mxu0
    %v5932 = vadd.f32 %v5391, %v5931
    %5933 = vmatmul.bf16.gmra.mxu0 %v5608
    %v5934 = vpop.f32.mrf.mxu0
    %v5935 = vadd.f32 %v5391, %v5934
    %v5936 = vpop.f32.mrf.mxu0
    %v5937 = vadd.f32 %v5391, %v5936
    %5938 = vdwg.mxu0
    %v5939 = vadd.f32 %v5620, %v3465
    %v5940 = vadd.f32 %v5622, %v3467
    %v5941 = vadd.f32 %v5625, %v3470
    %v5942 = vadd.f32 %v5627, %v3472
    %v5943 = vadd.f32 %v5630, %v3475
    %v5944 = vadd.f32 %v5632, %v3477
    %v5945 = vadd.f32 %v5635, %v3480
    %v5946 = vadd.f32 %v5637, %v3482
    %v5947 = vadd.f32 %v5640, %v3485
    %v5948 = vadd.f32 %v5642, %v3487
    %v5949 = vadd.f32 %v5645, %v3490
    %v5950 = vadd.f32 %v5647, %v3492
    %v5951 = vadd.f32 %v5650, %v3495
    %v5952 = vadd.f32 %v5652, %v3497
    %v5953 = vadd.f32 %v5655, %v3500
    %v5954 = vadd.f32 %v5657, %v3502
    %v5955 = vadd.f32 %v5660, %v3505
    %v5956 = vadd.f32 %v5662, %v3507
    %v5957 = vadd.f32 %v5665, %v3510
    %v5958 = vadd.f32 %v5667, %v3512
    %v5959 = vadd.f32 %v5670, %v3515
    %v5960 = vadd.f32 %v5672, %v3517
    %v5961 = vadd.f32 %v5675, %v3520
    %v5962 = vadd.f32 %v5677, %v3522
    %v5963 = vadd.f32 %v5680, %v3525
    %v5964 = vadd.f32 %v5682, %v3527
    %v5965 = vadd.f32 %v5685, %v3530
    %v5966 = vadd.f32 %v5687, %v3532
    %v5967 = vadd.f32 %v5690, %v3535
    %v5968 = vadd.f32 %v5692, %v3537
    %v5969 = vadd.f32 %v5695, %v3540
    %v5970 = vadd.f32 %v5697, %v3542
    %v5971 = vadd.f32 %v5700, %v3545
    %v5972 = vadd.f32 %v5702, %v3547
    %v5973 = vadd.f32 %v5705, %v3550
    %v5974 = vadd.f32 %v5707, %v3552
    %v5975 = vadd.f32 %v5710, %v3555
    %v5976 = vadd.f32 %v5712, %v3557
    %v5977 = vadd.f32 %v5715, %v3560
    %v5978 = vadd.f32 %v5717, %v3562
    %v5979 = vadd.f32 %v5720, %v3565
    %v5980 = vadd.f32 %v5722, %v3567
    %v5981 = vadd.f32 %v5725, %v3570
    %v5982 = vadd.f32 %v5727, %v3572
    %v5983 = vadd.f32 %v5730, %v3575
    %v5984 = vadd.f32 %v5732, %v3577
    %v5985 = vadd.f32 %v5735, %v3580
    %v5986 = vadd.f32 %v5737, %v3582
    %v5987 = vadd.f32 %v5740, %v3585
    %v5988 = vadd.f32 %v5742, %v3587
    %v5989 = vadd.f32 %v5745, %v3590
    %v5990 = vadd.f32 %v5747, %v3592
    %v5991 = vadd.f32 %v5750, %v3595
    %v5992 = vadd.f32 %v5752, %v3597
    %v5993 = vadd.f32 %v5755, %v3600
    %v5994 = vadd.f32 %v5757, %v3602
    %v5995 = vadd.f32 %v5760, %v3605
    %v5996 = vadd.f32 %v5762, %v3607
    %v5997 = vadd.f32 %v5765, %v3610
    %v5998 = vadd.f32 %v5767, %v3612
    %v5999 = vadd.f32 %v5770, %v3615
    %v6000 = vadd.f32 %v5772, %v3617
    %v6001 = vadd.f32 %v5775, %v3620
    %v6002 = vadd.f32 %v5777, %v3622
    %v6003 = vadd.f32 %v5780, %v3625
    %v6004 = vadd.f32 %v5782, %v3627
    %v6005 = vadd.f32 %v5785, %v3630
    %v6006 = vadd.f32 %v5787, %v3632
    %v6007 = vadd.f32 %v5790, %v3635
    %v6008 = vadd.f32 %v5792, %v3637
    %v6009 = vadd.f32 %v5795, %v3640
    %v6010 = vadd.f32 %v5797, %v3642
    %v6011 = vadd.f32 %v5800, %v3645
    %v6012 = vadd.f32 %v5802, %v3647
    %v6013 = vadd.f32 %v5805, %v3650
    %v6014 = vadd.f32 %v5807, %v3652
    %v6015 = vadd.f32 %v5810, %v3655
    %v6016 = vadd.f32 %v5812, %v3657
    %v6017 = vadd.f32 %v5815, %v3660
    %v6018 = vadd.f32 %v5817, %v3662
    %v6019 = vadd.f32 %v5820, %v3665
    %v6020 = vadd.f32 %v5822, %v3667
    %v6021 = vadd.f32 %v5825, %v3670
    %v6022 = vadd.f32 %v5827, %v3672
    %v6023 = vadd.f32 %v5830, %v3675
    %v6024 = vadd.f32 %v5832, %v3677
    %v6025 = vadd.f32 %v5835, %v3680
    %v6026 = vadd.f32 %v5837, %v3682
    %v6027 = vadd.f32 %v5840, %v3685
    %v6028 = vadd.f32 %v5842, %v3687
    %v6029 = vadd.f32 %v5845, %v3690
    %v6030 = vadd.f32 %v5847, %v3692
    %v6031 = vadd.f32 %v5850, %v3695
    %v6032 = vadd.f32 %v5852, %v3697
    %v6033 = vadd.f32 %v5855, %v3700
    %v6034 = vadd.f32 %v5857, %v3702
    %v6035 = vadd.f32 %v5860, %v3705
    %v6036 = vadd.f32 %v5862, %v3707
    %v6037 = vadd.f32 %v5865, %v3710
    %v6038 = vadd.f32 %v5867, %v3712
    %v6039 = vadd.f32 %v5870, %v3715
    %v6040 = vadd.f32 %v5872, %v3717
    %v6041 = vadd.f32 %v5875, %v3720
    %v6042 = vadd.f32 %v5877, %v3722
    %v6043 = vadd.f32 %v5880, %v3725
    %v6044 = vadd.f32 %v5882, %v3727
    %v6045 = vadd.f32 %v5885, %v3730
    %v6046 = vadd.f32 %v5887, %v3732
    %v6047 = vadd.f32 %v5890, %v3735
    %v6048 = vadd.f32 %v5892, %v3737
    %v6049 = vadd.f32 %v5895, %v3740
    %v6050 = vadd.f32 %v5897, %v3742
    %v6051 = vadd.f32 %v5900, %v3745
    %v6052 = vadd.f32 %v5902, %v3747
    %v6053 = vadd.f32 %v5905, %v3750
    %v6054 = vadd.f32 %v5907, %v3752
    %v6055 = vadd.f32 %v5910, %v3755
    %v6056 = vadd.f32 %v5912, %v3757
    %v6057 = vadd.f32 %v5915, %v3760
    %v6058 = vadd.f32 %v5917, %v3762
    %v6059 = vadd.f32 %v5920, %v3765
    %v6060 = vadd.f32 %v5922, %v3767
    %v6061 = vadd.f32 %v5925, %v3770
    %v6062 = vadd.f32 %v5927, %v3772
    %v6063 = vadd.f32 %v5930, %v3775
    %v6064 = vadd.f32 %v5932, %v3777
    %v6065 = vadd.f32 %v5935, %v3780
    %v6066 = vadd.f32 %v5937, %v3782
    %vm6067 = vcmask 31744
    %6068 = vst.msk [vmem:[#allocation2] sm:$0xff] %vm6067, %v5939
    %6069 = vst.msk [vmem:[#allocation2 + $0x8] sm:$0xff] %vm6067, %v5940
    %6070 = vst.msk [vmem:[#allocation2 + $0x10] sm:$0xff] %vm6067, %v5941
    %6071 = vst.msk [vmem:[#allocation2 + $0x18] sm:$0xff] %vm6067, %v5942
    %6072 = vst.msk [vmem:[#allocation2 + $0x20] sm:$0xff] %vm6067, %v5943
    %6073 = vst.msk [vmem:[#allocation2 + $0x28] sm:$0xff] %vm6067, %v5944
    %6074 = vst.msk [vmem:[#allocation2 + $0x30] sm:$0xff] %vm6067, %v5945
    %6075 = vst.msk [vmem:[#allocation2 + $0x38] sm:$0xff] %vm6067, %v5946
    %6076 = vst.msk [vmem:[#allocation2 + $0x40] sm:$0xff] %vm6067, %v5947
    %6077 = vst.msk [vmem:[#allocation2 + $0x48] sm:$0xff] %vm6067, %v5948
    %6078 = vst.msk [vmem:[#allocation2 + $0x50] sm:$0xff] %vm6067, %v5949
    %6079 = vst.msk [vmem:[#allocation2 + $0x58] sm:$0xff] %vm6067, %v5950
    %6080 = vst.msk [vmem:[#allocation2 + $0x60] sm:$0xff] %vm6067, %v5951
    %6081 = vst.msk [vmem:[#allocation2 + $0x68] sm:$0xff] %vm6067, %v5952
    %6082 = vst.msk [vmem:[#allocation2 + $0x70] sm:$0xff] %vm6067, %v5953
    %6083 = vst.msk [vmem:[#allocation2 + $0x78] sm:$0xff] %vm6067, %v5954
    %6084 = vst.msk [vmem:[#allocation2 + $0x80] sm:$0xff] %vm6067, %v5955
    %6085 = vst.msk [vmem:[#allocation2 + $0x88] sm:$0xff] %vm6067, %v5956
    %6086 = vst.msk [vmem:[#allocation2 + $0x90] sm:$0xff] %vm6067, %v5957
    %6087 = vst.msk [vmem:[#allocation2 + $0x98] sm:$0xff] %vm6067, %v5958
    %6088 = vst.msk [vmem:[#allocation2 + $0xa0] sm:$0xff] %vm6067, %v5959
    %6089 = vst.msk [vmem:[#allocation2 + $0xa8] sm:$0xff] %vm6067, %v5960
    %6090 = vst.msk [vmem:[#allocation2 + $0xb0] sm:$0xff] %vm6067, %v5961
    %6091 = vst.msk [vmem:[#allocation2 + $0xb8] sm:$0xff] %vm6067, %v5962
    %6092 = vst.msk [vmem:[#allocation2 + $0xc0] sm:$0xff] %vm6067, %v5963
    %6093 = vst.msk [vmem:[#allocation2 + $0xc8] sm:$0xff] %vm6067, %v5964
    %6094 = vst.msk [vmem:[#allocation2 + $0xd0] sm:$0xff] %vm6067, %v5965
    %6095 = vst.msk [vmem:[#allocation2 + $0xd8] sm:$0xff] %vm6067, %v5966
    %6096 = vst.msk [vmem:[#allocation2 + $0xe0] sm:$0xff] %vm6067, %v5967
    %6097 = vst.msk [vmem:[#allocation2 + $0xe8] sm:$0xff] %vm6067, %v5968
    %6098 = vst.msk [vmem:[#allocation2 + $0xf0] sm:$0xff] %vm6067, %v5969
    %6099 = vst.msk [vmem:[#allocation2 + $0xf8] sm:$0xff] %vm6067, %v5970
    %6100 = vst.msk [vmem:[#allocation2 + $0x100] sm:$0xff] %vm6067, %v5971
    %6101 = vst.msk [vmem:[#allocation2 + $0x108] sm:$0xff] %vm6067, %v5972
    %6102 = vst.msk [vmem:[#allocation2 + $0x110] sm:$0xff] %vm6067, %v5973
    %6103 = vst.msk [vmem:[#allocation2 + $0x118] sm:$0xff] %vm6067, %v5974
    %6104 = vst.msk [vmem:[#allocation2 + $0x120] sm:$0xff] %vm6067, %v5975
    %6105 = vst.msk [vmem:[#allocation2 + $0x128] sm:$0xff] %vm6067, %v5976
    %6106 = vst.msk [vmem:[#allocation2 + $0x130] sm:$0xff] %vm6067, %v5977
    %6107 = vst.msk [vmem:[#allocation2 + $0x138] sm:$0xff] %vm6067, %v5978
    %6108 = vst.msk [vmem:[#allocation2 + $0x140] sm:$0xff] %vm6067, %v5979
    %6109 = vst.msk [vmem:[#allocation2 + $0x148] sm:$0xff] %vm6067, %v5980
    %6110 = vst.msk [vmem:[#allocation2 + $0x150] sm:$0xff] %vm6067, %v5981
    %6111 = vst.msk [vmem:[#allocation2 + $0x158] sm:$0xff] %vm6067, %v5982
    %6112 = vst.msk [vmem:[#allocation2 + $0x160] sm:$0xff] %vm6067, %v5983
    %6113 = vst.msk [vmem:[#allocation2 + $0x168] sm:$0xff] %vm6067, %v5984
    %6114 = vst.msk [vmem:[#allocation2 + $0x170] sm:$0xff] %vm6067, %v5985
    %6115 = vst.msk [vmem:[#allocation2 + $0x178] sm:$0xff] %vm6067, %v5986
    %6116 = vst.msk [vmem:[#allocation2 + $0x180] sm:$0xff] %vm6067, %v5987
    %6117 = vst.msk [vmem:[#allocation2 + $0x188] sm:$0xff] %vm6067, %v5988
    %6118 = vst.msk [vmem:[#allocation2 + $0x190] sm:$0xff] %vm6067, %v5989
    %6119 = vst.msk [vmem:[#allocation2 + $0x198] sm:$0xff] %vm6067, %v5990
    %6120 = vst.msk [vmem:[#allocation2 + $0x1a0] sm:$0xff] %vm6067, %v5991
    %6121 = vst.msk [vmem:[#allocation2 + $0x1a8] sm:$0xff] %vm6067, %v5992
    %6122 = vst.msk [vmem:[#allocation2 + $0x1b0] sm:$0xff] %vm6067, %v5993
    %6123 = vst.msk [vmem:[#allocation2 + $0x1b8] sm:$0xff] %vm6067, %v5994
    %6124 = vst.msk [vmem:[#allocation2 + $0x1c0] sm:$0xff] %vm6067, %v5995
    %6125 = vst.msk [vmem:[#allocation2 + $0x1c8] sm:$0xff] %vm6067, %v5996
    %6126 = vst.msk [vmem:[#allocation2 + $0x1d0] sm:$0xff] %vm6067, %v5997
    %6127 = vst.msk [vmem:[#allocation2 + $0x1d8] sm:$0xff] %vm6067, %v5998
    %6128 = vst.msk [vmem:[#allocation2 + $0x1e0] sm:$0xff] %vm6067, %v5999
    %6129 = vst.msk [vmem:[#allocation2 + $0x1e8] sm:$0xff] %vm6067, %v6000
    %6130 = vst.msk [vmem:[#allocation2 + $0x1f0] sm:$0xff] %vm6067, %v6001
    %6131 = vst.msk [vmem:[#allocation2 + $0x1f8] sm:$0xff] %vm6067, %v6002
    %6132 = vst.msk [vmem:[#allocation2 + $0x200] sm:$0xff] %vm6067, %v6003
    %6133 = vst.msk [vmem:[#allocation2 + $0x208] sm:$0xff] %vm6067, %v6004
    %6134 = vst.msk [vmem:[#allocation2 + $0x210] sm:$0xff] %vm6067, %v6005
    %6135 = vst.msk [vmem:[#allocation2 + $0x218] sm:$0xff] %vm6067, %v6006
    %6136 = vst.msk [vmem:[#allocation2 + $0x220] sm:$0xff] %vm6067, %v6007
    %6137 = vst.msk [vmem:[#allocation2 + $0x228] sm:$0xff] %vm6067, %v6008
    %6138 = vst.msk [vmem:[#allocation2 + $0x230] sm:$0xff] %vm6067, %v6009
    %6139 = vst.msk [vmem:[#allocation2 + $0x238] sm:$0xff] %vm6067, %v6010
    %6140 = vst.msk [vmem:[#allocation2 + $0x240] sm:$0xff] %vm6067, %v6011
    %6141 = vst.msk [vmem:[#allocation2 + $0x248] sm:$0xff] %vm6067, %v6012
    %6142 = vst.msk [vmem:[#allocation2 + $0x250] sm:$0xff] %vm6067, %v6013
    %6143 = vst.msk [vmem:[#allocation2 + $0x258] sm:$0xff] %vm6067, %v6014
    %6144 = vst.msk [vmem:[#allocation2 + $0x260] sm:$0xff] %vm6067, %v6015
    %6145 = vst.msk [vmem:[#allocation2 + $0x268] sm:$0xff] %vm6067, %v6016
    %6146 = vst.msk [vmem:[#allocation2 + $0x270] sm:$0xff] %vm6067, %v6017
    %6147 = vst.msk [vmem:[#allocation2 + $0x278] sm:$0xff] %vm6067, %v6018
    %6148 = vst.msk [vmem:[#allocation2 + $0x280] sm:$0xff] %vm6067, %v6019
    %6149 = vst.msk [vmem:[#allocation2 + $0x288] sm:$0xff] %vm6067, %v6020
    %6150 = vst.msk [vmem:[#allocation2 + $0x290] sm:$0xff] %vm6067, %v6021
    %6151 = vst.msk [vmem:[#allocation2 + $0x298] sm:$0xff] %vm6067, %v6022
    %6152 = vst.msk [vmem:[#allocation2 + $0x2a0] sm:$0xff] %vm6067, %v6023
    %6153 = vst.msk [vmem:[#allocation2 + $0x2a8] sm:$0xff] %vm6067, %v6024
    %6154 = vst.msk [vmem:[#allocation2 + $0x2b0] sm:$0xff] %vm6067, %v6025
    %6155 = vst.msk [vmem:[#allocation2 + $0x2b8] sm:$0xff] %vm6067, %v6026
    %6156 = vst.msk [vmem:[#allocation2 + $0x2c0] sm:$0xff] %vm6067, %v6027
    %6157 = vst.msk [vmem:[#allocation2 + $0x2c8] sm:$0xff] %vm6067, %v6028
    %6158 = vst.msk [vmem:[#allocation2 + $0x2d0] sm:$0xff] %vm6067, %v6029
    %6159 = vst.msk [vmem:[#allocation2 + $0x2d8] sm:$0xff] %vm6067, %v6030
    %6160 = vst.msk [vmem:[#allocation2 + $0x2e0] sm:$0xff] %vm6067, %v6031
    %6161 = vst.msk [vmem:[#allocation2 + $0x2e8] sm:$0xff] %vm6067, %v6032
    %6162 = vst.msk [vmem:[#allocation2 + $0x2f0] sm:$0xff] %vm6067, %v6033
    %6163 = vst.msk [vmem:[#allocation2 + $0x2f8] sm:$0xff] %vm6067, %v6034
    %6164 = vst.msk [vmem:[#allocation2 + $0x300] sm:$0xff] %vm6067, %v6035
    %6165 = vst.msk [vmem:[#allocation2 + $0x308] sm:$0xff] %vm6067, %v6036
    %6166 = vst.msk [vmem:[#allocation2 + $0x310] sm:$0xff] %vm6067, %v6037
    %6167 = vst.msk [vmem:[#allocation2 + $0x318] sm:$0xff] %vm6067, %v6038
    %6168 = vst.msk [vmem:[#allocation2 + $0x320] sm:$0xff] %vm6067, %v6039
    %6169 = vst.msk [vmem:[#allocation2 + $0x328] sm:$0xff] %vm6067, %v6040
    %6170 = vst.msk [vmem:[#allocation2 + $0x330] sm:$0xff] %vm6067, %v6041
    %6171 = vst.msk [vmem:[#allocation2 + $0x338] sm:$0xff] %vm6067, %v6042
    %6172 = vst.msk [vmem:[#allocation2 + $0x340] sm:$0xff] %vm6067, %v6043
    %6173 = vst.msk [vmem:[#allocation2 + $0x348] sm:$0xff] %vm6067, %v6044
    %6174 = vst.msk [vmem:[#allocation2 + $0x350] sm:$0xff] %vm6067, %v6045
    %6175 = vst.msk [vmem:[#allocation2 + $0x358] sm:$0xff] %vm6067, %v6046
    %6176 = vst.msk [vmem:[#allocation2 + $0x360] sm:$0xff] %vm6067, %v6047
    %6177 = vst.msk [vmem:[#allocation2 + $0x368] sm:$0xff] %vm6067, %v6048
    %6178 = vst.msk [vmem:[#allocation2 + $0x370] sm:$0xff] %vm6067, %v6049
    %6179 = vst.msk [vmem:[#allocation2 + $0x378] sm:$0xff] %vm6067, %v6050
    %6180 = vst.msk [vmem:[#allocation2 + $0x380] sm:$0xff] %vm6067, %v6051
    %6181 = vst.msk [vmem:[#allocation2 + $0x388] sm:$0xff] %vm6067, %v6052
    %6182 = vst.msk [vmem:[#allocation2 + $0x390] sm:$0xff] %vm6067, %v6053
    %6183 = vst.msk [vmem:[#allocation2 + $0x398] sm:$0xff] %vm6067, %v6054
    %6184 = vst.msk [vmem:[#allocation2 + $0x3a0] sm:$0xff] %vm6067, %v6055
    %6185 = vst.msk [vmem:[#allocation2 + $0x3a8] sm:$0xff] %vm6067, %v6056
    %6186 = vst.msk [vmem:[#allocation2 + $0x3b0] sm:$0xff] %vm6067, %v6057
    %6187 = vst.msk [vmem:[#allocation2 + $0x3b8] sm:$0xff] %vm6067, %v6058
    %6188 = vst.msk [vmem:[#allocation2 + $0x3c0] sm:$0xff] %vm6067, %v6059
    %6189 = vst.msk [vmem:[#allocation2 + $0x3c8] sm:$0xff] %vm6067, %v6060
    %6190 = vst.msk [vmem:[#allocation2 + $0x3d0] sm:$0xff] %vm6067, %v6061
    %6191 = vst.msk [vmem:[#allocation2 + $0x3d8] sm:$0xff] %vm6067, %v6062
    %6192 = vst.msk [vmem:[#allocation2 + $0x3e0] sm:$0xff] %vm6067, %v6063
    %6193 = vst.msk [vmem:[#allocation2 + $0x3e8] sm:$0xff] %vm6067, %v6064
    %6194 = vst.msk [vmem:[#allocation2 + $0x3f0] sm:$0xff] %vm6067, %v6065
    %6195 = vst.msk [vmem:[#allocation2 + $0x3f8] sm:$0xff] %vm6067, %v6066
    // Predicated region
    $region62: #{tpu_custom_call.1} parent=1 // pred_check
      _
    $region63: #{tpu_custom_call.1} parent=1 // pred_check_branch
      %6197 = sbr.rel (0) target = $region65
    $region64: #{tpu_custom_call.1} parent=1 // pred_region
      // Predicated region
      $region66: #{tpu_custom_call.1} parent=64 // pred_check
        _
      $region67: #{tpu_custom_call.1} parent=64 // pred_check_branch
        %6199 = sbr.rel (0) target = $region69
      $region68: #{tpu_custom_call.1} parent=64 // pred_region
        // Predicated region
        $region70: #{tpu_custom_call.1} parent=68 // pred_check
          _
        $region71: #{tpu_custom_call.1} parent=68 // pred_check_branch
          %6201 = sbr.rel (0) target = $region73
        $region72: #{tpu_custom_call.1} parent=68 // pred_region
          // Predicated region
          $region85: #{tpu_custom_call.1} parent=72 // pred_check
            _
          $region86: #{tpu_custom_call.1} parent=72 // pred_check_branch
            %6465 = sbr.rel (0) target = $region88
          $region87: #{tpu_custom_call.1} parent=72 // pred_region
            loop: start=0, step=1, limit=1
            $region89: #{tpu_custom_call.1} parent=87 // loop_pre_header
              _
            $region90: #{tpu_custom_call.1} parent=87 // loop_header
              %s6467 = sphi 0, %s6471
              %p6468 = scmp.ge.s32.totalorder %s6467, 1
              %s6472 = sphi [#allocation2], [#allocation2]
              %s6473 = sphi %s15, %s15
            $region91: #{tpu_custom_call.1} parent=87 // loop_header_branch
              %6470 = sbr.rel (%p6468) target = $region95
            $region92: #{tpu_custom_call.1} parent=87 // loop_body
              %v6474 = vld [vmem:[%s6472] sm:$0xff]
              %6475 = vst [vmem:[%s6473] sm:$0xff] %v6474
              %v6476 = vld [vmem:[%s6472 + $0x8] sm:$0xff]
              %6477 = vst [vmem:[%s6473 + $0x8] sm:$0xff] %v6476
              %v6478 = vld [vmem:[%s6472 + $0x10] sm:$0xff]
              %6479 = vst [vmem:[%s6473 + $0x10] sm:$0xff] %v6478
              %v6480 = vld [vmem:[%s6472 + $0x18] sm:$0xff]
              %6481 = vst [vmem:[%s6473 + $0x18] sm:$0xff] %v6480
              %v6482 = vld [vmem:[%s6472 + $0x20] sm:$0xff]
              %6483 = vst [vmem:[%s6473 + $0x20] sm:$0xff] %v6482
              %v6484 = vld [vmem:[%s6472 + $0x28] sm:$0xff]
              %6485 = vst [vmem:[%s6473 + $0x28] sm:$0xff] %v6484
              %v6486 = vld [vmem:[%s6472 + $0x30] sm:$0xff]
              %6487 = vst [vmem:[%s6473 + $0x30] sm:$0xff] %v6486
              %v6488 = vld [vmem:[%s6472 + $0x38] sm:$0xff]
              %6489 = vst [vmem:[%s6473 + $0x38] sm:$0xff] %v6488
              %v6490 = vld [vmem:[%s6472 + $0x40] sm:$0xff]
              %6491 = vst [vmem:[%s6473 + $0x40] sm:$0xff] %v6490
              %v6492 = vld [vmem:[%s6472 + $0x48] sm:$0xff]
              %6493 = vst [vmem:[%s6473 + $0x48] sm:$0xff] %v6492
              %v6494 = vld [vmem:[%s6472 + $0x50] sm:$0xff]
              %6495 = vst [vmem:[%s6473 + $0x50] sm:$0xff] %v6494
              %v6496 = vld [vmem:[%s6472 + $0x58] sm:$0xff]
              %6497 = vst [vmem:[%s6473 + $0x58] sm:$0xff] %v6496
              %v6498 = vld [vmem:[%s6472 + $0x60] sm:$0xff]
              %6499 = vst [vmem:[%s6473 + $0x60] sm:$0xff] %v6498
              %v6500 = vld [vmem:[%s6472 + $0x68] sm:$0xff]
              %6501 = vst [vmem:[%s6473 + $0x68] sm:$0xff] %v6500
              %v6502 = vld [vmem:[%s6472 + $0x70] sm:$0xff]
              %6503 = vst [vmem:[%s6473 + $0x70] sm:$0xff] %v6502
              %v6504 = vld [vmem:[%s6472 + $0x78] sm:$0xff]
              %6505 = vst [vmem:[%s6473 + $0x78] sm:$0xff] %v6504
              %v6506 = vld [vmem:[%s6472 + $0x80] sm:$0xff]
              %6507 = vst [vmem:[%s6473 + $0x80] sm:$0xff] %v6506
              %v6508 = vld [vmem:[%s6472 + $0x88] sm:$0xff]
              %6509 = vst [vmem:[%s6473 + $0x88] sm:$0xff] %v6508
              %v6510 = vld [vmem:[%s6472 + $0x90] sm:$0xff]
              %6511 = vst [vmem:[%s6473 + $0x90] sm:$0xff] %v6510
              %v6512 = vld [vmem:[%s6472 + $0x98] sm:$0xff]
              %6513 = vst [vmem:[%s6473 + $0x98] sm:$0xff] %v6512
              %v6514 = vld [vmem:[%s6472 + $0xa0] sm:$0xff]
              %6515 = vst [vmem:[%s6473 + $0xa0] sm:$0xff] %v6514
              %v6516 = vld [vmem:[%s6472 + $0xa8] sm:$0xff]
              %6517 = vst [vmem:[%s6473 + $0xa8] sm:$0xff] %v6516
              %v6518 = vld [vmem:[%s6472 + $0xb0] sm:$0xff]
              %6519 = vst [vmem:[%s6473 + $0xb0] sm:$0xff] %v6518
              %v6520 = vld [vmem:[%s6472 + $0xb8] sm:$0xff]
              %6521 = vst [vmem:[%s6473 + $0xb8] sm:$0xff] %v6520
              %v6522 = vld [vmem:[%s6472 + $0xc0] sm:$0xff]
              %6523 = vst [vmem:[%s6473 + $0xc0] sm:$0xff] %v6522
              %v6524 = vld [vmem:[%s6472 + $0xc8] sm:$0xff]
              %6525 = vst [vmem:[%s6473 + $0xc8] sm:$0xff] %v6524
              %v6526 = vld [vmem:[%s6472 + $0xd0] sm:$0xff]
              %6527 = vst [vmem:[%s6473 + $0xd0] sm:$0xff] %v6526
              %v6528 = vld [vmem:[%s6472 + $0xd8] sm:$0xff]
              %6529 = vst [vmem:[%s6473 + $0xd8] sm:$0xff] %v6528
              %v6530 = vld [vmem:[%s6472 + $0xe0] sm:$0xff]
              %6531 = vst [vmem:[%s6473 + $0xe0] sm:$0xff] %v6530
              %v6532 = vld [vmem:[%s6472 + $0xe8] sm:$0xff]
              %6533 = vst [vmem:[%s6473 + $0xe8] sm:$0xff] %v6532
              %v6534 = vld [vmem:[%s6472 + $0xf0] sm:$0xff]
              %6535 = vst [vmem:[%s6473 + $0xf0] sm:$0xff] %v6534
              %v6536 = vld [vmem:[%s6472 + $0xf8] sm:$0xff]
              %6537 = vst [vmem:[%s6473 + $0xf8] sm:$0xff] %v6536
              %v6538 = vld [vmem:[%s6472 + $0x100] sm:$0xff]
              %6539 = vst [vmem:[%s6473 + $0x100] sm:$0xff] %v6538
              %v6540 = vld [vmem:[%s6472 + $0x108] sm:$0xff]
              %6541 = vst [vmem:[%s6473 + $0x108] sm:$0xff] %v6540
              %v6542 = vld [vmem:[%s6472 + $0x110] sm:$0xff]
              %6543 = vst [vmem:[%s6473 + $0x110] sm:$0xff] %v6542
              %v6544 = vld [vmem:[%s6472 + $0x118] sm:$0xff]
              %6545 = vst [vmem:[%s6473 + $0x118] sm:$0xff] %v6544
              %v6546 = vld [vmem:[%s6472 + $0x120] sm:$0xff]
              %6547 = vst [vmem:[%s6473 + $0x120] sm:$0xff] %v6546
              %v6548 = vld [vmem:[%s6472 + $0x128] sm:$0xff]
              %6549 = vst [vmem:[%s6473 + $0x128] sm:$0xff] %v6548
              %v6550 = vld [vmem:[%s6472 + $0x130] sm:$0xff]
              %6551 = vst [vmem:[%s6473 + $0x130] sm:$0xff] %v6550
              %v6552 = vld [vmem:[%s6472 + $0x138] sm:$0xff]
              %6553 = vst [vmem:[%s6473 + $0x138] sm:$0xff] %v6552
              %v6554 = vld [vmem:[%s6472 + $0x140] sm:$0xff]
              %6555 = vst [vmem:[%s6473 + $0x140] sm:$0xff] %v6554
              %v6556 = vld [vmem:[%s6472 + $0x148] sm:$0xff]
              %6557 = vst [vmem:[%s6473 + $0x148] sm:$0xff] %v6556
              %v6558 = vld [vmem:[%s6472 + $0x150] sm:$0xff]
              %6559 = vst [vmem:[%s6473 + $0x150] sm:$0xff] %v6558
              %v6560 = vld [vmem:[%s6472 + $0x158] sm:$0xff]
              %6561 = vst [vmem:[%s6473 + $0x158] sm:$0xff] %v6560
              %v6562 = vld [vmem:[%s6472 + $0x160] sm:$0xff]
              %6563 = vst [vmem:[%s6473 + $0x160] sm:$0xff] %v6562
              %v6564 = vld [vmem:[%s6472 + $0x168] sm:$0xff]
              %6565 = vst [vmem:[%s6473 + $0x168] sm:$0xff] %v6564
              %v6566 = vld [vmem:[%s6472 + $0x170] sm:$0xff]
              %6567 = vst [vmem:[%s6473 + $0x170] sm:$0xff] %v6566
              %v6568 = vld [vmem:[%s6472 + $0x178] sm:$0xff]
              %6569 = vst [vmem:[%s6473 + $0x178] sm:$0xff] %v6568
              %v6570 = vld [vmem:[%s6472 + $0x180] sm:$0xff]
              %6571 = vst [vmem:[%s6473 + $0x180] sm:$0xff] %v6570
              %v6572 = vld [vmem:[%s6472 + $0x188] sm:$0xff]
              %6573 = vst [vmem:[%s6473 + $0x188] sm:$0xff] %v6572
              %v6574 = vld [vmem:[%s6472 + $0x190] sm:$0xff]
              %6575 = vst [vmem:[%s6473 + $0x190] sm:$0xff] %v6574
              %v6576 = vld [vmem:[%s6472 + $0x198] sm:$0xff]
              %6577 = vst [vmem:[%s6473 + $0x198] sm:$0xff] %v6576
              %v6578 = vld [vmem:[%s6472 + $0x1a0] sm:$0xff]
              %6579 = vst [vmem:[%s6473 + $0x1a0] sm:$0xff] %v6578
              %v6580 = vld [vmem:[%s6472 + $0x1a8] sm:$0xff]
              %6581 = vst [vmem:[%s6473 + $0x1a8] sm:$0xff] %v6580
              %v6582 = vld [vmem:[%s6472 + $0x1b0] sm:$0xff]
              %6583 = vst [vmem:[%s6473 + $0x1b0] sm:$0xff] %v6582
              %v6584 = vld [vmem:[%s6472 + $0x1b8] sm:$0xff]
              %6585 = vst [vmem:[%s6473 + $0x1b8] sm:$0xff] %v6584
              %v6586 = vld [vmem:[%s6472 + $0x1c0] sm:$0xff]
              %6587 = vst [vmem:[%s6473 + $0x1c0] sm:$0xff] %v6586
              %v6588 = vld [vmem:[%s6472 + $0x1c8] sm:$0xff]
              %6589 = vst [vmem:[%s6473 + $0x1c8] sm:$0xff] %v6588
              %v6590 = vld [vmem:[%s6472 + $0x1d0] sm:$0xff]
              %6591 = vst [vmem:[%s6473 + $0x1d0] sm:$0xff] %v6590
              %v6592 = vld [vmem:[%s6472 + $0x1d8] sm:$0xff]
              %6593 = vst [vmem:[%s6473 + $0x1d8] sm:$0xff] %v6592
              %v6594 = vld [vmem:[%s6472 + $0x1e0] sm:$0xff]
              %6595 = vst [vmem:[%s6473 + $0x1e0] sm:$0xff] %v6594
              %v6596 = vld [vmem:[%s6472 + $0x1e8] sm:$0xff]
              %6597 = vst [vmem:[%s6473 + $0x1e8] sm:$0xff] %v6596
              %v6598 = vld [vmem:[%s6472 + $0x1f0] sm:$0xff]
              %6599 = vst [vmem:[%s6473 + $0x1f0] sm:$0xff] %v6598
              %v6600 = vld [vmem:[%s6472 + $0x1f8] sm:$0xff]
              %6601 = vst [vmem:[%s6473 + $0x1f8] sm:$0xff] %v6600
              %v6602 = vld [vmem:[%s6472 + $0x200] sm:$0xff]
              %6603 = vst [vmem:[%s6473 + $0x200] sm:$0xff] %v6602
              %v6604 = vld [vmem:[%s6472 + $0x208] sm:$0xff]
              %6605 = vst [vmem:[%s6473 + $0x208] sm:$0xff] %v6604
              %v6606 = vld [vmem:[%s6472 + $0x210] sm:$0xff]
              %6607 = vst [vmem:[%s6473 + $0x210] sm:$0xff] %v6606
              %v6608 = vld [vmem:[%s6472 + $0x218] sm:$0xff]
              %6609 = vst [vmem:[%s6473 + $0x218] sm:$0xff] %v6608
              %v6610 = vld [vmem:[%s6472 + $0x220] sm:$0xff]
              %6611 = vst [vmem:[%s6473 + $0x220] sm:$0xff] %v6610
              %v6612 = vld [vmem:[%s6472 + $0x228] sm:$0xff]
              %6613 = vst [vmem:[%s6473 + $0x228] sm:$0xff] %v6612
              %v6614 = vld [vmem:[%s6472 + $0x230] sm:$0xff]
              %6615 = vst [vmem:[%s6473 + $0x230] sm:$0xff] %v6614
              %v6616 = vld [vmem:[%s6472 + $0x238] sm:$0xff]
              %6617 = vst [vmem:[%s6473 + $0x238] sm:$0xff] %v6616
              %v6618 = vld [vmem:[%s6472 + $0x240] sm:$0xff]
              %6619 = vst [vmem:[%s6473 + $0x240] sm:$0xff] %v6618
              %v6620 = vld [vmem:[%s6472 + $0x248] sm:$0xff]
              %6621 = vst [vmem:[%s6473 + $0x248] sm:$0xff] %v6620
              %v6622 = vld [vmem:[%s6472 + $0x250] sm:$0xff]
              %6623 = vst [vmem:[%s6473 + $0x250] sm:$0xff] %v6622
              %v6624 = vld [vmem:[%s6472 + $0x258] sm:$0xff]
              %6625 = vst [vmem:[%s6473 + $0x258] sm:$0xff] %v6624
              %v6626 = vld [vmem:[%s6472 + $0x260] sm:$0xff]
              %6627 = vst [vmem:[%s6473 + $0x260] sm:$0xff] %v6626
              %v6628 = vld [vmem:[%s6472 + $0x268] sm:$0xff]
              %6629 = vst [vmem:[%s6473 + $0x268] sm:$0xff] %v6628
              %v6630 = vld [vmem:[%s6472 + $0x270] sm:$0xff]
              %6631 = vst [vmem:[%s6473 + $0x270] sm:$0xff] %v6630
              %v6632 = vld [vmem:[%s6472 + $0x278] sm:$0xff]
              %6633 = vst [vmem:[%s6473 + $0x278] sm:$0xff] %v6632
              %v6634 = vld [vmem:[%s6472 + $0x280] sm:$0xff]
              %6635 = vst [vmem:[%s6473 + $0x280] sm:$0xff] %v6634
              %v6636 = vld [vmem:[%s6472 + $0x288] sm:$0xff]
              %6637 = vst [vmem:[%s6473 + $0x288] sm:$0xff] %v6636
              %v6638 = vld [vmem:[%s6472 + $0x290] sm:$0xff]
              %6639 = vst [vmem:[%s6473 + $0x290] sm:$0xff] %v6638
              %v6640 = vld [vmem:[%s6472 + $0x298] sm:$0xff]
              %6641 = vst [vmem:[%s6473 + $0x298] sm:$0xff] %v6640
              %v6642 = vld [vmem:[%s6472 + $0x2a0] sm:$0xff]
              %6643 = vst [vmem:[%s6473 + $0x2a0] sm:$0xff] %v6642
              %v6644 = vld [vmem:[%s6472 + $0x2a8] sm:$0xff]
              %6645 = vst [vmem:[%s6473 + $0x2a8] sm:$0xff] %v6644
              %v6646 = vld [vmem:[%s6472 + $0x2b0] sm:$0xff]
              %6647 = vst [vmem:[%s6473 + $0x2b0] sm:$0xff] %v6646
              %v6648 = vld [vmem:[%s6472 + $0x2b8] sm:$0xff]
              %6649 = vst [vmem:[%s6473 + $0x2b8] sm:$0xff] %v6648
              %v6650 = vld [vmem:[%s6472 + $0x2c0] sm:$0xff]
              %6651 = vst [vmem:[%s6473 + $0x2c0] sm:$0xff] %v6650
              %v6652 = vld [vmem:[%s6472 + $0x2c8] sm:$0xff]
              %6653 = vst [vmem:[%s6473 + $0x2c8] sm:$0xff] %v6652
              %v6654 = vld [vmem:[%s6472 + $0x2d0] sm:$0xff]
              %6655 = vst [vmem:[%s6473 + $0x2d0] sm:$0xff] %v6654
              %v6656 = vld [vmem:[%s6472 + $0x2d8] sm:$0xff]
              %6657 = vst [vmem:[%s6473 + $0x2d8] sm:$0xff] %v6656
              %v6658 = vld [vmem:[%s6472 + $0x2e0] sm:$0xff]
              %6659 = vst [vmem:[%s6473 + $0x2e0] sm:$0xff] %v6658
              %v6660 = vld [vmem:[%s6472 + $0x2e8] sm:$0xff]
              %6661 = vst [vmem:[%s6473 + $0x2e8] sm:$0xff] %v6660
              %v6662 = vld [vmem:[%s6472 + $0x2f0] sm:$0xff]
              %6663 = vst [vmem:[%s6473 + $0x2f0] sm:$0xff] %v6662
              %v6664 = vld [vmem:[%s6472 + $0x2f8] sm:$0xff]
              %6665 = vst [vmem:[%s6473 + $0x2f8] sm:$0xff] %v6664
              %v6666 = vld [vmem:[%s6472 + $0x300] sm:$0xff]
              %6667 = vst [vmem:[%s6473 + $0x300] sm:$0xff] %v6666
              %v6668 = vld [vmem:[%s6472 + $0x308] sm:$0xff]
              %6669 = vst [vmem:[%s6473 + $0x308] sm:$0xff] %v6668
              %v6670 = vld [vmem:[%s6472 + $0x310] sm:$0xff]
              %6671 = vst [vmem:[%s6473 + $0x310] sm:$0xff] %v6670
              %v6672 = vld [vmem:[%s6472 + $0x318] sm:$0xff]
              %6673 = vst [vmem:[%s6473 + $0x318] sm:$0xff] %v6672
              %v6674 = vld [vmem:[%s6472 + $0x320] sm:$0xff]
              %6675 = vst [vmem:[%s6473 + $0x320] sm:$0xff] %v6674
              %v6676 = vld [vmem:[%s6472 + $0x328] sm:$0xff]
              %6677 = vst [vmem:[%s6473 + $0x328] sm:$0xff] %v6676
              %v6678 = vld [vmem:[%s6472 + $0x330] sm:$0xff]
              %6679 = vst [vmem:[%s6473 + $0x330] sm:$0xff] %v6678
              %v6680 = vld [vmem:[%s6472 + $0x338] sm:$0xff]
              %6681 = vst [vmem:[%s6473 + $0x338] sm:$0xff] %v6680
              %v6682 = vld [vmem:[%s6472 + $0x340] sm:$0xff]
              %6683 = vst [vmem:[%s6473 + $0x340] sm:$0xff] %v6682
              %v6684 = vld [vmem:[%s6472 + $0x348] sm:$0xff]
              %6685 = vst [vmem:[%s6473 + $0x348] sm:$0xff] %v6684
              %v6686 = vld [vmem:[%s6472 + $0x350] sm:$0xff]
              %6687 = vst [vmem:[%s6473 + $0x350] sm:$0xff] %v6686
              %v6688 = vld [vmem:[%s6472 + $0x358] sm:$0xff]
              %6689 = vst [vmem:[%s6473 + $0x358] sm:$0xff] %v6688
              %v6690 = vld [vmem:[%s6472 + $0x360] sm:$0xff]
              %6691 = vst [vmem:[%s6473 + $0x360] sm:$0xff] %v6690
              %v6692 = vld [vmem:[%s6472 + $0x368] sm:$0xff]
              %6693 = vst [vmem:[%s6473 + $0x368] sm:$0xff] %v6692
              %v6694 = vld [vmem:[%s6472 + $0x370] sm:$0xff]
              %6695 = vst [vmem:[%s6473 + $0x370] sm:$0xff] %v6694
              %v6696 = vld [vmem:[%s6472 + $0x378] sm:$0xff]
              %6697 = vst [vmem:[%s6473 + $0x378] sm:$0xff] %v6696
              %v6698 = vld [vmem:[%s6472 + $0x380] sm:$0xff]
              %6699 = vst [vmem:[%s6473 + $0x380] sm:$0xff] %v6698
              %v6700 = vld [vmem:[%s6472 + $0x388] sm:$0xff]
              %6701 = vst [vmem:[%s6473 + $0x388] sm:$0xff] %v6700
              %v6702 = vld [vmem:[%s6472 + $0x390] sm:$0xff]
              %6703 = vst [vmem:[%s6473 + $0x390] sm:$0xff] %v6702
              %v6704 = vld [vmem:[%s6472 + $0x398] sm:$0xff]
              %6705 = vst [vmem:[%s6473 + $0x398] sm:$0xff] %v6704
              %v6706 = vld [vmem:[%s6472 + $0x3a0] sm:$0xff]
              %6707 = vst [vmem:[%s6473 + $0x3a0] sm:$0xff] %v6706
              %v6708 = vld [vmem:[%s6472 + $0x3a8] sm:$0xff]
              %6709 = vst [vmem:[%s6473 + $0x3a8] sm:$0xff] %v6708
              %v6710 = vld [vmem:[%s6472 + $0x3b0] sm:$0xff]
              %6711 = vst [vmem:[%s6473 + $0x3b0] sm:$0xff] %v6710
              %v6712 = vld [vmem:[%s6472 + $0x3b8] sm:$0xff]
              %6713 = vst [vmem:[%s6473 + $0x3b8] sm:$0xff] %v6712
              %v6714 = vld [vmem:[%s6472 + $0x3c0] sm:$0xff]
              %6715 = vst [vmem:[%s6473 + $0x3c0] sm:$0xff] %v6714
              %v6716 = vld [vmem:[%s6472 + $0x3c8] sm:$0xff]
              %6717 = vst [vmem:[%s6473 + $0x3c8] sm:$0xff] %v6716
              %v6718 = vld [vmem:[%s6472 + $0x3d0] sm:$0xff]
              %6719 = vst [vmem:[%s6473 + $0x3d0] sm:$0xff] %v6718
              %v6720 = vld [vmem:[%s6472 + $0x3d8] sm:$0xff]
              %6721 = vst [vmem:[%s6473 + $0x3d8] sm:$0xff] %v6720
              %v6722 = vld [vmem:[%s6472 + $0x3e0] sm:$0xff]
              %6723 = vst [vmem:[%s6473 + $0x3e0] sm:$0xff] %v6722
            $region93: #{tpu_custom_call.1} parent=87 // loop_footer
              %s6471 = sadd.s32 1, %s6467
            $region94: #{tpu_custom_call.1} parent=87 // loop_footer_branch
              %6466 = sbr.rel target = $region90
            $region95: #{tpu_custom_call.1} parent=87 // loop_exit
              _
          $region88: #{tpu_custom_call.1} parent=72 // pred_fallthru
            _
          // Predicated region
          $region96: #{tpu_custom_call.1} parent=72 // pred_check
            _
          $region97: #{tpu_custom_call.1} parent=72 // pred_check_branch
            %6725 = sbr.rel target = $region99
          $region98: #{tpu_custom_call.1} parent=72 // pred_region
            _
          $region99: #{tpu_custom_call.1} parent=72 // pred_fallthru
            _
        $region73: #{tpu_custom_call.1} parent=68 // pred_fallthru
          _
        // Predicated region
        $region74: #{tpu_custom_call.1} parent=68 // pred_check
          _
        $region75: #{tpu_custom_call.1} parent=68 // pred_check_branch
          %6203 = sbr.rel target = $region77
        $region76: #{tpu_custom_call.1} parent=68 // pred_region
          %s6205 = ssub.s32 256, 1
          loop: start=0, step=1, limit=1
          $region78: #{tpu_custom_call.1} parent=76 // loop_pre_header
            _
          $region79: #{tpu_custom_call.1} parent=76 // loop_header
            %s6207 = sphi 0, %s6211
            %p6208 = scmp.ge.s32.totalorder %s6207, 1
            %s6212 = sphi [#allocation2], [#allocation2]
            %s6213 = sphi %s15, %s15
          $region80: #{tpu_custom_call.1} parent=76 // loop_header_branch
            %6210 = sbr.rel (%p6208) target = $region84
          $region81: #{tpu_custom_call.1} parent=76 // loop_body
            %v6214 = vld [vmem:[%s6212] sm:%s6205]
            %6215 = vst [vmem:[%s6213] sm:%s6205] %v6214
            %v6216 = vld [vmem:[%s6212 + $0x8] sm:%s6205]
            %6217 = vst [vmem:[%s6213 + $0x8] sm:%s6205] %v6216
            %v6218 = vld [vmem:[%s6212 + $0x10] sm:%s6205]
            %6219 = vst [vmem:[%s6213 + $0x10] sm:%s6205] %v6218
            %v6220 = vld [vmem:[%s6212 + $0x18] sm:%s6205]
            %6221 = vst [vmem:[%s6213 + $0x18] sm:%s6205] %v6220
            %v6222 = vld [vmem:[%s6212 + $0x20] sm:%s6205]
            %6223 = vst [vmem:[%s6213 + $0x20] sm:%s6205] %v6222
            %v6224 = vld [vmem:[%s6212 + $0x28] sm:%s6205]
            %6225 = vst [vmem:[%s6213 + $0x28] sm:%s6205] %v6224
            %v6226 = vld [vmem:[%s6212 + $0x30] sm:%s6205]
            %6227 = vst [vmem:[%s6213 + $0x30] sm:%s6205] %v6226
            %v6228 = vld [vmem:[%s6212 + $0x38] sm:%s6205]
            %6229 = vst [vmem:[%s6213 + $0x38] sm:%s6205] %v6228
            %v6230 = vld [vmem:[%s6212 + $0x40] sm:%s6205]
            %6231 = vst [vmem:[%s6213 + $0x40] sm:%s6205] %v6230
            %v6232 = vld [vmem:[%s6212 + $0x48] sm:%s6205]
            %6233 = vst [vmem:[%s6213 + $0x48] sm:%s6205] %v6232
            %v6234 = vld [vmem:[%s6212 + $0x50] sm:%s6205]
            %6235 = vst [vmem:[%s6213 + $0x50] sm:%s6205] %v6234
            %v6236 = vld [vmem:[%s6212 + $0x58] sm:%s6205]
            %6237 = vst [vmem:[%s6213 + $0x58] sm:%s6205] %v6236
            %v6238 = vld [vmem:[%s6212 + $0x60] sm:%s6205]
            %6239 = vst [vmem:[%s6213 + $0x60] sm:%s6205] %v6238
            %v6240 = vld [vmem:[%s6212 + $0x68] sm:%s6205]
            %6241 = vst [vmem:[%s6213 + $0x68] sm:%s6205] %v6240
            %v6242 = vld [vmem:[%s6212 + $0x70] sm:%s6205]
            %6243 = vst [vmem:[%s6213 + $0x70] sm:%s6205] %v6242
            %v6244 = vld [vmem:[%s6212 + $0x78] sm:%s6205]
            %6245 = vst [vmem:[%s6213 + $0x78] sm:%s6205] %v6244
            %v6246 = vld [vmem:[%s6212 + $0x80] sm:%s6205]
            %6247 = vst [vmem:[%s6213 + $0x80] sm:%s6205] %v6246
            %v6248 = vld [vmem:[%s6212 + $0x88] sm:%s6205]
            %6249 = vst [vmem:[%s6213 + $0x88] sm:%s6205] %v6248
            %v6250 = vld [vmem:[%s6212 + $0x90] sm:%s6205]
            %6251 = vst [vmem:[%s6213 + $0x90] sm:%s6205] %v6250
            %v6252 = vld [vmem:[%s6212 + $0x98] sm:%s6205]
            %6253 = vst [vmem:[%s6213 + $0x98] sm:%s6205] %v6252
            %v6254 = vld [vmem:[%s6212 + $0xa0] sm:%s6205]
            %6255 = vst [vmem:[%s6213 + $0xa0] sm:%s6205] %v6254
            %v6256 = vld [vmem:[%s6212 + $0xa8] sm:%s6205]
            %6257 = vst [vmem:[%s6213 + $0xa8] sm:%s6205] %v6256
            %v6258 = vld [vmem:[%s6212 + $0xb0] sm:%s6205]
            %6259 = vst [vmem:[%s6213 + $0xb0] sm:%s6205] %v6258
            %v6260 = vld [vmem:[%s6212 + $0xb8] sm:%s6205]
            %6261 = vst [vmem:[%s6213 + $0xb8] sm:%s6205] %v6260
            %v6262 = vld [vmem:[%s6212 + $0xc0] sm:%s6205]
            %6263 = vst [vmem:[%s6213 + $0xc0] sm:%s6205] %v6262
            %v6264 = vld [vmem:[%s6212 + $0xc8] sm:%s6205]
            %6265 = vst [vmem:[%s6213 + $0xc8] sm:%s6205] %v6264
            %v6266 = vld [vmem:[%s6212 + $0xd0] sm:%s6205]
            %6267 = vst [vmem:[%s6213 + $0xd0] sm:%s6205] %v6266
            %v6268 = vld [vmem:[%s6212 + $0xd8] sm:%s6205]
            %6269 = vst [vmem:[%s6213 + $0xd8] sm:%s6205] %v6268
            %v6270 = vld [vmem:[%s6212 + $0xe0] sm:%s6205]
            %6271 = vst [vmem:[%s6213 + $0xe0] sm:%s6205] %v6270
            %v6272 = vld [vmem:[%s6212 + $0xe8] sm:%s6205]
            %6273 = vst [vmem:[%s6213 + $0xe8] sm:%s6205] %v6272
            %v6274 = vld [vmem:[%s6212 + $0xf0] sm:%s6205]
            %6275 = vst [vmem:[%s6213 + $0xf0] sm:%s6205] %v6274
            %v6276 = vld [vmem:[%s6212 + $0xf8] sm:%s6205]
            %6277 = vst [vmem:[%s6213 + $0xf8] sm:%s6205] %v6276
            %v6278 = vld [vmem:[%s6212 + $0x100] sm:%s6205]
            %6279 = vst [vmem:[%s6213 + $0x100] sm:%s6205] %v6278
            %v6280 = vld [vmem:[%s6212 + $0x108] sm:%s6205]
            %6281 = vst [vmem:[%s6213 + $0x108] sm:%s6205] %v6280
            %v6282 = vld [vmem:[%s6212 + $0x110] sm:%s6205]
            %6283 = vst [vmem:[%s6213 + $0x110] sm:%s6205] %v6282
            %v6284 = vld [vmem:[%s6212 + $0x118] sm:%s6205]
            %6285 = vst [vmem:[%s6213 + $0x118] sm:%s6205] %v6284
            %v6286 = vld [vmem:[%s6212 + $0x120] sm:%s6205]
            %6287 = vst [vmem:[%s6213 + $0x120] sm:%s6205] %v6286
            %v6288 = vld [vmem:[%s6212 + $0x128] sm:%s6205]
            %6289 = vst [vmem:[%s6213 + $0x128] sm:%s6205] %v6288
            %v6290 = vld [vmem:[%s6212 + $0x130] sm:%s6205]
            %6291 = vst [vmem:[%s6213 + $0x130] sm:%s6205] %v6290
            %v6292 = vld [vmem:[%s6212 + $0x138] sm:%s6205]
            %6293 = vst [vmem:[%s6213 + $0x138] sm:%s6205] %v6292
            %v6294 = vld [vmem:[%s6212 + $0x140] sm:%s6205]
            %6295 = vst [vmem:[%s6213 + $0x140] sm:%s6205] %v6294
            %v6296 = vld [vmem:[%s6212 + $0x148] sm:%s6205]
            %6297 = vst [vmem:[%s6213 + $0x148] sm:%s6205] %v6296
            %v6298 = vld [vmem:[%s6212 + $0x150] sm:%s6205]
            %6299 = vst [vmem:[%s6213 + $0x150] sm:%s6205] %v6298
            %v6300 = vld [vmem:[%s6212 + $0x158] sm:%s6205]
            %6301 = vst [vmem:[%s6213 + $0x158] sm:%s6205] %v6300
            %v6302 = vld [vmem:[%s6212 + $0x160] sm:%s6205]
            %6303 = vst [vmem:[%s6213 + $0x160] sm:%s6205] %v6302
            %v6304 = vld [vmem:[%s6212 + $0x168] sm:%s6205]
            %6305 = vst [vmem:[%s6213 + $0x168] sm:%s6205] %v6304
            %v6306 = vld [vmem:[%s6212 + $0x170] sm:%s6205]
            %6307 = vst [vmem:[%s6213 + $0x170] sm:%s6205] %v6306
            %v6308 = vld [vmem:[%s6212 + $0x178] sm:%s6205]
            %6309 = vst [vmem:[%s6213 + $0x178] sm:%s6205] %v6308
            %v6310 = vld [vmem:[%s6212 + $0x180] sm:%s6205]
            %6311 = vst [vmem:[%s6213 + $0x180] sm:%s6205] %v6310
            %v6312 = vld [vmem:[%s6212 + $0x188] sm:%s6205]
            %6313 = vst [vmem:[%s6213 + $0x188] sm:%s6205] %v6312
            %v6314 = vld [vmem:[%s6212 + $0x190] sm:%s6205]
            %6315 = vst [vmem:[%s6213 + $0x190] sm:%s6205] %v6314
            %v6316 = vld [vmem:[%s6212 + $0x198] sm:%s6205]
            %6317 = vst [vmem:[%s6213 + $0x198] sm:%s6205] %v6316
            %v6318 = vld [vmem:[%s6212 + $0x1a0] sm:%s6205]
            %6319 = vst [vmem:[%s6213 + $0x1a0] sm:%s6205] %v6318
            %v6320 = vld [vmem:[%s6212 + $0x1a8] sm:%s6205]
            %6321 = vst [vmem:[%s6213 + $0x1a8] sm:%s6205] %v6320
            %v6322 = vld [vmem:[%s6212 + $0x1b0] sm:%s6205]
            %6323 = vst [vmem:[%s6213 + $0x1b0] sm:%s6205] %v6322
            %v6324 = vld [vmem:[%s6212 + $0x1b8] sm:%s6205]
            %6325 = vst [vmem:[%s6213 + $0x1b8] sm:%s6205] %v6324
            %v6326 = vld [vmem:[%s6212 + $0x1c0] sm:%s6205]
            %6327 = vst [vmem:[%s6213 + $0x1c0] sm:%s6205] %v6326
            %v6328 = vld [vmem:[%s6212 + $0x1c8] sm:%s6205]
            %6329 = vst [vmem:[%s6213 + $0x1c8] sm:%s6205] %v6328
            %v6330 = vld [vmem:[%s6212 + $0x1d0] sm:%s6205]
            %6331 = vst [vmem:[%s6213 + $0x1d0] sm:%s6205] %v6330
            %v6332 = vld [vmem:[%s6212 + $0x1d8] sm:%s6205]
            %6333 = vst [vmem:[%s6213 + $0x1d8] sm:%s6205] %v6332
            %v6334 = vld [vmem:[%s6212 + $0x1e0] sm:%s6205]
            %6335 = vst [vmem:[%s6213 + $0x1e0] sm:%s6205] %v6334
            %v6336 = vld [vmem:[%s6212 + $0x1e8] sm:%s6205]
            %6337 = vst [vmem:[%s6213 + $0x1e8] sm:%s6205] %v6336
            %v6338 = vld [vmem:[%s6212 + $0x1f0] sm:%s6205]
            %6339 = vst [vmem:[%s6213 + $0x1f0] sm:%s6205] %v6338
            %v6340 = vld [vmem:[%s6212 + $0x1f8] sm:%s6205]
            %6341 = vst [vmem:[%s6213 + $0x1f8] sm:%s6205] %v6340
            %v6342 = vld [vmem:[%s6212 + $0x200] sm:%s6205]
            %6343 = vst [vmem:[%s6213 + $0x200] sm:%s6205] %v6342
            %v6344 = vld [vmem:[%s6212 + $0x208] sm:%s6205]
            %6345 = vst [vmem:[%s6213 + $0x208] sm:%s6205] %v6344
            %v6346 = vld [vmem:[%s6212 + $0x210] sm:%s6205]
            %6347 = vst [vmem:[%s6213 + $0x210] sm:%s6205] %v6346
            %v6348 = vld [vmem:[%s6212 + $0x218] sm:%s6205]
            %6349 = vst [vmem:[%s6213 + $0x218] sm:%s6205] %v6348
            %v6350 = vld [vmem:[%s6212 + $0x220] sm:%s6205]
            %6351 = vst [vmem:[%s6213 + $0x220] sm:%s6205] %v6350
            %v6352 = vld [vmem:[%s6212 + $0x228] sm:%s6205]
            %6353 = vst [vmem:[%s6213 + $0x228] sm:%s6205] %v6352
            %v6354 = vld [vmem:[%s6212 + $0x230] sm:%s6205]
            %6355 = vst [vmem:[%s6213 + $0x230] sm:%s6205] %v6354
            %v6356 = vld [vmem:[%s6212 + $0x238] sm:%s6205]
            %6357 = vst [vmem:[%s6213 + $0x238] sm:%s6205] %v6356
            %v6358 = vld [vmem:[%s6212 + $0x240] sm:%s6205]
            %6359 = vst [vmem:[%s6213 + $0x240] sm:%s6205] %v6358
            %v6360 = vld [vmem:[%s6212 + $0x248] sm:%s6205]
            %6361 = vst [vmem:[%s6213 + $0x248] sm:%s6205] %v6360
            %v6362 = vld [vmem:[%s6212 + $0x250] sm:%s6205]
            %6363 = vst [vmem:[%s6213 + $0x250] sm:%s6205] %v6362
            %v6364 = vld [vmem:[%s6212 + $0x258] sm:%s6205]
            %6365 = vst [vmem:[%s6213 + $0x258] sm:%s6205] %v6364
            %v6366 = vld [vmem:[%s6212 + $0x260] sm:%s6205]
            %6367 = vst [vmem:[%s6213 + $0x260] sm:%s6205] %v6366
            %v6368 = vld [vmem:[%s6212 + $0x268] sm:%s6205]
            %6369 = vst [vmem:[%s6213 + $0x268] sm:%s6205] %v6368
            %v6370 = vld [vmem:[%s6212 + $0x270] sm:%s6205]
            %6371 = vst [vmem:[%s6213 + $0x270] sm:%s6205] %v6370
            %v6372 = vld [vmem:[%s6212 + $0x278] sm:%s6205]
            %6373 = vst [vmem:[%s6213 + $0x278] sm:%s6205] %v6372
            %v6374 = vld [vmem:[%s6212 + $0x280] sm:%s6205]
            %6375 = vst [vmem:[%s6213 + $0x280] sm:%s6205] %v6374
            %v6376 = vld [vmem:[%s6212 + $0x288] sm:%s6205]
            %6377 = vst [vmem:[%s6213 + $0x288] sm:%s6205] %v6376
            %v6378 = vld [vmem:[%s6212 + $0x290] sm:%s6205]
            %6379 = vst [vmem:[%s6213 + $0x290] sm:%s6205] %v6378
            %v6380 = vld [vmem:[%s6212 + $0x298] sm:%s6205]
            %6381 = vst [vmem:[%s6213 + $0x298] sm:%s6205] %v6380
            %v6382 = vld [vmem:[%s6212 + $0x2a0] sm:%s6205]
            %6383 = vst [vmem:[%s6213 + $0x2a0] sm:%s6205] %v6382
            %v6384 = vld [vmem:[%s6212 + $0x2a8] sm:%s6205]
            %6385 = vst [vmem:[%s6213 + $0x2a8] sm:%s6205] %v6384
            %v6386 = vld [vmem:[%s6212 + $0x2b0] sm:%s6205]
            %6387 = vst [vmem:[%s6213 + $0x2b0] sm:%s6205] %v6386
            %v6388 = vld [vmem:[%s6212 + $0x2b8] sm:%s6205]
            %6389 = vst [vmem:[%s6213 + $0x2b8] sm:%s6205] %v6388
            %v6390 = vld [vmem:[%s6212 + $0x2c0] sm:%s6205]
            %6391 = vst [vmem:[%s6213 + $0x2c0] sm:%s6205] %v6390
            %v6392 = vld [vmem:[%s6212 + $0x2c8] sm:%s6205]
            %6393 = vst [vmem:[%s6213 + $0x2c8] sm:%s6205] %v6392
            %v6394 = vld [vmem:[%s6212 + $0x2d0] sm:%s6205]
            %6395 = vst [vmem:[%s6213 + $0x2d0] sm:%s6205] %v6394
            %v6396 = vld [vmem:[%s6212 + $0x2d8] sm:%s6205]
            %6397 = vst [vmem:[%s6213 + $0x2d8] sm:%s6205] %v6396
            %v6398 = vld [vmem:[%s6212 + $0x2e0] sm:%s6205]
            %6399 = vst [vmem:[%s6213 + $0x2e0] sm:%s6205] %v6398
            %v6400 = vld [vmem:[%s6212 + $0x2e8] sm:%s6205]
            %6401 = vst [vmem:[%s6213 + $0x2e8] sm:%s6205] %v6400
            %v6402 = vld [vmem:[%s6212 + $0x2f0] sm:%s6205]
            %6403 = vst [vmem:[%s6213 + $0x2f0] sm:%s6205] %v6402
            %v6404 = vld [vmem:[%s6212 + $0x2f8] sm:%s6205]
            %6405 = vst [vmem:[%s6213 + $0x2f8] sm:%s6205] %v6404
            %v6406 = vld [vmem:[%s6212 + $0x300] sm:%s6205]
            %6407 = vst [vmem:[%s6213 + $0x300] sm:%s6205] %v6406
            %v6408 = vld [vmem:[%s6212 + $0x308] sm:%s6205]
            %6409 = vst [vmem:[%s6213 + $0x308] sm:%s6205] %v6408
            %v6410 = vld [vmem:[%s6212 + $0x310] sm:%s6205]
            %6411 = vst [vmem:[%s6213 + $0x310] sm:%s6205] %v6410
            %v6412 = vld [vmem:[%s6212 + $0x318] sm:%s6205]
            %6413 = vst [vmem:[%s6213 + $0x318] sm:%s6205] %v6412
            %v6414 = vld [vmem:[%s6212 + $0x320] sm:%s6205]
            %6415 = vst [vmem:[%s6213 + $0x320] sm:%s6205] %v6414
            %v6416 = vld [vmem:[%s6212 + $0x328] sm:%s6205]
            %6417 = vst [vmem:[%s6213 + $0x328] sm:%s6205] %v6416
            %v6418 = vld [vmem:[%s6212 + $0x330] sm:%s6205]
            %6419 = vst [vmem:[%s6213 + $0x330] sm:%s6205] %v6418
            %v6420 = vld [vmem:[%s6212 + $0x338] sm:%s6205]
            %6421 = vst [vmem:[%s6213 + $0x338] sm:%s6205] %v6420
            %v6422 = vld [vmem:[%s6212 + $0x340] sm:%s6205]
            %6423 = vst [vmem:[%s6213 + $0x340] sm:%s6205] %v6422
            %v6424 = vld [vmem:[%s6212 + $0x348] sm:%s6205]
            %6425 = vst [vmem:[%s6213 + $0x348] sm:%s6205] %v6424
            %v6426 = vld [vmem:[%s6212 + $0x350] sm:%s6205]
            %6427 = vst [vmem:[%s6213 + $0x350] sm:%s6205] %v6426
            %v6428 = vld [vmem:[%s6212 + $0x358] sm:%s6205]
            %6429 = vst [vmem:[%s6213 + $0x358] sm:%s6205] %v6428
            %v6430 = vld [vmem:[%s6212 + $0x360] sm:%s6205]
            %6431 = vst [vmem:[%s6213 + $0x360] sm:%s6205] %v6430
            %v6432 = vld [vmem:[%s6212 + $0x368] sm:%s6205]
            %6433 = vst [vmem:[%s6213 + $0x368] sm:%s6205] %v6432
            %v6434 = vld [vmem:[%s6212 + $0x370] sm:%s6205]
            %6435 = vst [vmem:[%s6213 + $0x370] sm:%s6205] %v6434
            %v6436 = vld [vmem:[%s6212 + $0x378] sm:%s6205]
            %6437 = vst [vmem:[%s6213 + $0x378] sm:%s6205] %v6436
            %v6438 = vld [vmem:[%s6212 + $0x380] sm:%s6205]
            %6439 = vst [vmem:[%s6213 + $0x380] sm:%s6205] %v6438
            %v6440 = vld [vmem:[%s6212 + $0x388] sm:%s6205]
            %6441 = vst [vmem:[%s6213 + $0x388] sm:%s6205] %v6440
            %v6442 = vld [vmem:[%s6212 + $0x390] sm:%s6205]
            %6443 = vst [vmem:[%s6213 + $0x390] sm:%s6205] %v6442
            %v6444 = vld [vmem:[%s6212 + $0x398] sm:%s6205]
            %6445 = vst [vmem:[%s6213 + $0x398] sm:%s6205] %v6444
            %v6446 = vld [vmem:[%s6212 + $0x3a0] sm:%s6205]
            %6447 = vst [vmem:[%s6213 + $0x3a0] sm:%s6205] %v6446
            %v6448 = vld [vmem:[%s6212 + $0x3a8] sm:%s6205]
            %6449 = vst [vmem:[%s6213 + $0x3a8] sm:%s6205] %v6448
            %v6450 = vld [vmem:[%s6212 + $0x3b0] sm:%s6205]
            %6451 = vst [vmem:[%s6213 + $0x3b0] sm:%s6205] %v6450
            %v6452 = vld [vmem:[%s6212 + $0x3b8] sm:%s6205]
            %6453 = vst [vmem:[%s6213 + $0x3b8] sm:%s6205] %v6452
            %v6454 = vld [vmem:[%s6212 + $0x3c0] sm:%s6205]
            %6455 = vst [vmem:[%s6213 + $0x3c0] sm:%s6205] %v6454
            %v6456 = vld [vmem:[%s6212 + $0x3c8] sm:%s6205]
            %6457 = vst [vmem:[%s6213 + $0x3c8] sm:%s6205] %v6456
            %v6458 = vld [vmem:[%s6212 + $0x3d0] sm:%s6205]
            %6459 = vst [vmem:[%s6213 + $0x3d0] sm:%s6205] %v6458
            %v6460 = vld [vmem:[%s6212 + $0x3d8] sm:%s6205]
            %6461 = vst [vmem:[%s6213 + $0x3d8] sm:%s6205] %v6460
            %v6462 = vld [vmem:[%s6212 + $0x3e0] sm:%s6205]
            %6463 = vst [vmem:[%s6213 + $0x3e0] sm:%s6205] %v6462
          $region82: #{tpu_custom_call.1} parent=76 // loop_footer
            %s6211 = sadd.s32 1, %s6207
          $region83: #{tpu_custom_call.1} parent=76 // loop_footer_branch
            %6206 = sbr.rel target = $region79
          $region84: #{tpu_custom_call.1} parent=76 // loop_exit
            _
        $region77: #{tpu_custom_call.1} parent=68 // pred_fallthru
          _
      $region69: #{tpu_custom_call.1} parent=64 // pred_fallthru
        _
      %6726 = vnop
    $region65: #{tpu_custom_call.1} parent=1 // pred_fallthru
      _
    // Predicated region
    $region100: #{tpu_custom_call.1} parent=1 // pred_check
      _
    $region101: #{tpu_custom_call.1} parent=1 // pred_check_branch
      %6728 = sbr.rel (0) target = $region103
    $region102: #{tpu_custom_call.1} parent=1 // pred_region
      _
    $region103: #{tpu_custom_call.1} parent=1 // pred_fallthru
      _

</llo_original>
